<compile_context>
chip_gen: v7x
topology: tpu7x:2x2x1
jax: 0.10.0
libtpu: 0.0.40
codegen_flags: <defaults>
</compile_context>

<pallas_src>
import functools

import jax
import jax.numpy as jnp
import numpy as np
from jax.experimental import pallas as pl
from jax.experimental.pallas import tpu as pltpu


# ----------------------------------------------------------------------------
# Fused multi-layer DCGRU kernel: single invocation, layers + time inside.
# ----------------------------------------------------------------------------
def dcgru_fused_kernel(*refs, L, K, T, BN, hidden_dims, write_all, compute_dtype):
    f32 = jnp.float32
    cdt = compute_dtype

    P_ref = refs[0]                         # (K, BN, BN)   block-diag supports
    x_ref = refs[1]                         # (T*BN, Cin0)  t-major rows
    w_refs = refs[2:2 + 5 * L]              # 5 weight tensors per layer
    n_out = L if write_all else 1
    out_refs = refs[2 + 5 * L:2 + 5 * L + n_out]
    seq_refs = refs[2 + 5 * L + n_out:]     # VMEM seq scratch, layers 0..L-2

    P_all = P_ref[...]                      # (K, BN, BN) in compute dtype
    Pk = [P_all[k] for k in range(K)]

    X = x_ref[...]                          # current layer's input sequence (cdt)

    for l in range(L):
        H = hidden_dims[l]
        KH = K * H

        Wx_all = w_refs[5 * l + 0][...]     # (Cin_l, 3KH)  cols: [zr_0|..|zr_{K-1}|c_0|..|c_{K-1}]
        Wh_zr = w_refs[5 * l + 1][...]      # (H,     2KH)  cols: per-k [z_k|r_k]
        Wh_c = w_refs[5 * l + 2][...]       # (H,      KH)  cols: per-k [c_k]
        b_zr = jnp.broadcast_to(w_refs[5 * l + 3][...], (BN, 2 * H)).astype(f32)
        b_c = jnp.broadcast_to(w_refs[5 * l + 4][...], (BN, H)).astype(f32)

        # x-path channel contraction for the WHOLE sequence: one big matmul,
        # hoisted out of the recurrent loop.
        A = jnp.dot(X, Wx_all, preferred_element_type=f32)   # (T*BN, 3KH) f32

        is_last = (l == L - 1)
        if is_last:
            dst = out_refs[L - 1] if write_all else out_refs[0]
        else:
            dst = seq_refs[l]

        h = jnp.zeros((BN, H), f32)
        for t in range(T):                   # static unroll: T is small
            r0 = t * BN
            a_zr = A[r0:r0 + BN, :2 * KH]    # (BN, 2KH) static slice
            a_c = A[r0:r0 + BN, 2 * KH:]     # (BN,  KH)

            # ---- update / reset gates -------------------------------------
            Uzr = a_zr + jnp.dot(h.astype(cdt), Wh_zr,
                                 preferred_element_type=f32)        # (BN, 2KH)
            zr_acc = b_zr                                           # start with bias
            for k in range(K):
                zr_acc = zr_acc + jnp.dot(
                    Pk[k], Uzr[:, 2 * H * k:2 * H * (k + 1)].astype(cdt),
                    preferred_element_type=f32)                     # (BN, 2H)
            zr = jax.nn.sigmoid(zr_acc)
            z = zr[:, :H]                    # update gate
            r = zr[:, H:]                    # reset gate

            # ---- candidate --------------------------------------------------
            Uc = a_c + jnp.dot((r * h).astype(cdt), Wh_c,
                               preferred_element_type=f32)          # (BN, KH)
            c_acc = b_c
            for k in range(K):
                c_acc = c_acc + jnp.dot(
                    Pk[k], Uc[:, H * k:H * (k + 1)].astype(cdt),
                    preferred_element_type=f32)                     # (BN, H)
            cand = jnp.tanh(c_acc)

            h = h + z * (cand - h)           # (1-z)*h + z*cand
            dst[r0:r0 + BN, :] = h

        if write_all and not is_last:
            out_refs[l][...] = dst[...]      # bulk copy scratch -> HBM output

        if not is_last:
            X = dst[...].astype(cdt)         # full seq feeds next layer


# ----------------------------------------------------------------------------
# Host-side weight/support re-packing + wrapper
# ----------------------------------------------------------------------------
def _block_diag_supports(P, B):
    """(K, N, N) -> (K, B*N, B*N) block-diagonal (row index = b*N + n)."""
    K, N, _ = P.shape
    eye_b = jnp.eye(B, dtype=P.dtype)
    return jnp.einsum("ab,kij->kaibj", eye_b, P).reshape(K, B * N, B * N)


def _prep_layer(p, Cin, H, K, cdt):
    """Re-pack PyTorch-layout GCN weights.

    Returns [Wx_all (Cin,3KH), Wh_zr (H,2KH), Wh_c (H,KH), b_zr (1,2H), b_c (1,H)]
    with z/r columns adjacent per diffusion order k.
    """
    Wg, bg, Wc, bc = p["Wg"], p["bg"], p["Wc"], p["bc"]
    Wg_r = Wg.reshape(K, Cin + H, 2 * H)                       # per-k row blocks
    Wx_zr = jnp.transpose(Wg_r[:, :Cin, :], (1, 0, 2)).reshape(Cin, K * 2 * H)
    Wh_zr = jnp.transpose(Wg_r[:, Cin:, :], (1, 0, 2)).reshape(H, K * 2 * H)
    Wc_r = Wc.reshape(K, Cin + H, H)
    Wx_c = jnp.transpose(Wc_r[:, :Cin, :], (1, 0, 2)).reshape(Cin, K * H)
    Wh_c = jnp.transpose(Wc_r[:, Cin:, :], (1, 0, 2)).reshape(H, K * H)

    Wx_all = jnp.concatenate([Wx_zr, Wx_c], axis=1)            # (Cin, 3*K*H)
    return [Wx_all.astype(cdt), Wh_zr.astype(cdt), Wh_c.astype(cdt),
            bg.astype(jnp.float32), bc.astype(jnp.float32)]


def dcgru_encoder_pallas(P, x_seq, params, hidden_dims, return_all_layers=False,
                         compute_dtype=jnp.float32):
    """
    P:      (K, N, N)
    x_seq:  (B, T, N, C)   -- PyTorch convention
    params: list per layer: {'Wg','bg','Wc','bc'} in PyTorch GCN layout
    returns (out_seq_lst, h_t_lst) matching DCGRU_Encoder.forward
    """
    B, T, N, Cin = x_seq.shape
    K = P.shape[0]
    L = len(params)
    BN = B * N
    cdt = compute_dtype

    Pbd = _block_diag_supports(P, B).astype(cdt)                        # (K, BN, BN)
    x_kern = jnp.transpose(x_seq, (1, 0, 2, 3)).reshape(T * BN, Cin).astype(cdt)

    in_arrays = [Pbd, x_kern]
    cin_l = Cin
    for l in range(L):
        in_arrays += _prep_layer(params[l], cin_l, hidden_dims[l], K, cdt)
        cin_l = hidden_dims[l]

    write_all = bool(return_all_layers)
    out_layers = list(range(L)) if write_all else [L - 1]
    out_shapes = tuple(jax.ShapeDtypeStruct((T * BN, hidden_dims[l]), jnp.float32)
                       for l in out_layers)

    def full_spec(shape):
        nd = len(shape)
        return pl.BlockSpec(shape, lambda i, nd=nd: (0,) * nd)

    in_specs = [full_spec(a.shape) for a in in_arrays]
    out_specs = tuple(full_spec(s.shape) for s in out_shapes)
    # Intermediate layer sequences stay in VMEM scratch (layers 0..L-2).
    scratch = [pltpu.VMEM((T * BN, hidden_dims[l]), jnp.float32)
               for l in range(L - 1)]

    kernel = functools.partial(
        dcgru_fused_kernel, L=L, K=K, T=T, BN=BN,
        hidden_dims=tuple(hidden_dims), write_all=write_all, compute_dtype=cdt)

    outs = pl.pallas_call(
        kernel,
        out_shape=out_shapes,
        grid=(1,),
        in_specs=in_specs,
        out_specs=out_specs,
        scratch_shapes=scratch,
        compiler_params=pltpu.CompilerParams(
            dimension_semantics=("arbitrary",)),
    )(*in_arrays)

    if not isinstance(outs, (tuple, list)):
        outs = (outs,)

    out_seq_lst, h_t_lst = [], []
    for s, l in zip(outs, out_layers):
        H = hidden_dims[l]
        o = s.reshape(T, B, N, H).transpose(1, 0, 2, 3)      # (B, T, N, H)
        out_seq_lst.append(o)
        h_t_lst.append(o[:, -1])                             # (B, N, H)
    return out_seq_lst, h_t_lst


# ----------------------------------------------------------------------------
# Pure-JAX reference (mirrors the PyTorch module exactly)
# ----------------------------------------------------------------------------
def _gcn_ref(G, x, W, b):
    K = G.shape[0]
    sup = jnp.concatenate(
        [jnp.einsum("ij,bjp->bip", G[k], x) for k in range(K)], axis=-1)
    return jnp.einsum("bip,pq->biq", sup, W) + b[0]


def _cell_ref(P, x_t, h, p, H):
    xh = jnp.concatenate([x_t, h], axis=-1)
    g = _gcn_ref(P, xh, p["Wg"], p["bg"])
    z = jax.nn.sigmoid(g[..., :H])
    r = jax.nn.sigmoid(g[..., H:])
    cand = jnp.tanh(_gcn_ref(P, jnp.concatenate([x_t, r * h], axis=-1),
                             p["Wc"], p["bc"]))
    return (1.0 - z) * h + z * cand


def dcgru_encoder_ref(P, x_seq, params, hidden_dims, return_all_layers=False):
    B, T, N, _ = x_seq.shape
    in_seq = x_seq
    out_seq_lst, h_t_lst = [], []
    for l, p in enumerate(params):
        H = hidden_dims[l]
        h = jnp.zeros((B, N, H), jnp.float32)
        outs = []
        for t in range(T):
            h = _cell_ref(P, in_seq[:, t], h, p, H)
            outs.append(h)
        out = jnp.stack(outs, axis=1)
        in_seq = out
        out_seq_lst.append(out)
        h_t_lst.append(h)
    if not return_all_layers:
        out_seq_lst = out_seq_lst[-1:]
        h_t_lst = h_t_lst[-1:]
    return out_seq_lst, h_t_lst


# ----------------------------------------------------------------------------
# Deterministic parameter init (xavier_normal for W, zeros for b)
# ----------------------------------------------------------------------------
def init_params(key, num_layers, input_dim, hidden_dims, K):
    params = []
    for l in range(num_layers):
        cin = input_dim if l == 0 else hidden_dims[l - 1]
        H = hidden_dims[l]
        d_in = K * (cin + H)
        key, kg, kc = jax.random.split(key, 3)
        std_g = float(np.sqrt(2.0 / (d_in + 2 * H)))
        std_c = float(np.sqrt(2.0 / (d_in + H)))
        params.append({
            "Wg": jax.random.normal(kg, (d_in, 2 * H), jnp.float32) * std_g,
            "bg": jnp.zeros((1, 2 * H), jnp.float32),
            "Wc": jax.random.normal(kc, (d_in, H), jnp.float32) * std_c,
            "bc": jnp.zeros((1, H), jnp.float32),
        })
    return params


if __name__ == "__main__":
    # Small shapes consistent with DCGRU_Encoder.forward
    B, T, N, Cin = 2, 8, 16, 4
    H, K, L = 32, 2, 2
    hidden_dims = [H] * L

    key = jax.random.PRNGKey(0)
    k_p, k_x, k_w = jax.random.split(key, 3)

    # K diffusion support matrices (row-normalized so the recurrence is stable)
    P = jax.random.uniform(k_p, (K, N, N), jnp.float32)
    P = P / jnp.sum(P, axis=-1, keepdims=True)

    x_seq = jax.random.normal(k_x, (B, T, N, Cin), jnp.float32)
    params = init_params(k_w, L, Cin, hidden_dims, K)

    # Pure-JAX reference of the PyTorch forward
    ref_out_lst, ref_h_lst = dcgru_encoder_ref(P, x_seq, params, hidden_dims)

    # --- f32 path (bit-tight check, last layer only) --------------------------
    out_lst, h_lst = dcgru_encoder_pallas(P, x_seq, params, hidden_dims)
    out = jax.block_until_ready(out_lst[0])
    h_T = jax.block_until_ready(h_lst[0])
    np.testing.assert_allclose(np.asarray(out), np.asarray(ref_out_lst[0]),
                               rtol=2e-4, atol=2e-4)
    np.testing.assert_allclose(np.asarray(h_T), np.asarray(ref_h_lst[0]),
                               rtol=2e-4, atol=2e-4)
    assert out.shape == (B, T, N, H) and h_T.shape == (B, N, H)

    # --- return_all_layers path (exercises the multi-output write path) -------
    ref_all_out, ref_all_h = dcgru_encoder_ref(P, x_seq, params, hidden_dims,
                                               return_all_layers=True)
    all_out, all_h = dcgru_encoder_pallas(P, x_seq, params, hidden_dims,
                                          return_all_layers=True)
    for l in range(L):
        np.testing.assert_allclose(np.asarray(jax.block_until_ready(all_out[l])),
                                   np.asarray(ref_all_out[l]),
                                   rtol=2e-4, atol=2e-4)
        np.testing.assert_allclose(np.asarray(all_h[l]), np.asarray(ref_all_h[l]),
                                   rtol=2e-4, atol=2e-4)

    # --- bf16-MXU-operand path (recommended on v6e/v7x; f32 accumulation) -----
    out_bf_lst, _ = dcgru_encoder_pallas(P, x_seq, params, hidden_dims,
                                         compute_dtype=jnp.bfloat16)
    out_bf = jax.block_until_ready(out_bf_lst[0])
    np.testing.assert_allclose(np.asarray(out_bf), np.asarray(ref_out_lst[0]),
                               rtol=1.5e-1, atol=1.5e-1)

    print("KERNEL_OK")
</pallas_src>

<mosaic_0001>
module attributes {stable_mosaic.version = 11 : i64} {
  func.func @dcgru_fused_kernel(%arg0: i32, %arg1: memref<2x32x32xf32, #tpu.memory_space<vmem>>, %arg2: memref<256x4xf32, #tpu.memory_space<vmem>>, %arg3: memref<4x192xf32, #tpu.memory_space<vmem>>, %arg4: memref<32x128xf32, #tpu.memory_space<vmem>>, %arg5: memref<32x64xf32, #tpu.memory_space<vmem>>, %arg6: memref<1x64xf32, #tpu.memory_space<vmem>>, %arg7: memref<1x32xf32, #tpu.memory_space<vmem>>, %arg8: memref<32x192xf32, #tpu.memory_space<vmem>>, %arg9: memref<32x128xf32, #tpu.memory_space<vmem>>, %arg10: memref<32x64xf32, #tpu.memory_space<vmem>>, %arg11: memref<1x64xf32, #tpu.memory_space<vmem>>, %arg12: memref<1x32xf32, #tpu.memory_space<vmem>>, %arg13: memref<256x32xf32, #tpu.memory_space<vmem>>, %arg14: memref<256x32xf32, #tpu.memory_space<vmem>>) attributes {dimension_semantics = [#tpu.dimension_semantics<arbitrary>], iteration_bounds = array<i64: 1>, scalar_prefetch = 0 : i64, scratch_operands = 1 : i64, tpu.core_type = #tpu.core_type<tc>, window_params = [{pipeline_mode = #tpu.pipeline_mode<synchronous>, transform_indices = @transform_0, window_bounds = array<i64: 2, 32, 32>}, {pipeline_mode = #tpu.pipeline_mode<synchronous>, transform_indices = @transform_1, window_bounds = array<i64: 256, 4>}, {pipeline_mode = #tpu.pipeline_mode<synchronous>, transform_indices = @transform_2, window_bounds = array<i64: 4, 192>}, {pipeline_mode = #tpu.pipeline_mode<synchronous>, transform_indices = @transform_3, window_bounds = array<i64: 32, 128>}, {pipeline_mode = #tpu.pipeline_mode<synchronous>, transform_indices = @transform_4, window_bounds = array<i64: 32, 64>}, {pipeline_mode = #tpu.pipeline_mode<synchronous>, transform_indices = @transform_5, window_bounds = array<i64: 1, 64>}, {pipeline_mode = #tpu.pipeline_mode<synchronous>, transform_indices = @transform_6, window_bounds = array<i64: 1, 32>}, {pipeline_mode = #tpu.pipeline_mode<synchronous>, transform_indices = @transform_7, window_bounds = array<i64: 32, 192>}, {pipeline_mode = #tpu.pipeline_mode<synchronous>, transform_indices = @transform_8, window_bounds = array<i64: 32, 128>}, {pipeline_mode = #tpu.pipeline_mode<synchronous>, transform_indices = @transform_9, window_bounds = array<i64: 32, 64>}, {pipeline_mode = #tpu.pipeline_mode<synchronous>, transform_indices = @transform_10, window_bounds = array<i64: 1, 64>}, {pipeline_mode = #tpu.pipeline_mode<synchronous>, transform_indices = @transform_11, window_bounds = array<i64: 1, 32>}, {pipeline_mode = #tpu.pipeline_mode<synchronous>, transform_indices = @transform_12, window_bounds = array<i64: 256, 32>}]} {
    %c0 = arith.constant 0 : index
    %c0_0 = arith.constant 0 : index
    %c0_1 = arith.constant 0 : index
    %0 = vector.load %arg1[%c0, %c0_0, %c0_1] : memref<2x32x32xf32, #tpu.memory_space<vmem>>, vector<2x32x32xf32>
    %1 = vector.extract_strided_slice %0 {offsets = [0, 0, 0], sizes = [1, 32, 32], strides = [1, 1, 1]} : vector<2x32x32xf32> to vector<1x32x32xf32>
    %2 = vector.shape_cast %1 : vector<1x32x32xf32> to vector<32x32xf32>
    %3 = vector.extract_strided_slice %0 {offsets = [1, 0, 0], sizes = [1, 32, 32], strides = [1, 1, 1]} : vector<2x32x32xf32> to vector<1x32x32xf32>
    %4 = vector.shape_cast %3 : vector<1x32x32xf32> to vector<32x32xf32>
    %c0_2 = arith.constant 0 : index
    %c0_3 = arith.constant 0 : index
    %5 = vector.load %arg2[%c0_2, %c0_3] : memref<256x4xf32, #tpu.memory_space<vmem>>, vector<256x4xf32>
    %c0_4 = arith.constant 0 : index
    %c0_5 = arith.constant 0 : index
    %6 = vector.load %arg3[%c0_4, %c0_5] : memref<4x192xf32, #tpu.memory_space<vmem>>, vector<4x192xf32>
    %c0_6 = arith.constant 0 : index
    %c0_7 = arith.constant 0 : index
    %7 = vector.load %arg4[%c0_6, %c0_7] : memref<32x128xf32, #tpu.memory_space<vmem>>, vector<32x128xf32>
    %c0_8 = arith.constant 0 : index
    %c0_9 = arith.constant 0 : index
    %8 = vector.load %arg5[%c0_8, %c0_9] : memref<32x64xf32, #tpu.memory_space<vmem>>, vector<32x64xf32>
    %c0_10 = arith.constant 0 : index
    %c0_11 = arith.constant 0 : index
    %9 = vector.load %arg6[%c0_10, %c0_11] : memref<1x64xf32, #tpu.memory_space<vmem>>, vector<1x64xf32>
    %10 = vector.shape_cast %9 : vector<1x64xf32> to vector<1x64xf32>
    %11 = vector.broadcast %10 : vector<1x64xf32> to vector<32x64xf32>
    %c0_12 = arith.constant 0 : index
    %c0_13 = arith.constant 0 : index
    %12 = vector.load %arg7[%c0_12, %c0_13] : memref<1x32xf32, #tpu.memory_space<vmem>>, vector<1x32xf32>
    %13 = vector.shape_cast %12 : vector<1x32xf32> to vector<1x32xf32>
    %14 = vector.broadcast %13 : vector<1x32xf32> to vector<32x32xf32>
    %cst = arith.constant dense<0.000000e+00> : vector<256x192xf32>
    %15 = tpu.matmul %5, %6, %cst {dimension_numbers = #tpu.dot_dimension_numbers<[1], [0], [0], [1], [0, 0, 1, 1], [], []>} : vector<256x4xf32>, vector<4x192xf32>, vector<256x192xf32> -> vector<256x192xf32>
    %cst_14 = arith.constant 0.000000e+00 : f32
    %16 = vector.broadcast %cst_14 : f32 to vector<32x32xf32>
    %17 = vector.extract_strided_slice %15 {offsets = [0, 0], sizes = [32, 128], strides = [1, 1]} : vector<256x192xf32> to vector<32x128xf32>
    %18 = vector.extract_strided_slice %15 {offsets = [0, 128], sizes = [32, 64], strides = [1, 1]} : vector<256x192xf32> to vector<32x64xf32>
    %cst_15 = arith.constant dense<0.000000e+00> : vector<32x128xf32>
    %19 = tpu.matmul %16, %7, %cst_15 {dimension_numbers = #tpu.dot_dimension_numbers<[1], [0], [0], [1], [0, 0, 1, 1], [], []>} : vector<32x32xf32>, vector<32x128xf32>, vector<32x128xf32> -> vector<32x128xf32>
    %20 = arith.addf %17, %19 : vector<32x128xf32>
    %21 = vector.extract_strided_slice %20 {offsets = [0, 0], sizes = [32, 64], strides = [1, 1]} : vector<32x128xf32> to vector<32x64xf32>
    %cst_16 = arith.constant dense<0.000000e+00> : vector<32x64xf32>
    %22 = tpu.matmul %2, %21, %cst_16 {dimension_numbers = #tpu.dot_dimension_numbers<[1], [0], [0], [1], [0, 0, 1, 1], [], []>} : vector<32x32xf32>, vector<32x64xf32>, vector<32x64xf32> -> vector<32x64xf32>
    %23 = arith.addf %11, %22 : vector<32x64xf32>
    %24 = vector.extract_strided_slice %20 {offsets = [0, 64], sizes = [32, 64], strides = [1, 1]} : vector<32x128xf32> to vector<32x64xf32>
    %cst_17 = arith.constant dense<0.000000e+00> : vector<32x64xf32>
    %25 = tpu.matmul %4, %24, %cst_17 {dimension_numbers = #tpu.dot_dimension_numbers<[1], [0], [0], [1], [0, 0, 1, 1], [], []>} : vector<32x32xf32>, vector<32x64xf32>, vector<32x64xf32> -> vector<32x64xf32>
    %26 = arith.addf %23, %25 : vector<32x64xf32>
    %27 = arith.negf %26 : vector<32x64xf32>
    %28 = math.exp %27 : vector<32x64xf32>
    %cst_18 = arith.constant 1.000000e+00 : f32
    %29 = vector.broadcast %cst_18 : f32 to vector<32x64xf32>
    %30 = arith.addf %29, %28 : vector<32x64xf32>
    %31 = arith.divf %29, %30 : vector<32x64xf32>
    %32 = vector.extract_strided_slice %31 {offsets = [0, 0], sizes = [32, 32], strides = [1, 1]} : vector<32x64xf32> to vector<32x32xf32>
    %33 = vector.extract_strided_slice %31 {offsets = [0, 32], sizes = [32, 32], strides = [1, 1]} : vector<32x64xf32> to vector<32x32xf32>
    %34 = arith.mulf %33, %16 : vector<32x32xf32>
    %cst_19 = arith.constant dense<0.000000e+00> : vector<32x64xf32>
    %35 = tpu.matmul %34, %8, %cst_19 {dimension_numbers = #tpu.dot_dimension_numbers<[1], [0], [0], [1], [0, 0, 1, 1], [], []>} : vector<32x32xf32>, vector<32x64xf32>, vector<32x64xf32> -> vector<32x64xf32>
    %36 = arith.addf %18, %35 : vector<32x64xf32>
    %37 = vector.extract_strided_slice %36 {offsets = [0, 0], sizes = [32, 32], strides = [1, 1]} : vector<32x64xf32> to vector<32x32xf32>
    %cst_20 = arith.constant dense<0.000000e+00> : vector<32x32xf32>
    %38 = tpu.matmul %2, %37, %cst_20 {dimension_numbers = #tpu.dot_dimension_numbers<[1], [0], [0], [1], [0, 0, 1, 1], [], []>} : vector<32x32xf32>, vector<32x32xf32>, vector<32x32xf32> -> vector<32x32xf32>
    %39 = arith.addf %14, %38 : vector<32x32xf32>
    %40 = vector.extract_strided_slice %36 {offsets = [0, 32], sizes = [32, 32], strides = [1, 1]} : vector<32x64xf32> to vector<32x32xf32>
    %cst_21 = arith.constant dense<0.000000e+00> : vector<32x32xf32>
    %41 = tpu.matmul %4, %40, %cst_21 {dimension_numbers = #tpu.dot_dimension_numbers<[1], [0], [0], [1], [0, 0, 1, 1], [], []>} : vector<32x32xf32>, vector<32x32xf32>, vector<32x32xf32> -> vector<32x32xf32>
    %42 = arith.addf %39, %41 : vector<32x32xf32>
    %43 = math.tanh %42 : vector<32x32xf32>
    %44 = arith.subf %43, %16 : vector<32x32xf32>
    %45 = arith.mulf %32, %44 : vector<32x32xf32>
    %46 = arith.addf %16, %45 : vector<32x32xf32>
    %c0_22 = arith.constant 0 : index
    %c0_23 = arith.constant 0 : index
    %47 = vector.load %arg14[%c0_22, %c0_23] : memref<256x32xf32, #tpu.memory_space<vmem>>, vector<32x32xf32>
    tpu.vector_store %arg14[%c0_22, %c0_23], %46 {strides = array<i32>} : memref<256x32xf32, #tpu.memory_space<vmem>>, vector<32x32xf32>,
    %48 = vector.extract_strided_slice %15 {offsets = [32, 0], sizes = [32, 128], strides = [1, 1]} : vector<256x192xf32> to vector<32x128xf32>
    %49 = vector.extract_strided_slice %15 {offsets = [32, 128], sizes = [32, 64], strides = [1, 1]} : vector<256x192xf32> to vector<32x64xf32>
    %cst_24 = arith.constant dense<0.000000e+00> : vector<32x128xf32>
    %50 = tpu.matmul %46, %7, %cst_24 {dimension_numbers = #tpu.dot_dimension_numbers<[1], [0], [0], [1], [0, 0, 1, 1], [], []>} : vector<32x32xf32>, vector<32x128xf32>, vector<32x128xf32> -> vector<32x128xf32>
    %51 = arith.addf %48, %50 : vector<32x128xf32>
    %52 = vector.extract_strided_slice %51 {offsets = [0, 0], sizes = [32, 64], strides = [1, 1]} : vector<32x128xf32> to vector<32x64xf32>
    %cst_25 = arith.constant dense<0.000000e+00> : vector<32x64xf32>
    %53 = tpu.matmul %2, %52, %cst_25 {dimension_numbers = #tpu.dot_dimension_numbers<[1], [0], [0], [1], [0, 0, 1, 1], [], []>} : vector<32x32xf32>, vector<32x64xf32>, vector<32x64xf32> -> vector<32x64xf32>
    %54 = arith.addf %11, %53 : vector<32x64xf32>
    %55 = vector.extract_strided_slice %51 {offsets = [0, 64], sizes = [32, 64], strides = [1, 1]} : vector<32x128xf32> to vector<32x64xf32>
    %cst_26 = arith.constant dense<0.000000e+00> : vector<32x64xf32>
    %56 = tpu.matmul %4, %55, %cst_26 {dimension_numbers = #tpu.dot_dimension_numbers<[1], [0], [0], [1], [0, 0, 1, 1], [], []>} : vector<32x32xf32>, vector<32x64xf32>, vector<32x64xf32> -> vector<32x64xf32>
    %57 = arith.addf %54, %56 : vector<32x64xf32>
    %58 = arith.negf %57 : vector<32x64xf32>
    %59 = math.exp %58 : vector<32x64xf32>
    %cst_27 = arith.constant 1.000000e+00 : f32
    %60 = vector.broadcast %cst_27 : f32 to vector<32x64xf32>
    %61 = arith.addf %60, %59 : vector<32x64xf32>
    %62 = arith.divf %60, %61 : vector<32x64xf32>
    %63 = vector.extract_strided_slice %62 {offsets = [0, 0], sizes = [32, 32], strides = [1, 1]} : vector<32x64xf32> to vector<32x32xf32>
    %64 = vector.extract_strided_slice %62 {offsets = [0, 32], sizes = [32, 32], strides = [1, 1]} : vector<32x64xf32> to vector<32x32xf32>
    %65 = arith.mulf %64, %46 : vector<32x32xf32>
    %cst_28 = arith.constant dense<0.000000e+00> : vector<32x64xf32>
    %66 = tpu.matmul %65, %8, %cst_28 {dimension_numbers = #tpu.dot_dimension_numbers<[1], [0], [0], [1], [0, 0, 1, 1], [], []>} : vector<32x32xf32>, vector<32x64xf32>, vector<32x64xf32> -> vector<32x64xf32>
    %67 = arith.addf %49, %66 : vector<32x64xf32>
    %68 = vector.extract_strided_slice %67 {offsets = [0, 0], sizes = [32, 32], strides = [1, 1]} : vector<32x64xf32> to vector<32x32xf32>
    %cst_29 = arith.constant dense<0.000000e+00> : vector<32x32xf32>
    %69 = tpu.matmul %2, %68, %cst_29 {dimension_numbers = #tpu.dot_dimension_numbers<[1], [0], [0], [1], [0, 0, 1, 1], [], []>} : vector<32x32xf32>, vector<32x32xf32>, vector<32x32xf32> -> vector<32x32xf32>
    %70 = arith.addf %14, %69 : vector<32x32xf32>
    %71 = vector.extract_strided_slice %67 {offsets = [0, 32], sizes = [32, 32], strides = [1, 1]} : vector<32x64xf32> to vector<32x32xf32>
    %cst_30 = arith.constant dense<0.000000e+00> : vector<32x32xf32>
    %72 = tpu.matmul %4, %71, %cst_30 {dimension_numbers = #tpu.dot_dimension_numbers<[1], [0], [0], [1], [0, 0, 1, 1], [], []>} : vector<32x32xf32>, vector<32x32xf32>, vector<32x32xf32> -> vector<32x32xf32>
    %73 = arith.addf %70, %72 : vector<32x32xf32>
    %74 = math.tanh %73 : vector<32x32xf32>
    %75 = arith.subf %74, %46 : vector<32x32xf32>
    %76 = arith.mulf %63, %75 : vector<32x32xf32>
    %77 = arith.addf %46, %76 : vector<32x32xf32>
    %c32 = arith.constant 32 : index
    %c0_31 = arith.constant 0 : index
    %78 = vector.load %arg14[%c32, %c0_31] : memref<256x32xf32, #tpu.memory_space<vmem>>, vector<32x32xf32>
    tpu.vector_store %arg14[%c32, %c0_31], %77 {strides = array<i32>} : memref<256x32xf32, #tpu.memory_space<vmem>>, vector<32x32xf32>,
    %79 = vector.extract_strided_slice %15 {offsets = [64, 0], sizes = [32, 128], strides = [1, 1]} : vector<256x192xf32> to vector<32x128xf32>
    %80 = vector.extract_strided_slice %15 {offsets = [64, 128], sizes = [32, 64], strides = [1, 1]} : vector<256x192xf32> to vector<32x64xf32>
    %cst_32 = arith.constant dense<0.000000e+00> : vector<32x128xf32>
    %81 = tpu.matmul %77, %7, %cst_32 {dimension_numbers = #tpu.dot_dimension_numbers<[1], [0], [0], [1], [0, 0, 1, 1], [], []>} : vector<32x32xf32>, vector<32x128xf32>, vector<32x128xf32> -> vector<32x128xf32>
    %82 = arith.addf %79, %81 : vector<32x128xf32>
    %83 = vector.extract_strided_slice %82 {offsets = [0, 0], sizes = [32, 64], strides = [1, 1]} : vector<32x128xf32> to vector<32x64xf32>
    %cst_33 = arith.constant dense<0.000000e+00> : vector<32x64xf32>
    %84 = tpu.matmul %2, %83, %cst_33 {dimension_numbers = #tpu.dot_dimension_numbers<[1], [0], [0], [1], [0, 0, 1, 1], [], []>} : vector<32x32xf32>, vector<32x64xf32>, vector<32x64xf32> -> vector<32x64xf32>
    %85 = arith.addf %11, %84 : vector<32x64xf32>
    %86 = vector.extract_strided_slice %82 {offsets = [0, 64], sizes = [32, 64], strides = [1, 1]} : vector<32x128xf32> to vector<32x64xf32>
    %cst_34 = arith.constant dense<0.000000e+00> : vector<32x64xf32>
    %87 = tpu.matmul %4, %86, %cst_34 {dimension_numbers = #tpu.dot_dimension_numbers<[1], [0], [0], [1], [0, 0, 1, 1], [], []>} : vector<32x32xf32>, vector<32x64xf32>, vector<32x64xf32> -> vector<32x64xf32>
    %88 = arith.addf %85, %87 : vector<32x64xf32>
    %89 = arith.negf %88 : vector<32x64xf32>
    %90 = math.exp %89 : vector<32x64xf32>
    %cst_35 = arith.constant 1.000000e+00 : f32
    %91 = vector.broadcast %cst_35 : f32 to vector<32x64xf32>
    %92 = arith.addf %91, %90 : vector<32x64xf32>
    %93 = arith.divf %91, %92 : vector<32x64xf32>
    %94 = vector.extract_strided_slice %93 {offsets = [0, 0], sizes = [32, 32], strides = [1, 1]} : vector<32x64xf32> to vector<32x32xf32>
    %95 = vector.extract_strided_slice %93 {offsets = [0, 32], sizes = [32, 32], strides = [1, 1]} : vector<32x64xf32> to vector<32x32xf32>
    %96 = arith.mulf %95, %77 : vector<32x32xf32>
    %cst_36 = arith.constant dense<0.000000e+00> : vector<32x64xf32>
    %97 = tpu.matmul %96, %8, %cst_36 {dimension_numbers = #tpu.dot_dimension_numbers<[1], [0], [0], [1], [0, 0, 1, 1], [], []>} : vector<32x32xf32>, vector<32x64xf32>, vector<32x64xf32> -> vector<32x64xf32>
    %98 = arith.addf %80, %97 : vector<32x64xf32>
    %99 = vector.extract_strided_slice %98 {offsets = [0, 0], sizes = [32, 32], strides = [1, 1]} : vector<32x64xf32> to vector<32x32xf32>
    %cst_37 = arith.constant dense<0.000000e+00> : vector<32x32xf32>
    %100 = tpu.matmul %2, %99, %cst_37 {dimension_numbers = #tpu.dot_dimension_numbers<[1], [0], [0], [1], [0, 0, 1, 1], [], []>} : vector<32x32xf32>, vector<32x32xf32>, vector<32x32xf32> -> vector<32x32xf32>
    %101 = arith.addf %14, %100 : vector<32x32xf32>
    %102 = vector.extract_strided_slice %98 {offsets = [0, 32], sizes = [32, 32], strides = [1, 1]} : vector<32x64xf32> to vector<32x32xf32>
    %cst_38 = arith.constant dense<0.000000e+00> : vector<32x32xf32>
    %103 = tpu.matmul %4, %102, %cst_38 {dimension_numbers = #tpu.dot_dimension_numbers<[1], [0], [0], [1], [0, 0, 1, 1], [], []>} : vector<32x32xf32>, vector<32x32xf32>, vector<32x32xf32> -> vector<32x32xf32>
    %104 = arith.addf %101, %103 : vector<32x32xf32>
    %105 = math.tanh %104 : vector<32x32xf32>
    %106 = arith.subf %105, %77 : vector<32x32xf32>
    %107 = arith.mulf %94, %106 : vector<32x32xf32>
    %108 = arith.addf %77, %107 : vector<32x32xf32>
    %c64 = arith.constant 64 : index
    %c0_39 = arith.constant 0 : index
    %109 = vector.load %arg14[%c64, %c0_39] : memref<256x32xf32, #tpu.memory_space<vmem>>, vector<32x32xf32>
    tpu.vector_store %arg14[%c64, %c0_39], %108 {strides = array<i32>} : memref<256x32xf32, #tpu.memory_space<vmem>>, vector<32x32xf32>,
    %110 = vector.extract_strided_slice %15 {offsets = [96, 0], sizes = [32, 128], strides = [1, 1]} : vector<256x192xf32> to vector<32x128xf32>
    %111 = vector.extract_strided_slice %15 {offsets = [96, 128], sizes = [32, 64], strides = [1, 1]} : vector<256x192xf32> to vector<32x64xf32>
    %cst_40 = arith.constant dense<0.000000e+00> : vector<32x128xf32>
    %112 = tpu.matmul %108, %7, %cst_40 {dimension_numbers = #tpu.dot_dimension_numbers<[1], [0], [0], [1], [0, 0, 1, 1], [], []>} : vector<32x32xf32>, vector<32x128xf32>, vector<32x128xf32> -> vector<32x128xf32>
    %113 = arith.addf %110, %112 : vector<32x128xf32>
    %114 = vector.extract_strided_slice %113 {offsets = [0, 0], sizes = [32, 64], strides = [1, 1]} : vector<32x128xf32> to vector<32x64xf32>
    %cst_41 = arith.constant dense<0.000000e+00> : vector<32x64xf32>
    %115 = tpu.matmul %2, %114, %cst_41 {dimension_numbers = #tpu.dot_dimension_numbers<[1], [0], [0], [1], [0, 0, 1, 1], [], []>} : vector<32x32xf32>, vector<32x64xf32>, vector<32x64xf32> -> vector<32x64xf32>
    %116 = arith.addf %11, %115 : vector<32x64xf32>
    %117 = vector.extract_strided_slice %113 {offsets = [0, 64], sizes = [32, 64], strides = [1, 1]} : vector<32x128xf32> to vector<32x64xf32>
    %cst_42 = arith.constant dense<0.000000e+00> : vector<32x64xf32>
    %118 = tpu.matmul %4, %117, %cst_42 {dimension_numbers = #tpu.dot_dimension_numbers<[1], [0], [0], [1], [0, 0, 1, 1], [], []>} : vector<32x32xf32>, vector<32x64xf32>, vector<32x64xf32> -> vector<32x64xf32>
    %119 = arith.addf %116, %118 : vector<32x64xf32>
    %120 = arith.negf %119 : vector<32x64xf32>
    %121 = math.exp %120 : vector<32x64xf32>
    %cst_43 = arith.constant 1.000000e+00 : f32
    %122 = vector.broadcast %cst_43 : f32 to vector<32x64xf32>
    %123 = arith.addf %122, %121 : vector<32x64xf32>
    %124 = arith.divf %122, %123 : vector<32x64xf32>
    %125 = vector.extract_strided_slice %124 {offsets = [0, 0], sizes = [32, 32], strides = [1, 1]} : vector<32x64xf32> to vector<32x32xf32>
    %126 = vector.extract_strided_slice %124 {offsets = [0, 32], sizes = [32, 32], strides = [1, 1]} : vector<32x64xf32> to vector<32x32xf32>
    %127 = arith.mulf %126, %108 : vector<32x32xf32>
    %cst_44 = arith.constant dense<0.000000e+00> : vector<32x64xf32>
    %128 = tpu.matmul %127, %8, %cst_44 {dimension_numbers = #tpu.dot_dimension_numbers<[1], [0], [0], [1], [0, 0, 1, 1], [], []>} : vector<32x32xf32>, vector<32x64xf32>, vector<32x64xf32> -> vector<32x64xf32>
    %129 = arith.addf %111, %128 : vector<32x64xf32>
    %130 = vector.extract_strided_slice %129 {offsets = [0, 0], sizes = [32, 32], strides = [1, 1]} : vector<32x64xf32> to vector<32x32xf32>
    %cst_45 = arith.constant dense<0.000000e+00> : vector<32x32xf32>
    %131 = tpu.matmul %2, %130, %cst_45 {dimension_numbers = #tpu.dot_dimension_numbers<[1], [0], [0], [1], [0, 0, 1, 1], [], []>} : vector<32x32xf32>, vector<32x32xf32>, vector<32x32xf32> -> vector<32x32xf32>
    %132 = arith.addf %14, %131 : vector<32x32xf32>
    %133 = vector.extract_strided_slice %129 {offsets = [0, 32], sizes = [32, 32], strides = [1, 1]} : vector<32x64xf32> to vector<32x32xf32>
    %cst_46 = arith.constant dense<0.000000e+00> : vector<32x32xf32>
    %134 = tpu.matmul %4, %133, %cst_46 {dimension_numbers = #tpu.dot_dimension_numbers<[1], [0], [0], [1], [0, 0, 1, 1], [], []>} : vector<32x32xf32>, vector<32x32xf32>, vector<32x32xf32> -> vector<32x32xf32>
    %135 = arith.addf %132, %134 : vector<32x32xf32>
    %136 = math.tanh %135 : vector<32x32xf32>
    %137 = arith.subf %136, %108 : vector<32x32xf32>
    %138 = arith.mulf %125, %137 : vector<32x32xf32>
    %139 = arith.addf %108, %138 : vector<32x32xf32>
    %c96 = arith.constant 96 : index
    %c0_47 = arith.constant 0 : index
    %140 = vector.load %arg14[%c96, %c0_47] : memref<256x32xf32, #tpu.memory_space<vmem>>, vector<32x32xf32>
    tpu.vector_store %arg14[%c96, %c0_47], %139 {strides = array<i32>} : memref<256x32xf32, #tpu.memory_space<vmem>>, vector<32x32xf32>,
    %141 = vector.extract_strided_slice %15 {offsets = [128, 0], sizes = [32, 128], strides = [1, 1]} : vector<256x192xf32> to vector<32x128xf32>
    %142 = vector.extract_strided_slice %15 {offsets = [128, 128], sizes = [32, 64], strides = [1, 1]} : vector<256x192xf32> to vector<32x64xf32>
    %cst_48 = arith.constant dense<0.000000e+00> : vector<32x128xf32>
    %143 = tpu.matmul %139, %7, %cst_48 {dimension_numbers = #tpu.dot_dimension_numbers<[1], [0], [0], [1], [0, 0, 1, 1], [], []>} : vector<32x32xf32>, vector<32x128xf32>, vector<32x128xf32> -> vector<32x128xf32>
    %144 = arith.addf %141, %143 : vector<32x128xf32>
    %145 = vector.extract_strided_slice %144 {offsets = [0, 0], sizes = [32, 64], strides = [1, 1]} : vector<32x128xf32> to vector<32x64xf32>
    %cst_49 = arith.constant dense<0.000000e+00> : vector<32x64xf32>
    %146 = tpu.matmul %2, %145, %cst_49 {dimension_numbers = #tpu.dot_dimension_numbers<[1], [0], [0], [1], [0, 0, 1, 1], [], []>} : vector<32x32xf32>, vector<32x64xf32>, vector<32x64xf32> -> vector<32x64xf32>
    %147 = arith.addf %11, %146 : vector<32x64xf32>
    %148 = vector.extract_strided_slice %144 {offsets = [0, 64], sizes = [32, 64], strides = [1, 1]} : vector<32x128xf32> to vector<32x64xf32>
    %cst_50 = arith.constant dense<0.000000e+00> : vector<32x64xf32>
    %149 = tpu.matmul %4, %148, %cst_50 {dimension_numbers = #tpu.dot_dimension_numbers<[1], [0], [0], [1], [0, 0, 1, 1], [], []>} : vector<32x32xf32>, vector<32x64xf32>, vector<32x64xf32> -> vector<32x64xf32>
    %150 = arith.addf %147, %149 : vector<32x64xf32>
    %151 = arith.negf %150 : vector<32x64xf32>
    %152 = math.exp %151 : vector<32x64xf32>
    %cst_51 = arith.constant 1.000000e+00 : f32
    %153 = vector.broadcast %cst_51 : f32 to vector<32x64xf32>
    %154 = arith.addf %153, %152 : vector<32x64xf32>
    %155 = arith.divf %153, %154 : vector<32x64xf32>
    %156 = vector.extract_strided_slice %155 {offsets = [0, 0], sizes = [32, 32], strides = [1, 1]} : vector<32x64xf32> to vector<32x32xf32>
    %157 = vector.extract_strided_slice %155 {offsets = [0, 32], sizes = [32, 32], strides = [1, 1]} : vector<32x64xf32> to vector<32x32xf32>
    %158 = arith.mulf %157, %139 : vector<32x32xf32>
    %cst_52 = arith.constant dense<0.000000e+00> : vector<32x64xf32>
    %159 = tpu.matmul %158, %8, %cst_52 {dimension_numbers = #tpu.dot_dimension_numbers<[1], [0], [0], [1], [0, 0, 1, 1], [], []>} : vector<32x32xf32>, vector<32x64xf32>, vector<32x64xf32> -> vector<32x64xf32>
    %160 = arith.addf %142, %159 : vector<32x64xf32>
    %161 = vector.extract_strided_slice %160 {offsets = [0, 0], sizes = [32, 32], strides = [1, 1]} : vector<32x64xf32> to vector<32x32xf32>
    %cst_53 = arith.constant dense<0.000000e+00> : vector<32x32xf32>
    %162 = tpu.matmul %2, %161, %cst_53 {dimension_numbers = #tpu.dot_dimension_numbers<[1], [0], [0], [1], [0, 0, 1, 1], [], []>} : vector<32x32xf32>, vector<32x32xf32>, vector<32x32xf32> -> vector<32x32xf32>
    %163 = arith.addf %14, %162 : vector<32x32xf32>
    %164 = vector.extract_strided_slice %160 {offsets = [0, 32], sizes = [32, 32], strides = [1, 1]} : vector<32x64xf32> to vector<32x32xf32>
    %cst_54 = arith.constant dense<0.000000e+00> : vector<32x32xf32>
    %165 = tpu.matmul %4, %164, %cst_54 {dimension_numbers = #tpu.dot_dimension_numbers<[1], [0], [0], [1], [0, 0, 1, 1], [], []>} : vector<32x32xf32>, vector<32x32xf32>, vector<32x32xf32> -> vector<32x32xf32>
    %166 = arith.addf %163, %165 : vector<32x32xf32>
    %167 = math.tanh %166 : vector<32x32xf32>
    %168 = arith.subf %167, %139 : vector<32x32xf32>
    %169 = arith.mulf %156, %168 : vector<32x32xf32>
    %170 = arith.addf %139, %169 : vector<32x32xf32>
    %c128 = arith.constant 128 : index
    %c0_55 = arith.constant 0 : index
    %171 = vector.load %arg14[%c128, %c0_55] : memref<256x32xf32, #tpu.memory_space<vmem>>, vector<32x32xf32>
    tpu.vector_store %arg14[%c128, %c0_55], %170 {strides = array<i32>} : memref<256x32xf32, #tpu.memory_space<vmem>>, vector<32x32xf32>,
    %172 = vector.extract_strided_slice %15 {offsets = [160, 0], sizes = [32, 128], strides = [1, 1]} : vector<256x192xf32> to vector<32x128xf32>
    %173 = vector.extract_strided_slice %15 {offsets = [160, 128], sizes = [32, 64], strides = [1, 1]} : vector<256x192xf32> to vector<32x64xf32>
    %cst_56 = arith.constant dense<0.000000e+00> : vector<32x128xf32>
    %174 = tpu.matmul %170, %7, %cst_56 {dimension_numbers = #tpu.dot_dimension_numbers<[1], [0], [0], [1], [0, 0, 1, 1], [], []>} : vector<32x32xf32>, vector<32x128xf32>, vector<32x128xf32> -> vector<32x128xf32>
    %175 = arith.addf %172, %174 : vector<32x128xf32>
    %176 = vector.extract_strided_slice %175 {offsets = [0, 0], sizes = [32, 64], strides = [1, 1]} : vector<32x128xf32> to vector<32x64xf32>
    %cst_57 = arith.constant dense<0.000000e+00> : vector<32x64xf32>
    %177 = tpu.matmul %2, %176, %cst_57 {dimension_numbers = #tpu.dot_dimension_numbers<[1], [0], [0], [1], [0, 0, 1, 1], [], []>} : vector<32x32xf32>, vector<32x64xf32>, vector<32x64xf32> -> vector<32x64xf32>
    %178 = arith.addf %11, %177 : vector<32x64xf32>
    %179 = vector.extract_strided_slice %175 {offsets = [0, 64], sizes = [32, 64], strides = [1, 1]} : vector<32x128xf32> to vector<32x64xf32>
    %cst_58 = arith.constant dense<0.000000e+00> : vector<32x64xf32>
    %180 = tpu.matmul %4, %179, %cst_58 {dimension_numbers = #tpu.dot_dimension_numbers<[1], [0], [0], [1], [0, 0, 1, 1], [], []>} : vector<32x32xf32>, vector<32x64xf32>, vector<32x64xf32> -> vector<32x64xf32>
    %181 = arith.addf %178, %180 : vector<32x64xf32>
    %182 = arith.negf %181 : vector<32x64xf32>
    %183 = math.exp %182 : vector<32x64xf32>
    %cst_59 = arith.constant 1.000000e+00 : f32
    %184 = vector.broadcast %cst_59 : f32 to vector<32x64xf32>
    %185 = arith.addf %184, %183 : vector<32x64xf32>
    %186 = arith.divf %184, %185 : vector<32x64xf32>
    %187 = vector.extract_strided_slice %186 {offsets = [0, 0], sizes = [32, 32], strides = [1, 1]} : vector<32x64xf32> to vector<32x32xf32>
    %188 = vector.extract_strided_slice %186 {offsets = [0, 32], sizes = [32, 32], strides = [1, 1]} : vector<32x64xf32> to vector<32x32xf32>
    %189 = arith.mulf %188, %170 : vector<32x32xf32>
    %cst_60 = arith.constant dense<0.000000e+00> : vector<32x64xf32>
    %190 = tpu.matmul %189, %8, %cst_60 {dimension_numbers = #tpu.dot_dimension_numbers<[1], [0], [0], [1], [0, 0, 1, 1], [], []>} : vector<32x32xf32>, vector<32x64xf32>, vector<32x64xf32> -> vector<32x64xf32>
    %191 = arith.addf %173, %190 : vector<32x64xf32>
    %192 = vector.extract_strided_slice %191 {offsets = [0, 0], sizes = [32, 32], strides = [1, 1]} : vector<32x64xf32> to vector<32x32xf32>
    %cst_61 = arith.constant dense<0.000000e+00> : vector<32x32xf32>
    %193 = tpu.matmul %2, %192, %cst_61 {dimension_numbers = #tpu.dot_dimension_numbers<[1], [0], [0], [1], [0, 0, 1, 1], [], []>} : vector<32x32xf32>, vector<32x32xf32>, vector<32x32xf32> -> vector<32x32xf32>
    %194 = arith.addf %14, %193 : vector<32x32xf32>
    %195 = vector.extract_strided_slice %191 {offsets = [0, 32], sizes = [32, 32], strides = [1, 1]} : vector<32x64xf32> to vector<32x32xf32>
    %cst_62 = arith.constant dense<0.000000e+00> : vector<32x32xf32>
    %196 = tpu.matmul %4, %195, %cst_62 {dimension_numbers = #tpu.dot_dimension_numbers<[1], [0], [0], [1], [0, 0, 1, 1], [], []>} : vector<32x32xf32>, vector<32x32xf32>, vector<32x32xf32> -> vector<32x32xf32>
    %197 = arith.addf %194, %196 : vector<32x32xf32>
    %198 = math.tanh %197 : vector<32x32xf32>
    %199 = arith.subf %198, %170 : vector<32x32xf32>
    %200 = arith.mulf %187, %199 : vector<32x32xf32>
    %201 = arith.addf %170, %200 : vector<32x32xf32>
    %c160 = arith.constant 160 : index
    %c0_63 = arith.constant 0 : index
    %202 = vector.load %arg14[%c160, %c0_63] : memref<256x32xf32, #tpu.memory_space<vmem>>, vector<32x32xf32>
    tpu.vector_store %arg14[%c160, %c0_63], %201 {strides = array<i32>} : memref<256x32xf32, #tpu.memory_space<vmem>>, vector<32x32xf32>,
    %203 = vector.extract_strided_slice %15 {offsets = [192, 0], sizes = [32, 128], strides = [1, 1]} : vector<256x192xf32> to vector<32x128xf32>
    %204 = vector.extract_strided_slice %15 {offsets = [192, 128], sizes = [32, 64], strides = [1, 1]} : vector<256x192xf32> to vector<32x64xf32>
    %cst_64 = arith.constant dense<0.000000e+00> : vector<32x128xf32>
    %205 = tpu.matmul %201, %7, %cst_64 {dimension_numbers = #tpu.dot_dimension_numbers<[1], [0], [0], [1], [0, 0, 1, 1], [], []>} : vector<32x32xf32>, vector<32x128xf32>, vector<32x128xf32> -> vector<32x128xf32>
    %206 = arith.addf %203, %205 : vector<32x128xf32>
    %207 = vector.extract_strided_slice %206 {offsets = [0, 0], sizes = [32, 64], strides = [1, 1]} : vector<32x128xf32> to vector<32x64xf32>
    %cst_65 = arith.constant dense<0.000000e+00> : vector<32x64xf32>
    %208 = tpu.matmul %2, %207, %cst_65 {dimension_numbers = #tpu.dot_dimension_numbers<[1], [0], [0], [1], [0, 0, 1, 1], [], []>} : vector<32x32xf32>, vector<32x64xf32>, vector<32x64xf32> -> vector<32x64xf32>
    %209 = arith.addf %11, %208 : vector<32x64xf32>
    %210 = vector.extract_strided_slice %206 {offsets = [0, 64], sizes = [32, 64], strides = [1, 1]} : vector<32x128xf32> to vector<32x64xf32>
    %cst_66 = arith.constant dense<0.000000e+00> : vector<32x64xf32>
    %211 = tpu.matmul %4, %210, %cst_66 {dimension_numbers = #tpu.dot_dimension_numbers<[1], [0], [0], [1], [0, 0, 1, 1], [], []>} : vector<32x32xf32>, vector<32x64xf32>, vector<32x64xf32> -> vector<32x64xf32>
    %212 = arith.addf %209, %211 : vector<32x64xf32>
    %213 = arith.negf %212 : vector<32x64xf32>
    %214 = math.exp %213 : vector<32x64xf32>
    %cst_67 = arith.constant 1.000000e+00 : f32
    %215 = vector.broadcast %cst_67 : f32 to vector<32x64xf32>
    %216 = arith.addf %215, %214 : vector<32x64xf32>
    %217 = arith.divf %215, %216 : vector<32x64xf32>
    %218 = vector.extract_strided_slice %217 {offsets = [0, 0], sizes = [32, 32], strides = [1, 1]} : vector<32x64xf32> to vector<32x32xf32>
    %219 = vector.extract_strided_slice %217 {offsets = [0, 32], sizes = [32, 32], strides = [1, 1]} : vector<32x64xf32> to vector<32x32xf32>
    %220 = arith.mulf %219, %201 : vector<32x32xf32>
    %cst_68 = arith.constant dense<0.000000e+00> : vector<32x64xf32>
    %221 = tpu.matmul %220, %8, %cst_68 {dimension_numbers = #tpu.dot_dimension_numbers<[1], [0], [0], [1], [0, 0, 1, 1], [], []>} : vector<32x32xf32>, vector<32x64xf32>, vector<32x64xf32> -> vector<32x64xf32>
    %222 = arith.addf %204, %221 : vector<32x64xf32>
    %223 = vector.extract_strided_slice %222 {offsets = [0, 0], sizes = [32, 32], strides = [1, 1]} : vector<32x64xf32> to vector<32x32xf32>
    %cst_69 = arith.constant dense<0.000000e+00> : vector<32x32xf32>
    %224 = tpu.matmul %2, %223, %cst_69 {dimension_numbers = #tpu.dot_dimension_numbers<[1], [0], [0], [1], [0, 0, 1, 1], [], []>} : vector<32x32xf32>, vector<32x32xf32>, vector<32x32xf32> -> vector<32x32xf32>
    %225 = arith.addf %14, %224 : vector<32x32xf32>
    %226 = vector.extract_strided_slice %222 {offsets = [0, 32], sizes = [32, 32], strides = [1, 1]} : vector<32x64xf32> to vector<32x32xf32>
    %cst_70 = arith.constant dense<0.000000e+00> : vector<32x32xf32>
    %227 = tpu.matmul %4, %226, %cst_70 {dimension_numbers = #tpu.dot_dimension_numbers<[1], [0], [0], [1], [0, 0, 1, 1], [], []>} : vector<32x32xf32>, vector<32x32xf32>, vector<32x32xf32> -> vector<32x32xf32>
    %228 = arith.addf %225, %227 : vector<32x32xf32>
    %229 = math.tanh %228 : vector<32x32xf32>
    %230 = arith.subf %229, %201 : vector<32x32xf32>
    %231 = arith.mulf %218, %230 : vector<32x32xf32>
    %232 = arith.addf %201, %231 : vector<32x32xf32>
    %c192 = arith.constant 192 : index
    %c0_71 = arith.constant 0 : index
    %233 = vector.load %arg14[%c192, %c0_71] : memref<256x32xf32, #tpu.memory_space<vmem>>, vector<32x32xf32>
    tpu.vector_store %arg14[%c192, %c0_71], %232 {strides = array<i32>} : memref<256x32xf32, #tpu.memory_space<vmem>>, vector<32x32xf32>,
    %234 = vector.extract_strided_slice %15 {offsets = [224, 0], sizes = [32, 128], strides = [1, 1]} : vector<256x192xf32> to vector<32x128xf32>
    %235 = vector.extract_strided_slice %15 {offsets = [224, 128], sizes = [32, 64], strides = [1, 1]} : vector<256x192xf32> to vector<32x64xf32>
    %cst_72 = arith.constant dense<0.000000e+00> : vector<32x128xf32>
    %236 = tpu.matmul %232, %7, %cst_72 {dimension_numbers = #tpu.dot_dimension_numbers<[1], [0], [0], [1], [0, 0, 1, 1], [], []>} : vector<32x32xf32>, vector<32x128xf32>, vector<32x128xf32> -> vector<32x128xf32>
    %237 = arith.addf %234, %236 : vector<32x128xf32>
    %238 = vector.extract_strided_slice %237 {offsets = [0, 0], sizes = [32, 64], strides = [1, 1]} : vector<32x128xf32> to vector<32x64xf32>
    %cst_73 = arith.constant dense<0.000000e+00> : vector<32x64xf32>
    %239 = tpu.matmul %2, %238, %cst_73 {dimension_numbers = #tpu.dot_dimension_numbers<[1], [0], [0], [1], [0, 0, 1, 1], [], []>} : vector<32x32xf32>, vector<32x64xf32>, vector<32x64xf32> -> vector<32x64xf32>
    %240 = arith.addf %11, %239 : vector<32x64xf32>
    %241 = vector.extract_strided_slice %237 {offsets = [0, 64], sizes = [32, 64], strides = [1, 1]} : vector<32x128xf32> to vector<32x64xf32>
    %cst_74 = arith.constant dense<0.000000e+00> : vector<32x64xf32>
    %242 = tpu.matmul %4, %241, %cst_74 {dimension_numbers = #tpu.dot_dimension_numbers<[1], [0], [0], [1], [0, 0, 1, 1], [], []>} : vector<32x32xf32>, vector<32x64xf32>, vector<32x64xf32> -> vector<32x64xf32>
    %243 = arith.addf %240, %242 : vector<32x64xf32>
    %244 = arith.negf %243 : vector<32x64xf32>
    %245 = math.exp %244 : vector<32x64xf32>
    %cst_75 = arith.constant 1.000000e+00 : f32
    %246 = vector.broadcast %cst_75 : f32 to vector<32x64xf32>
    %247 = arith.addf %246, %245 : vector<32x64xf32>
    %248 = arith.divf %246, %247 : vector<32x64xf32>
    %249 = vector.extract_strided_slice %248 {offsets = [0, 0], sizes = [32, 32], strides = [1, 1]} : vector<32x64xf32> to vector<32x32xf32>
    %250 = vector.extract_strided_slice %248 {offsets = [0, 32], sizes = [32, 32], strides = [1, 1]} : vector<32x64xf32> to vector<32x32xf32>
    %251 = arith.mulf %250, %232 : vector<32x32xf32>
    %cst_76 = arith.constant dense<0.000000e+00> : vector<32x64xf32>
    %252 = tpu.matmul %251, %8, %cst_76 {dimension_numbers = #tpu.dot_dimension_numbers<[1], [0], [0], [1], [0, 0, 1, 1], [], []>} : vector<32x32xf32>, vector<32x64xf32>, vector<32x64xf32> -> vector<32x64xf32>
    %253 = arith.addf %235, %252 : vector<32x64xf32>
    %254 = vector.extract_strided_slice %253 {offsets = [0, 0], sizes = [32, 32], strides = [1, 1]} : vector<32x64xf32> to vector<32x32xf32>
    %cst_77 = arith.constant dense<0.000000e+00> : vector<32x32xf32>
    %255 = tpu.matmul %2, %254, %cst_77 {dimension_numbers = #tpu.dot_dimension_numbers<[1], [0], [0], [1], [0, 0, 1, 1], [], []>} : vector<32x32xf32>, vector<32x32xf32>, vector<32x32xf32> -> vector<32x32xf32>
    %256 = arith.addf %14, %255 : vector<32x32xf32>
    %257 = vector.extract_strided_slice %253 {offsets = [0, 32], sizes = [32, 32], strides = [1, 1]} : vector<32x64xf32> to vector<32x32xf32>
    %cst_78 = arith.constant dense<0.000000e+00> : vector<32x32xf32>
    %258 = tpu.matmul %4, %257, %cst_78 {dimension_numbers = #tpu.dot_dimension_numbers<[1], [0], [0], [1], [0, 0, 1, 1], [], []>} : vector<32x32xf32>, vector<32x32xf32>, vector<32x32xf32> -> vector<32x32xf32>
    %259 = arith.addf %256, %258 : vector<32x32xf32>
    %260 = math.tanh %259 : vector<32x32xf32>
    %261 = arith.subf %260, %232 : vector<32x32xf32>
    %262 = arith.mulf %249, %261 : vector<32x32xf32>
    %263 = arith.addf %232, %262 : vector<32x32xf32>
    %c224 = arith.constant 224 : index
    %c0_79 = arith.constant 0 : index
    %264 = vector.load %arg14[%c224, %c0_79] : memref<256x32xf32, #tpu.memory_space<vmem>>, vector<32x32xf32>
    tpu.vector_store %arg14[%c224, %c0_79], %263 {strides = array<i32>} : memref<256x32xf32, #tpu.memory_space<vmem>>, vector<32x32xf32>,
    %c0_80 = arith.constant 0 : index
    %c0_81 = arith.constant 0 : index
    %265 = vector.load %arg14[%c0_80, %c0_81] : memref<256x32xf32, #tpu.memory_space<vmem>>, vector<256x32xf32>
    %c0_82 = arith.constant 0 : index
    %c0_83 = arith.constant 0 : index
    %266 = vector.load %arg8[%c0_82, %c0_83] : memref<32x192xf32, #tpu.memory_space<vmem>>, vector<32x192xf32>
    %c0_84 = arith.constant 0 : index
    %c0_85 = arith.constant 0 : index
    %267 = vector.load %arg9[%c0_84, %c0_85] : memref<32x128xf32, #tpu.memory_space<vmem>>, vector<32x128xf32>
    %c0_86 = arith.constant 0 : index
    %c0_87 = arith.constant 0 : index
    %268 = vector.load %arg10[%c0_86, %c0_87] : memref<32x64xf32, #tpu.memory_space<vmem>>, vector<32x64xf32>
    %c0_88 = arith.constant 0 : index
    %c0_89 = arith.constant 0 : index
    %269 = vector.load %arg11[%c0_88, %c0_89] : memref<1x64xf32, #tpu.memory_space<vmem>>, vector<1x64xf32>
    %270 = vector.shape_cast %269 : vector<1x64xf32> to vector<1x64xf32>
    %271 = vector.broadcast %270 : vector<1x64xf32> to vector<32x64xf32>
    %c0_90 = arith.constant 0 : index
    %c0_91 = arith.constant 0 : index
    %272 = vector.load %arg12[%c0_90, %c0_91] : memref<1x32xf32, #tpu.memory_space<vmem>>, vector<1x32xf32>
    %273 = vector.shape_cast %272 : vector<1x32xf32> to vector<1x32xf32>
    %274 = vector.broadcast %273 : vector<1x32xf32> to vector<32x32xf32>
    %cst_92 = arith.constant dense<0.000000e+00> : vector<256x192xf32>
    %275 = tpu.matmul %265, %266, %cst_92 {dimension_numbers = #tpu.dot_dimension_numbers<[1], [0], [0], [1], [0, 0, 1, 1], [], []>} : vector<256x32xf32>, vector<32x192xf32>, vector<256x192xf32> -> vector<256x192xf32>
    %cst_93 = arith.constant 0.000000e+00 : f32
    %276 = vector.broadcast %cst_93 : f32 to vector<32x32xf32>
    %277 = vector.extract_strided_slice %275 {offsets = [0, 0], sizes = [32, 128], strides = [1, 1]} : vector<256x192xf32> to vector<32x128xf32>
    %278 = vector.extract_strided_slice %275 {offsets = [0, 128], sizes = [32, 64], strides = [1, 1]} : vector<256x192xf32> to vector<32x64xf32>
    %cst_94 = arith.constant dense<0.000000e+00> : vector<32x128xf32>
    %279 = tpu.matmul %276, %267, %cst_94 {dimension_numbers = #tpu.dot_dimension_numbers<[1], [0], [0], [1], [0, 0, 1, 1], [], []>} : vector<32x32xf32>, vector<32x128xf32>, vector<32x128xf32> -> vector<32x128xf32>
    %280 = arith.addf %277, %279 : vector<32x128xf32>
    %281 = vector.extract_strided_slice %280 {offsets = [0, 0], sizes = [32, 64], strides = [1, 1]} : vector<32x128xf32> to vector<32x64xf32>
    %cst_95 = arith.constant dense<0.000000e+00> : vector<32x64xf32>
    %282 = tpu.matmul %2, %281, %cst_95 {dimension_numbers = #tpu.dot_dimension_numbers<[1], [0], [0], [1], [0, 0, 1, 1], [], []>} : vector<32x32xf32>, vector<32x64xf32>, vector<32x64xf32> -> vector<32x64xf32>
    %283 = arith.addf %271, %282 : vector<32x64xf32>
    %284 = vector.extract_strided_slice %280 {offsets = [0, 64], sizes = [32, 64], strides = [1, 1]} : vector<32x128xf32> to vector<32x64xf32>
    %cst_96 = arith.constant dense<0.000000e+00> : vector<32x64xf32>
    %285 = tpu.matmul %4, %284, %cst_96 {dimension_numbers = #tpu.dot_dimension_numbers<[1], [0], [0], [1], [0, 0, 1, 1], [], []>} : vector<32x32xf32>, vector<32x64xf32>, vector<32x64xf32> -> vector<32x64xf32>
    %286 = arith.addf %283, %285 : vector<32x64xf32>
    %287 = arith.negf %286 : vector<32x64xf32>
    %288 = math.exp %287 : vector<32x64xf32>
    %cst_97 = arith.constant 1.000000e+00 : f32
    %289 = vector.broadcast %cst_97 : f32 to vector<32x64xf32>
    %290 = arith.addf %289, %288 : vector<32x64xf32>
    %291 = arith.divf %289, %290 : vector<32x64xf32>
    %292 = vector.extract_strided_slice %291 {offsets = [0, 0], sizes = [32, 32], strides = [1, 1]} : vector<32x64xf32> to vector<32x32xf32>
    %293 = vector.extract_strided_slice %291 {offsets = [0, 32], sizes = [32, 32], strides = [1, 1]} : vector<32x64xf32> to vector<32x32xf32>
    %294 = arith.mulf %293, %276 : vector<32x32xf32>
    %cst_98 = arith.constant dense<0.000000e+00> : vector<32x64xf32>
    %295 = tpu.matmul %294, %268, %cst_98 {dimension_numbers = #tpu.dot_dimension_numbers<[1], [0], [0], [1], [0, 0, 1, 1], [], []>} : vector<32x32xf32>, vector<32x64xf32>, vector<32x64xf32> -> vector<32x64xf32>
    %296 = arith.addf %278, %295 : vector<32x64xf32>
    %297 = vector.extract_strided_slice %296 {offsets = [0, 0], sizes = [32, 32], strides = [1, 1]} : vector<32x64xf32> to vector<32x32xf32>
    %cst_99 = arith.constant dense<0.000000e+00> : vector<32x32xf32>
    %298 = tpu.matmul %2, %297, %cst_99 {dimension_numbers = #tpu.dot_dimension_numbers<[1], [0], [0], [1], [0, 0, 1, 1], [], []>} : vector<32x32xf32>, vector<32x32xf32>, vector<32x32xf32> -> vector<32x32xf32>
    %299 = arith.addf %274, %298 : vector<32x32xf32>
    %300 = vector.extract_strided_slice %296 {offsets = [0, 32], sizes = [32, 32], strides = [1, 1]} : vector<32x64xf32> to vector<32x32xf32>
    %cst_100 = arith.constant dense<0.000000e+00> : vector<32x32xf32>
    %301 = tpu.matmul %4, %300, %cst_100 {dimension_numbers = #tpu.dot_dimension_numbers<[1], [0], [0], [1], [0, 0, 1, 1], [], []>} : vector<32x32xf32>, vector<32x32xf32>, vector<32x32xf32> -> vector<32x32xf32>
    %302 = arith.addf %299, %301 : vector<32x32xf32>
    %303 = math.tanh %302 : vector<32x32xf32>
    %304 = arith.subf %303, %276 : vector<32x32xf32>
    %305 = arith.mulf %292, %304 : vector<32x32xf32>
    %306 = arith.addf %276, %305 : vector<32x32xf32>
    %c0_101 = arith.constant 0 : index
    %c0_102 = arith.constant 0 : index
    %307 = vector.load %arg13[%c0_101, %c0_102] : memref<256x32xf32, #tpu.memory_space<vmem>>, vector<32x32xf32>
    tpu.vector_store %arg13[%c0_101, %c0_102], %306 {strides = array<i32>} : memref<256x32xf32, #tpu.memory_space<vmem>>, vector<32x32xf32>,
    %308 = vector.extract_strided_slice %275 {offsets = [32, 0], sizes = [32, 128], strides = [1, 1]} : vector<256x192xf32> to vector<32x128xf32>
    %309 = vector.extract_strided_slice %275 {offsets = [32, 128], sizes = [32, 64], strides = [1, 1]} : vector<256x192xf32> to vector<32x64xf32>
    %cst_103 = arith.constant dense<0.000000e+00> : vector<32x128xf32>
    %310 = tpu.matmul %306, %267, %cst_103 {dimension_numbers = #tpu.dot_dimension_numbers<[1], [0], [0], [1], [0, 0, 1, 1], [], []>} : vector<32x32xf32>, vector<32x128xf32>, vector<32x128xf32> -> vector<32x128xf32>
    %311 = arith.addf %308, %310 : vector<32x128xf32>
    %312 = vector.extract_strided_slice %311 {offsets = [0, 0], sizes = [32, 64], strides = [1, 1]} : vector<32x128xf32> to vector<32x64xf32>
    %cst_104 = arith.constant dense<0.000000e+00> : vector<32x64xf32>
    %313 = tpu.matmul %2, %312, %cst_104 {dimension_numbers = #tpu.dot_dimension_numbers<[1], [0], [0], [1], [0, 0, 1, 1], [], []>} : vector<32x32xf32>, vector<32x64xf32>, vector<32x64xf32> -> vector<32x64xf32>
    %314 = arith.addf %271, %313 : vector<32x64xf32>
    %315 = vector.extract_strided_slice %311 {offsets = [0, 64], sizes = [32, 64], strides = [1, 1]} : vector<32x128xf32> to vector<32x64xf32>
    %cst_105 = arith.constant dense<0.000000e+00> : vector<32x64xf32>
    %316 = tpu.matmul %4, %315, %cst_105 {dimension_numbers = #tpu.dot_dimension_numbers<[1], [0], [0], [1], [0, 0, 1, 1], [], []>} : vector<32x32xf32>, vector<32x64xf32>, vector<32x64xf32> -> vector<32x64xf32>
    %317 = arith.addf %314, %316 : vector<32x64xf32>
    %318 = arith.negf %317 : vector<32x64xf32>
    %319 = math.exp %318 : vector<32x64xf32>
    %cst_106 = arith.constant 1.000000e+00 : f32
    %320 = vector.broadcast %cst_106 : f32 to vector<32x64xf32>
    %321 = arith.addf %320, %319 : vector<32x64xf32>
    %322 = arith.divf %320, %321 : vector<32x64xf32>
    %323 = vector.extract_strided_slice %322 {offsets = [0, 0], sizes = [32, 32], strides = [1, 1]} : vector<32x64xf32> to vector<32x32xf32>
    %324 = vector.extract_strided_slice %322 {offsets = [0, 32], sizes = [32, 32], strides = [1, 1]} : vector<32x64xf32> to vector<32x32xf32>
    %325 = arith.mulf %324, %306 : vector<32x32xf32>
    %cst_107 = arith.constant dense<0.000000e+00> : vector<32x64xf32>
    %326 = tpu.matmul %325, %268, %cst_107 {dimension_numbers = #tpu.dot_dimension_numbers<[1], [0], [0], [1], [0, 0, 1, 1], [], []>} : vector<32x32xf32>, vector<32x64xf32>, vector<32x64xf32> -> vector<32x64xf32>
    %327 = arith.addf %309, %326 : vector<32x64xf32>
    %328 = vector.extract_strided_slice %327 {offsets = [0, 0], sizes = [32, 32], strides = [1, 1]} : vector<32x64xf32> to vector<32x32xf32>
    %cst_108 = arith.constant dense<0.000000e+00> : vector<32x32xf32>
    %329 = tpu.matmul %2, %328, %cst_108 {dimension_numbers = #tpu.dot_dimension_numbers<[1], [0], [0], [1], [0, 0, 1, 1], [], []>} : vector<32x32xf32>, vector<32x32xf32>, vector<32x32xf32> -> vector<32x32xf32>
    %330 = arith.addf %274, %329 : vector<32x32xf32>
    %331 = vector.extract_strided_slice %327 {offsets = [0, 32], sizes = [32, 32], strides = [1, 1]} : vector<32x64xf32> to vector<32x32xf32>
    %cst_109 = arith.constant dense<0.000000e+00> : vector<32x32xf32>
    %332 = tpu.matmul %4, %331, %cst_109 {dimension_numbers = #tpu.dot_dimension_numbers<[1], [0], [0], [1], [0, 0, 1, 1], [], []>} : vector<32x32xf32>, vector<32x32xf32>, vector<32x32xf32> -> vector<32x32xf32>
    %333 = arith.addf %330, %332 : vector<32x32xf32>
    %334 = math.tanh %333 : vector<32x32xf32>
    %335 = arith.subf %334, %306 : vector<32x32xf32>
    %336 = arith.mulf %323, %335 : vector<32x32xf32>
    %337 = arith.addf %306, %336 : vector<32x32xf32>
    %c32_110 = arith.constant 32 : index
    %c0_111 = arith.constant 0 : index
    %338 = vector.load %arg13[%c32_110, %c0_111] : memref<256x32xf32, #tpu.memory_space<vmem>>, vector<32x32xf32>
    tpu.vector_store %arg13[%c32_110, %c0_111], %337 {strides = array<i32>} : memref<256x32xf32, #tpu.memory_space<vmem>>, vector<32x32xf32>,
    %339 = vector.extract_strided_slice %275 {offsets = [64, 0], sizes = [32, 128], strides = [1, 1]} : vector<256x192xf32> to vector<32x128xf32>
    %340 = vector.extract_strided_slice %275 {offsets = [64, 128], sizes = [32, 64], strides = [1, 1]} : vector<256x192xf32> to vector<32x64xf32>
    %cst_112 = arith.constant dense<0.000000e+00> : vector<32x128xf32>
    %341 = tpu.matmul %337, %267, %cst_112 {dimension_numbers = #tpu.dot_dimension_numbers<[1], [0], [0], [1], [0, 0, 1, 1], [], []>} : vector<32x32xf32>, vector<32x128xf32>, vector<32x128xf32> -> vector<32x128xf32>
    %342 = arith.addf %339, %341 : vector<32x128xf32>
    %343 = vector.extract_strided_slice %342 {offsets = [0, 0], sizes = [32, 64], strides = [1, 1]} : vector<32x128xf32> to vector<32x64xf32>
    %cst_113 = arith.constant dense<0.000000e+00> : vector<32x64xf32>
    %344 = tpu.matmul %2, %343, %cst_113 {dimension_numbers = #tpu.dot_dimension_numbers<[1], [0], [0], [1], [0, 0, 1, 1], [], []>} : vector<32x32xf32>, vector<32x64xf32>, vector<32x64xf32> -> vector<32x64xf32>
    %345 = arith.addf %271, %344 : vector<32x64xf32>
    %346 = vector.extract_strided_slice %342 {offsets = [0, 64], sizes = [32, 64], strides = [1, 1]} : vector<32x128xf32> to vector<32x64xf32>
    %cst_114 = arith.constant dense<0.000000e+00> : vector<32x64xf32>
    %347 = tpu.matmul %4, %346, %cst_114 {dimension_numbers = #tpu.dot_dimension_numbers<[1], [0], [0], [1], [0, 0, 1, 1], [], []>} : vector<32x32xf32>, vector<32x64xf32>, vector<32x64xf32> -> vector<32x64xf32>
    %348 = arith.addf %345, %347 : vector<32x64xf32>
    %349 = arith.negf %348 : vector<32x64xf32>
    %350 = math.exp %349 : vector<32x64xf32>
    %cst_115 = arith.constant 1.000000e+00 : f32
    %351 = vector.broadcast %cst_115 : f32 to vector<32x64xf32>
    %352 = arith.addf %351, %350 : vector<32x64xf32>
    %353 = arith.divf %351, %352 : vector<32x64xf32>
    %354 = vector.extract_strided_slice %353 {offsets = [0, 0], sizes = [32, 32], strides = [1, 1]} : vector<32x64xf32> to vector<32x32xf32>
    %355 = vector.extract_strided_slice %353 {offsets = [0, 32], sizes = [32, 32], strides = [1, 1]} : vector<32x64xf32> to vector<32x32xf32>
    %356 = arith.mulf %355, %337 : vector<32x32xf32>
    %cst_116 = arith.constant dense<0.000000e+00> : vector<32x64xf32>
    %357 = tpu.matmul %356, %268, %cst_116 {dimension_numbers = #tpu.dot_dimension_numbers<[1], [0], [0], [1], [0, 0, 1, 1], [], []>} : vector<32x32xf32>, vector<32x64xf32>, vector<32x64xf32> -> vector<32x64xf32>
    %358 = arith.addf %340, %357 : vector<32x64xf32>
    %359 = vector.extract_strided_slice %358 {offsets = [0, 0], sizes = [32, 32], strides = [1, 1]} : vector<32x64xf32> to vector<32x32xf32>
    %cst_117 = arith.constant dense<0.000000e+00> : vector<32x32xf32>
    %360 = tpu.matmul %2, %359, %cst_117 {dimension_numbers = #tpu.dot_dimension_numbers<[1], [0], [0], [1], [0, 0, 1, 1], [], []>} : vector<32x32xf32>, vector<32x32xf32>, vector<32x32xf32> -> vector<32x32xf32>
    %361 = arith.addf %274, %360 : vector<32x32xf32>
    %362 = vector.extract_strided_slice %358 {offsets = [0, 32], sizes = [32, 32], strides = [1, 1]} : vector<32x64xf32> to vector<32x32xf32>
    %cst_118 = arith.constant dense<0.000000e+00> : vector<32x32xf32>
    %363 = tpu.matmul %4, %362, %cst_118 {dimension_numbers = #tpu.dot_dimension_numbers<[1], [0], [0], [1], [0, 0, 1, 1], [], []>} : vector<32x32xf32>, vector<32x32xf32>, vector<32x32xf32> -> vector<32x32xf32>
    %364 = arith.addf %361, %363 : vector<32x32xf32>
    %365 = math.tanh %364 : vector<32x32xf32>
    %366 = arith.subf %365, %337 : vector<32x32xf32>
    %367 = arith.mulf %354, %366 : vector<32x32xf32>
    %368 = arith.addf %337, %367 : vector<32x32xf32>
    %c64_119 = arith.constant 64 : index
    %c0_120 = arith.constant 0 : index
    %369 = vector.load %arg13[%c64_119, %c0_120] : memref<256x32xf32, #tpu.memory_space<vmem>>, vector<32x32xf32>
    tpu.vector_store %arg13[%c64_119, %c0_120], %368 {strides = array<i32>} : memref<256x32xf32, #tpu.memory_space<vmem>>, vector<32x32xf32>,
    %370 = vector.extract_strided_slice %275 {offsets = [96, 0], sizes = [32, 128], strides = [1, 1]} : vector<256x192xf32> to vector<32x128xf32>
    %371 = vector.extract_strided_slice %275 {offsets = [96, 128], sizes = [32, 64], strides = [1, 1]} : vector<256x192xf32> to vector<32x64xf32>
    %cst_121 = arith.constant dense<0.000000e+00> : vector<32x128xf32>
    %372 = tpu.matmul %368, %267, %cst_121 {dimension_numbers = #tpu.dot_dimension_numbers<[1], [0], [0], [1], [0, 0, 1, 1], [], []>} : vector<32x32xf32>, vector<32x128xf32>, vector<32x128xf32> -> vector<32x128xf32>
    %373 = arith.addf %370, %372 : vector<32x128xf32>
    %374 = vector.extract_strided_slice %373 {offsets = [0, 0], sizes = [32, 64], strides = [1, 1]} : vector<32x128xf32> to vector<32x64xf32>
    %cst_122 = arith.constant dense<0.000000e+00> : vector<32x64xf32>
    %375 = tpu.matmul %2, %374, %cst_122 {dimension_numbers = #tpu.dot_dimension_numbers<[1], [0], [0], [1], [0, 0, 1, 1], [], []>} : vector<32x32xf32>, vector<32x64xf32>, vector<32x64xf32> -> vector<32x64xf32>
    %376 = arith.addf %271, %375 : vector<32x64xf32>
    %377 = vector.extract_strided_slice %373 {offsets = [0, 64], sizes = [32, 64], strides = [1, 1]} : vector<32x128xf32> to vector<32x64xf32>
    %cst_123 = arith.constant dense<0.000000e+00> : vector<32x64xf32>
    %378 = tpu.matmul %4, %377, %cst_123 {dimension_numbers = #tpu.dot_dimension_numbers<[1], [0], [0], [1], [0, 0, 1, 1], [], []>} : vector<32x32xf32>, vector<32x64xf32>, vector<32x64xf32> -> vector<32x64xf32>
    %379 = arith.addf %376, %378 : vector<32x64xf32>
    %380 = arith.negf %379 : vector<32x64xf32>
    %381 = math.exp %380 : vector<32x64xf32>
    %cst_124 = arith.constant 1.000000e+00 : f32
    %382 = vector.broadcast %cst_124 : f32 to vector<32x64xf32>
    %383 = arith.addf %382, %381 : vector<32x64xf32>
    %384 = arith.divf %382, %383 : vector<32x64xf32>
    %385 = vector.extract_strided_slice %384 {offsets = [0, 0], sizes = [32, 32], strides = [1, 1]} : vector<32x64xf32> to vector<32x32xf32>
    %386 = vector.extract_strided_slice %384 {offsets = [0, 32], sizes = [32, 32], strides = [1, 1]} : vector<32x64xf32> to vector<32x32xf32>
    %387 = arith.mulf %386, %368 : vector<32x32xf32>
    %cst_125 = arith.constant dense<0.000000e+00> : vector<32x64xf32>
    %388 = tpu.matmul %387, %268, %cst_125 {dimension_numbers = #tpu.dot_dimension_numbers<[1], [0], [0], [1], [0, 0, 1, 1], [], []>} : vector<32x32xf32>, vector<32x64xf32>, vector<32x64xf32> -> vector<32x64xf32>
    %389 = arith.addf %371, %388 : vector<32x64xf32>
    %390 = vector.extract_strided_slice %389 {offsets = [0, 0], sizes = [32, 32], strides = [1, 1]} : vector<32x64xf32> to vector<32x32xf32>
    %cst_126 = arith.constant dense<0.000000e+00> : vector<32x32xf32>
    %391 = tpu.matmul %2, %390, %cst_126 {dimension_numbers = #tpu.dot_dimension_numbers<[1], [0], [0], [1], [0, 0, 1, 1], [], []>} : vector<32x32xf32>, vector<32x32xf32>, vector<32x32xf32> -> vector<32x32xf32>
    %392 = arith.addf %274, %391 : vector<32x32xf32>
    %393 = vector.extract_strided_slice %389 {offsets = [0, 32], sizes = [32, 32], strides = [1, 1]} : vector<32x64xf32> to vector<32x32xf32>
    %cst_127 = arith.constant dense<0.000000e+00> : vector<32x32xf32>
    %394 = tpu.matmul %4, %393, %cst_127 {dimension_numbers = #tpu.dot_dimension_numbers<[1], [0], [0], [1], [0, 0, 1, 1], [], []>} : vector<32x32xf32>, vector<32x32xf32>, vector<32x32xf32> -> vector<32x32xf32>
    %395 = arith.addf %392, %394 : vector<32x32xf32>
    %396 = math.tanh %395 : vector<32x32xf32>
    %397 = arith.subf %396, %368 : vector<32x32xf32>
    %398 = arith.mulf %385, %397 : vector<32x32xf32>
    %399 = arith.addf %368, %398 : vector<32x32xf32>
    %c96_128 = arith.constant 96 : index
    %c0_129 = arith.constant 0 : index
    %400 = vector.load %arg13[%c96_128, %c0_129] : memref<256x32xf32, #tpu.memory_space<vmem>>, vector<32x32xf32>
    tpu.vector_store %arg13[%c96_128, %c0_129], %399 {strides = array<i32>} : memref<256x32xf32, #tpu.memory_space<vmem>>, vector<32x32xf32>,
    %401 = vector.extract_strided_slice %275 {offsets = [128, 0], sizes = [32, 128], strides = [1, 1]} : vector<256x192xf32> to vector<32x128xf32>
    %402 = vector.extract_strided_slice %275 {offsets = [128, 128], sizes = [32, 64], strides = [1, 1]} : vector<256x192xf32> to vector<32x64xf32>
    %cst_130 = arith.constant dense<0.000000e+00> : vector<32x128xf32>
    %403 = tpu.matmul %399, %267, %cst_130 {dimension_numbers = #tpu.dot_dimension_numbers<[1], [0], [0], [1], [0, 0, 1, 1], [], []>} : vector<32x32xf32>, vector<32x128xf32>, vector<32x128xf32> -> vector<32x128xf32>
    %404 = arith.addf %401, %403 : vector<32x128xf32>
    %405 = vector.extract_strided_slice %404 {offsets = [0, 0], sizes = [32, 64], strides = [1, 1]} : vector<32x128xf32> to vector<32x64xf32>
    %cst_131 = arith.constant dense<0.000000e+00> : vector<32x64xf32>
    %406 = tpu.matmul %2, %405, %cst_131 {dimension_numbers = #tpu.dot_dimension_numbers<[1], [0], [0], [1], [0, 0, 1, 1], [], []>} : vector<32x32xf32>, vector<32x64xf32>, vector<32x64xf32> -> vector<32x64xf32>
    %407 = arith.addf %271, %406 : vector<32x64xf32>
    %408 = vector.extract_strided_slice %404 {offsets = [0, 64], sizes = [32, 64], strides = [1, 1]} : vector<32x128xf32> to vector<32x64xf32>
    %cst_132 = arith.constant dense<0.000000e+00> : vector<32x64xf32>
    %409 = tpu.matmul %4, %408, %cst_132 {dimension_numbers = #tpu.dot_dimension_numbers<[1], [0], [0], [1], [0, 0, 1, 1], [], []>} : vector<32x32xf32>, vector<32x64xf32>, vector<32x64xf32> -> vector<32x64xf32>
    %410 = arith.addf %407, %409 : vector<32x64xf32>
    %411 = arith.negf %410 : vector<32x64xf32>
    %412 = math.exp %411 : vector<32x64xf32>
    %cst_133 = arith.constant 1.000000e+00 : f32
    %413 = vector.broadcast %cst_133 : f32 to vector<32x64xf32>
    %414 = arith.addf %413, %412 : vector<32x64xf32>
    %415 = arith.divf %413, %414 : vector<32x64xf32>
    %416 = vector.extract_strided_slice %415 {offsets = [0, 0], sizes = [32, 32], strides = [1, 1]} : vector<32x64xf32> to vector<32x32xf32>
    %417 = vector.extract_strided_slice %415 {offsets = [0, 32], sizes = [32, 32], strides = [1, 1]} : vector<32x64xf32> to vector<32x32xf32>
    %418 = arith.mulf %417, %399 : vector<32x32xf32>
    %cst_134 = arith.constant dense<0.000000e+00> : vector<32x64xf32>
    %419 = tpu.matmul %418, %268, %cst_134 {dimension_numbers = #tpu.dot_dimension_numbers<[1], [0], [0], [1], [0, 0, 1, 1], [], []>} : vector<32x32xf32>, vector<32x64xf32>, vector<32x64xf32> -> vector<32x64xf32>
    %420 = arith.addf %402, %419 : vector<32x64xf32>
    %421 = vector.extract_strided_slice %420 {offsets = [0, 0], sizes = [32, 32], strides = [1, 1]} : vector<32x64xf32> to vector<32x32xf32>
    %cst_135 = arith.constant dense<0.000000e+00> : vector<32x32xf32>
    %422 = tpu.matmul %2, %421, %cst_135 {dimension_numbers = #tpu.dot_dimension_numbers<[1], [0], [0], [1], [0, 0, 1, 1], [], []>} : vector<32x32xf32>, vector<32x32xf32>, vector<32x32xf32> -> vector<32x32xf32>
    %423 = arith.addf %274, %422 : vector<32x32xf32>
    %424 = vector.extract_strided_slice %420 {offsets = [0, 32], sizes = [32, 32], strides = [1, 1]} : vector<32x64xf32> to vector<32x32xf32>
    %cst_136 = arith.constant dense<0.000000e+00> : vector<32x32xf32>
    %425 = tpu.matmul %4, %424, %cst_136 {dimension_numbers = #tpu.dot_dimension_numbers<[1], [0], [0], [1], [0, 0, 1, 1], [], []>} : vector<32x32xf32>, vector<32x32xf32>, vector<32x32xf32> -> vector<32x32xf32>
    %426 = arith.addf %423, %425 : vector<32x32xf32>
    %427 = math.tanh %426 : vector<32x32xf32>
    %428 = arith.subf %427, %399 : vector<32x32xf32>
    %429 = arith.mulf %416, %428 : vector<32x32xf32>
    %430 = arith.addf %399, %429 : vector<32x32xf32>
    %c128_137 = arith.constant 128 : index
    %c0_138 = arith.constant 0 : index
    %431 = vector.load %arg13[%c128_137, %c0_138] : memref<256x32xf32, #tpu.memory_space<vmem>>, vector<32x32xf32>
    tpu.vector_store %arg13[%c128_137, %c0_138], %430 {strides = array<i32>} : memref<256x32xf32, #tpu.memory_space<vmem>>, vector<32x32xf32>,
    %432 = vector.extract_strided_slice %275 {offsets = [160, 0], sizes = [32, 128], strides = [1, 1]} : vector<256x192xf32> to vector<32x128xf32>
    %433 = vector.extract_strided_slice %275 {offsets = [160, 128], sizes = [32, 64], strides = [1, 1]} : vector<256x192xf32> to vector<32x64xf32>
    %cst_139 = arith.constant dense<0.000000e+00> : vector<32x128xf32>
    %434 = tpu.matmul %430, %267, %cst_139 {dimension_numbers = #tpu.dot_dimension_numbers<[1], [0], [0], [1], [0, 0, 1, 1], [], []>} : vector<32x32xf32>, vector<32x128xf32>, vector<32x128xf32> -> vector<32x128xf32>
    %435 = arith.addf %432, %434 : vector<32x128xf32>
    %436 = vector.extract_strided_slice %435 {offsets = [0, 0], sizes = [32, 64], strides = [1, 1]} : vector<32x128xf32> to vector<32x64xf32>
    %cst_140 = arith.constant dense<0.000000e+00> : vector<32x64xf32>
    %437 = tpu.matmul %2, %436, %cst_140 {dimension_numbers = #tpu.dot_dimension_numbers<[1], [0], [0], [1], [0, 0, 1, 1], [], []>} : vector<32x32xf32>, vector<32x64xf32>, vector<32x64xf32> -> vector<32x64xf32>
    %438 = arith.addf %271, %437 : vector<32x64xf32>
    %439 = vector.extract_strided_slice %435 {offsets = [0, 64], sizes = [32, 64], strides = [1, 1]} : vector<32x128xf32> to vector<32x64xf32>
    %cst_141 = arith.constant dense<0.000000e+00> : vector<32x64xf32>
    %440 = tpu.matmul %4, %439, %cst_141 {dimension_numbers = #tpu.dot_dimension_numbers<[1], [0], [0], [1], [0, 0, 1, 1], [], []>} : vector<32x32xf32>, vector<32x64xf32>, vector<32x64xf32> -> vector<32x64xf32>
    %441 = arith.addf %438, %440 : vector<32x64xf32>
    %442 = arith.negf %441 : vector<32x64xf32>
    %443 = math.exp %442 : vector<32x64xf32>
    %cst_142 = arith.constant 1.000000e+00 : f32
    %444 = vector.broadcast %cst_142 : f32 to vector<32x64xf32>
    %445 = arith.addf %444, %443 : vector<32x64xf32>
    %446 = arith.divf %444, %445 : vector<32x64xf32>
    %447 = vector.extract_strided_slice %446 {offsets = [0, 0], sizes = [32, 32], strides = [1, 1]} : vector<32x64xf32> to vector<32x32xf32>
    %448 = vector.extract_strided_slice %446 {offsets = [0, 32], sizes = [32, 32], strides = [1, 1]} : vector<32x64xf32> to vector<32x32xf32>
    %449 = arith.mulf %448, %430 : vector<32x32xf32>
    %cst_143 = arith.constant dense<0.000000e+00> : vector<32x64xf32>
    %450 = tpu.matmul %449, %268, %cst_143 {dimension_numbers = #tpu.dot_dimension_numbers<[1], [0], [0], [1], [0, 0, 1, 1], [], []>} : vector<32x32xf32>, vector<32x64xf32>, vector<32x64xf32> -> vector<32x64xf32>
    %451 = arith.addf %433, %450 : vector<32x64xf32>
    %452 = vector.extract_strided_slice %451 {offsets = [0, 0], sizes = [32, 32], strides = [1, 1]} : vector<32x64xf32> to vector<32x32xf32>
    %cst_144 = arith.constant dense<0.000000e+00> : vector<32x32xf32>
    %453 = tpu.matmul %2, %452, %cst_144 {dimension_numbers = #tpu.dot_dimension_numbers<[1], [0], [0], [1], [0, 0, 1, 1], [], []>} : vector<32x32xf32>, vector<32x32xf32>, vector<32x32xf32> -> vector<32x32xf32>
    %454 = arith.addf %274, %453 : vector<32x32xf32>
    %455 = vector.extract_strided_slice %451 {offsets = [0, 32], sizes = [32, 32], strides = [1, 1]} : vector<32x64xf32> to vector<32x32xf32>
    %cst_145 = arith.constant dense<0.000000e+00> : vector<32x32xf32>
    %456 = tpu.matmul %4, %455, %cst_145 {dimension_numbers = #tpu.dot_dimension_numbers<[1], [0], [0], [1], [0, 0, 1, 1], [], []>} : vector<32x32xf32>, vector<32x32xf32>, vector<32x32xf32> -> vector<32x32xf32>
    %457 = arith.addf %454, %456 : vector<32x32xf32>
    %458 = math.tanh %457 : vector<32x32xf32>
    %459 = arith.subf %458, %430 : vector<32x32xf32>
    %460 = arith.mulf %447, %459 : vector<32x32xf32>
    %461 = arith.addf %430, %460 : vector<32x32xf32>
    %c160_146 = arith.constant 160 : index
    %c0_147 = arith.constant 0 : index
    %462 = vector.load %arg13[%c160_146, %c0_147] : memref<256x32xf32, #tpu.memory_space<vmem>>, vector<32x32xf32>
    tpu.vector_store %arg13[%c160_146, %c0_147], %461 {strides = array<i32>} : memref<256x32xf32, #tpu.memory_space<vmem>>, vector<32x32xf32>,
    %463 = vector.extract_strided_slice %275 {offsets = [192, 0], sizes = [32, 128], strides = [1, 1]} : vector<256x192xf32> to vector<32x128xf32>
    %464 = vector.extract_strided_slice %275 {offsets = [192, 128], sizes = [32, 64], strides = [1, 1]} : vector<256x192xf32> to vector<32x64xf32>
    %cst_148 = arith.constant dense<0.000000e+00> : vector<32x128xf32>
    %465 = tpu.matmul %461, %267, %cst_148 {dimension_numbers = #tpu.dot_dimension_numbers<[1], [0], [0], [1], [0, 0, 1, 1], [], []>} : vector<32x32xf32>, vector<32x128xf32>, vector<32x128xf32> -> vector<32x128xf32>
    %466 = arith.addf %463, %465 : vector<32x128xf32>
    %467 = vector.extract_strided_slice %466 {offsets = [0, 0], sizes = [32, 64], strides = [1, 1]} : vector<32x128xf32> to vector<32x64xf32>
    %cst_149 = arith.constant dense<0.000000e+00> : vector<32x64xf32>
    %468 = tpu.matmul %2, %467, %cst_149 {dimension_numbers = #tpu.dot_dimension_numbers<[1], [0], [0], [1], [0, 0, 1, 1], [], []>} : vector<32x32xf32>, vector<32x64xf32>, vector<32x64xf32> -> vector<32x64xf32>
    %469 = arith.addf %271, %468 : vector<32x64xf32>
    %470 = vector.extract_strided_slice %466 {offsets = [0, 64], sizes = [32, 64], strides = [1, 1]} : vector<32x128xf32> to vector<32x64xf32>
    %cst_150 = arith.constant dense<0.000000e+00> : vector<32x64xf32>
    %471 = tpu.matmul %4, %470, %cst_150 {dimension_numbers = #tpu.dot_dimension_numbers<[1], [0], [0], [1], [0, 0, 1, 1], [], []>} : vector<32x32xf32>, vector<32x64xf32>, vector<32x64xf32> -> vector<32x64xf32>
    %472 = arith.addf %469, %471 : vector<32x64xf32>
    %473 = arith.negf %472 : vector<32x64xf32>
    %474 = math.exp %473 : vector<32x64xf32>
    %cst_151 = arith.constant 1.000000e+00 : f32
    %475 = vector.broadcast %cst_151 : f32 to vector<32x64xf32>
    %476 = arith.addf %475, %474 : vector<32x64xf32>
    %477 = arith.divf %475, %476 : vector<32x64xf32>
    %478 = vector.extract_strided_slice %477 {offsets = [0, 0], sizes = [32, 32], strides = [1, 1]} : vector<32x64xf32> to vector<32x32xf32>
    %479 = vector.extract_strided_slice %477 {offsets = [0, 32], sizes = [32, 32], strides = [1, 1]} : vector<32x64xf32> to vector<32x32xf32>
    %480 = arith.mulf %479, %461 : vector<32x32xf32>
    %cst_152 = arith.constant dense<0.000000e+00> : vector<32x64xf32>
    %481 = tpu.matmul %480, %268, %cst_152 {dimension_numbers = #tpu.dot_dimension_numbers<[1], [0], [0], [1], [0, 0, 1, 1], [], []>} : vector<32x32xf32>, vector<32x64xf32>, vector<32x64xf32> -> vector<32x64xf32>
    %482 = arith.addf %464, %481 : vector<32x64xf32>
    %483 = vector.extract_strided_slice %482 {offsets = [0, 0], sizes = [32, 32], strides = [1, 1]} : vector<32x64xf32> to vector<32x32xf32>
    %cst_153 = arith.constant dense<0.000000e+00> : vector<32x32xf32>
    %484 = tpu.matmul %2, %483, %cst_153 {dimension_numbers = #tpu.dot_dimension_numbers<[1], [0], [0], [1], [0, 0, 1, 1], [], []>} : vector<32x32xf32>, vector<32x32xf32>, vector<32x32xf32> -> vector<32x32xf32>
    %485 = arith.addf %274, %484 : vector<32x32xf32>
    %486 = vector.extract_strided_slice %482 {offsets = [0, 32], sizes = [32, 32], strides = [1, 1]} : vector<32x64xf32> to vector<32x32xf32>
    %cst_154 = arith.constant dense<0.000000e+00> : vector<32x32xf32>
    %487 = tpu.matmul %4, %486, %cst_154 {dimension_numbers = #tpu.dot_dimension_numbers<[1], [0], [0], [1], [0, 0, 1, 1], [], []>} : vector<32x32xf32>, vector<32x32xf32>, vector<32x32xf32> -> vector<32x32xf32>
    %488 = arith.addf %485, %487 : vector<32x32xf32>
    %489 = math.tanh %488 : vector<32x32xf32>
    %490 = arith.subf %489, %461 : vector<32x32xf32>
    %491 = arith.mulf %478, %490 : vector<32x32xf32>
    %492 = arith.addf %461, %491 : vector<32x32xf32>
    %c192_155 = arith.constant 192 : index
    %c0_156 = arith.constant 0 : index
    %493 = vector.load %arg13[%c192_155, %c0_156] : memref<256x32xf32, #tpu.memory_space<vmem>>, vector<32x32xf32>
    tpu.vector_store %arg13[%c192_155, %c0_156], %492 {strides = array<i32>} : memref<256x32xf32, #tpu.memory_space<vmem>>, vector<32x32xf32>,
    %494 = vector.extract_strided_slice %275 {offsets = [224, 0], sizes = [32, 128], strides = [1, 1]} : vector<256x192xf32> to vector<32x128xf32>
    %495 = vector.extract_strided_slice %275 {offsets = [224, 128], sizes = [32, 64], strides = [1, 1]} : vector<256x192xf32> to vector<32x64xf32>
    %cst_157 = arith.constant dense<0.000000e+00> : vector<32x128xf32>
    %496 = tpu.matmul %492, %267, %cst_157 {dimension_numbers = #tpu.dot_dimension_numbers<[1], [0], [0], [1], [0, 0, 1, 1], [], []>} : vector<32x32xf32>, vector<32x128xf32>, vector<32x128xf32> -> vector<32x128xf32>
    %497 = arith.addf %494, %496 : vector<32x128xf32>
    %498 = vector.extract_strided_slice %497 {offsets = [0, 0], sizes = [32, 64], strides = [1, 1]} : vector<32x128xf32> to vector<32x64xf32>
    %cst_158 = arith.constant dense<0.000000e+00> : vector<32x64xf32>
    %499 = tpu.matmul %2, %498, %cst_158 {dimension_numbers = #tpu.dot_dimension_numbers<[1], [0], [0], [1], [0, 0, 1, 1], [], []>} : vector<32x32xf32>, vector<32x64xf32>, vector<32x64xf32> -> vector<32x64xf32>
    %500 = arith.addf %271, %499 : vector<32x64xf32>
    %501 = vector.extract_strided_slice %497 {offsets = [0, 64], sizes = [32, 64], strides = [1, 1]} : vector<32x128xf32> to vector<32x64xf32>
    %cst_159 = arith.constant dense<0.000000e+00> : vector<32x64xf32>
    %502 = tpu.matmul %4, %501, %cst_159 {dimension_numbers = #tpu.dot_dimension_numbers<[1], [0], [0], [1], [0, 0, 1, 1], [], []>} : vector<32x32xf32>, vector<32x64xf32>, vector<32x64xf32> -> vector<32x64xf32>
    %503 = arith.addf %500, %502 : vector<32x64xf32>
    %504 = arith.negf %503 : vector<32x64xf32>
    %505 = math.exp %504 : vector<32x64xf32>
    %cst_160 = arith.constant 1.000000e+00 : f32
    %506 = vector.broadcast %cst_160 : f32 to vector<32x64xf32>
    %507 = arith.addf %506, %505 : vector<32x64xf32>
    %508 = arith.divf %506, %507 : vector<32x64xf32>
    %509 = vector.extract_strided_slice %508 {offsets = [0, 0], sizes = [32, 32], strides = [1, 1]} : vector<32x64xf32> to vector<32x32xf32>
    %510 = vector.extract_strided_slice %508 {offsets = [0, 32], sizes = [32, 32], strides = [1, 1]} : vector<32x64xf32> to vector<32x32xf32>
    %511 = arith.mulf %510, %492 : vector<32x32xf32>
    %cst_161 = arith.constant dense<0.000000e+00> : vector<32x64xf32>
    %512 = tpu.matmul %511, %268, %cst_161 {dimension_numbers = #tpu.dot_dimension_numbers<[1], [0], [0], [1], [0, 0, 1, 1], [], []>} : vector<32x32xf32>, vector<32x64xf32>, vector<32x64xf32> -> vector<32x64xf32>
    %513 = arith.addf %495, %512 : vector<32x64xf32>
    %514 = vector.extract_strided_slice %513 {offsets = [0, 0], sizes = [32, 32], strides = [1, 1]} : vector<32x64xf32> to vector<32x32xf32>
    %cst_162 = arith.constant dense<0.000000e+00> : vector<32x32xf32>
    %515 = tpu.matmul %2, %514, %cst_162 {dimension_numbers = #tpu.dot_dimension_numbers<[1], [0], [0], [1], [0, 0, 1, 1], [], []>} : vector<32x32xf32>, vector<32x32xf32>, vector<32x32xf32> -> vector<32x32xf32>
    %516 = arith.addf %274, %515 : vector<32x32xf32>
    %517 = vector.extract_strided_slice %513 {offsets = [0, 32], sizes = [32, 32], strides = [1, 1]} : vector<32x64xf32> to vector<32x32xf32>
    %cst_163 = arith.constant dense<0.000000e+00> : vector<32x32xf32>
    %518 = tpu.matmul %4, %517, %cst_163 {dimension_numbers = #tpu.dot_dimension_numbers<[1], [0], [0], [1], [0, 0, 1, 1], [], []>} : vector<32x32xf32>, vector<32x32xf32>, vector<32x32xf32> -> vector<32x32xf32>
    %519 = arith.addf %516, %518 : vector<32x32xf32>
    %520 = math.tanh %519 : vector<32x32xf32>
    %521 = arith.subf %520, %492 : vector<32x32xf32>
    %522 = arith.mulf %509, %521 : vector<32x32xf32>
    %523 = arith.addf %492, %522 : vector<32x32xf32>
    %c224_164 = arith.constant 224 : index
    %c0_165 = arith.constant 0 : index
    %524 = vector.load %arg13[%c224_164, %c0_165] : memref<256x32xf32, #tpu.memory_space<vmem>>, vector<32x32xf32>
    tpu.vector_store %arg13[%c224_164, %c0_165], %523 {strides = array<i32>} : memref<256x32xf32, #tpu.memory_space<vmem>>, vector<32x32xf32>,
    return
  }
  func.func @transform_0(%arg0: i32) -> (i32, i32, i32) {
    %c0_i32 = arith.constant 0 : i32
    %c0_i32_0 = arith.constant 0 : i32
    %c0_i32_1 = arith.constant 0 : i32
    %c0_i32_2 = arith.constant 0 : i32
    return %c0_i32, %c0_i32_0, %c0_i32_1 : i32, i32, i32
  }
  func.func @transform_1(%arg0: i32) -> (i32, i32) {
    %c0_i32 = arith.constant 0 : i32
    %c0_i32_0 = arith.constant 0 : i32
    %c0_i32_1 = arith.constant 0 : i32
    return %c0_i32, %c0_i32_0 : i32, i32
  }
  func.func @transform_2(%arg0: i32) -> (i32, i32) {
    %c0_i32 = arith.constant 0 : i32
    %c0_i32_0 = arith.constant 0 : i32
    %c0_i32_1 = arith.constant 0 : i32
    return %c0_i32, %c0_i32_0 : i32, i32
  }
  func.func @transform_3(%arg0: i32) -> (i32, i32) {
    %c0_i32 = arith.constant 0 : i32
    %c0_i32_0 = arith.constant 0 : i32
    %c0_i32_1 = arith.constant 0 : i32
    return %c0_i32, %c0_i32_0 : i32, i32
  }
  func.func @transform_4(%arg0: i32) -> (i32, i32) {
    %c0_i32 = arith.constant 0 : i32
    %c0_i32_0 = arith.constant 0 : i32
    %c0_i32_1 = arith.constant 0 : i32
    return %c0_i32, %c0_i32_0 : i32, i32
  }
  func.func @transform_5(%arg0: i32) -> (i32, i32) {
    %c0_i32 = arith.constant 0 : i32
    %c0_i32_0 = arith.constant 0 : i32
    %c0_i32_1 = arith.constant 0 : i32
    return %c0_i32, %c0_i32_0 : i32, i32
  }
  func.func @transform_6(%arg0: i32) -> (i32, i32) {
    %c0_i32 = arith.constant 0 : i32
    %c0_i32_0 = arith.constant 0 : i32
    %c0_i32_1 = arith.constant 0 : i32
    return %c0_i32, %c0_i32_0 : i32, i32
  }
  func.func @transform_7(%arg0: i32) -> (i32, i32) {
    %c0_i32 = arith.constant 0 : i32
    %c0_i32_0 = arith.constant 0 : i32
    %c0_i32_1 = arith.constant 0 : i32
    return %c0_i32, %c0_i32_0 : i32, i32
  }
  func.func @transform_8(%arg0: i32) -> (i32, i32) {
    %c0_i32 = arith.constant 0 : i32
    %c0_i32_0 = arith.constant 0 : i32
    %c0_i32_1 = arith.constant 0 : i32
    return %c0_i32, %c0_i32_0 : i32, i32
  }
  func.func @transform_9(%arg0: i32) -> (i32, i32) {
    %c0_i32 = arith.constant 0 : i32
    %c0_i32_0 = arith.constant 0 : i32
    %c0_i32_1 = arith.constant 0 : i32
    return %c0_i32, %c0_i32_0 : i32, i32
  }
  func.func @transform_10(%arg0: i32) -> (i32, i32) {
    %c0_i32 = arith.constant 0 : i32
    %c0_i32_0 = arith.constant 0 : i32
    %c0_i32_1 = arith.constant 0 : i32
    return %c0_i32, %c0_i32_0 : i32, i32
  }
  func.func @transform_11(%arg0: i32) -> (i32, i32) {
    %c0_i32 = arith.constant 0 : i32
    %c0_i32_0 = arith.constant 0 : i32
    %c0_i32_1 = arith.constant 0 : i32
    return %c0_i32, %c0_i32_0 : i32, i32
  }
  func.func @transform_12(%arg0: i32) -> (i32, i32) {
    %c0_i32 = arith.constant 0 : i32
    %c0_i32_0 = arith.constant 0 : i32
    %c0_i32_1 = arith.constant 0 : i32
    return %c0_i32, %c0_i32_0 : i32, i32
  }
}

</mosaic_0001>

<llo_original>
// kernel: tpu_custom_call.1
$region0: #{tpu_custom_call.1}
  #allocation0 [shape = 'u32[]', space=smem, size = 0x4, offset = 0x4, fixed_abs, tag = 'smem constant byte address 0x4 - core index']
  #allocation1 [shape = 'u32[144,128]{1,0:T(1,128)}', space=vmem, size = 0x12000, scoped, tag = 'internal scratch']
  #allocation2 [shape = 'f32[256,32]{1,0:T(8,128)}', space=vmem, size = 0x20000, scoped, tag = 'scratch operand']
  %s0 = inlined_call_operand.vmem [shape: f32[2,32,32], index: 0, kind: input, shape index: {}]
  %s1 = inlined_call_operand.vmem [shape: f32[256,4], index: 1, kind: input, shape index: {}]
  %s2 = inlined_call_operand.vmem [shape: f32[4,192], index: 2, kind: input, shape index: {}]
  %s3 = inlined_call_operand.vmem [shape: f32[32,128], index: 3, kind: input, shape index: {}]
  %s4 = inlined_call_operand.vmem [shape: f32[32,64], index: 4, kind: input, shape index: {}]
  %s5 = inlined_call_operand.vmem [shape: f32[1,64], index: 5, kind: input, shape index: {}]
  %s6 = inlined_call_operand.vmem [shape: f32[1,32], index: 6, kind: input, shape index: {}]
  %s7 = inlined_call_operand.vmem [shape: f32[32,192], index: 7, kind: input, shape index: {}]
  %s8 = inlined_call_operand.vmem [shape: f32[32,128], index: 8, kind: input, shape index: {}]
  %s9 = inlined_call_operand.vmem [shape: f32[32,64], index: 9, kind: input, shape index: {}]
  %s10 = inlined_call_operand.vmem [shape: f32[1,64], index: 10, kind: input, shape index: {}]
  %s11 = inlined_call_operand.vmem [shape: f32[1,32], index: 11, kind: input, shape index: {}]
  %s12 = inlined_call_operand.vmem [shape: f32[256,32], index: 12, kind: output, shape index: {}]
  %s13 = sld [smem:[#allocation0]]
  $region58: #{tpu_custom_call.1} parent=0
    _
  %s15 = ssub.s32 1, %s13
  %s16 = scalar_select 0, %s15, %s13
  // Predicated region
  $region2: #{tpu_custom_call.1} parent=0 // pred_check
    _
  $region3: #{tpu_custom_call.1} parent=0 // pred_check_branch
    %18 = sbr.rel (0) target = $region5
  $region4: #{tpu_custom_call.1} parent=0 // pred_region
    _
  $region5: #{tpu_custom_call.1} parent=0 // pred_fallthru
    _
  // Predicated region
  $region6: #{tpu_custom_call.1} parent=0 // pred_check
    _
  $region7: #{tpu_custom_call.1} parent=0 // pred_check_branch
    %20 = sbr.rel (0) target = $region9
  $region8: #{tpu_custom_call.1} parent=0 // pred_region
    _
  $region9: #{tpu_custom_call.1} parent=0 // pred_fallthru
    _
  // Predicated region
  $region10: #{tpu_custom_call.1} parent=0 // pred_check
    _
  $region11: #{tpu_custom_call.1} parent=0 // pred_check_branch
    %22 = sbr.rel (0) target = $region13
  $region12: #{tpu_custom_call.1} parent=0 // pred_region
    _
  $region13: #{tpu_custom_call.1} parent=0 // pred_fallthru
    _
  // Predicated region
  $region14: #{tpu_custom_call.1} parent=0 // pred_check
    _
  $region15: #{tpu_custom_call.1} parent=0 // pred_check_branch
    %24 = sbr.rel (0) target = $region17
  $region16: #{tpu_custom_call.1} parent=0 // pred_region
    _
  $region17: #{tpu_custom_call.1} parent=0 // pred_fallthru
    _
  // Predicated region
  $region18: #{tpu_custom_call.1} parent=0 // pred_check
    _
  $region19: #{tpu_custom_call.1} parent=0 // pred_check_branch
    %26 = sbr.rel (0) target = $region21
  $region20: #{tpu_custom_call.1} parent=0 // pred_region
    _
  $region21: #{tpu_custom_call.1} parent=0 // pred_fallthru
    _
  // Predicated region
  $region22: #{tpu_custom_call.1} parent=0 // pred_check
    _
  $region23: #{tpu_custom_call.1} parent=0 // pred_check_branch
    %28 = sbr.rel (0) target = $region25
  $region24: #{tpu_custom_call.1} parent=0 // pred_region
    _
  $region25: #{tpu_custom_call.1} parent=0 // pred_fallthru
    _
  // Predicated region
  $region26: #{tpu_custom_call.1} parent=0 // pred_check
    _
  $region27: #{tpu_custom_call.1} parent=0 // pred_check_branch
    %30 = sbr.rel (0) target = $region29
  $region28: #{tpu_custom_call.1} parent=0 // pred_region
    _
  $region29: #{tpu_custom_call.1} parent=0 // pred_fallthru
    _
  // Predicated region
  $region30: #{tpu_custom_call.1} parent=0 // pred_check
    _
  $region31: #{tpu_custom_call.1} parent=0 // pred_check_branch
    %32 = sbr.rel (0) target = $region33
  $region32: #{tpu_custom_call.1} parent=0 // pred_region
    _
  $region33: #{tpu_custom_call.1} parent=0 // pred_fallthru
    _
  // Predicated region
  $region34: #{tpu_custom_call.1} parent=0 // pred_check
    _
  $region35: #{tpu_custom_call.1} parent=0 // pred_check_branch
    %34 = sbr.rel (0) target = $region37
  $region36: #{tpu_custom_call.1} parent=0 // pred_region
    _
  $region37: #{tpu_custom_call.1} parent=0 // pred_fallthru
    _
  // Predicated region
  $region38: #{tpu_custom_call.1} parent=0 // pred_check
    _
  $region39: #{tpu_custom_call.1} parent=0 // pred_check_branch
    %36 = sbr.rel (0) target = $region41
  $region40: #{tpu_custom_call.1} parent=0 // pred_region
    _
  $region41: #{tpu_custom_call.1} parent=0 // pred_fallthru
    _
  // Predicated region
  $region42: #{tpu_custom_call.1} parent=0 // pred_check
    _
  $region43: #{tpu_custom_call.1} parent=0 // pred_check_branch
    %38 = sbr.rel (0) target = $region45
  $region44: #{tpu_custom_call.1} parent=0 // pred_region
    _
  $region45: #{tpu_custom_call.1} parent=0 // pred_fallthru
    _
  // Predicated region
  $region46: #{tpu_custom_call.1} parent=0 // pred_check
    _
  $region47: #{tpu_custom_call.1} parent=0 // pred_check_branch
    %40 = sbr.rel (0) target = $region49
  $region48: #{tpu_custom_call.1} parent=0 // pred_region
    _
  $region49: #{tpu_custom_call.1} parent=0 // pred_fallthru
    _
  %v41 = vld [vmem:[%s0] sm:$0xff]
  %v42 = vld [vmem:[%s0 + $0x8] sm:$0xff]
  %v43 = vld [vmem:[%s0 + $0x10] sm:$0xff]
  %v44 = vld [vmem:[%s0 + $0x18] sm:$0xff]
  %v45 = vld [vmem:[%s0 + $0x20] sm:$0xff]
  %v46 = vld [vmem:[%s0 + $0x28] sm:$0xff]
  %v47 = vld [vmem:[%s0 + $0x30] sm:$0xff]
  %v48 = vld [vmem:[%s0 + $0x38] sm:$0xff]
  %v49 = vld [vmem:[%s1] sm:$0xff]
  %v50 = vld [vmem:[%s1 + $0x8] sm:$0xff]
  %v51 = vld [vmem:[%s1 + $0x10] sm:$0xff]
  %v52 = vld [vmem:[%s1 + $0x18] sm:$0xff]
  %v53 = vld [vmem:[%s1 + $0x20] sm:$0xff]
  %v54 = vld [vmem:[%s1 + $0x28] sm:$0xff]
  %v55 = vld [vmem:[%s1 + $0x30] sm:$0xff]
  %v56 = vld [vmem:[%s1 + $0x38] sm:$0xff]
  %v57 = vld [vmem:[%s1 + $0x40] sm:$0xff]
  %v58 = vld [vmem:[%s1 + $0x48] sm:$0xff]
  %v59 = vld [vmem:[%s1 + $0x50] sm:$0xff]
  %v60 = vld [vmem:[%s1 + $0x58] sm:$0xff]
  %v61 = vld [vmem:[%s1 + $0x60] sm:$0xff]
  %v62 = vld [vmem:[%s1 + $0x68] sm:$0xff]
  %v63 = vld [vmem:[%s1 + $0x70] sm:$0xff]
  %v64 = vld [vmem:[%s1 + $0x78] sm:$0xff]
  %v65 = vld [vmem:[%s1 + $0x80] sm:$0xff]
  %v66 = vld [vmem:[%s1 + $0x88] sm:$0xff]
  %v67 = vld [vmem:[%s1 + $0x90] sm:$0xff]
  %v68 = vld [vmem:[%s1 + $0x98] sm:$0xff]
  %v69 = vld [vmem:[%s1 + $0xa0] sm:$0xff]
  %v70 = vld [vmem:[%s1 + $0xa8] sm:$0xff]
  %v71 = vld [vmem:[%s1 + $0xb0] sm:$0xff]
  %v72 = vld [vmem:[%s1 + $0xb8] sm:$0xff]
  %v73 = vld [vmem:[%s1 + $0xc0] sm:$0xff]
  %v74 = vld [vmem:[%s1 + $0xc8] sm:$0xff]
  %v75 = vld [vmem:[%s1 + $0xd0] sm:$0xff]
  %v76 = vld [vmem:[%s1 + $0xd8] sm:$0xff]
  %v77 = vld [vmem:[%s1 + $0xe0] sm:$0xff]
  %v78 = vld [vmem:[%s1 + $0xe8] sm:$0xff]
  %v79 = vld [vmem:[%s1 + $0xf0] sm:$0xff]
  %v80 = vld [vmem:[%s1 + $0xf8] sm:$0xff]
  %v81 = vld [vmem:[%s2] sm:$0xff]
  %v82 = vld [vmem:[%s3] sm:$0xff]
  %v83 = vld [vmem:[%s3 + $0x8] sm:$0xff]
  %v84 = vld [vmem:[%s3 + $0x10] sm:$0xff]
  %v85 = vld [vmem:[%s3 + $0x18] sm:$0xff]
  %v86 = vld [vmem:[%s4] sm:$0xff]
  %v87 = vld [vmem:[%s4 + $0x8] sm:$0xff]
  %v88 = vld [vmem:[%s4 + $0x10] sm:$0xff]
  %v89 = vld [vmem:[%s4 + $0x18] sm:$0xff]
  %v90 = vld [vmem:[%s5] sm:$0x1]
  %v92 = vlaneseq
  %v93 = vshrl.u32 %v92, 7
  %v94 = vsub.s32 0, %v93
  %v95 = vrot.slane %v90, %v94
  %v97 = vld [vmem:[%s6] sm:$0x1]
  %v99 = vlaneseq
  %v100 = vshrl.u32 %v99, 7
  %v101 = vsub.s32 0, %v100
  %v102 = vrot.slane %v97, %v101
  %v105 = vcombine.high %v81, %v81
  %vm106 = vcmask 31744
  %v108 = vsel %vm106, %v49, 0
  %v111 = vsel %vm106, %v50, 0
  %v114 = vsel %vm106, %v51, 0
  %v117 = vsel %vm106, %v52, 0
  %v120 = vsel %vm106, %v53, 0
  %v123 = vsel %vm106, %v54, 0
  %v126 = vsel %vm106, %v55, 0
  %v129 = vsel %vm106, %v56, 0
  %v132 = vsel %vm106, %v57, 0
  %v135 = vsel %vm106, %v58, 0
  %v138 = vsel %vm106, %v59, 0
  %v141 = vsel %vm106, %v60, 0
  %v144 = vsel %vm106, %v61, 0
  %v147 = vsel %vm106, %v62, 0
  %v150 = vsel %vm106, %v63, 0
  %v153 = vsel %vm106, %v64, 0
  %v156 = vsel %vm106, %v65, 0
  %v159 = vsel %vm106, %v66, 0
  %v162 = vsel %vm106, %v67, 0
  %v165 = vsel %vm106, %v68, 0
  %v168 = vsel %vm106, %v69, 0
  %v171 = vsel %vm106, %v70, 0
  %v174 = vsel %vm106, %v71, 0
  %v177 = vsel %vm106, %v72, 0
  %v180 = vsel %vm106, %v73, 0
  %v183 = vsel %vm106, %v74, 0
  %v186 = vsel %vm106, %v75, 0
  %v189 = vsel %vm106, %v76, 0
  %v192 = vsel %vm106, %v77, 0
  %v195 = vsel %vm106, %v78, 0
  %v198 = vsel %vm106, %v79, 0
  %v201 = vsel %vm106, %v80, 0
  %vm203 = vcmask 1043456
  %v204 = vsel %vm203, %v81, 0
  %v206 = vsel %vm203, %v105, 0
  %208 = vmatprep.subr.mxu0 %v206
  %209 = vmatpush1.msra.mxu0 %v204
  %210 = vmatprep.subr.mxu0 0.0
  %211 = vmatpush1.msra.mxu0 0.0
  %212 = vmatprep.subr.mxu0 0.0
  %213 = vmatpush1.msra.mxu0 0.0
  %214 = vmatprep.subr.mxu0 0.0
  %215 = vmatpush1.msra.mxu0 0.0
  %216 = vmatprep.subr.mxu0 0.0
  %217 = vmatpush1.msra.mxu0 0.0
  %218 = vmatprep.subr.mxu0 0.0
  %219 = vmatpush1.msra.mxu0 0.0
  %220 = vmatprep.subr.mxu0 0.0
  %221 = vmatpush1.msra.mxu0 0.0
  %222 = vmatprep.subr.mxu0 0.0
  %223 = vmatpush1.msra.mxu0 0.0
  %224 = vmatprep.subr.mxu0 0.0
  %225 = vmatpush1.msra.mxu0 0.0
  %226 = vmatprep.subr.mxu0 0.0
  %227 = vmatpush1.msra.mxu0 0.0
  %228 = vmatprep.subr.mxu0 0.0
  %229 = vmatpush1.msra.mxu0 0.0
  %230 = vmatprep.subr.mxu0 0.0
  %231 = vmatpush1.msra.mxu0 0.0
  %232 = vmatprep.subr.mxu0 0.0
  %233 = vmatpush1.msra.mxu0 0.0
  %234 = vmatprep.subr.mxu0 0.0
  %235 = vmatpush1.msra.mxu0 0.0
  %236 = vmatprep.subr.mxu0 0.0
  %237 = vmatpush1.msra.mxu0 0.0
  %238 = vmatprep.subr.mxu0 0.0
  %239 = vmatpush1.msra.mxu0 0.0
  %240 = vmatprep.subr.mxu0 0.0
  %241 = vmatpush1.msra.mxu0 0.0
  %242 = vmatprep.subr.mxu0 0.0
  %243 = vmatpush1.msra.mxu0 0.0
  %244 = vmatprep.subr.mxu0 0.0
  %245 = vmatpush1.msra.mxu0 0.0
  %246 = vmatprep.subr.mxu0 0.0
  %247 = vmatpush1.msra.mxu0 0.0
  %248 = vmatprep.subr.mxu0 0.0
  %249 = vmatpush1.msra.mxu0 0.0
  %250 = vmatprep.subr.mxu0 0.0
  %251 = vmatpush1.msra.mxu0 0.0
  %252 = vmatprep.subr.mxu0 0.0
  %253 = vmatpush1.msra.mxu0 0.0
  %254 = vmatprep.subr.mxu0 0.0
  %255 = vmatpush1.msra.mxu0 0.0
  %256 = vmatprep.subr.mxu0 0.0
  %257 = vmatpush1.msra.mxu0 0.0
  %258 = vmatprep.subr.mxu0 0.0
  %259 = vmatpush1.msra.mxu0 0.0
  %260 = vmatprep.subr.mxu0 0.0
  %261 = vmatpush1.msra.mxu0 0.0
  %262 = vmatprep.subr.mxu0 0.0
  %263 = vmatpush1.msra.mxu0 0.0
  %264 = vmatprep.subr.mxu0 0.0
  %265 = vmatpush1.msra.mxu0 0.0
  %266 = vmatprep.subr.mxu0 0.0
  %267 = vmatpush1.msra.mxu0 0.0
  %268 = vmatprep.subr.mxu0 0.0
  %269 = vmatpush1.msra.mxu0 0.0
  %270 = vmatprep.subr.mxu0 0.0
  %271 = vmatpush1.msra.mxu0 0.0
  %272 = vmatprep.mubr.f32.mxu0 0.0
  %273 = vmatmul.mubr.f32.gmra.mrb[0].mxu0 %v108
  %v274 = vpop.f32.mrb[0].mxu0
  %v275 = vadd.f32 0.0, %v274
  %v276 = vpop.f32.mrb[0].mxu0
  %v277 = vadd.f32 0.0, %v276
  %278 = vmatprep.mubr.f32.mxu0 0.0
  %279 = vmatmul.mubr.f32.gmra.mrb[0].mxu0 %v111
  %v280 = vpop.f32.mrb[0].mxu0
  %v281 = vadd.f32 0.0, %v280
  %v282 = vpop.f32.mrb[0].mxu0
  %v283 = vadd.f32 0.0, %v282
  %284 = vmatprep.mubr.f32.mxu0 0.0
  %285 = vmatmul.mubr.f32.gmra.mrb[0].mxu0 %v114
  %v286 = vpop.f32.mrb[0].mxu0
  %v287 = vadd.f32 0.0, %v286
  %v288 = vpop.f32.mrb[0].mxu0
  %v289 = vadd.f32 0.0, %v288
  %290 = vmatprep.mubr.f32.mxu0 0.0
  %291 = vmatmul.mubr.f32.gmra.mrb[0].mxu0 %v117
  %v292 = vpop.f32.mrb[0].mxu0
  %v293 = vadd.f32 0.0, %v292
  %v294 = vpop.f32.mrb[0].mxu0
  %v295 = vadd.f32 0.0, %v294
  %296 = vmatprep.mubr.f32.mxu0 0.0
  %297 = vmatmul.mubr.f32.gmra.mrb[0].mxu0 %v120
  %v298 = vpop.f32.mrb[0].mxu0
  %v299 = vadd.f32 0.0, %v298
  %v300 = vpop.f32.mrb[0].mxu0
  %v301 = vadd.f32 0.0, %v300
  %302 = vmatprep.mubr.f32.mxu0 0.0
  %303 = vmatmul.mubr.f32.gmra.mrb[0].mxu0 %v123
  %v304 = vpop.f32.mrb[0].mxu0
  %v305 = vadd.f32 0.0, %v304
  %v306 = vpop.f32.mrb[0].mxu0
  %v307 = vadd.f32 0.0, %v306
  %308 = vmatprep.mubr.f32.mxu0 0.0
  %309 = vmatmul.mubr.f32.gmra.mrb[0].mxu0 %v126
  %v310 = vpop.f32.mrb[0].mxu0
  %v311 = vadd.f32 0.0, %v310
  %v312 = vpop.f32.mrb[0].mxu0
  %v313 = vadd.f32 0.0, %v312
  %314 = vmatprep.mubr.f32.mxu0 0.0
  %315 = vmatmul.mubr.f32.gmra.mrb[0].mxu0 %v129
  %v316 = vpop.f32.mrb[0].mxu0
  %v317 = vadd.f32 0.0, %v316
  %v318 = vpop.f32.mrb[0].mxu0
  %v319 = vadd.f32 0.0, %v318
  %320 = vmatprep.mubr.f32.mxu0 0.0
  %321 = vmatmul.mubr.f32.gmra.mrb[0].mxu0 %v132
  %v322 = vpop.f32.mrb[0].mxu0
  %v323 = vadd.f32 0.0, %v322
  %v324 = vpop.f32.mrb[0].mxu0
  %v325 = vadd.f32 0.0, %v324
  %326 = vmatprep.mubr.f32.mxu0 0.0
  %327 = vmatmul.mubr.f32.gmra.mrb[0].mxu0 %v135
  %v328 = vpop.f32.mrb[0].mxu0
  %v329 = vadd.f32 0.0, %v328
  %v330 = vpop.f32.mrb[0].mxu0
  %v331 = vadd.f32 0.0, %v330
  %332 = vmatprep.mubr.f32.mxu0 0.0
  %333 = vmatmul.mubr.f32.gmra.mrb[0].mxu0 %v138
  %v334 = vpop.f32.mrb[0].mxu0
  %v335 = vadd.f32 0.0, %v334
  %v336 = vpop.f32.mrb[0].mxu0
  %v337 = vadd.f32 0.0, %v336
  %338 = vmatprep.mubr.f32.mxu0 0.0
  %339 = vmatmul.mubr.f32.gmra.mrb[0].mxu0 %v141
  %v340 = vpop.f32.mrb[0].mxu0
  %v341 = vadd.f32 0.0, %v340
  %v342 = vpop.f32.mrb[0].mxu0
  %v343 = vadd.f32 0.0, %v342
  %344 = vmatprep.mubr.f32.mxu0 0.0
  %345 = vmatmul.mubr.f32.gmra.mrb[0].mxu0 %v144
  %v346 = vpop.f32.mrb[0].mxu0
  %v347 = vadd.f32 0.0, %v346
  %v348 = vpop.f32.mrb[0].mxu0
  %v349 = vadd.f32 0.0, %v348
  %350 = vmatprep.mubr.f32.mxu0 0.0
  %351 = vmatmul.mubr.f32.gmra.mrb[0].mxu0 %v147
  %v352 = vpop.f32.mrb[0].mxu0
  %v353 = vadd.f32 0.0, %v352
  %v354 = vpop.f32.mrb[0].mxu0
  %v355 = vadd.f32 0.0, %v354
  %356 = vmatprep.mubr.f32.mxu0 0.0
  %357 = vmatmul.mubr.f32.gmra.mrb[0].mxu0 %v150
  %v358 = vpop.f32.mrb[0].mxu0
  %v359 = vadd.f32 0.0, %v358
  %v360 = vpop.f32.mrb[0].mxu0
  %v361 = vadd.f32 0.0, %v360
  %362 = vmatprep.mubr.f32.mxu0 0.0
  %363 = vmatmul.mubr.f32.gmra.mrb[0].mxu0 %v153
  %v364 = vpop.f32.mrb[0].mxu0
  %v365 = vadd.f32 0.0, %v364
  %v366 = vpop.f32.mrb[0].mxu0
  %v367 = vadd.f32 0.0, %v366
  %368 = vmatprep.mubr.f32.mxu0 0.0
  %369 = vmatmul.mubr.f32.gmra.mrb[0].mxu0 %v156
  %v370 = vpop.f32.mrb[0].mxu0
  %v371 = vadd.f32 0.0, %v370
  %v372 = vpop.f32.mrb[0].mxu0
  %v373 = vadd.f32 0.0, %v372
  %374 = vmatprep.mubr.f32.mxu0 0.0
  %375 = vmatmul.mubr.f32.gmra.mrb[0].mxu0 %v159
  %v376 = vpop.f32.mrb[0].mxu0
  %v377 = vadd.f32 0.0, %v376
  %v378 = vpop.f32.mrb[0].mxu0
  %v379 = vadd.f32 0.0, %v378
  %380 = vmatprep.mubr.f32.mxu0 0.0
  %381 = vmatmul.mubr.f32.gmra.mrb[0].mxu0 %v162
  %v382 = vpop.f32.mrb[0].mxu0
  %v383 = vadd.f32 0.0, %v382
  %v384 = vpop.f32.mrb[0].mxu0
  %v385 = vadd.f32 0.0, %v384
  %386 = vmatprep.mubr.f32.mxu0 0.0
  %387 = vmatmul.mubr.f32.gmra.mrb[0].mxu0 %v165
  %v388 = vpop.f32.mrb[0].mxu0
  %v389 = vadd.f32 0.0, %v388
  %v390 = vpop.f32.mrb[0].mxu0
  %v391 = vadd.f32 0.0, %v390
  %392 = vmatprep.mubr.f32.mxu0 0.0
  %393 = vmatmul.mubr.f32.gmra.mrb[0].mxu0 %v168
  %v394 = vpop.f32.mrb[0].mxu0
  %v395 = vadd.f32 0.0, %v394
  %v396 = vpop.f32.mrb[0].mxu0
  %v397 = vadd.f32 0.0, %v396
  %398 = vmatprep.mubr.f32.mxu0 0.0
  %399 = vmatmul.mubr.f32.gmra.mrb[0].mxu0 %v171
  %v400 = vpop.f32.mrb[0].mxu0
  %v401 = vadd.f32 0.0, %v400
  %v402 = vpop.f32.mrb[0].mxu0
  %v403 = vadd.f32 0.0, %v402
  %404 = vmatprep.mubr.f32.mxu0 0.0
  %405 = vmatmul.mubr.f32.gmra.mrb[0].mxu0 %v174
  %v406 = vpop.f32.mrb[0].mxu0
  %v407 = vadd.f32 0.0, %v406
  %v408 = vpop.f32.mrb[0].mxu0
  %v409 = vadd.f32 0.0, %v408
  %410 = vmatprep.mubr.f32.mxu0 0.0
  %411 = vmatmul.mubr.f32.gmra.mrb[0].mxu0 %v177
  %v412 = vpop.f32.mrb[0].mxu0
  %v413 = vadd.f32 0.0, %v412
  %v414 = vpop.f32.mrb[0].mxu0
  %v415 = vadd.f32 0.0, %v414
  %416 = vmatprep.mubr.f32.mxu0 0.0
  %417 = vmatmul.mubr.f32.gmra.mrb[0].mxu0 %v180
  %v418 = vpop.f32.mrb[0].mxu0
  %v419 = vadd.f32 0.0, %v418
  %v420 = vpop.f32.mrb[0].mxu0
  %v421 = vadd.f32 0.0, %v420
  %422 = vmatprep.mubr.f32.mxu0 0.0
  %423 = vmatmul.mubr.f32.gmra.mrb[0].mxu0 %v183
  %v424 = vpop.f32.mrb[0].mxu0
  %v425 = vadd.f32 0.0, %v424
  %v426 = vpop.f32.mrb[0].mxu0
  %v427 = vadd.f32 0.0, %v426
  %428 = vmatprep.mubr.f32.mxu0 0.0
  %429 = vmatmul.mubr.f32.gmra.mrb[0].mxu0 %v186
  %v430 = vpop.f32.mrb[0].mxu0
  %v431 = vadd.f32 0.0, %v430
  %v432 = vpop.f32.mrb[0].mxu0
  %v433 = vadd.f32 0.0, %v432
  %434 = vmatprep.mubr.f32.mxu0 0.0
  %435 = vmatmul.mubr.f32.gmra.mrb[0].mxu0 %v189
  %v436 = vpop.f32.mrb[0].mxu0
  %v437 = vadd.f32 0.0, %v436
  %v438 = vpop.f32.mrb[0].mxu0
  %v439 = vadd.f32 0.0, %v438
  %440 = vmatprep.mubr.f32.mxu0 0.0
  %441 = vmatmul.mubr.f32.gmra.mrb[0].mxu0 %v192
  %v442 = vpop.f32.mrb[0].mxu0
  %v443 = vadd.f32 0.0, %v442
  %v444 = vpop.f32.mrb[0].mxu0
  %v445 = vadd.f32 0.0, %v444
  %446 = vmatprep.mubr.f32.mxu0 0.0
  %447 = vmatmul.mubr.f32.gmra.mrb[0].mxu0 %v195
  %v448 = vpop.f32.mrb[0].mxu0
  %v449 = vadd.f32 0.0, %v448
  %v450 = vpop.f32.mrb[0].mxu0
  %v451 = vadd.f32 0.0, %v450
  %452 = vmatprep.mubr.f32.mxu0 0.0
  %453 = vmatmul.mubr.f32.gmra.mrb[0].mxu0 %v198
  %v454 = vpop.f32.mrb[0].mxu0
  %v455 = vadd.f32 0.0, %v454
  %v456 = vpop.f32.mrb[0].mxu0
  %v457 = vadd.f32 0.0, %v456
  %458 = vmatprep.mubr.f32.mxu0 0.0
  %459 = vmatmul.mubr.f32.gmra.mrb[0].mxu0 %v201
  %v460 = vpop.f32.mrb[0].mxu0
  %v461 = vadd.f32 0.0, %v460
  %v462 = vpop.f32.mrb[0].mxu0
  %v463 = vadd.f32 0.0, %v462
  %464 = vdwg.mxu0
  %vm465 = vcmask 261120
  %v467 = vsel %vm465, 0.0, 0
  %469 = vmatprep.subr.mxu0 0.0
  %470 = vmatpush1.msra.mxu0 %v82
  %471 = vmatprep.subr.mxu0 0.0
  %472 = vmatpush1.msra.mxu0 %v83
  %473 = vmatprep.subr.mxu0 0.0
  %474 = vmatpush1.msra.mxu0 %v84
  %475 = vmatprep.subr.mxu0 0.0
  %476 = vmatpush1.msra.mxu0 %v85
  %477 = vmatprep.subr.mxu0 0.0
  %478 = vmatpush1.msra.mxu0 0.0
  %479 = vmatprep.subr.mxu0 0.0
  %480 = vmatpush1.msra.mxu0 0.0
  %481 = vmatprep.subr.mxu0 0.0
  %482 = vmatpush1.msra.mxu0 0.0
  %483 = vmatprep.subr.mxu0 0.0
  %484 = vmatpush1.msra.mxu0 0.0
  %485 = vmatprep.subr.mxu0 0.0
  %486 = vmatpush1.msra.mxu0 0.0
  %487 = vmatprep.subr.mxu0 0.0
  %488 = vmatpush1.msra.mxu0 0.0
  %489 = vmatprep.subr.mxu0 0.0
  %490 = vmatpush1.msra.mxu0 0.0
  %491 = vmatprep.subr.mxu0 0.0
  %492 = vmatpush1.msra.mxu0 0.0
  %493 = vmatprep.subr.mxu0 0.0
  %494 = vmatpush1.msra.mxu0 0.0
  %495 = vmatprep.subr.mxu0 0.0
  %496 = vmatpush1.msra.mxu0 0.0
  %497 = vmatprep.subr.mxu0 0.0
  %498 = vmatpush1.msra.mxu0 0.0
  %499 = vmatprep.subr.mxu0 0.0
  %500 = vmatpush1.msra.mxu0 0.0
  %501 = vmatprep.subr.mxu0 0.0
  %502 = vmatpush1.msra.mxu0 0.0
  %503 = vmatprep.subr.mxu0 0.0
  %504 = vmatpush1.msra.mxu0 0.0
  %505 = vmatprep.subr.mxu0 0.0
  %506 = vmatpush1.msra.mxu0 0.0
  %507 = vmatprep.subr.mxu0 0.0
  %508 = vmatpush1.msra.mxu0 0.0
  %509 = vmatprep.subr.mxu0 0.0
  %510 = vmatpush1.msra.mxu0 0.0
  %511 = vmatprep.subr.mxu0 0.0
  %512 = vmatpush1.msra.mxu0 0.0
  %513 = vmatprep.subr.mxu0 0.0
  %514 = vmatpush1.msra.mxu0 0.0
  %515 = vmatprep.subr.mxu0 0.0
  %516 = vmatpush1.msra.mxu0 0.0
  %517 = vmatprep.subr.mxu0 0.0
  %518 = vmatpush1.msra.mxu0 0.0
  %519 = vmatprep.subr.mxu0 0.0
  %520 = vmatpush1.msra.mxu0 0.0
  %521 = vmatprep.subr.mxu0 0.0
  %522 = vmatpush1.msra.mxu0 0.0
  %523 = vmatprep.subr.mxu0 0.0
  %524 = vmatpush1.msra.mxu0 0.0
  %525 = vmatprep.subr.mxu0 0.0
  %526 = vmatpush1.msra.mxu0 0.0
  %527 = vmatprep.subr.mxu0 0.0
  %528 = vmatpush1.msra.mxu0 0.0
  %529 = vmatprep.subr.mxu0 0.0
  %530 = vmatpush1.msra.mxu0 0.0
  %531 = vmatprep.subr.mxu0 0.0
  %532 = vmatpush1.msra.mxu0 0.0
  %533 = vmatprep.mubr.f32.mxu0 0.0
  %534 = vmatmul.mubr.f32.gmra.mrb[0].mxu0 %v467
  %v535 = vpop.f32.mrb[0].mxu0
  %v536 = vadd.f32 0.0, %v535
  %v537 = vpop.f32.mrb[0].mxu0
  %538 = vmatprep.mubr.f32.mxu0 0.0
  %539 = vmatmul.mubr.f32.gmra.mrb[0].mxu0 %v467
  %v540 = vpop.f32.mrb[0].mxu0
  %v541 = vadd.f32 0.0, %v540
  %v542 = vpop.f32.mrb[0].mxu0
  %543 = vmatprep.mubr.f32.mxu0 0.0
  %544 = vmatmul.mubr.f32.gmra.mrb[0].mxu0 %v467
  %v545 = vpop.f32.mrb[0].mxu0
  %v546 = vadd.f32 0.0, %v545
  %v547 = vpop.f32.mrb[0].mxu0
  %548 = vmatprep.mubr.f32.mxu0 0.0
  %549 = vmatmul.mubr.f32.gmra.mrb[0].mxu0 %v467
  %v550 = vpop.f32.mrb[0].mxu0
  %v551 = vadd.f32 0.0, %v550
  %v552 = vpop.f32.mrb[0].mxu0
  %553 = vdwg.mxu0
  %v554 = vadd.f32 %v275, %v536
  %v555 = vadd.f32 %v281, %v541
  %v556 = vadd.f32 %v287, %v546
  %v557 = vadd.f32 %v293, %v551
  %v559 = vsel %vm465, %v41, 0
  %v562 = vsel %vm465, %v42, 0
  %v565 = vsel %vm465, %v43, 0
  %v568 = vsel %vm465, %v44, 0
  %570 = vmatprep.subr.mxu0 0.0
  %571 = vmatpush1.msra.mxu0 %v554
  %572 = vmatprep.subr.mxu0 0.0
  %573 = vmatpush1.msra.mxu0 %v555
  %574 = vmatprep.subr.mxu0 0.0
  %575 = vmatpush1.msra.mxu0 %v556
  %576 = vmatprep.subr.mxu0 0.0
  %577 = vmatpush1.msra.mxu0 %v557
  %578 = vmatprep.subr.mxu0 0.0
  %579 = vmatpush1.msra.mxu0 0.0
  %580 = vmatprep.subr.mxu0 0.0
  %581 = vmatpush1.msra.mxu0 0.0
  %582 = vmatprep.subr.mxu0 0.0
  %583 = vmatpush1.msra.mxu0 0.0
  %584 = vmatprep.subr.mxu0 0.0
  %585 = vmatpush1.msra.mxu0 0.0
  %586 = vmatprep.subr.mxu0 0.0
  %587 = vmatpush1.msra.mxu0 0.0
  %588 = vmatprep.subr.mxu0 0.0
  %589 = vmatpush1.msra.mxu0 0.0
  %590 = vmatprep.subr.mxu0 0.0
  %591 = vmatpush1.msra.mxu0 0.0
  %592 = vmatprep.subr.mxu0 0.0
  %593 = vmatpush1.msra.mxu0 0.0
  %594 = vmatprep.subr.mxu0 0.0
  %595 = vmatpush1.msra.mxu0 0.0
  %596 = vmatprep.subr.mxu0 0.0
  %597 = vmatpush1.msra.mxu0 0.0
  %598 = vmatprep.subr.mxu0 0.0
  %599 = vmatpush1.msra.mxu0 0.0
  %600 = vmatprep.subr.mxu0 0.0
  %601 = vmatpush1.msra.mxu0 0.0
  %602 = vmatprep.subr.mxu0 0.0
  %603 = vmatpush1.msra.mxu0 0.0
  %604 = vmatprep.subr.mxu0 0.0
  %605 = vmatpush1.msra.mxu0 0.0
  %606 = vmatprep.subr.mxu0 0.0
  %607 = vmatpush1.msra.mxu0 0.0
  %608 = vmatprep.subr.mxu0 0.0
  %609 = vmatpush1.msra.mxu0 0.0
  %610 = vmatprep.subr.mxu0 0.0
  %611 = vmatpush1.msra.mxu0 0.0
  %612 = vmatprep.subr.mxu0 0.0
  %613 = vmatpush1.msra.mxu0 0.0
  %614 = vmatprep.subr.mxu0 0.0
  %615 = vmatpush1.msra.mxu0 0.0
  %616 = vmatprep.subr.mxu0 0.0
  %617 = vmatpush1.msra.mxu0 0.0
  %618 = vmatprep.subr.mxu0 0.0
  %619 = vmatpush1.msra.mxu0 0.0
  %620 = vmatprep.subr.mxu0 0.0
  %621 = vmatpush1.msra.mxu0 0.0
  %622 = vmatprep.subr.mxu0 0.0
  %623 = vmatpush1.msra.mxu0 0.0
  %624 = vmatprep.subr.mxu0 0.0
  %625 = vmatpush1.msra.mxu0 0.0
  %626 = vmatprep.subr.mxu0 0.0
  %627 = vmatpush1.msra.mxu0 0.0
  %628 = vmatprep.subr.mxu0 0.0
  %629 = vmatpush1.msra.mxu0 0.0
  %630 = vmatprep.subr.mxu0 0.0
  %631 = vmatpush1.msra.mxu0 0.0
  %632 = vmatprep.subr.mxu0 0.0
  %633 = vmatpush1.msra.mxu0 0.0
  %634 = vmatprep.mubr.f32.mxu0 0.0
  %635 = vmatmul.mubr.f32.gmra.mrb[0].mxu0 %v559
  %v636 = vpop.f32.mrb[0].mxu0
  %v637 = vadd.f32 0.0, %v636
  %v638 = vpop.f32.mrb[0].mxu0
  %639 = vmatprep.mubr.f32.mxu0 0.0
  %640 = vmatmul.mubr.f32.gmra.mrb[0].mxu0 %v562
  %v641 = vpop.f32.mrb[0].mxu0
  %v642 = vadd.f32 0.0, %v641
  %v643 = vpop.f32.mrb[0].mxu0
  %644 = vmatprep.mubr.f32.mxu0 0.0
  %645 = vmatmul.mubr.f32.gmra.mrb[0].mxu0 %v565
  %v646 = vpop.f32.mrb[0].mxu0
  %v647 = vadd.f32 0.0, %v646
  %v648 = vpop.f32.mrb[0].mxu0
  %649 = vmatprep.mubr.f32.mxu0 0.0
  %650 = vmatmul.mubr.f32.gmra.mrb[0].mxu0 %v568
  %v651 = vpop.f32.mrb[0].mxu0
  %v652 = vadd.f32 0.0, %v651
  %v653 = vpop.f32.mrb[0].mxu0
  %654 = vdwg.mxu0
  %v655 = vadd.f32 %v95, %v637
  %v656 = vadd.f32 %v95, %v642
  %v657 = vadd.f32 %v95, %v647
  %v658 = vadd.f32 %v95, %v652
  %663 = vrot.lane.b32.xlu0 %v554, 64
  %v664 = vpop.permute.xlu0 %663
  %665 = vrot.lane.b32.xlu0 %v555, 64
  %v666 = vpop.permute.xlu0 %665
  %667 = vrot.lane.b32.xlu0 %v556, 64
  %v668 = vpop.permute.xlu0 %667
  %669 = vrot.lane.b32.xlu0 %v557, 64
  %v670 = vpop.permute.xlu0 %669
  %v676 = vsel %vm465, %v45, 0
  %v679 = vsel %vm465, %v46, 0
  %v682 = vsel %vm465, %v47, 0
  %v685 = vsel %vm465, %v48, 0
  %687 = vmatprep.subr.mxu0 0.0
  %688 = vmatpush1.msra.mxu0 %v664
  %689 = vmatprep.subr.mxu0 0.0
  %690 = vmatpush1.msra.mxu0 %v666
  %691 = vmatprep.subr.mxu0 0.0
  %692 = vmatpush1.msra.mxu0 %v668
  %693 = vmatprep.subr.mxu0 0.0
  %694 = vmatpush1.msra.mxu0 %v670
  %695 = vmatprep.subr.mxu0 0.0
  %696 = vmatpush1.msra.mxu0 0.0
  %697 = vmatprep.subr.mxu0 0.0
  %698 = vmatpush1.msra.mxu0 0.0
  %699 = vmatprep.subr.mxu0 0.0
  %700 = vmatpush1.msra.mxu0 0.0
  %701 = vmatprep.subr.mxu0 0.0
  %702 = vmatpush1.msra.mxu0 0.0
  %703 = vmatprep.subr.mxu0 0.0
  %704 = vmatpush1.msra.mxu0 0.0
  %705 = vmatprep.subr.mxu0 0.0
  %706 = vmatpush1.msra.mxu0 0.0
  %707 = vmatprep.subr.mxu0 0.0
  %708 = vmatpush1.msra.mxu0 0.0
  %709 = vmatprep.subr.mxu0 0.0
  %710 = vmatpush1.msra.mxu0 0.0
  %711 = vmatprep.subr.mxu0 0.0
  %712 = vmatpush1.msra.mxu0 0.0
  %713 = vmatprep.subr.mxu0 0.0
  %714 = vmatpush1.msra.mxu0 0.0
  %715 = vmatprep.subr.mxu0 0.0
  %716 = vmatpush1.msra.mxu0 0.0
  %717 = vmatprep.subr.mxu0 0.0
  %718 = vmatpush1.msra.mxu0 0.0
  %719 = vmatprep.subr.mxu0 0.0
  %720 = vmatpush1.msra.mxu0 0.0
  %721 = vmatprep.subr.mxu0 0.0
  %722 = vmatpush1.msra.mxu0 0.0
  %723 = vmatprep.subr.mxu0 0.0
  %724 = vmatpush1.msra.mxu0 0.0
  %725 = vmatprep.subr.mxu0 0.0
  %726 = vmatpush1.msra.mxu0 0.0
  %727 = vmatprep.subr.mxu0 0.0
  %728 = vmatpush1.msra.mxu0 0.0
  %729 = vmatprep.subr.mxu0 0.0
  %730 = vmatpush1.msra.mxu0 0.0
  %731 = vmatprep.subr.mxu0 0.0
  %732 = vmatpush1.msra.mxu0 0.0
  %733 = vmatprep.subr.mxu0 0.0
  %734 = vmatpush1.msra.mxu0 0.0
  %735 = vmatprep.subr.mxu0 0.0
  %736 = vmatpush1.msra.mxu0 0.0
  %737 = vmatprep.subr.mxu0 0.0
  %738 = vmatpush1.msra.mxu0 0.0
  %739 = vmatprep.subr.mxu0 0.0
  %740 = vmatpush1.msra.mxu0 0.0
  %741 = vmatprep.subr.mxu0 0.0
  %742 = vmatpush1.msra.mxu0 0.0
  %743 = vmatprep.subr.mxu0 0.0
  %744 = vmatpush1.msra.mxu0 0.0
  %745 = vmatprep.subr.mxu0 0.0
  %746 = vmatpush1.msra.mxu0 0.0
  %747 = vmatprep.subr.mxu0 0.0
  %748 = vmatpush1.msra.mxu0 0.0
  %749 = vmatprep.subr.mxu0 0.0
  %750 = vmatpush1.msra.mxu0 0.0
  %751 = vmatprep.mubr.f32.mxu0 0.0
  %752 = vmatmul.mubr.f32.gmra.mrb[0].mxu0 %v676
  %v753 = vpop.f32.mrb[0].mxu0
  %v754 = vadd.f32 0.0, %v753
  %v755 = vpop.f32.mrb[0].mxu0
  %756 = vmatprep.mubr.f32.mxu0 0.0
  %757 = vmatmul.mubr.f32.gmra.mrb[0].mxu0 %v679
  %v758 = vpop.f32.mrb[0].mxu0
  %v759 = vadd.f32 0.0, %v758
  %v760 = vpop.f32.mrb[0].mxu0
  %761 = vmatprep.mubr.f32.mxu0 0.0
  %762 = vmatmul.mubr.f32.gmra.mrb[0].mxu0 %v682
  %v763 = vpop.f32.mrb[0].mxu0
  %v764 = vadd.f32 0.0, %v763
  %v765 = vpop.f32.mrb[0].mxu0
  %766 = vmatprep.mubr.f32.mxu0 0.0
  %767 = vmatmul.mubr.f32.gmra.mrb[0].mxu0 %v685
  %v768 = vpop.f32.mrb[0].mxu0
  %v769 = vadd.f32 0.0, %v768
  %v770 = vpop.f32.mrb[0].mxu0
  %771 = vdwg.mxu0
  %v772 = vadd.f32 %v655, %v754
  %v773 = vadd.f32 %v656, %v759
  %v774 = vadd.f32 %v657, %v764
  %v775 = vadd.f32 %v658, %v769
  %v776 = vxor.u32 %v772, 2147483648
  %v777 = vxor.u32 %v773, 2147483648
  %v778 = vxor.u32 %v774, 2147483648
  %v779 = vxor.u32 %v775, 2147483648
  %v780 = vmul.f32 %v776, 1.442695
  %v781 = vpow.pop %v780
  %v782 = vmul.f32 %v777, 1.442695
  %v783 = vpow.pop %v782
  %v784 = vmul.f32 %v778, 1.442695
  %v785 = vpow.pop %v784
  %v786 = vmul.f32 %v779, 1.442695
  %v787 = vpow.pop %v786
  %v788 = vadd.f32 %v781, 1.0
  %v789 = vadd.f32 %v783, 1.0
  %v790 = vadd.f32 %v785, 1.0
  %v791 = vadd.f32 %v787, 1.0
  %v792 = vrcp.pop %v788
  %v793 = vmul.f32 1.0, %v792
  %v794 = vrcp.pop %v789
  %v795 = vmul.f32 1.0, %v794
  %v796 = vrcp.pop %v790
  %v797 = vmul.f32 1.0, %v796
  %v798 = vrcp.pop %v791
  %v799 = vmul.f32 1.0, %v798
  %v800 = vmul.f32 %v793, 0.0
  %v801 = vmul.f32 %v795, 0.0
  %v802 = vmul.f32 %v797, 0.0
  %v803 = vmul.f32 %v799, 0.0
  %808 = vrot.lane.b32.xlu0 %v800, 96
  %v809 = vpop.permute.xlu0 %808
  %810 = vrot.lane.b32.xlu0 %v801, 96
  %v811 = vpop.permute.xlu0 %810
  %812 = vrot.lane.b32.xlu0 %v802, 96
  %v813 = vpop.permute.xlu0 %812
  %814 = vrot.lane.b32.xlu0 %v803, 96
  %v815 = vpop.permute.xlu0 %814
  %v816 = vsel %vm465, %v809, 0
  %v818 = vsel %vm465, %v811, 0
  %v820 = vsel %vm465, %v813, 0
  %v822 = vsel %vm465, %v815, 0
  %824 = vmatprep.subr.mxu0 0.0
  %825 = vmatpush1.msra.mxu0 %v86
  %826 = vmatprep.subr.mxu0 0.0
  %827 = vmatpush1.msra.mxu0 %v87
  %828 = vmatprep.subr.mxu0 0.0
  %829 = vmatpush1.msra.mxu0 %v88
  %830 = vmatprep.subr.mxu0 0.0
  %831 = vmatpush1.msra.mxu0 %v89
  %832 = vmatprep.subr.mxu0 0.0
  %833 = vmatpush1.msra.mxu0 0.0
  %834 = vmatprep.subr.mxu0 0.0
  %835 = vmatpush1.msra.mxu0 0.0
  %836 = vmatprep.subr.mxu0 0.0
  %837 = vmatpush1.msra.mxu0 0.0
  %838 = vmatprep.subr.mxu0 0.0
  %839 = vmatpush1.msra.mxu0 0.0
  %840 = vmatprep.subr.mxu0 0.0
  %841 = vmatpush1.msra.mxu0 0.0
  %842 = vmatprep.subr.mxu0 0.0
  %843 = vmatpush1.msra.mxu0 0.0
  %844 = vmatprep.subr.mxu0 0.0
  %845 = vmatpush1.msra.mxu0 0.0
  %846 = vmatprep.subr.mxu0 0.0
  %847 = vmatpush1.msra.mxu0 0.0
  %848 = vmatprep.subr.mxu0 0.0
  %849 = vmatpush1.msra.mxu0 0.0
  %850 = vmatprep.subr.mxu0 0.0
  %851 = vmatpush1.msra.mxu0 0.0
  %852 = vmatprep.subr.mxu0 0.0
  %853 = vmatpush1.msra.mxu0 0.0
  %854 = vmatprep.subr.mxu0 0.0
  %855 = vmatpush1.msra.mxu0 0.0
  %856 = vmatprep.subr.mxu0 0.0
  %857 = vmatpush1.msra.mxu0 0.0
  %858 = vmatprep.subr.mxu0 0.0
  %859 = vmatpush1.msra.mxu0 0.0
  %860 = vmatprep.subr.mxu0 0.0
  %861 = vmatpush1.msra.mxu0 0.0
  %862 = vmatprep.subr.mxu0 0.0
  %863 = vmatpush1.msra.mxu0 0.0
  %864 = vmatprep.subr.mxu0 0.0
  %865 = vmatpush1.msra.mxu0 0.0
  %866 = vmatprep.subr.mxu0 0.0
  %867 = vmatpush1.msra.mxu0 0.0
  %868 = vmatprep.subr.mxu0 0.0
  %869 = vmatpush1.msra.mxu0 0.0
  %870 = vmatprep.subr.mxu0 0.0
  %871 = vmatpush1.msra.mxu0 0.0
  %872 = vmatprep.subr.mxu0 0.0
  %873 = vmatpush1.msra.mxu0 0.0
  %874 = vmatprep.subr.mxu0 0.0
  %875 = vmatpush1.msra.mxu0 0.0
  %876 = vmatprep.subr.mxu0 0.0
  %877 = vmatpush1.msra.mxu0 0.0
  %878 = vmatprep.subr.mxu0 0.0
  %879 = vmatpush1.msra.mxu0 0.0
  %880 = vmatprep.subr.mxu0 0.0
  %881 = vmatpush1.msra.mxu0 0.0
  %882 = vmatprep.subr.mxu0 0.0
  %883 = vmatpush1.msra.mxu0 0.0
  %884 = vmatprep.subr.mxu0 0.0
  %885 = vmatpush1.msra.mxu0 0.0
  %886 = vmatprep.subr.mxu0 0.0
  %887 = vmatpush1.msra.mxu0 0.0
  %888 = vmatprep.mubr.f32.mxu0 0.0
  %889 = vmatmul.mubr.f32.gmra.mrb[0].mxu0 %v816
  %v890 = vpop.f32.mrb[0].mxu0
  %v891 = vadd.f32 0.0, %v890
  %v892 = vpop.f32.mrb[0].mxu0
  %893 = vmatprep.mubr.f32.mxu0 0.0
  %894 = vmatmul.mubr.f32.gmra.mrb[0].mxu0 %v818
  %v895 = vpop.f32.mrb[0].mxu0
  %v896 = vadd.f32 0.0, %v895
  %v897 = vpop.f32.mrb[0].mxu0
  %898 = vmatprep.mubr.f32.mxu0 0.0
  %899 = vmatmul.mubr.f32.gmra.mrb[0].mxu0 %v820
  %v900 = vpop.f32.mrb[0].mxu0
  %v901 = vadd.f32 0.0, %v900
  %v902 = vpop.f32.mrb[0].mxu0
  %903 = vmatprep.mubr.f32.mxu0 0.0
  %904 = vmatmul.mubr.f32.gmra.mrb[0].mxu0 %v822
  %v905 = vpop.f32.mrb[0].mxu0
  %v906 = vadd.f32 0.0, %v905
  %v907 = vpop.f32.mrb[0].mxu0
  %908 = vdwg.mxu0
  %v909 = vadd.f32 %v277, %v891
  %v910 = vadd.f32 %v283, %v896
  %v911 = vadd.f32 %v289, %v901
  %v912 = vadd.f32 %v295, %v906
  %913 = vmatprep.subr.mxu0 0.0
  %914 = vmatpush1.msra.mxu0 %v909
  %915 = vmatprep.subr.mxu0 0.0
  %916 = vmatpush1.msra.mxu0 %v910
  %917 = vmatprep.subr.mxu0 0.0
  %918 = vmatpush1.msra.mxu0 %v911
  %919 = vmatprep.subr.mxu0 0.0
  %920 = vmatpush1.msra.mxu0 %v912
  %921 = vmatprep.subr.mxu0 0.0
  %922 = vmatpush1.msra.mxu0 0.0
  %923 = vmatprep.subr.mxu0 0.0
  %924 = vmatpush1.msra.mxu0 0.0
  %925 = vmatprep.subr.mxu0 0.0
  %926 = vmatpush1.msra.mxu0 0.0
  %927 = vmatprep.subr.mxu0 0.0
  %928 = vmatpush1.msra.mxu0 0.0
  %929 = vmatprep.subr.mxu0 0.0
  %930 = vmatpush1.msra.mxu0 0.0
  %931 = vmatprep.subr.mxu0 0.0
  %932 = vmatpush1.msra.mxu0 0.0
  %933 = vmatprep.subr.mxu0 0.0
  %934 = vmatpush1.msra.mxu0 0.0
  %935 = vmatprep.subr.mxu0 0.0
  %936 = vmatpush1.msra.mxu0 0.0
  %937 = vmatprep.subr.mxu0 0.0
  %938 = vmatpush1.msra.mxu0 0.0
  %939 = vmatprep.subr.mxu0 0.0
  %940 = vmatpush1.msra.mxu0 0.0
  %941 = vmatprep.subr.mxu0 0.0
  %942 = vmatpush1.msra.mxu0 0.0
  %943 = vmatprep.subr.mxu0 0.0
  %944 = vmatpush1.msra.mxu0 0.0
  %945 = vmatprep.subr.mxu0 0.0
  %946 = vmatpush1.msra.mxu0 0.0
  %947 = vmatprep.subr.mxu0 0.0
  %948 = vmatpush1.msra.mxu0 0.0
  %949 = vmatprep.subr.mxu0 0.0
  %950 = vmatpush1.msra.mxu0 0.0
  %951 = vmatprep.subr.mxu0 0.0
  %952 = vmatpush1.msra.mxu0 0.0
  %953 = vmatprep.subr.mxu0 0.0
  %954 = vmatpush1.msra.mxu0 0.0
  %955 = vmatprep.subr.mxu0 0.0
  %956 = vmatpush1.msra.mxu0 0.0
  %957 = vmatprep.subr.mxu0 0.0
  %958 = vmatpush1.msra.mxu0 0.0
  %959 = vmatprep.subr.mxu0 0.0
  %960 = vmatpush1.msra.mxu0 0.0
  %961 = vmatprep.subr.mxu0 0.0
  %962 = vmatpush1.msra.mxu0 0.0
  %963 = vmatprep.subr.mxu0 0.0
  %964 = vmatpush1.msra.mxu0 0.0
  %965 = vmatprep.subr.mxu0 0.0
  %966 = vmatpush1.msra.mxu0 0.0
  %967 = vmatprep.subr.mxu0 0.0
  %968 = vmatpush1.msra.mxu0 0.0
  %969 = vmatprep.subr.mxu0 0.0
  %970 = vmatpush1.msra.mxu0 0.0
  %971 = vmatprep.subr.mxu0 0.0
  %972 = vmatpush1.msra.mxu0 0.0
  %973 = vmatprep.subr.mxu0 0.0
  %974 = vmatpush1.msra.mxu0 0.0
  %975 = vmatprep.subr.mxu0 0.0
  %976 = vmatpush1.msra.mxu0 0.0
  %977 = vmatprep.mubr.f32.mxu0 0.0
  %978 = vmatmul.mubr.f32.gmra.mrb[0].mxu0 %v559
  %v979 = vpop.f32.mrb[0].mxu0
  %v980 = vadd.f32 0.0, %v979
  %v981 = vpop.f32.mrb[0].mxu0
  %982 = vmatprep.mubr.f32.mxu0 0.0
  %983 = vmatmul.mubr.f32.gmra.mrb[0].mxu0 %v562
  %v984 = vpop.f32.mrb[0].mxu0
  %v985 = vadd.f32 0.0, %v984
  %v986 = vpop.f32.mrb[0].mxu0
  %987 = vmatprep.mubr.f32.mxu0 0.0
  %988 = vmatmul.mubr.f32.gmra.mrb[0].mxu0 %v565
  %v989 = vpop.f32.mrb[0].mxu0
  %v990 = vadd.f32 0.0, %v989
  %v991 = vpop.f32.mrb[0].mxu0
  %992 = vmatprep.mubr.f32.mxu0 0.0
  %993 = vmatmul.mubr.f32.gmra.mrb[0].mxu0 %v568
  %v994 = vpop.f32.mrb[0].mxu0
  %v995 = vadd.f32 0.0, %v994
  %v996 = vpop.f32.mrb[0].mxu0
  %997 = vdwg.mxu0
  %v998 = vadd.f32 %v102, %v980
  %v999 = vadd.f32 %v102, %v985
  %v1000 = vadd.f32 %v102, %v990
  %v1001 = vadd.f32 %v102, %v995
  %1006 = vrot.lane.b32.xlu0 %v909, 96
  %v1007 = vpop.permute.xlu0 %1006
  %1008 = vrot.lane.b32.xlu0 %v910, 96
  %v1009 = vpop.permute.xlu0 %1008
  %1010 = vrot.lane.b32.xlu0 %v911, 96
  %v1011 = vpop.permute.xlu0 %1010
  %1012 = vrot.lane.b32.xlu0 %v912, 96
  %v1013 = vpop.permute.xlu0 %1012
  %1018 = vmatprep.subr.mxu0 0.0
  %1019 = vmatpush1.msra.mxu0 %v1007
  %1020 = vmatprep.subr.mxu0 0.0
  %1021 = vmatpush1.msra.mxu0 %v1009
  %1022 = vmatprep.subr.mxu0 0.0
  %1023 = vmatpush1.msra.mxu0 %v1011
  %1024 = vmatprep.subr.mxu0 0.0
  %1025 = vmatpush1.msra.mxu0 %v1013
  %1026 = vmatprep.subr.mxu0 0.0
  %1027 = vmatpush1.msra.mxu0 0.0
  %1028 = vmatprep.subr.mxu0 0.0
  %1029 = vmatpush1.msra.mxu0 0.0
  %1030 = vmatprep.subr.mxu0 0.0
  %1031 = vmatpush1.msra.mxu0 0.0
  %1032 = vmatprep.subr.mxu0 0.0
  %1033 = vmatpush1.msra.mxu0 0.0
  %1034 = vmatprep.subr.mxu0 0.0
  %1035 = vmatpush1.msra.mxu0 0.0
  %1036 = vmatprep.subr.mxu0 0.0
  %1037 = vmatpush1.msra.mxu0 0.0
  %1038 = vmatprep.subr.mxu0 0.0
  %1039 = vmatpush1.msra.mxu0 0.0
  %1040 = vmatprep.subr.mxu0 0.0
  %1041 = vmatpush1.msra.mxu0 0.0
  %1042 = vmatprep.subr.mxu0 0.0
  %1043 = vmatpush1.msra.mxu0 0.0
  %1044 = vmatprep.subr.mxu0 0.0
  %1045 = vmatpush1.msra.mxu0 0.0
  %1046 = vmatprep.subr.mxu0 0.0
  %1047 = vmatpush1.msra.mxu0 0.0
  %1048 = vmatprep.subr.mxu0 0.0
  %1049 = vmatpush1.msra.mxu0 0.0
  %1050 = vmatprep.subr.mxu0 0.0
  %1051 = vmatpush1.msra.mxu0 0.0
  %1052 = vmatprep.subr.mxu0 0.0
  %1053 = vmatpush1.msra.mxu0 0.0
  %1054 = vmatprep.subr.mxu0 0.0
  %1055 = vmatpush1.msra.mxu0 0.0
  %1056 = vmatprep.subr.mxu0 0.0
  %1057 = vmatpush1.msra.mxu0 0.0
  %1058 = vmatprep.subr.mxu0 0.0
  %1059 = vmatpush1.msra.mxu0 0.0
  %1060 = vmatprep.subr.mxu0 0.0
  %1061 = vmatpush1.msra.mxu0 0.0
  %1062 = vmatprep.subr.mxu0 0.0
  %1063 = vmatpush1.msra.mxu0 0.0
  %1064 = vmatprep.subr.mxu0 0.0
  %1065 = vmatpush1.msra.mxu0 0.0
  %1066 = vmatprep.subr.mxu0 0.0
  %1067 = vmatpush1.msra.mxu0 0.0
  %1068 = vmatprep.subr.mxu0 0.0
  %1069 = vmatpush1.msra.mxu0 0.0
  %1070 = vmatprep.subr.mxu0 0.0
  %1071 = vmatpush1.msra.mxu0 0.0
  %1072 = vmatprep.subr.mxu0 0.0
  %1073 = vmatpush1.msra.mxu0 0.0
  %1074 = vmatprep.subr.mxu0 0.0
  %1075 = vmatpush1.msra.mxu0 0.0
  %1076 = vmatprep.subr.mxu0 0.0
  %1077 = vmatpush1.msra.mxu0 0.0
  %1078 = vmatprep.subr.mxu0 0.0
  %1079 = vmatpush1.msra.mxu0 0.0
  %1080 = vmatprep.subr.mxu0 0.0
  %1081 = vmatpush1.msra.mxu0 0.0
  %1082 = vmatprep.mubr.f32.mxu0 0.0
  %1083 = vmatmul.mubr.f32.gmra.mrb[0].mxu0 %v676
  %v1084 = vpop.f32.mrb[0].mxu0
  %v1085 = vadd.f32 0.0, %v1084
  %v1086 = vpop.f32.mrb[0].mxu0
  %1087 = vmatprep.mubr.f32.mxu0 0.0
  %1088 = vmatmul.mubr.f32.gmra.mrb[0].mxu0 %v679
  %v1089 = vpop.f32.mrb[0].mxu0
  %v1090 = vadd.f32 0.0, %v1089
  %v1091 = vpop.f32.mrb[0].mxu0
  %1092 = vmatprep.mubr.f32.mxu0 0.0
  %1093 = vmatmul.mubr.f32.gmra.mrb[0].mxu0 %v682
  %v1094 = vpop.f32.mrb[0].mxu0
  %v1095 = vadd.f32 0.0, %v1094
  %v1096 = vpop.f32.mrb[0].mxu0
  %1097 = vmatprep.mubr.f32.mxu0 0.0
  %1098 = vmatmul.mubr.f32.gmra.mrb[0].mxu0 %v685
  %v1099 = vpop.f32.mrb[0].mxu0
  %v1100 = vadd.f32 0.0, %v1099
  %v1101 = vpop.f32.mrb[0].mxu0
  %1102 = vdwg.mxu0
  %v1103 = vadd.f32 %v998, %v1085
  %v1104 = vadd.f32 %v999, %v1090
  %v1105 = vadd.f32 %v1000, %v1095
  %v1106 = vadd.f32 %v1001, %v1100
  %v1107 = vtanh.pop %v1103
  %v1108 = vtanh.pop %v1104
  %v1109 = vtanh.pop %v1105
  %v1110 = vtanh.pop %v1106
  %v1111 = vmul.f32 %v793, %v1107
  %v1112 = vmul.f32 %v795, %v1108
  %v1113 = vmul.f32 %v797, %v1109
  %v1114 = vmul.f32 %v799, %v1110
  %v1115 = vadd.f32 %v1111, 0.0
  %v1116 = vadd.f32 %v1112, 0.0
  %v1117 = vadd.f32 %v1113, 0.0
  %v1118 = vadd.f32 %v1114, 0.0
  %1119 = vst.msk [vmem:[#allocation2] sm:$0xff] %vm465, %v1115
  %1120 = vst.msk [vmem:[#allocation2 + $0x8] sm:$0xff] %vm465, %v1116
  %1121 = vst.msk [vmem:[#allocation2 + $0x10] sm:$0xff] %vm465, %v1117
  %1122 = vst.msk [vmem:[#allocation2 + $0x18] sm:$0xff] %vm465, %v1118
  %v1124 = vsel %vm465, %v1115, 0
  %v1127 = vsel %vm465, %v1116, 0
  %v1130 = vsel %vm465, %v1117, 0
  %v1133 = vsel %vm465, %v1118, 0
  %1135 = vmatprep.subr.mxu0 0.0
  %1136 = vmatpush1.msra.mxu0 %v82
  %1137 = vmatprep.subr.mxu0 0.0
  %1138 = vmatpush1.msra.mxu0 %v83
  %1139 = vmatprep.subr.mxu0 0.0
  %1140 = vmatpush1.msra.mxu0 %v84
  %1141 = vmatprep.subr.mxu0 0.0
  %1142 = vmatpush1.msra.mxu0 %v85
  %1143 = vmatprep.subr.mxu0 0.0
  %1144 = vmatpush1.msra.mxu0 0.0
  %1145 = vmatprep.subr.mxu0 0.0
  %1146 = vmatpush1.msra.mxu0 0.0
  %1147 = vmatprep.subr.mxu0 0.0
  %1148 = vmatpush1.msra.mxu0 0.0
  %1149 = vmatprep.subr.mxu0 0.0
  %1150 = vmatpush1.msra.mxu0 0.0
  %1151 = vmatprep.subr.mxu0 0.0
  %1152 = vmatpush1.msra.mxu0 0.0
  %1153 = vmatprep.subr.mxu0 0.0
  %1154 = vmatpush1.msra.mxu0 0.0
  %1155 = vmatprep.subr.mxu0 0.0
  %1156 = vmatpush1.msra.mxu0 0.0
  %1157 = vmatprep.subr.mxu0 0.0
  %1158 = vmatpush1.msra.mxu0 0.0
  %1159 = vmatprep.subr.mxu0 0.0
  %1160 = vmatpush1.msra.mxu0 0.0
  %1161 = vmatprep.subr.mxu0 0.0
  %1162 = vmatpush1.msra.mxu0 0.0
  %1163 = vmatprep.subr.mxu0 0.0
  %1164 = vmatpush1.msra.mxu0 0.0
  %1165 = vmatprep.subr.mxu0 0.0
  %1166 = vmatpush1.msra.mxu0 0.0
  %1167 = vmatprep.subr.mxu0 0.0
  %1168 = vmatpush1.msra.mxu0 0.0
  %1169 = vmatprep.subr.mxu0 0.0
  %1170 = vmatpush1.msra.mxu0 0.0
  %1171 = vmatprep.subr.mxu0 0.0
  %1172 = vmatpush1.msra.mxu0 0.0
  %1173 = vmatprep.subr.mxu0 0.0
  %1174 = vmatpush1.msra.mxu0 0.0
  %1175 = vmatprep.subr.mxu0 0.0
  %1176 = vmatpush1.msra.mxu0 0.0
  %1177 = vmatprep.subr.mxu0 0.0
  %1178 = vmatpush1.msra.mxu0 0.0
  %1179 = vmatprep.subr.mxu0 0.0
  %1180 = vmatpush1.msra.mxu0 0.0
  %1181 = vmatprep.subr.mxu0 0.0
  %1182 = vmatpush1.msra.mxu0 0.0
  %1183 = vmatprep.subr.mxu0 0.0
  %1184 = vmatpush1.msra.mxu0 0.0
  %1185 = vmatprep.subr.mxu0 0.0
  %1186 = vmatpush1.msra.mxu0 0.0
  %1187 = vmatprep.subr.mxu0 0.0
  %1188 = vmatpush1.msra.mxu0 0.0
  %1189 = vmatprep.subr.mxu0 0.0
  %1190 = vmatpush1.msra.mxu0 0.0
  %1191 = vmatprep.subr.mxu0 0.0
  %1192 = vmatpush1.msra.mxu0 0.0
  %1193 = vmatprep.subr.mxu0 0.0
  %1194 = vmatpush1.msra.mxu0 0.0
  %1195 = vmatprep.subr.mxu0 0.0
  %1196 = vmatpush1.msra.mxu0 0.0
  %1197 = vmatprep.subr.mxu0 0.0
  %1198 = vmatpush1.msra.mxu0 0.0
  %1199 = vmatprep.mubr.f32.mxu0 0.0
  %1200 = vmatmul.mubr.f32.gmra.mrb[0].mxu0 %v1124
  %v1201 = vpop.f32.mrb[0].mxu0
  %v1202 = vadd.f32 0.0, %v1201
  %v1203 = vpop.f32.mrb[0].mxu0
  %1204 = vmatprep.mubr.f32.mxu0 0.0
  %1205 = vmatmul.mubr.f32.gmra.mrb[0].mxu0 %v1127
  %v1206 = vpop.f32.mrb[0].mxu0
  %v1207 = vadd.f32 0.0, %v1206
  %v1208 = vpop.f32.mrb[0].mxu0
  %1209 = vmatprep.mubr.f32.mxu0 0.0
  %1210 = vmatmul.mubr.f32.gmra.mrb[0].mxu0 %v1130
  %v1211 = vpop.f32.mrb[0].mxu0
  %v1212 = vadd.f32 0.0, %v1211
  %v1213 = vpop.f32.mrb[0].mxu0
  %1214 = vmatprep.mubr.f32.mxu0 0.0
  %1215 = vmatmul.mubr.f32.gmra.mrb[0].mxu0 %v1133
  %v1216 = vpop.f32.mrb[0].mxu0
  %v1217 = vadd.f32 0.0, %v1216
  %v1218 = vpop.f32.mrb[0].mxu0
  %1219 = vdwg.mxu0
  %v1220 = vadd.f32 %v299, %v1202
  %v1221 = vadd.f32 %v305, %v1207
  %v1222 = vadd.f32 %v311, %v1212
  %v1223 = vadd.f32 %v317, %v1217
  %1224 = vmatprep.subr.mxu0 0.0
  %1225 = vmatpush1.msra.mxu0 %v1220
  %1226 = vmatprep.subr.mxu0 0.0
  %1227 = vmatpush1.msra.mxu0 %v1221
  %1228 = vmatprep.subr.mxu0 0.0
  %1229 = vmatpush1.msra.mxu0 %v1222
  %1230 = vmatprep.subr.mxu0 0.0
  %1231 = vmatpush1.msra.mxu0 %v1223
  %1232 = vmatprep.subr.mxu0 0.0
  %1233 = vmatpush1.msra.mxu0 0.0
  %1234 = vmatprep.subr.mxu0 0.0
  %1235 = vmatpush1.msra.mxu0 0.0
  %1236 = vmatprep.subr.mxu0 0.0
  %1237 = vmatpush1.msra.mxu0 0.0
  %1238 = vmatprep.subr.mxu0 0.0
  %1239 = vmatpush1.msra.mxu0 0.0
  %1240 = vmatprep.subr.mxu0 0.0
  %1241 = vmatpush1.msra.mxu0 0.0
  %1242 = vmatprep.subr.mxu0 0.0
  %1243 = vmatpush1.msra.mxu0 0.0
  %1244 = vmatprep.subr.mxu0 0.0
  %1245 = vmatpush1.msra.mxu0 0.0
  %1246 = vmatprep.subr.mxu0 0.0
  %1247 = vmatpush1.msra.mxu0 0.0
  %1248 = vmatprep.subr.mxu0 0.0
  %1249 = vmatpush1.msra.mxu0 0.0
  %1250 = vmatprep.subr.mxu0 0.0
  %1251 = vmatpush1.msra.mxu0 0.0
  %1252 = vmatprep.subr.mxu0 0.0
  %1253 = vmatpush1.msra.mxu0 0.0
  %1254 = vmatprep.subr.mxu0 0.0
  %1255 = vmatpush1.msra.mxu0 0.0
  %1256 = vmatprep.subr.mxu0 0.0
  %1257 = vmatpush1.msra.mxu0 0.0
  %1258 = vmatprep.subr.mxu0 0.0
  %1259 = vmatpush1.msra.mxu0 0.0
  %1260 = vmatprep.subr.mxu0 0.0
  %1261 = vmatpush1.msra.mxu0 0.0
  %1262 = vmatprep.subr.mxu0 0.0
  %1263 = vmatpush1.msra.mxu0 0.0
  %1264 = vmatprep.subr.mxu0 0.0
  %1265 = vmatpush1.msra.mxu0 0.0
  %1266 = vmatprep.subr.mxu0 0.0
  %1267 = vmatpush1.msra.mxu0 0.0
  %1268 = vmatprep.subr.mxu0 0.0
  %1269 = vmatpush1.msra.mxu0 0.0
  %1270 = vmatprep.subr.mxu0 0.0
  %1271 = vmatpush1.msra.mxu0 0.0
  %1272 = vmatprep.subr.mxu0 0.0
  %1273 = vmatpush1.msra.mxu0 0.0
  %1274 = vmatprep.subr.mxu0 0.0
  %1275 = vmatpush1.msra.mxu0 0.0
  %1276 = vmatprep.subr.mxu0 0.0
  %1277 = vmatpush1.msra.mxu0 0.0
  %1278 = vmatprep.subr.mxu0 0.0
  %1279 = vmatpush1.msra.mxu0 0.0
  %1280 = vmatprep.subr.mxu0 0.0
  %1281 = vmatpush1.msra.mxu0 0.0
  %1282 = vmatprep.subr.mxu0 0.0
  %1283 = vmatpush1.msra.mxu0 0.0
  %1284 = vmatprep.subr.mxu0 0.0
  %1285 = vmatpush1.msra.mxu0 0.0
  %1286 = vmatprep.subr.mxu0 0.0
  %1287 = vmatpush1.msra.mxu0 0.0
  %1288 = vmatprep.mubr.f32.mxu0 0.0
  %1289 = vmatmul.mubr.f32.gmra.mrb[0].mxu0 %v559
  %v1290 = vpop.f32.mrb[0].mxu0
  %v1291 = vadd.f32 0.0, %v1290
  %v1292 = vpop.f32.mrb[0].mxu0
  %1293 = vmatprep.mubr.f32.mxu0 0.0
  %1294 = vmatmul.mubr.f32.gmra.mrb[0].mxu0 %v562
  %v1295 = vpop.f32.mrb[0].mxu0
  %v1296 = vadd.f32 0.0, %v1295
  %v1297 = vpop.f32.mrb[0].mxu0
  %1298 = vmatprep.mubr.f32.mxu0 0.0
  %1299 = vmatmul.mubr.f32.gmra.mrb[0].mxu0 %v565
  %v1300 = vpop.f32.mrb[0].mxu0
  %v1301 = vadd.f32 0.0, %v1300
  %v1302 = vpop.f32.mrb[0].mxu0
  %1303 = vmatprep.mubr.f32.mxu0 0.0
  %1304 = vmatmul.mubr.f32.gmra.mrb[0].mxu0 %v568
  %v1305 = vpop.f32.mrb[0].mxu0
  %v1306 = vadd.f32 0.0, %v1305
  %v1307 = vpop.f32.mrb[0].mxu0
  %1308 = vdwg.mxu0
  %v1309 = vadd.f32 %v95, %v1291
  %v1310 = vadd.f32 %v95, %v1296
  %v1311 = vadd.f32 %v95, %v1301
  %v1312 = vadd.f32 %v95, %v1306
  %1317 = vrot.lane.b32.xlu0 %v1220, 64
  %v1318 = vpop.permute.xlu0 %1317
  %1319 = vrot.lane.b32.xlu0 %v1221, 64
  %v1320 = vpop.permute.xlu0 %1319
  %1321 = vrot.lane.b32.xlu0 %v1222, 64
  %v1322 = vpop.permute.xlu0 %1321
  %1323 = vrot.lane.b32.xlu0 %v1223, 64
  %v1324 = vpop.permute.xlu0 %1323
  %1329 = vmatprep.subr.mxu0 0.0
  %1330 = vmatpush1.msra.mxu0 %v1318
  %1331 = vmatprep.subr.mxu0 0.0
  %1332 = vmatpush1.msra.mxu0 %v1320
  %1333 = vmatprep.subr.mxu0 0.0
  %1334 = vmatpush1.msra.mxu0 %v1322
  %1335 = vmatprep.subr.mxu0 0.0
  %1336 = vmatpush1.msra.mxu0 %v1324
  %1337 = vmatprep.subr.mxu0 0.0
  %1338 = vmatpush1.msra.mxu0 0.0
  %1339 = vmatprep.subr.mxu0 0.0
  %1340 = vmatpush1.msra.mxu0 0.0
  %1341 = vmatprep.subr.mxu0 0.0
  %1342 = vmatpush1.msra.mxu0 0.0
  %1343 = vmatprep.subr.mxu0 0.0
  %1344 = vmatpush1.msra.mxu0 0.0
  %1345 = vmatprep.subr.mxu0 0.0
  %1346 = vmatpush1.msra.mxu0 0.0
  %1347 = vmatprep.subr.mxu0 0.0
  %1348 = vmatpush1.msra.mxu0 0.0
  %1349 = vmatprep.subr.mxu0 0.0
  %1350 = vmatpush1.msra.mxu0 0.0
  %1351 = vmatprep.subr.mxu0 0.0
  %1352 = vmatpush1.msra.mxu0 0.0
  %1353 = vmatprep.subr.mxu0 0.0
  %1354 = vmatpush1.msra.mxu0 0.0
  %1355 = vmatprep.subr.mxu0 0.0
  %1356 = vmatpush1.msra.mxu0 0.0
  %1357 = vmatprep.subr.mxu0 0.0
  %1358 = vmatpush1.msra.mxu0 0.0
  %1359 = vmatprep.subr.mxu0 0.0
  %1360 = vmatpush1.msra.mxu0 0.0
  %1361 = vmatprep.subr.mxu0 0.0
  %1362 = vmatpush1.msra.mxu0 0.0
  %1363 = vmatprep.subr.mxu0 0.0
  %1364 = vmatpush1.msra.mxu0 0.0
  %1365 = vmatprep.subr.mxu0 0.0
  %1366 = vmatpush1.msra.mxu0 0.0
  %1367 = vmatprep.subr.mxu0 0.0
  %1368 = vmatpush1.msra.mxu0 0.0
  %1369 = vmatprep.subr.mxu0 0.0
  %1370 = vmatpush1.msra.mxu0 0.0
  %1371 = vmatprep.subr.mxu0 0.0
  %1372 = vmatpush1.msra.mxu0 0.0
  %1373 = vmatprep.subr.mxu0 0.0
  %1374 = vmatpush1.msra.mxu0 0.0
  %1375 = vmatprep.subr.mxu0 0.0
  %1376 = vmatpush1.msra.mxu0 0.0
  %1377 = vmatprep.subr.mxu0 0.0
  %1378 = vmatpush1.msra.mxu0 0.0
  %1379 = vmatprep.subr.mxu0 0.0
  %1380 = vmatpush1.msra.mxu0 0.0
  %1381 = vmatprep.subr.mxu0 0.0
  %1382 = vmatpush1.msra.mxu0 0.0
  %1383 = vmatprep.subr.mxu0 0.0
  %1384 = vmatpush1.msra.mxu0 0.0
  %1385 = vmatprep.subr.mxu0 0.0
  %1386 = vmatpush1.msra.mxu0 0.0
  %1387 = vmatprep.subr.mxu0 0.0
  %1388 = vmatpush1.msra.mxu0 0.0
  %1389 = vmatprep.subr.mxu0 0.0
  %1390 = vmatpush1.msra.mxu0 0.0
  %1391 = vmatprep.subr.mxu0 0.0
  %1392 = vmatpush1.msra.mxu0 0.0
  %1393 = vmatprep.mubr.f32.mxu0 0.0
  %1394 = vmatmul.mubr.f32.gmra.mrb[0].mxu0 %v676
  %v1395 = vpop.f32.mrb[0].mxu0
  %v1396 = vadd.f32 0.0, %v1395
  %v1397 = vpop.f32.mrb[0].mxu0
  %1398 = vmatprep.mubr.f32.mxu0 0.0
  %1399 = vmatmul.mubr.f32.gmra.mrb[0].mxu0 %v679
  %v1400 = vpop.f32.mrb[0].mxu0
  %v1401 = vadd.f32 0.0, %v1400
  %v1402 = vpop.f32.mrb[0].mxu0
  %1403 = vmatprep.mubr.f32.mxu0 0.0
  %1404 = vmatmul.mubr.f32.gmra.mrb[0].mxu0 %v682
  %v1405 = vpop.f32.mrb[0].mxu0
  %v1406 = vadd.f32 0.0, %v1405
  %v1407 = vpop.f32.mrb[0].mxu0
  %1408 = vmatprep.mubr.f32.mxu0 0.0
  %1409 = vmatmul.mubr.f32.gmra.mrb[0].mxu0 %v685
  %v1410 = vpop.f32.mrb[0].mxu0
  %v1411 = vadd.f32 0.0, %v1410
  %v1412 = vpop.f32.mrb[0].mxu0
  %1413 = vdwg.mxu0
  %v1414 = vadd.f32 %v1309, %v1396
  %v1415 = vadd.f32 %v1310, %v1401
  %v1416 = vadd.f32 %v1311, %v1406
  %v1417 = vadd.f32 %v1312, %v1411
  %v1418 = vxor.u32 %v1414, 2147483648
  %v1419 = vxor.u32 %v1415, 2147483648
  %v1420 = vxor.u32 %v1416, 2147483648
  %v1421 = vxor.u32 %v1417, 2147483648
  %v1422 = vmul.f32 %v1418, 1.442695
  %v1423 = vpow.pop %v1422
  %v1424 = vmul.f32 %v1419, 1.442695
  %v1425 = vpow.pop %v1424
  %v1426 = vmul.f32 %v1420, 1.442695
  %v1427 = vpow.pop %v1426
  %v1428 = vmul.f32 %v1421, 1.442695
  %v1429 = vpow.pop %v1428
  %v1430 = vadd.f32 %v1423, 1.0
  %v1431 = vadd.f32 %v1425, 1.0
  %v1432 = vadd.f32 %v1427, 1.0
  %v1433 = vadd.f32 %v1429, 1.0
  %v1434 = vrcp.pop %v1430
  %v1435 = vmul.f32 1.0, %v1434
  %v1436 = vrcp.pop %v1431
  %v1437 = vmul.f32 1.0, %v1436
  %v1438 = vrcp.pop %v1432
  %v1439 = vmul.f32 1.0, %v1438
  %v1440 = vrcp.pop %v1433
  %v1441 = vmul.f32 1.0, %v1440
  %1442 = vrot.lane.b32.xlu0 %v1115, 32
  %v1443 = vpop.permute.xlu0 %1442
  %1444 = vrot.lane.b32.xlu0 %v1116, 32
  %v1445 = vpop.permute.xlu0 %1444
  %1446 = vrot.lane.b32.xlu0 %v1117, 32
  %v1447 = vpop.permute.xlu0 %1446
  %1448 = vrot.lane.b32.xlu0 %v1118, 32
  %v1449 = vpop.permute.xlu0 %1448
  %v1454 = vmul.f32 %v1435, %v1443
  %v1455 = vmul.f32 %v1437, %v1445
  %v1456 = vmul.f32 %v1439, %v1447
  %v1457 = vmul.f32 %v1441, %v1449
  %1462 = vrot.lane.b32.xlu0 %v1454, 96
  %v1463 = vpop.permute.xlu0 %1462
  %1464 = vrot.lane.b32.xlu0 %v1455, 96
  %v1465 = vpop.permute.xlu0 %1464
  %1466 = vrot.lane.b32.xlu0 %v1456, 96
  %v1467 = vpop.permute.xlu0 %1466
  %1468 = vrot.lane.b32.xlu0 %v1457, 96
  %v1469 = vpop.permute.xlu0 %1468
  %v1470 = vsel %vm465, %v1463, 0
  %v1472 = vsel %vm465, %v1465, 0
  %v1474 = vsel %vm465, %v1467, 0
  %v1476 = vsel %vm465, %v1469, 0
  %1478 = vmatprep.subr.mxu0 0.0
  %1479 = vmatpush1.msra.mxu0 %v86
  %1480 = vmatprep.subr.mxu0 0.0
  %1481 = vmatpush1.msra.mxu0 %v87
  %1482 = vmatprep.subr.mxu0 0.0
  %1483 = vmatpush1.msra.mxu0 %v88
  %1484 = vmatprep.subr.mxu0 0.0
  %1485 = vmatpush1.msra.mxu0 %v89
  %1486 = vmatprep.subr.mxu0 0.0
  %1487 = vmatpush1.msra.mxu0 0.0
  %1488 = vmatprep.subr.mxu0 0.0
  %1489 = vmatpush1.msra.mxu0 0.0
  %1490 = vmatprep.subr.mxu0 0.0
  %1491 = vmatpush1.msra.mxu0 0.0
  %1492 = vmatprep.subr.mxu0 0.0
  %1493 = vmatpush1.msra.mxu0 0.0
  %1494 = vmatprep.subr.mxu0 0.0
  %1495 = vmatpush1.msra.mxu0 0.0
  %1496 = vmatprep.subr.mxu0 0.0
  %1497 = vmatpush1.msra.mxu0 0.0
  %1498 = vmatprep.subr.mxu0 0.0
  %1499 = vmatpush1.msra.mxu0 0.0
  %1500 = vmatprep.subr.mxu0 0.0
  %1501 = vmatpush1.msra.mxu0 0.0
  %1502 = vmatprep.subr.mxu0 0.0
  %1503 = vmatpush1.msra.mxu0 0.0
  %1504 = vmatprep.subr.mxu0 0.0
  %1505 = vmatpush1.msra.mxu0 0.0
  %1506 = vmatprep.subr.mxu0 0.0
  %1507 = vmatpush1.msra.mxu0 0.0
  %1508 = vmatprep.subr.mxu0 0.0
  %1509 = vmatpush1.msra.mxu0 0.0
  %1510 = vmatprep.subr.mxu0 0.0
  %1511 = vmatpush1.msra.mxu0 0.0
  %1512 = vmatprep.subr.mxu0 0.0
  %1513 = vmatpush1.msra.mxu0 0.0
  %1514 = vmatprep.subr.mxu0 0.0
  %1515 = vmatpush1.msra.mxu0 0.0
  %1516 = vmatprep.subr.mxu0 0.0
  %1517 = vmatpush1.msra.mxu0 0.0
  %1518 = vmatprep.subr.mxu0 0.0
  %1519 = vmatpush1.msra.mxu0 0.0
  %1520 = vmatprep.subr.mxu0 0.0
  %1521 = vmatpush1.msra.mxu0 0.0
  %1522 = vmatprep.subr.mxu0 0.0
  %1523 = vmatpush1.msra.mxu0 0.0
  %1524 = vmatprep.subr.mxu0 0.0
  %1525 = vmatpush1.msra.mxu0 0.0
  %1526 = vmatprep.subr.mxu0 0.0
  %1527 = vmatpush1.msra.mxu0 0.0
  %1528 = vmatprep.subr.mxu0 0.0
  %1529 = vmatpush1.msra.mxu0 0.0
  %1530 = vmatprep.subr.mxu0 0.0
  %1531 = vmatpush1.msra.mxu0 0.0
  %1532 = vmatprep.subr.mxu0 0.0
  %1533 = vmatpush1.msra.mxu0 0.0
  %1534 = vmatprep.subr.mxu0 0.0
  %1535 = vmatpush1.msra.mxu0 0.0
  %1536 = vmatprep.subr.mxu0 0.0
  %1537 = vmatpush1.msra.mxu0 0.0
  %1538 = vmatprep.subr.mxu0 0.0
  %1539 = vmatpush1.msra.mxu0 0.0
  %1540 = vmatprep.subr.mxu0 0.0
  %1541 = vmatpush1.msra.mxu0 0.0
  %1542 = vmatprep.mubr.f32.mxu0 0.0
  %1543 = vmatmul.mubr.f32.gmra.mrb[0].mxu0 %v1470
  %v1544 = vpop.f32.mrb[0].mxu0
  %v1545 = vadd.f32 0.0, %v1544
  %v1546 = vpop.f32.mrb[0].mxu0
  %1547 = vmatprep.mubr.f32.mxu0 0.0
  %1548 = vmatmul.mubr.f32.gmra.mrb[0].mxu0 %v1472
  %v1549 = vpop.f32.mrb[0].mxu0
  %v1550 = vadd.f32 0.0, %v1549
  %v1551 = vpop.f32.mrb[0].mxu0
  %1552 = vmatprep.mubr.f32.mxu0 0.0
  %1553 = vmatmul.mubr.f32.gmra.mrb[0].mxu0 %v1474
  %v1554 = vpop.f32.mrb[0].mxu0
  %v1555 = vadd.f32 0.0, %v1554
  %v1556 = vpop.f32.mrb[0].mxu0
  %1557 = vmatprep.mubr.f32.mxu0 0.0
  %1558 = vmatmul.mubr.f32.gmra.mrb[0].mxu0 %v1476
  %v1559 = vpop.f32.mrb[0].mxu0
  %v1560 = vadd.f32 0.0, %v1559
  %v1561 = vpop.f32.mrb[0].mxu0
  %1562 = vdwg.mxu0
  %v1563 = vadd.f32 %v301, %v1545
  %v1564 = vadd.f32 %v307, %v1550
  %v1565 = vadd.f32 %v313, %v1555
  %v1566 = vadd.f32 %v319, %v1560
  %1567 = vmatprep.subr.mxu0 0.0
  %1568 = vmatpush1.msra.mxu0 %v1563
  %1569 = vmatprep.subr.mxu0 0.0
  %1570 = vmatpush1.msra.mxu0 %v1564
  %1571 = vmatprep.subr.mxu0 0.0
  %1572 = vmatpush1.msra.mxu0 %v1565
  %1573 = vmatprep.subr.mxu0 0.0
  %1574 = vmatpush1.msra.mxu0 %v1566
  %1575 = vmatprep.subr.mxu0 0.0
  %1576 = vmatpush1.msra.mxu0 0.0
  %1577 = vmatprep.subr.mxu0 0.0
  %1578 = vmatpush1.msra.mxu0 0.0
  %1579 = vmatprep.subr.mxu0 0.0
  %1580 = vmatpush1.msra.mxu0 0.0
  %1581 = vmatprep.subr.mxu0 0.0
  %1582 = vmatpush1.msra.mxu0 0.0
  %1583 = vmatprep.subr.mxu0 0.0
  %1584 = vmatpush1.msra.mxu0 0.0
  %1585 = vmatprep.subr.mxu0 0.0
  %1586 = vmatpush1.msra.mxu0 0.0
  %1587 = vmatprep.subr.mxu0 0.0
  %1588 = vmatpush1.msra.mxu0 0.0
  %1589 = vmatprep.subr.mxu0 0.0
  %1590 = vmatpush1.msra.mxu0 0.0
  %1591 = vmatprep.subr.mxu0 0.0
  %1592 = vmatpush1.msra.mxu0 0.0
  %1593 = vmatprep.subr.mxu0 0.0
  %1594 = vmatpush1.msra.mxu0 0.0
  %1595 = vmatprep.subr.mxu0 0.0
  %1596 = vmatpush1.msra.mxu0 0.0
  %1597 = vmatprep.subr.mxu0 0.0
  %1598 = vmatpush1.msra.mxu0 0.0
  %1599 = vmatprep.subr.mxu0 0.0
  %1600 = vmatpush1.msra.mxu0 0.0
  %1601 = vmatprep.subr.mxu0 0.0
  %1602 = vmatpush1.msra.mxu0 0.0
  %1603 = vmatprep.subr.mxu0 0.0
  %1604 = vmatpush1.msra.mxu0 0.0
  %1605 = vmatprep.subr.mxu0 0.0
  %1606 = vmatpush1.msra.mxu0 0.0
  %1607 = vmatprep.subr.mxu0 0.0
  %1608 = vmatpush1.msra.mxu0 0.0
  %1609 = vmatprep.subr.mxu0 0.0
  %1610 = vmatpush1.msra.mxu0 0.0
  %1611 = vmatprep.subr.mxu0 0.0
  %1612 = vmatpush1.msra.mxu0 0.0
  %1613 = vmatprep.subr.mxu0 0.0
  %1614 = vmatpush1.msra.mxu0 0.0
  %1615 = vmatprep.subr.mxu0 0.0
  %1616 = vmatpush1.msra.mxu0 0.0
  %1617 = vmatprep.subr.mxu0 0.0
  %1618 = vmatpush1.msra.mxu0 0.0
  %1619 = vmatprep.subr.mxu0 0.0
  %1620 = vmatpush1.msra.mxu0 0.0
  %1621 = vmatprep.subr.mxu0 0.0
  %1622 = vmatpush1.msra.mxu0 0.0
  %1623 = vmatprep.subr.mxu0 0.0
  %1624 = vmatpush1.msra.mxu0 0.0
  %1625 = vmatprep.subr.mxu0 0.0
  %1626 = vmatpush1.msra.mxu0 0.0
  %1627 = vmatprep.subr.mxu0 0.0
  %1628 = vmatpush1.msra.mxu0 0.0
  %1629 = vmatprep.subr.mxu0 0.0
  %1630 = vmatpush1.msra.mxu0 0.0
  %1631 = vmatprep.mubr.f32.mxu0 0.0
  %1632 = vmatmul.mubr.f32.gmra.mrb[0].mxu0 %v559
  %v1633 = vpop.f32.mrb[0].mxu0
  %v1634 = vadd.f32 0.0, %v1633
  %v1635 = vpop.f32.mrb[0].mxu0
  %1636 = vmatprep.mubr.f32.mxu0 0.0
  %1637 = vmatmul.mubr.f32.gmra.mrb[0].mxu0 %v562
  %v1638 = vpop.f32.mrb[0].mxu0
  %v1639 = vadd.f32 0.0, %v1638
  %v1640 = vpop.f32.mrb[0].mxu0
  %1641 = vmatprep.mubr.f32.mxu0 0.0
  %1642 = vmatmul.mubr.f32.gmra.mrb[0].mxu0 %v565
  %v1643 = vpop.f32.mrb[0].mxu0
  %v1644 = vadd.f32 0.0, %v1643
  %v1645 = vpop.f32.mrb[0].mxu0
  %1646 = vmatprep.mubr.f32.mxu0 0.0
  %1647 = vmatmul.mubr.f32.gmra.mrb[0].mxu0 %v568
  %v1648 = vpop.f32.mrb[0].mxu0
  %v1649 = vadd.f32 0.0, %v1648
  %v1650 = vpop.f32.mrb[0].mxu0
  %1651 = vdwg.mxu0
  %v1652 = vadd.f32 %v102, %v1634
  %v1653 = vadd.f32 %v102, %v1639
  %v1654 = vadd.f32 %v102, %v1644
  %v1655 = vadd.f32 %v102, %v1649
  %1660 = vrot.lane.b32.xlu0 %v1563, 96
  %v1661 = vpop.permute.xlu0 %1660
  %1662 = vrot.lane.b32.xlu0 %v1564, 96
  %v1663 = vpop.permute.xlu0 %1662
  %1664 = vrot.lane.b32.xlu0 %v1565, 96
  %v1665 = vpop.permute.xlu0 %1664
  %1666 = vrot.lane.b32.xlu0 %v1566, 96
  %v1667 = vpop.permute.xlu0 %1666
  %1672 = vmatprep.subr.mxu0 0.0
  %1673 = vmatpush1.msra.mxu0 %v1661
  %1674 = vmatprep.subr.mxu0 0.0
  %1675 = vmatpush1.msra.mxu0 %v1663
  %1676 = vmatprep.subr.mxu0 0.0
  %1677 = vmatpush1.msra.mxu0 %v1665
  %1678 = vmatprep.subr.mxu0 0.0
  %1679 = vmatpush1.msra.mxu0 %v1667
  %1680 = vmatprep.subr.mxu0 0.0
  %1681 = vmatpush1.msra.mxu0 0.0
  %1682 = vmatprep.subr.mxu0 0.0
  %1683 = vmatpush1.msra.mxu0 0.0
  %1684 = vmatprep.subr.mxu0 0.0
  %1685 = vmatpush1.msra.mxu0 0.0
  %1686 = vmatprep.subr.mxu0 0.0
  %1687 = vmatpush1.msra.mxu0 0.0
  %1688 = vmatprep.subr.mxu0 0.0
  %1689 = vmatpush1.msra.mxu0 0.0
  %1690 = vmatprep.subr.mxu0 0.0
  %1691 = vmatpush1.msra.mxu0 0.0
  %1692 = vmatprep.subr.mxu0 0.0
  %1693 = vmatpush1.msra.mxu0 0.0
  %1694 = vmatprep.subr.mxu0 0.0
  %1695 = vmatpush1.msra.mxu0 0.0
  %1696 = vmatprep.subr.mxu0 0.0
  %1697 = vmatpush1.msra.mxu0 0.0
  %1698 = vmatprep.subr.mxu0 0.0
  %1699 = vmatpush1.msra.mxu0 0.0
  %1700 = vmatprep.subr.mxu0 0.0
  %1701 = vmatpush1.msra.mxu0 0.0
  %1702 = vmatprep.subr.mxu0 0.0
  %1703 = vmatpush1.msra.mxu0 0.0
  %1704 = vmatprep.subr.mxu0 0.0
  %1705 = vmatpush1.msra.mxu0 0.0
  %1706 = vmatprep.subr.mxu0 0.0
  %1707 = vmatpush1.msra.mxu0 0.0
  %1708 = vmatprep.subr.mxu0 0.0
  %1709 = vmatpush1.msra.mxu0 0.0
  %1710 = vmatprep.subr.mxu0 0.0
  %1711 = vmatpush1.msra.mxu0 0.0
  %1712 = vmatprep.subr.mxu0 0.0
  %1713 = vmatpush1.msra.mxu0 0.0
  %1714 = vmatprep.subr.mxu0 0.0
  %1715 = vmatpush1.msra.mxu0 0.0
  %1716 = vmatprep.subr.mxu0 0.0
  %1717 = vmatpush1.msra.mxu0 0.0
  %1718 = vmatprep.subr.mxu0 0.0
  %1719 = vmatpush1.msra.mxu0 0.0
  %1720 = vmatprep.subr.mxu0 0.0
  %1721 = vmatpush1.msra.mxu0 0.0
  %1722 = vmatprep.subr.mxu0 0.0
  %1723 = vmatpush1.msra.mxu0 0.0
  %1724 = vmatprep.subr.mxu0 0.0
  %1725 = vmatpush1.msra.mxu0 0.0
  %1726 = vmatprep.subr.mxu0 0.0
  %1727 = vmatpush1.msra.mxu0 0.0
  %1728 = vmatprep.subr.mxu0 0.0
  %1729 = vmatpush1.msra.mxu0 0.0
  %1730 = vmatprep.subr.mxu0 0.0
  %1731 = vmatpush1.msra.mxu0 0.0
  %1732 = vmatprep.subr.mxu0 0.0
  %1733 = vmatpush1.msra.mxu0 0.0
  %1734 = vmatprep.subr.mxu0 0.0
  %1735 = vmatpush1.msra.mxu0 0.0
  %1736 = vmatprep.mubr.f32.mxu0 0.0
  %1737 = vmatmul.mubr.f32.gmra.mrb[0].mxu0 %v676
  %v1738 = vpop.f32.mrb[0].mxu0
  %v1739 = vadd.f32 0.0, %v1738
  %v1740 = vpop.f32.mrb[0].mxu0
  %1741 = vmatprep.mubr.f32.mxu0 0.0
  %1742 = vmatmul.mubr.f32.gmra.mrb[0].mxu0 %v679
  %v1743 = vpop.f32.mrb[0].mxu0
  %v1744 = vadd.f32 0.0, %v1743
  %v1745 = vpop.f32.mrb[0].mxu0
  %1746 = vmatprep.mubr.f32.mxu0 0.0
  %1747 = vmatmul.mubr.f32.gmra.mrb[0].mxu0 %v682
  %v1748 = vpop.f32.mrb[0].mxu0
  %v1749 = vadd.f32 0.0, %v1748
  %v1750 = vpop.f32.mrb[0].mxu0
  %1751 = vmatprep.mubr.f32.mxu0 0.0
  %1752 = vmatmul.mubr.f32.gmra.mrb[0].mxu0 %v685
  %v1753 = vpop.f32.mrb[0].mxu0
  %v1754 = vadd.f32 0.0, %v1753
  %v1755 = vpop.f32.mrb[0].mxu0
  %1756 = vdwg.mxu0
  %v1757 = vadd.f32 %v1652, %v1739
  %v1758 = vadd.f32 %v1653, %v1744
  %v1759 = vadd.f32 %v1654, %v1749
  %v1760 = vadd.f32 %v1655, %v1754
  %v1761 = vtanh.pop %v1757
  %v1762 = vtanh.pop %v1758
  %v1763 = vtanh.pop %v1759
  %v1764 = vtanh.pop %v1760
  %v1765 = vsub.f32 %v1761, %v1115
  %v1766 = vsub.f32 %v1762, %v1116
  %v1767 = vsub.f32 %v1763, %v1117
  %v1768 = vsub.f32 %v1764, %v1118
  %v1769 = vmul.f32 %v1435, %v1765
  %v1770 = vmul.f32 %v1437, %v1766
  %v1771 = vmul.f32 %v1439, %v1767
  %v1772 = vmul.f32 %v1441, %v1768
  %v1773 = vadd.f32 %v1115, %v1769
  %v1774 = vadd.f32 %v1116, %v1770
  %v1775 = vadd.f32 %v1117, %v1771
  %v1776 = vadd.f32 %v1118, %v1772
  %1777 = vst.msk [vmem:[#allocation2 + $0x20] sm:$0xff] %vm465, %v1773
  %1778 = vst.msk [vmem:[#allocation2 + $0x28] sm:$0xff] %vm465, %v1774
  %1779 = vst.msk [vmem:[#allocation2 + $0x30] sm:$0xff] %vm465, %v1775
  %1780 = vst.msk [vmem:[#allocation2 + $0x38] sm:$0xff] %vm465, %v1776
  %v1782 = vsel %vm465, %v1773, 0
  %v1785 = vsel %vm465, %v1774, 0
  %v1788 = vsel %vm465, %v1775, 0
  %v1791 = vsel %vm465, %v1776, 0
  %1793 = vmatprep.subr.mxu0 0.0
  %1794 = vmatpush1.msra.mxu0 %v82
  %1795 = vmatprep.subr.mxu0 0.0
  %1796 = vmatpush1.msra.mxu0 %v83
  %1797 = vmatprep.subr.mxu0 0.0
  %1798 = vmatpush1.msra.mxu0 %v84
  %1799 = vmatprep.subr.mxu0 0.0
  %1800 = vmatpush1.msra.mxu0 %v85
  %1801 = vmatprep.subr.mxu0 0.0
  %1802 = vmatpush1.msra.mxu0 0.0
  %1803 = vmatprep.subr.mxu0 0.0
  %1804 = vmatpush1.msra.mxu0 0.0
  %1805 = vmatprep.subr.mxu0 0.0
  %1806 = vmatpush1.msra.mxu0 0.0
  %1807 = vmatprep.subr.mxu0 0.0
  %1808 = vmatpush1.msra.mxu0 0.0
  %1809 = vmatprep.subr.mxu0 0.0
  %1810 = vmatpush1.msra.mxu0 0.0
  %1811 = vmatprep.subr.mxu0 0.0
  %1812 = vmatpush1.msra.mxu0 0.0
  %1813 = vmatprep.subr.mxu0 0.0
  %1814 = vmatpush1.msra.mxu0 0.0
  %1815 = vmatprep.subr.mxu0 0.0
  %1816 = vmatpush1.msra.mxu0 0.0
  %1817 = vmatprep.subr.mxu0 0.0
  %1818 = vmatpush1.msra.mxu0 0.0
  %1819 = vmatprep.subr.mxu0 0.0
  %1820 = vmatpush1.msra.mxu0 0.0
  %1821 = vmatprep.subr.mxu0 0.0
  %1822 = vmatpush1.msra.mxu0 0.0
  %1823 = vmatprep.subr.mxu0 0.0
  %1824 = vmatpush1.msra.mxu0 0.0
  %1825 = vmatprep.subr.mxu0 0.0
  %1826 = vmatpush1.msra.mxu0 0.0
  %1827 = vmatprep.subr.mxu0 0.0
  %1828 = vmatpush1.msra.mxu0 0.0
  %1829 = vmatprep.subr.mxu0 0.0
  %1830 = vmatpush1.msra.mxu0 0.0
  %1831 = vmatprep.subr.mxu0 0.0
  %1832 = vmatpush1.msra.mxu0 0.0
  %1833 = vmatprep.subr.mxu0 0.0
  %1834 = vmatpush1.msra.mxu0 0.0
  %1835 = vmatprep.subr.mxu0 0.0
  %1836 = vmatpush1.msra.mxu0 0.0
  %1837 = vmatprep.subr.mxu0 0.0
  %1838 = vmatpush1.msra.mxu0 0.0
  %1839 = vmatprep.subr.mxu0 0.0
  %1840 = vmatpush1.msra.mxu0 0.0
  %1841 = vmatprep.subr.mxu0 0.0
  %1842 = vmatpush1.msra.mxu0 0.0
  %1843 = vmatprep.subr.mxu0 0.0
  %1844 = vmatpush1.msra.mxu0 0.0
  %1845 = vmatprep.subr.mxu0 0.0
  %1846 = vmatpush1.msra.mxu0 0.0
  %1847 = vmatprep.subr.mxu0 0.0
  %1848 = vmatpush1.msra.mxu0 0.0
  %1849 = vmatprep.subr.mxu0 0.0
  %1850 = vmatpush1.msra.mxu0 0.0
  %1851 = vmatprep.subr.mxu0 0.0
  %1852 = vmatpush1.msra.mxu0 0.0
  %1853 = vmatprep.subr.mxu0 0.0
  %1854 = vmatpush1.msra.mxu0 0.0
  %1855 = vmatprep.subr.mxu0 0.0
  %1856 = vmatpush1.msra.mxu0 0.0
  %1857 = vmatprep.mubr.f32.mxu0 0.0
  %1858 = vmatmul.mubr.f32.gmra.mrb[0].mxu0 %v1782
  %v1859 = vpop.f32.mrb[0].mxu0
  %v1860 = vadd.f32 0.0, %v1859
  %v1861 = vpop.f32.mrb[0].mxu0
  %1862 = vmatprep.mubr.f32.mxu0 0.0
  %1863 = vmatmul.mubr.f32.gmra.mrb[0].mxu0 %v1785
  %v1864 = vpop.f32.mrb[0].mxu0
  %v1865 = vadd.f32 0.0, %v1864
  %v1866 = vpop.f32.mrb[0].mxu0
  %1867 = vmatprep.mubr.f32.mxu0 0.0
  %1868 = vmatmul.mubr.f32.gmra.mrb[0].mxu0 %v1788
  %v1869 = vpop.f32.mrb[0].mxu0
  %v1870 = vadd.f32 0.0, %v1869
  %v1871 = vpop.f32.mrb[0].mxu0
  %1872 = vmatprep.mubr.f32.mxu0 0.0
  %1873 = vmatmul.mubr.f32.gmra.mrb[0].mxu0 %v1791
  %v1874 = vpop.f32.mrb[0].mxu0
  %v1875 = vadd.f32 0.0, %v1874
  %v1876 = vpop.f32.mrb[0].mxu0
  %1877 = vdwg.mxu0
  %v1878 = vadd.f32 %v323, %v1860
  %v1879 = vadd.f32 %v329, %v1865
  %v1880 = vadd.f32 %v335, %v1870
  %v1881 = vadd.f32 %v341, %v1875
  %1882 = vmatprep.subr.mxu0 0.0
  %1883 = vmatpush1.msra.mxu0 %v1878
  %1884 = vmatprep.subr.mxu0 0.0
  %1885 = vmatpush1.msra.mxu0 %v1879
  %1886 = vmatprep.subr.mxu0 0.0
  %1887 = vmatpush1.msra.mxu0 %v1880
  %1888 = vmatprep.subr.mxu0 0.0
  %1889 = vmatpush1.msra.mxu0 %v1881
  %1890 = vmatprep.subr.mxu0 0.0
  %1891 = vmatpush1.msra.mxu0 0.0
  %1892 = vmatprep.subr.mxu0 0.0
  %1893 = vmatpush1.msra.mxu0 0.0
  %1894 = vmatprep.subr.mxu0 0.0
  %1895 = vmatpush1.msra.mxu0 0.0
  %1896 = vmatprep.subr.mxu0 0.0
  %1897 = vmatpush1.msra.mxu0 0.0
  %1898 = vmatprep.subr.mxu0 0.0
  %1899 = vmatpush1.msra.mxu0 0.0
  %1900 = vmatprep.subr.mxu0 0.0
  %1901 = vmatpush1.msra.mxu0 0.0
  %1902 = vmatprep.subr.mxu0 0.0
  %1903 = vmatpush1.msra.mxu0 0.0
  %1904 = vmatprep.subr.mxu0 0.0
  %1905 = vmatpush1.msra.mxu0 0.0
  %1906 = vmatprep.subr.mxu0 0.0
  %1907 = vmatpush1.msra.mxu0 0.0
  %1908 = vmatprep.subr.mxu0 0.0
  %1909 = vmatpush1.msra.mxu0 0.0
  %1910 = vmatprep.subr.mxu0 0.0
  %1911 = vmatpush1.msra.mxu0 0.0
  %1912 = vmatprep.subr.mxu0 0.0
  %1913 = vmatpush1.msra.mxu0 0.0
  %1914 = vmatprep.subr.mxu0 0.0
  %1915 = vmatpush1.msra.mxu0 0.0
  %1916 = vmatprep.subr.mxu0 0.0
  %1917 = vmatpush1.msra.mxu0 0.0
  %1918 = vmatprep.subr.mxu0 0.0
  %1919 = vmatpush1.msra.mxu0 0.0
  %1920 = vmatprep.subr.mxu0 0.0
  %1921 = vmatpush1.msra.mxu0 0.0
  %1922 = vmatprep.subr.mxu0 0.0
  %1923 = vmatpush1.msra.mxu0 0.0
  %1924 = vmatprep.subr.mxu0 0.0
  %1925 = vmatpush1.msra.mxu0 0.0
  %1926 = vmatprep.subr.mxu0 0.0
  %1927 = vmatpush1.msra.mxu0 0.0
  %1928 = vmatprep.subr.mxu0 0.0
  %1929 = vmatpush1.msra.mxu0 0.0
  %1930 = vmatprep.subr.mxu0 0.0
  %1931 = vmatpush1.msra.mxu0 0.0
  %1932 = vmatprep.subr.mxu0 0.0
  %1933 = vmatpush1.msra.mxu0 0.0
  %1934 = vmatprep.subr.mxu0 0.0
  %1935 = vmatpush1.msra.mxu0 0.0
  %1936 = vmatprep.subr.mxu0 0.0
  %1937 = vmatpush1.msra.mxu0 0.0
  %1938 = vmatprep.subr.mxu0 0.0
  %1939 = vmatpush1.msra.mxu0 0.0
  %1940 = vmatprep.subr.mxu0 0.0
  %1941 = vmatpush1.msra.mxu0 0.0
  %1942 = vmatprep.subr.mxu0 0.0
  %1943 = vmatpush1.msra.mxu0 0.0
  %1944 = vmatprep.subr.mxu0 0.0
  %1945 = vmatpush1.msra.mxu0 0.0
  %1946 = vmatprep.mubr.f32.mxu0 0.0
  %1947 = vmatmul.mubr.f32.gmra.mrb[0].mxu0 %v559
  %v1948 = vpop.f32.mrb[0].mxu0
  %v1949 = vadd.f32 0.0, %v1948
  %v1950 = vpop.f32.mrb[0].mxu0
  %1951 = vmatprep.mubr.f32.mxu0 0.0
  %1952 = vmatmul.mubr.f32.gmra.mrb[0].mxu0 %v562
  %v1953 = vpop.f32.mrb[0].mxu0
  %v1954 = vadd.f32 0.0, %v1953
  %v1955 = vpop.f32.mrb[0].mxu0
  %1956 = vmatprep.mubr.f32.mxu0 0.0
  %1957 = vmatmul.mubr.f32.gmra.mrb[0].mxu0 %v565
  %v1958 = vpop.f32.mrb[0].mxu0
  %v1959 = vadd.f32 0.0, %v1958
  %v1960 = vpop.f32.mrb[0].mxu0
  %1961 = vmatprep.mubr.f32.mxu0 0.0
  %1962 = vmatmul.mubr.f32.gmra.mrb[0].mxu0 %v568
  %v1963 = vpop.f32.mrb[0].mxu0
  %v1964 = vadd.f32 0.0, %v1963
  %v1965 = vpop.f32.mrb[0].mxu0
  %1966 = vdwg.mxu0
  %v1967 = vadd.f32 %v95, %v1949
  %v1968 = vadd.f32 %v95, %v1954
  %v1969 = vadd.f32 %v95, %v1959
  %v1970 = vadd.f32 %v95, %v1964
  %1975 = vrot.lane.b32.xlu0 %v1878, 64
  %v1976 = vpop.permute.xlu0 %1975
  %1977 = vrot.lane.b32.xlu0 %v1879, 64
  %v1978 = vpop.permute.xlu0 %1977
  %1979 = vrot.lane.b32.xlu0 %v1880, 64
  %v1980 = vpop.permute.xlu0 %1979
  %1981 = vrot.lane.b32.xlu0 %v1881, 64
  %v1982 = vpop.permute.xlu0 %1981
  %1987 = vmatprep.subr.mxu0 0.0
  %1988 = vmatpush1.msra.mxu0 %v1976
  %1989 = vmatprep.subr.mxu0 0.0
  %1990 = vmatpush1.msra.mxu0 %v1978
  %1991 = vmatprep.subr.mxu0 0.0
  %1992 = vmatpush1.msra.mxu0 %v1980
  %1993 = vmatprep.subr.mxu0 0.0
  %1994 = vmatpush1.msra.mxu0 %v1982
  %1995 = vmatprep.subr.mxu0 0.0
  %1996 = vmatpush1.msra.mxu0 0.0
  %1997 = vmatprep.subr.mxu0 0.0
  %1998 = vmatpush1.msra.mxu0 0.0
  %1999 = vmatprep.subr.mxu0 0.0
  %2000 = vmatpush1.msra.mxu0 0.0
  %2001 = vmatprep.subr.mxu0 0.0
  %2002 = vmatpush1.msra.mxu0 0.0
  %2003 = vmatprep.subr.mxu0 0.0
  %2004 = vmatpush1.msra.mxu0 0.0
  %2005 = vmatprep.subr.mxu0 0.0
  %2006 = vmatpush1.msra.mxu0 0.0
  %2007 = vmatprep.subr.mxu0 0.0
  %2008 = vmatpush1.msra.mxu0 0.0
  %2009 = vmatprep.subr.mxu0 0.0
  %2010 = vmatpush1.msra.mxu0 0.0
  %2011 = vmatprep.subr.mxu0 0.0
  %2012 = vmatpush1.msra.mxu0 0.0
  %2013 = vmatprep.subr.mxu0 0.0
  %2014 = vmatpush1.msra.mxu0 0.0
  %2015 = vmatprep.subr.mxu0 0.0
  %2016 = vmatpush1.msra.mxu0 0.0
  %2017 = vmatprep.subr.mxu0 0.0
  %2018 = vmatpush1.msra.mxu0 0.0
  %2019 = vmatprep.subr.mxu0 0.0
  %2020 = vmatpush1.msra.mxu0 0.0
  %2021 = vmatprep.subr.mxu0 0.0
  %2022 = vmatpush1.msra.mxu0 0.0
  %2023 = vmatprep.subr.mxu0 0.0
  %2024 = vmatpush1.msra.mxu0 0.0
  %2025 = vmatprep.subr.mxu0 0.0
  %2026 = vmatpush1.msra.mxu0 0.0
  %2027 = vmatprep.subr.mxu0 0.0
  %2028 = vmatpush1.msra.mxu0 0.0
  %2029 = vmatprep.subr.mxu0 0.0
  %2030 = vmatpush1.msra.mxu0 0.0
  %2031 = vmatprep.subr.mxu0 0.0
  %2032 = vmatpush1.msra.mxu0 0.0
  %2033 = vmatprep.subr.mxu0 0.0
  %2034 = vmatpush1.msra.mxu0 0.0
  %2035 = vmatprep.subr.mxu0 0.0
  %2036 = vmatpush1.msra.mxu0 0.0
  %2037 = vmatprep.subr.mxu0 0.0
  %2038 = vmatpush1.msra.mxu0 0.0
  %2039 = vmatprep.subr.mxu0 0.0
  %2040 = vmatpush1.msra.mxu0 0.0
  %2041 = vmatprep.subr.mxu0 0.0
  %2042 = vmatpush1.msra.mxu0 0.0
  %2043 = vmatprep.subr.mxu0 0.0
  %2044 = vmatpush1.msra.mxu0 0.0
  %2045 = vmatprep.subr.mxu0 0.0
  %2046 = vmatpush1.msra.mxu0 0.0
  %2047 = vmatprep.subr.mxu0 0.0
  %2048 = vmatpush1.msra.mxu0 0.0
  %2049 = vmatprep.subr.mxu0 0.0
  %2050 = vmatpush1.msra.mxu0 0.0
  %2051 = vmatprep.mubr.f32.mxu0 0.0
  %2052 = vmatmul.mubr.f32.gmra.mrb[0].mxu0 %v676
  %v2053 = vpop.f32.mrb[0].mxu0
  %v2054 = vadd.f32 0.0, %v2053
  %v2055 = vpop.f32.mrb[0].mxu0
  %2056 = vmatprep.mubr.f32.mxu0 0.0
  %2057 = vmatmul.mubr.f32.gmra.mrb[0].mxu0 %v679
  %v2058 = vpop.f32.mrb[0].mxu0
  %v2059 = vadd.f32 0.0, %v2058
  %v2060 = vpop.f32.mrb[0].mxu0
  %2061 = vmatprep.mubr.f32.mxu0 0.0
  %2062 = vmatmul.mubr.f32.gmra.mrb[0].mxu0 %v682
  %v2063 = vpop.f32.mrb[0].mxu0
  %v2064 = vadd.f32 0.0, %v2063
  %v2065 = vpop.f32.mrb[0].mxu0
  %2066 = vmatprep.mubr.f32.mxu0 0.0
  %2067 = vmatmul.mubr.f32.gmra.mrb[0].mxu0 %v685
  %v2068 = vpop.f32.mrb[0].mxu0
  %v2069 = vadd.f32 0.0, %v2068
  %v2070 = vpop.f32.mrb[0].mxu0
  %2071 = vdwg.mxu0
  %v2072 = vadd.f32 %v1967, %v2054
  %v2073 = vadd.f32 %v1968, %v2059
  %v2074 = vadd.f32 %v1969, %v2064
  %v2075 = vadd.f32 %v1970, %v2069
  %v2076 = vxor.u32 %v2072, 2147483648
  %v2077 = vxor.u32 %v2073, 2147483648
  %v2078 = vxor.u32 %v2074, 2147483648
  %v2079 = vxor.u32 %v2075, 2147483648
  %v2080 = vmul.f32 %v2076, 1.442695
  %v2081 = vpow.pop %v2080
  %v2082 = vmul.f32 %v2077, 1.442695
  %v2083 = vpow.pop %v2082
  %v2084 = vmul.f32 %v2078, 1.442695
  %v2085 = vpow.pop %v2084
  %v2086 = vmul.f32 %v2079, 1.442695
  %v2087 = vpow.pop %v2086
  %v2088 = vadd.f32 %v2081, 1.0
  %v2089 = vadd.f32 %v2083, 1.0
  %v2090 = vadd.f32 %v2085, 1.0
  %v2091 = vadd.f32 %v2087, 1.0
  %v2092 = vrcp.pop %v2088
  %v2093 = vmul.f32 1.0, %v2092
  %v2094 = vrcp.pop %v2089
  %v2095 = vmul.f32 1.0, %v2094
  %v2096 = vrcp.pop %v2090
  %v2097 = vmul.f32 1.0, %v2096
  %v2098 = vrcp.pop %v2091
  %v2099 = vmul.f32 1.0, %v2098
  %2100 = vrot.lane.b32.xlu0 %v1773, 32
  %v2101 = vpop.permute.xlu0 %2100
  %2102 = vrot.lane.b32.xlu0 %v1774, 32
  %v2103 = vpop.permute.xlu0 %2102
  %2104 = vrot.lane.b32.xlu0 %v1775, 32
  %v2105 = vpop.permute.xlu0 %2104
  %2106 = vrot.lane.b32.xlu0 %v1776, 32
  %v2107 = vpop.permute.xlu0 %2106
  %v2112 = vmul.f32 %v2093, %v2101
  %v2113 = vmul.f32 %v2095, %v2103
  %v2114 = vmul.f32 %v2097, %v2105
  %v2115 = vmul.f32 %v2099, %v2107
  %2120 = vrot.lane.b32.xlu0 %v2112, 96
  %v2121 = vpop.permute.xlu0 %2120
  %2122 = vrot.lane.b32.xlu0 %v2113, 96
  %v2123 = vpop.permute.xlu0 %2122
  %2124 = vrot.lane.b32.xlu0 %v2114, 96
  %v2125 = vpop.permute.xlu0 %2124
  %2126 = vrot.lane.b32.xlu0 %v2115, 96
  %v2127 = vpop.permute.xlu0 %2126
  %v2128 = vsel %vm465, %v2121, 0
  %v2130 = vsel %vm465, %v2123, 0
  %v2132 = vsel %vm465, %v2125, 0
  %v2134 = vsel %vm465, %v2127, 0
  %2136 = vmatprep.subr.mxu0 0.0
  %2137 = vmatpush1.msra.mxu0 %v86
  %2138 = vmatprep.subr.mxu0 0.0
  %2139 = vmatpush1.msra.mxu0 %v87
  %2140 = vmatprep.subr.mxu0 0.0
  %2141 = vmatpush1.msra.mxu0 %v88
  %2142 = vmatprep.subr.mxu0 0.0
  %2143 = vmatpush1.msra.mxu0 %v89
  %2144 = vmatprep.subr.mxu0 0.0
  %2145 = vmatpush1.msra.mxu0 0.0
  %2146 = vmatprep.subr.mxu0 0.0
  %2147 = vmatpush1.msra.mxu0 0.0
  %2148 = vmatprep.subr.mxu0 0.0
  %2149 = vmatpush1.msra.mxu0 0.0
  %2150 = vmatprep.subr.mxu0 0.0
  %2151 = vmatpush1.msra.mxu0 0.0
  %2152 = vmatprep.subr.mxu0 0.0
  %2153 = vmatpush1.msra.mxu0 0.0
  %2154 = vmatprep.subr.mxu0 0.0
  %2155 = vmatpush1.msra.mxu0 0.0
  %2156 = vmatprep.subr.mxu0 0.0
  %2157 = vmatpush1.msra.mxu0 0.0
  %2158 = vmatprep.subr.mxu0 0.0
  %2159 = vmatpush1.msra.mxu0 0.0
  %2160 = vmatprep.subr.mxu0 0.0
  %2161 = vmatpush1.msra.mxu0 0.0
  %2162 = vmatprep.subr.mxu0 0.0
  %2163 = vmatpush1.msra.mxu0 0.0
  %2164 = vmatprep.subr.mxu0 0.0
  %2165 = vmatpush1.msra.mxu0 0.0
  %2166 = vmatprep.subr.mxu0 0.0
  %2167 = vmatpush1.msra.mxu0 0.0
  %2168 = vmatprep.subr.mxu0 0.0
  %2169 = vmatpush1.msra.mxu0 0.0
  %2170 = vmatprep.subr.mxu0 0.0
  %2171 = vmatpush1.msra.mxu0 0.0
  %2172 = vmatprep.subr.mxu0 0.0
  %2173 = vmatpush1.msra.mxu0 0.0
  %2174 = vmatprep.subr.mxu0 0.0
  %2175 = vmatpush1.msra.mxu0 0.0
  %2176 = vmatprep.subr.mxu0 0.0
  %2177 = vmatpush1.msra.mxu0 0.0
  %2178 = vmatprep.subr.mxu0 0.0
  %2179 = vmatpush1.msra.mxu0 0.0
  %2180 = vmatprep.subr.mxu0 0.0
  %2181 = vmatpush1.msra.mxu0 0.0
  %2182 = vmatprep.subr.mxu0 0.0
  %2183 = vmatpush1.msra.mxu0 0.0
  %2184 = vmatprep.subr.mxu0 0.0
  %2185 = vmatpush1.msra.mxu0 0.0
  %2186 = vmatprep.subr.mxu0 0.0
  %2187 = vmatpush1.msra.mxu0 0.0
  %2188 = vmatprep.subr.mxu0 0.0
  %2189 = vmatpush1.msra.mxu0 0.0
  %2190 = vmatprep.subr.mxu0 0.0
  %2191 = vmatpush1.msra.mxu0 0.0
  %2192 = vmatprep.subr.mxu0 0.0
  %2193 = vmatpush1.msra.mxu0 0.0
  %2194 = vmatprep.subr.mxu0 0.0
  %2195 = vmatpush1.msra.mxu0 0.0
  %2196 = vmatprep.subr.mxu0 0.0
  %2197 = vmatpush1.msra.mxu0 0.0
  %2198 = vmatprep.subr.mxu0 0.0
  %2199 = vmatpush1.msra.mxu0 0.0
  %2200 = vmatprep.mubr.f32.mxu0 0.0
  %2201 = vmatmul.mubr.f32.gmra.mrb[0].mxu0 %v2128
  %v2202 = vpop.f32.mrb[0].mxu0
  %v2203 = vadd.f32 0.0, %v2202
  %v2204 = vpop.f32.mrb[0].mxu0
  %2205 = vmatprep.mubr.f32.mxu0 0.0
  %2206 = vmatmul.mubr.f32.gmra.mrb[0].mxu0 %v2130
  %v2207 = vpop.f32.mrb[0].mxu0
  %v2208 = vadd.f32 0.0, %v2207
  %v2209 = vpop.f32.mrb[0].mxu0
  %2210 = vmatprep.mubr.f32.mxu0 0.0
  %2211 = vmatmul.mubr.f32.gmra.mrb[0].mxu0 %v2132
  %v2212 = vpop.f32.mrb[0].mxu0
  %v2213 = vadd.f32 0.0, %v2212
  %v2214 = vpop.f32.mrb[0].mxu0
  %2215 = vmatprep.mubr.f32.mxu0 0.0
  %2216 = vmatmul.mubr.f32.gmra.mrb[0].mxu0 %v2134
  %v2217 = vpop.f32.mrb[0].mxu0
  %v2218 = vadd.f32 0.0, %v2217
  %v2219 = vpop.f32.mrb[0].mxu0
  %2220 = vdwg.mxu0
  %v2221 = vadd.f32 %v325, %v2203
  %v2222 = vadd.f32 %v331, %v2208
  %v2223 = vadd.f32 %v337, %v2213
  %v2224 = vadd.f32 %v343, %v2218
  %2225 = vmatprep.subr.mxu0 0.0
  %2226 = vmatpush1.msra.mxu0 %v2221
  %2227 = vmatprep.subr.mxu0 0.0
  %2228 = vmatpush1.msra.mxu0 %v2222
  %2229 = vmatprep.subr.mxu0 0.0
  %2230 = vmatpush1.msra.mxu0 %v2223
  %2231 = vmatprep.subr.mxu0 0.0
  %2232 = vmatpush1.msra.mxu0 %v2224
  %2233 = vmatprep.subr.mxu0 0.0
  %2234 = vmatpush1.msra.mxu0 0.0
  %2235 = vmatprep.subr.mxu0 0.0
  %2236 = vmatpush1.msra.mxu0 0.0
  %2237 = vmatprep.subr.mxu0 0.0
  %2238 = vmatpush1.msra.mxu0 0.0
  %2239 = vmatprep.subr.mxu0 0.0
  %2240 = vmatpush1.msra.mxu0 0.0
  %2241 = vmatprep.subr.mxu0 0.0
  %2242 = vmatpush1.msra.mxu0 0.0
  %2243 = vmatprep.subr.mxu0 0.0
  %2244 = vmatpush1.msra.mxu0 0.0
  %2245 = vmatprep.subr.mxu0 0.0
  %2246 = vmatpush1.msra.mxu0 0.0
  %2247 = vmatprep.subr.mxu0 0.0
  %2248 = vmatpush1.msra.mxu0 0.0
  %2249 = vmatprep.subr.mxu0 0.0
  %2250 = vmatpush1.msra.mxu0 0.0
  %2251 = vmatprep.subr.mxu0 0.0
  %2252 = vmatpush1.msra.mxu0 0.0
  %2253 = vmatprep.subr.mxu0 0.0
  %2254 = vmatpush1.msra.mxu0 0.0
  %2255 = vmatprep.subr.mxu0 0.0
  %2256 = vmatpush1.msra.mxu0 0.0
  %2257 = vmatprep.subr.mxu0 0.0
  %2258 = vmatpush1.msra.mxu0 0.0
  %2259 = vmatprep.subr.mxu0 0.0
  %2260 = vmatpush1.msra.mxu0 0.0
  %2261 = vmatprep.subr.mxu0 0.0
  %2262 = vmatpush1.msra.mxu0 0.0
  %2263 = vmatprep.subr.mxu0 0.0
  %2264 = vmatpush1.msra.mxu0 0.0
  %2265 = vmatprep.subr.mxu0 0.0
  %2266 = vmatpush1.msra.mxu0 0.0
  %2267 = vmatprep.subr.mxu0 0.0
  %2268 = vmatpush1.msra.mxu0 0.0
  %2269 = vmatprep.subr.mxu0 0.0
  %2270 = vmatpush1.msra.mxu0 0.0
  %2271 = vmatprep.subr.mxu0 0.0
  %2272 = vmatpush1.msra.mxu0 0.0
  %2273 = vmatprep.subr.mxu0 0.0
  %2274 = vmatpush1.msra.mxu0 0.0
  %2275 = vmatprep.subr.mxu0 0.0
  %2276 = vmatpush1.msra.mxu0 0.0
  %2277 = vmatprep.subr.mxu0 0.0
  %2278 = vmatpush1.msra.mxu0 0.0
  %2279 = vmatprep.subr.mxu0 0.0
  %2280 = vmatpush1.msra.mxu0 0.0
  %2281 = vmatprep.subr.mxu0 0.0
  %2282 = vmatpush1.msra.mxu0 0.0
  %2283 = vmatprep.subr.mxu0 0.0
  %2284 = vmatpush1.msra.mxu0 0.0
  %2285 = vmatprep.subr.mxu0 0.0
  %2286 = vmatpush1.msra.mxu0 0.0
  %2287 = vmatprep.subr.mxu0 0.0
  %2288 = vmatpush1.msra.mxu0 0.0
  %2289 = vmatprep.mubr.f32.mxu0 0.0
  %2290 = vmatmul.mubr.f32.gmra.mrb[0].mxu0 %v559
  %v2291 = vpop.f32.mrb[0].mxu0
  %v2292 = vadd.f32 0.0, %v2291
  %v2293 = vpop.f32.mrb[0].mxu0
  %2294 = vmatprep.mubr.f32.mxu0 0.0
  %2295 = vmatmul.mubr.f32.gmra.mrb[0].mxu0 %v562
  %v2296 = vpop.f32.mrb[0].mxu0
  %v2297 = vadd.f32 0.0, %v2296
  %v2298 = vpop.f32.mrb[0].mxu0
  %2299 = vmatprep.mubr.f32.mxu0 0.0
  %2300 = vmatmul.mubr.f32.gmra.mrb[0].mxu0 %v565
  %v2301 = vpop.f32.mrb[0].mxu0
  %v2302 = vadd.f32 0.0, %v2301
  %v2303 = vpop.f32.mrb[0].mxu0
  %2304 = vmatprep.mubr.f32.mxu0 0.0
  %2305 = vmatmul.mubr.f32.gmra.mrb[0].mxu0 %v568
  %v2306 = vpop.f32.mrb[0].mxu0
  %v2307 = vadd.f32 0.0, %v2306
  %v2308 = vpop.f32.mrb[0].mxu0
  %2309 = vdwg.mxu0
  %v2310 = vadd.f32 %v102, %v2292
  %v2311 = vadd.f32 %v102, %v2297
  %v2312 = vadd.f32 %v102, %v2302
  %v2313 = vadd.f32 %v102, %v2307
  %2318 = vrot.lane.b32.xlu0 %v2221, 96
  %v2319 = vpop.permute.xlu0 %2318
  %2320 = vrot.lane.b32.xlu0 %v2222, 96
  %v2321 = vpop.permute.xlu0 %2320
  %2322 = vrot.lane.b32.xlu0 %v2223, 96
  %v2323 = vpop.permute.xlu0 %2322
  %2324 = vrot.lane.b32.xlu0 %v2224, 96
  %v2325 = vpop.permute.xlu0 %2324
  %2330 = vmatprep.subr.mxu0 0.0
  %2331 = vmatpush1.msra.mxu0 %v2319
  %2332 = vmatprep.subr.mxu0 0.0
  %2333 = vmatpush1.msra.mxu0 %v2321
  %2334 = vmatprep.subr.mxu0 0.0
  %2335 = vmatpush1.msra.mxu0 %v2323
  %2336 = vmatprep.subr.mxu0 0.0
  %2337 = vmatpush1.msra.mxu0 %v2325
  %2338 = vmatprep.subr.mxu0 0.0
  %2339 = vmatpush1.msra.mxu0 0.0
  %2340 = vmatprep.subr.mxu0 0.0
  %2341 = vmatpush1.msra.mxu0 0.0
  %2342 = vmatprep.subr.mxu0 0.0
  %2343 = vmatpush1.msra.mxu0 0.0
  %2344 = vmatprep.subr.mxu0 0.0
  %2345 = vmatpush1.msra.mxu0 0.0
  %2346 = vmatprep.subr.mxu0 0.0
  %2347 = vmatpush1.msra.mxu0 0.0
  %2348 = vmatprep.subr.mxu0 0.0
  %2349 = vmatpush1.msra.mxu0 0.0
  %2350 = vmatprep.subr.mxu0 0.0
  %2351 = vmatpush1.msra.mxu0 0.0
  %2352 = vmatprep.subr.mxu0 0.0
  %2353 = vmatpush1.msra.mxu0 0.0
  %2354 = vmatprep.subr.mxu0 0.0
  %2355 = vmatpush1.msra.mxu0 0.0
  %2356 = vmatprep.subr.mxu0 0.0
  %2357 = vmatpush1.msra.mxu0 0.0
  %2358 = vmatprep.subr.mxu0 0.0
  %2359 = vmatpush1.msra.mxu0 0.0
  %2360 = vmatprep.subr.mxu0 0.0
  %2361 = vmatpush1.msra.mxu0 0.0
  %2362 = vmatprep.subr.mxu0 0.0
  %2363 = vmatpush1.msra.mxu0 0.0
  %2364 = vmatprep.subr.mxu0 0.0
  %2365 = vmatpush1.msra.mxu0 0.0
  %2366 = vmatprep.subr.mxu0 0.0
  %2367 = vmatpush1.msra.mxu0 0.0
  %2368 = vmatprep.subr.mxu0 0.0
  %2369 = vmatpush1.msra.mxu0 0.0
  %2370 = vmatprep.subr.mxu0 0.0
  %2371 = vmatpush1.msra.mxu0 0.0
  %2372 = vmatprep.subr.mxu0 0.0
  %2373 = vmatpush1.msra.mxu0 0.0
  %2374 = vmatprep.subr.mxu0 0.0
  %2375 = vmatpush1.msra.mxu0 0.0
  %2376 = vmatprep.subr.mxu0 0.0
  %2377 = vmatpush1.msra.mxu0 0.0
  %2378 = vmatprep.subr.mxu0 0.0
  %2379 = vmatpush1.msra.mxu0 0.0
  %2380 = vmatprep.subr.mxu0 0.0
  %2381 = vmatpush1.msra.mxu0 0.0
  %2382 = vmatprep.subr.mxu0 0.0
  %2383 = vmatpush1.msra.mxu0 0.0
  %2384 = vmatprep.subr.mxu0 0.0
  %2385 = vmatpush1.msra.mxu0 0.0
  %2386 = vmatprep.subr.mxu0 0.0
  %2387 = vmatpush1.msra.mxu0 0.0
  %2388 = vmatprep.subr.mxu0 0.0
  %2389 = vmatpush1.msra.mxu0 0.0
  %2390 = vmatprep.subr.mxu0 0.0
  %2391 = vmatpush1.msra.mxu0 0.0
  %2392 = vmatprep.subr.mxu0 0.0
  %2393 = vmatpush1.msra.mxu0 0.0
  %2394 = vmatprep.mubr.f32.mxu0 0.0
  %2395 = vmatmul.mubr.f32.gmra.mrb[0].mxu0 %v676
  %v2396 = vpop.f32.mrb[0].mxu0
  %v2397 = vadd.f32 0.0, %v2396
  %v2398 = vpop.f32.mrb[0].mxu0
  %2399 = vmatprep.mubr.f32.mxu0 0.0
  %2400 = vmatmul.mubr.f32.gmra.mrb[0].mxu0 %v679
  %v2401 = vpop.f32.mrb[0].mxu0
  %v2402 = vadd.f32 0.0, %v2401
  %v2403 = vpop.f32.mrb[0].mxu0
  %2404 = vmatprep.mubr.f32.mxu0 0.0
  %2405 = vmatmul.mubr.f32.gmra.mrb[0].mxu0 %v682
  %v2406 = vpop.f32.mrb[0].mxu0
  %v2407 = vadd.f32 0.0, %v2406
  %v2408 = vpop.f32.mrb[0].mxu0
  %2409 = vmatprep.mubr.f32.mxu0 0.0
  %2410 = vmatmul.mubr.f32.gmra.mrb[0].mxu0 %v685
  %v2411 = vpop.f32.mrb[0].mxu0
  %v2412 = vadd.f32 0.0, %v2411
  %v2413 = vpop.f32.mrb[0].mxu0
  %2414 = vdwg.mxu0
  %v2415 = vadd.f32 %v2310, %v2397
  %v2416 = vadd.f32 %v2311, %v2402
  %v2417 = vadd.f32 %v2312, %v2407
  %v2418 = vadd.f32 %v2313, %v2412
  %v2419 = vtanh.pop %v2415
  %v2420 = vtanh.pop %v2416
  %v2421 = vtanh.pop %v2417
  %v2422 = vtanh.pop %v2418
  %v2423 = vsub.f32 %v2419, %v1773
  %v2424 = vsub.f32 %v2420, %v1774
  %v2425 = vsub.f32 %v2421, %v1775
  %v2426 = vsub.f32 %v2422, %v1776
  %v2427 = vmul.f32 %v2093, %v2423
  %v2428 = vmul.f32 %v2095, %v2424
  %v2429 = vmul.f32 %v2097, %v2425
  %v2430 = vmul.f32 %v2099, %v2426
  %v2431 = vadd.f32 %v1773, %v2427
  %v2432 = vadd.f32 %v1774, %v2428
  %v2433 = vadd.f32 %v1775, %v2429
  %v2434 = vadd.f32 %v1776, %v2430
  %2435 = vst.msk [vmem:[#allocation2 + $0x40] sm:$0xff] %vm465, %v2431
  %2436 = vst.msk [vmem:[#allocation2 + $0x48] sm:$0xff] %vm465, %v2432
  %2437 = vst.msk [vmem:[#allocation2 + $0x50] sm:$0xff] %vm465, %v2433
  %2438 = vst.msk [vmem:[#allocation2 + $0x58] sm:$0xff] %vm465, %v2434
  %v2440 = vsel %vm465, %v2431, 0
  %v2443 = vsel %vm465, %v2432, 0
  %v2446 = vsel %vm465, %v2433, 0
  %v2449 = vsel %vm465, %v2434, 0
  %2451 = vmatprep.subr.mxu0 0.0
  %2452 = vmatpush1.msra.mxu0 %v82
  %2453 = vmatprep.subr.mxu0 0.0
  %2454 = vmatpush1.msra.mxu0 %v83
  %2455 = vmatprep.subr.mxu0 0.0
  %2456 = vmatpush1.msra.mxu0 %v84
  %2457 = vmatprep.subr.mxu0 0.0
  %2458 = vmatpush1.msra.mxu0 %v85
  %2459 = vmatprep.subr.mxu0 0.0
  %2460 = vmatpush1.msra.mxu0 0.0
  %2461 = vmatprep.subr.mxu0 0.0
  %2462 = vmatpush1.msra.mxu0 0.0
  %2463 = vmatprep.subr.mxu0 0.0
  %2464 = vmatpush1.msra.mxu0 0.0
  %2465 = vmatprep.subr.mxu0 0.0
  %2466 = vmatpush1.msra.mxu0 0.0
  %2467 = vmatprep.subr.mxu0 0.0
  %2468 = vmatpush1.msra.mxu0 0.0
  %2469 = vmatprep.subr.mxu0 0.0
  %2470 = vmatpush1.msra.mxu0 0.0
  %2471 = vmatprep.subr.mxu0 0.0
  %2472 = vmatpush1.msra.mxu0 0.0
  %2473 = vmatprep.subr.mxu0 0.0
  %2474 = vmatpush1.msra.mxu0 0.0
  %2475 = vmatprep.subr.mxu0 0.0
  %2476 = vmatpush1.msra.mxu0 0.0
  %2477 = vmatprep.subr.mxu0 0.0
  %2478 = vmatpush1.msra.mxu0 0.0
  %2479 = vmatprep.subr.mxu0 0.0
  %2480 = vmatpush1.msra.mxu0 0.0
  %2481 = vmatprep.subr.mxu0 0.0
  %2482 = vmatpush1.msra.mxu0 0.0
  %2483 = vmatprep.subr.mxu0 0.0
  %2484 = vmatpush1.msra.mxu0 0.0
  %2485 = vmatprep.subr.mxu0 0.0
  %2486 = vmatpush1.msra.mxu0 0.0
  %2487 = vmatprep.subr.mxu0 0.0
  %2488 = vmatpush1.msra.mxu0 0.0
  %2489 = vmatprep.subr.mxu0 0.0
  %2490 = vmatpush1.msra.mxu0 0.0
  %2491 = vmatprep.subr.mxu0 0.0
  %2492 = vmatpush1.msra.mxu0 0.0
  %2493 = vmatprep.subr.mxu0 0.0
  %2494 = vmatpush1.msra.mxu0 0.0
  %2495 = vmatprep.subr.mxu0 0.0
  %2496 = vmatpush1.msra.mxu0 0.0
  %2497 = vmatprep.subr.mxu0 0.0
  %2498 = vmatpush1.msra.mxu0 0.0
  %2499 = vmatprep.subr.mxu0 0.0
  %2500 = vmatpush1.msra.mxu0 0.0
  %2501 = vmatprep.subr.mxu0 0.0
  %2502 = vmatpush1.msra.mxu0 0.0
  %2503 = vmatprep.subr.mxu0 0.0
  %2504 = vmatpush1.msra.mxu0 0.0
  %2505 = vmatprep.subr.mxu0 0.0
  %2506 = vmatpush1.msra.mxu0 0.0
  %2507 = vmatprep.subr.mxu0 0.0
  %2508 = vmatpush1.msra.mxu0 0.0
  %2509 = vmatprep.subr.mxu0 0.0
  %2510 = vmatpush1.msra.mxu0 0.0
  %2511 = vmatprep.subr.mxu0 0.0
  %2512 = vmatpush1.msra.mxu0 0.0
  %2513 = vmatprep.subr.mxu0 0.0
  %2514 = vmatpush1.msra.mxu0 0.0
  %2515 = vmatprep.mubr.f32.mxu0 0.0
  %2516 = vmatmul.mubr.f32.gmra.mrb[0].mxu0 %v2440
  %v2517 = vpop.f32.mrb[0].mxu0
  %v2518 = vadd.f32 0.0, %v2517
  %v2519 = vpop.f32.mrb[0].mxu0
  %2520 = vmatprep.mubr.f32.mxu0 0.0
  %2521 = vmatmul.mubr.f32.gmra.mrb[0].mxu0 %v2443
  %v2522 = vpop.f32.mrb[0].mxu0
  %v2523 = vadd.f32 0.0, %v2522
  %v2524 = vpop.f32.mrb[0].mxu0
  %2525 = vmatprep.mubr.f32.mxu0 0.0
  %2526 = vmatmul.mubr.f32.gmra.mrb[0].mxu0 %v2446
  %v2527 = vpop.f32.mrb[0].mxu0
  %v2528 = vadd.f32 0.0, %v2527
  %v2529 = vpop.f32.mrb[0].mxu0
  %2530 = vmatprep.mubr.f32.mxu0 0.0
  %2531 = vmatmul.mubr.f32.gmra.mrb[0].mxu0 %v2449
  %v2532 = vpop.f32.mrb[0].mxu0
  %v2533 = vadd.f32 0.0, %v2532
  %v2534 = vpop.f32.mrb[0].mxu0
  %2535 = vdwg.mxu0
  %v2536 = vadd.f32 %v347, %v2518
  %v2537 = vadd.f32 %v353, %v2523
  %v2538 = vadd.f32 %v359, %v2528
  %v2539 = vadd.f32 %v365, %v2533
  %2540 = vmatprep.subr.mxu0 0.0
  %2541 = vmatpush1.msra.mxu0 %v2536
  %2542 = vmatprep.subr.mxu0 0.0
  %2543 = vmatpush1.msra.mxu0 %v2537
  %2544 = vmatprep.subr.mxu0 0.0
  %2545 = vmatpush1.msra.mxu0 %v2538
  %2546 = vmatprep.subr.mxu0 0.0
  %2547 = vmatpush1.msra.mxu0 %v2539
  %2548 = vmatprep.subr.mxu0 0.0
  %2549 = vmatpush1.msra.mxu0 0.0
  %2550 = vmatprep.subr.mxu0 0.0
  %2551 = vmatpush1.msra.mxu0 0.0
  %2552 = vmatprep.subr.mxu0 0.0
  %2553 = vmatpush1.msra.mxu0 0.0
  %2554 = vmatprep.subr.mxu0 0.0
  %2555 = vmatpush1.msra.mxu0 0.0
  %2556 = vmatprep.subr.mxu0 0.0
  %2557 = vmatpush1.msra.mxu0 0.0
  %2558 = vmatprep.subr.mxu0 0.0
  %2559 = vmatpush1.msra.mxu0 0.0
  %2560 = vmatprep.subr.mxu0 0.0
  %2561 = vmatpush1.msra.mxu0 0.0
  %2562 = vmatprep.subr.mxu0 0.0
  %2563 = vmatpush1.msra.mxu0 0.0
  %2564 = vmatprep.subr.mxu0 0.0
  %2565 = vmatpush1.msra.mxu0 0.0
  %2566 = vmatprep.subr.mxu0 0.0
  %2567 = vmatpush1.msra.mxu0 0.0
  %2568 = vmatprep.subr.mxu0 0.0
  %2569 = vmatpush1.msra.mxu0 0.0
  %2570 = vmatprep.subr.mxu0 0.0
  %2571 = vmatpush1.msra.mxu0 0.0
  %2572 = vmatprep.subr.mxu0 0.0
  %2573 = vmatpush1.msra.mxu0 0.0
  %2574 = vmatprep.subr.mxu0 0.0
  %2575 = vmatpush1.msra.mxu0 0.0
  %2576 = vmatprep.subr.mxu0 0.0
  %2577 = vmatpush1.msra.mxu0 0.0
  %2578 = vmatprep.subr.mxu0 0.0
  %2579 = vmatpush1.msra.mxu0 0.0
  %2580 = vmatprep.subr.mxu0 0.0
  %2581 = vmatpush1.msra.mxu0 0.0
  %2582 = vmatprep.subr.mxu0 0.0
  %2583 = vmatpush1.msra.mxu0 0.0
  %2584 = vmatprep.subr.mxu0 0.0
  %2585 = vmatpush1.msra.mxu0 0.0
  %2586 = vmatprep.subr.mxu0 0.0
  %2587 = vmatpush1.msra.mxu0 0.0
  %2588 = vmatprep.subr.mxu0 0.0
  %2589 = vmatpush1.msra.mxu0 0.0
  %2590 = vmatprep.subr.mxu0 0.0
  %2591 = vmatpush1.msra.mxu0 0.0
  %2592 = vmatprep.subr.mxu0 0.0
  %2593 = vmatpush1.msra.mxu0 0.0
  %2594 = vmatprep.subr.mxu0 0.0
  %2595 = vmatpush1.msra.mxu0 0.0
  %2596 = vmatprep.subr.mxu0 0.0
  %2597 = vmatpush1.msra.mxu0 0.0
  %2598 = vmatprep.subr.mxu0 0.0
  %2599 = vmatpush1.msra.mxu0 0.0
  %2600 = vmatprep.subr.mxu0 0.0
  %2601 = vmatpush1.msra.mxu0 0.0
  %2602 = vmatprep.subr.mxu0 0.0
  %2603 = vmatpush1.msra.mxu0 0.0
  %2604 = vmatprep.mubr.f32.mxu0 0.0
  %2605 = vmatmul.mubr.f32.gmra.mrb[0].mxu0 %v559
  %v2606 = vpop.f32.mrb[0].mxu0
  %v2607 = vadd.f32 0.0, %v2606
  %v2608 = vpop.f32.mrb[0].mxu0
  %2609 = vmatprep.mubr.f32.mxu0 0.0
  %2610 = vmatmul.mubr.f32.gmra.mrb[0].mxu0 %v562
  %v2611 = vpop.f32.mrb[0].mxu0
  %v2612 = vadd.f32 0.0, %v2611
  %v2613 = vpop.f32.mrb[0].mxu0
  %2614 = vmatprep.mubr.f32.mxu0 0.0
  %2615 = vmatmul.mubr.f32.gmra.mrb[0].mxu0 %v565
  %v2616 = vpop.f32.mrb[0].mxu0
  %v2617 = vadd.f32 0.0, %v2616
  %v2618 = vpop.f32.mrb[0].mxu0
  %2619 = vmatprep.mubr.f32.mxu0 0.0
  %2620 = vmatmul.mubr.f32.gmra.mrb[0].mxu0 %v568
  %v2621 = vpop.f32.mrb[0].mxu0
  %v2622 = vadd.f32 0.0, %v2621
  %v2623 = vpop.f32.mrb[0].mxu0
  %2624 = vdwg.mxu0
  %v2625 = vadd.f32 %v95, %v2607
  %v2626 = vadd.f32 %v95, %v2612
  %v2627 = vadd.f32 %v95, %v2617
  %v2628 = vadd.f32 %v95, %v2622
  %2633 = vrot.lane.b32.xlu0 %v2536, 64
  %v2634 = vpop.permute.xlu0 %2633
  %2635 = vrot.lane.b32.xlu0 %v2537, 64
  %v2636 = vpop.permute.xlu0 %2635
  %2637 = vrot.lane.b32.xlu0 %v2538, 64
  %v2638 = vpop.permute.xlu0 %2637
  %2639 = vrot.lane.b32.xlu0 %v2539, 64
  %v2640 = vpop.permute.xlu0 %2639
  %2645 = vmatprep.subr.mxu0 0.0
  %2646 = vmatpush1.msra.mxu0 %v2634
  %2647 = vmatprep.subr.mxu0 0.0
  %2648 = vmatpush1.msra.mxu0 %v2636
  %2649 = vmatprep.subr.mxu0 0.0
  %2650 = vmatpush1.msra.mxu0 %v2638
  %2651 = vmatprep.subr.mxu0 0.0
  %2652 = vmatpush1.msra.mxu0 %v2640
  %2653 = vmatprep.subr.mxu0 0.0
  %2654 = vmatpush1.msra.mxu0 0.0
  %2655 = vmatprep.subr.mxu0 0.0
  %2656 = vmatpush1.msra.mxu0 0.0
  %2657 = vmatprep.subr.mxu0 0.0
  %2658 = vmatpush1.msra.mxu0 0.0
  %2659 = vmatprep.subr.mxu0 0.0
  %2660 = vmatpush1.msra.mxu0 0.0
  %2661 = vmatprep.subr.mxu0 0.0
  %2662 = vmatpush1.msra.mxu0 0.0
  %2663 = vmatprep.subr.mxu0 0.0
  %2664 = vmatpush1.msra.mxu0 0.0
  %2665 = vmatprep.subr.mxu0 0.0
  %2666 = vmatpush1.msra.mxu0 0.0
  %2667 = vmatprep.subr.mxu0 0.0
  %2668 = vmatpush1.msra.mxu0 0.0
  %2669 = vmatprep.subr.mxu0 0.0
  %2670 = vmatpush1.msra.mxu0 0.0
  %2671 = vmatprep.subr.mxu0 0.0
  %2672 = vmatpush1.msra.mxu0 0.0
  %2673 = vmatprep.subr.mxu0 0.0
  %2674 = vmatpush1.msra.mxu0 0.0
  %2675 = vmatprep.subr.mxu0 0.0
  %2676 = vmatpush1.msra.mxu0 0.0
  %2677 = vmatprep.subr.mxu0 0.0
  %2678 = vmatpush1.msra.mxu0 0.0
  %2679 = vmatprep.subr.mxu0 0.0
  %2680 = vmatpush1.msra.mxu0 0.0
  %2681 = vmatprep.subr.mxu0 0.0
  %2682 = vmatpush1.msra.mxu0 0.0
  %2683 = vmatprep.subr.mxu0 0.0
  %2684 = vmatpush1.msra.mxu0 0.0
  %2685 = vmatprep.subr.mxu0 0.0
  %2686 = vmatpush1.msra.mxu0 0.0
  %2687 = vmatprep.subr.mxu0 0.0
  %2688 = vmatpush1.msra.mxu0 0.0
  %2689 = vmatprep.subr.mxu0 0.0
  %2690 = vmatpush1.msra.mxu0 0.0
  %2691 = vmatprep.subr.mxu0 0.0
  %2692 = vmatpush1.msra.mxu0 0.0
  %2693 = vmatprep.subr.mxu0 0.0
  %2694 = vmatpush1.msra.mxu0 0.0
  %2695 = vmatprep.subr.mxu0 0.0
  %2696 = vmatpush1.msra.mxu0 0.0
  %2697 = vmatprep.subr.mxu0 0.0
  %2698 = vmatpush1.msra.mxu0 0.0
  %2699 = vmatprep.subr.mxu0 0.0
  %2700 = vmatpush1.msra.mxu0 0.0
  %2701 = vmatprep.subr.mxu0 0.0
  %2702 = vmatpush1.msra.mxu0 0.0
  %2703 = vmatprep.subr.mxu0 0.0
  %2704 = vmatpush1.msra.mxu0 0.0
  %2705 = vmatprep.subr.mxu0 0.0
  %2706 = vmatpush1.msra.mxu0 0.0
  %2707 = vmatprep.subr.mxu0 0.0
  %2708 = vmatpush1.msra.mxu0 0.0
  %2709 = vmatprep.mubr.f32.mxu0 0.0
  %2710 = vmatmul.mubr.f32.gmra.mrb[0].mxu0 %v676
  %v2711 = vpop.f32.mrb[0].mxu0
  %v2712 = vadd.f32 0.0, %v2711
  %v2713 = vpop.f32.mrb[0].mxu0
  %2714 = vmatprep.mubr.f32.mxu0 0.0
  %2715 = vmatmul.mubr.f32.gmra.mrb[0].mxu0 %v679
  %v2716 = vpop.f32.mrb[0].mxu0
  %v2717 = vadd.f32 0.0, %v2716
  %v2718 = vpop.f32.mrb[0].mxu0
  %2719 = vmatprep.mubr.f32.mxu0 0.0
  %2720 = vmatmul.mubr.f32.gmra.mrb[0].mxu0 %v682
  %v2721 = vpop.f32.mrb[0].mxu0
  %v2722 = vadd.f32 0.0, %v2721
  %v2723 = vpop.f32.mrb[0].mxu0
  %2724 = vmatprep.mubr.f32.mxu0 0.0
  %2725 = vmatmul.mubr.f32.gmra.mrb[0].mxu0 %v685
  %v2726 = vpop.f32.mrb[0].mxu0
  %v2727 = vadd.f32 0.0, %v2726
  %v2728 = vpop.f32.mrb[0].mxu0
  %2729 = vdwg.mxu0
  %v2730 = vadd.f32 %v2625, %v2712
  %v2731 = vadd.f32 %v2626, %v2717
  %v2732 = vadd.f32 %v2627, %v2722
  %v2733 = vadd.f32 %v2628, %v2727
  %v2734 = vxor.u32 %v2730, 2147483648
  %v2735 = vxor.u32 %v2731, 2147483648
  %v2736 = vxor.u32 %v2732, 2147483648
  %v2737 = vxor.u32 %v2733, 2147483648
  %v2738 = vmul.f32 %v2734, 1.442695
  %v2739 = vpow.pop %v2738
  %v2740 = vmul.f32 %v2735, 1.442695
  %v2741 = vpow.pop %v2740
  %v2742 = vmul.f32 %v2736, 1.442695
  %v2743 = vpow.pop %v2742
  %v2744 = vmul.f32 %v2737, 1.442695
  %v2745 = vpow.pop %v2744
  %v2746 = vadd.f32 %v2739, 1.0
  %v2747 = vadd.f32 %v2741, 1.0
  %v2748 = vadd.f32 %v2743, 1.0
  %v2749 = vadd.f32 %v2745, 1.0
  %v2750 = vrcp.pop %v2746
  %v2751 = vmul.f32 1.0, %v2750
  %v2752 = vrcp.pop %v2747
  %v2753 = vmul.f32 1.0, %v2752
  %v2754 = vrcp.pop %v2748
  %v2755 = vmul.f32 1.0, %v2754
  %v2756 = vrcp.pop %v2749
  %v2757 = vmul.f32 1.0, %v2756
  %2758 = vrot.lane.b32.xlu0 %v2431, 32
  %v2759 = vpop.permute.xlu0 %2758
  %2760 = vrot.lane.b32.xlu0 %v2432, 32
  %v2761 = vpop.permute.xlu0 %2760
  %2762 = vrot.lane.b32.xlu0 %v2433, 32
  %v2763 = vpop.permute.xlu0 %2762
  %2764 = vrot.lane.b32.xlu0 %v2434, 32
  %v2765 = vpop.permute.xlu0 %2764
  %v2770 = vmul.f32 %v2751, %v2759
  %v2771 = vmul.f32 %v2753, %v2761
  %v2772 = vmul.f32 %v2755, %v2763
  %v2773 = vmul.f32 %v2757, %v2765
  %2778 = vrot.lane.b32.xlu0 %v2770, 96
  %v2779 = vpop.permute.xlu0 %2778
  %2780 = vrot.lane.b32.xlu0 %v2771, 96
  %v2781 = vpop.permute.xlu0 %2780
  %2782 = vrot.lane.b32.xlu0 %v2772, 96
  %v2783 = vpop.permute.xlu0 %2782
  %2784 = vrot.lane.b32.xlu0 %v2773, 96
  %v2785 = vpop.permute.xlu0 %2784
  %v2786 = vsel %vm465, %v2779, 0
  %v2788 = vsel %vm465, %v2781, 0
  %v2790 = vsel %vm465, %v2783, 0
  %v2792 = vsel %vm465, %v2785, 0
  %2794 = vmatprep.subr.mxu0 0.0
  %2795 = vmatpush1.msra.mxu0 %v86
  %2796 = vmatprep.subr.mxu0 0.0
  %2797 = vmatpush1.msra.mxu0 %v87
  %2798 = vmatprep.subr.mxu0 0.0
  %2799 = vmatpush1.msra.mxu0 %v88
  %2800 = vmatprep.subr.mxu0 0.0
  %2801 = vmatpush1.msra.mxu0 %v89
  %2802 = vmatprep.subr.mxu0 0.0
  %2803 = vmatpush1.msra.mxu0 0.0
  %2804 = vmatprep.subr.mxu0 0.0
  %2805 = vmatpush1.msra.mxu0 0.0
  %2806 = vmatprep.subr.mxu0 0.0
  %2807 = vmatpush1.msra.mxu0 0.0
  %2808 = vmatprep.subr.mxu0 0.0
  %2809 = vmatpush1.msra.mxu0 0.0
  %2810 = vmatprep.subr.mxu0 0.0
  %2811 = vmatpush1.msra.mxu0 0.0
  %2812 = vmatprep.subr.mxu0 0.0
  %2813 = vmatpush1.msra.mxu0 0.0
  %2814 = vmatprep.subr.mxu0 0.0
  %2815 = vmatpush1.msra.mxu0 0.0
  %2816 = vmatprep.subr.mxu0 0.0
  %2817 = vmatpush1.msra.mxu0 0.0
  %2818 = vmatprep.subr.mxu0 0.0
  %2819 = vmatpush1.msra.mxu0 0.0
  %2820 = vmatprep.subr.mxu0 0.0
  %2821 = vmatpush1.msra.mxu0 0.0
  %2822 = vmatprep.subr.mxu0 0.0
  %2823 = vmatpush1.msra.mxu0 0.0
  %2824 = vmatprep.subr.mxu0 0.0
  %2825 = vmatpush1.msra.mxu0 0.0
  %2826 = vmatprep.subr.mxu0 0.0
  %2827 = vmatpush1.msra.mxu0 0.0
  %2828 = vmatprep.subr.mxu0 0.0
  %2829 = vmatpush1.msra.mxu0 0.0
  %2830 = vmatprep.subr.mxu0 0.0
  %2831 = vmatpush1.msra.mxu0 0.0
  %2832 = vmatprep.subr.mxu0 0.0
  %2833 = vmatpush1.msra.mxu0 0.0
  %2834 = vmatprep.subr.mxu0 0.0
  %2835 = vmatpush1.msra.mxu0 0.0
  %2836 = vmatprep.subr.mxu0 0.0
  %2837 = vmatpush1.msra.mxu0 0.0
  %2838 = vmatprep.subr.mxu0 0.0
  %2839 = vmatpush1.msra.mxu0 0.0
  %2840 = vmatprep.subr.mxu0 0.0
  %2841 = vmatpush1.msra.mxu0 0.0
  %2842 = vmatprep.subr.mxu0 0.0
  %2843 = vmatpush1.msra.mxu0 0.0
  %2844 = vmatprep.subr.mxu0 0.0
  %2845 = vmatpush1.msra.mxu0 0.0
  %2846 = vmatprep.subr.mxu0 0.0
  %2847 = vmatpush1.msra.mxu0 0.0
  %2848 = vmatprep.subr.mxu0 0.0
  %2849 = vmatpush1.msra.mxu0 0.0
  %2850 = vmatprep.subr.mxu0 0.0
  %2851 = vmatpush1.msra.mxu0 0.0
  %2852 = vmatprep.subr.mxu0 0.0
  %2853 = vmatpush1.msra.mxu0 0.0
  %2854 = vmatprep.subr.mxu0 0.0
  %2855 = vmatpush1.msra.mxu0 0.0
  %2856 = vmatprep.subr.mxu0 0.0
  %2857 = vmatpush1.msra.mxu0 0.0
  %2858 = vmatprep.mubr.f32.mxu0 0.0
  %2859 = vmatmul.mubr.f32.gmra.mrb[0].mxu0 %v2786
  %v2860 = vpop.f32.mrb[0].mxu0
  %v2861 = vadd.f32 0.0, %v2860
  %v2862 = vpop.f32.mrb[0].mxu0
  %2863 = vmatprep.mubr.f32.mxu0 0.0
  %2864 = vmatmul.mubr.f32.gmra.mrb[0].mxu0 %v2788
  %v2865 = vpop.f32.mrb[0].mxu0
  %v2866 = vadd.f32 0.0, %v2865
  %v2867 = vpop.f32.mrb[0].mxu0
  %2868 = vmatprep.mubr.f32.mxu0 0.0
  %2869 = vmatmul.mubr.f32.gmra.mrb[0].mxu0 %v2790
  %v2870 = vpop.f32.mrb[0].mxu0
  %v2871 = vadd.f32 0.0, %v2870
  %v2872 = vpop.f32.mrb[0].mxu0
  %2873 = vmatprep.mubr.f32.mxu0 0.0
  %2874 = vmatmul.mubr.f32.gmra.mrb[0].mxu0 %v2792
  %v2875 = vpop.f32.mrb[0].mxu0
  %v2876 = vadd.f32 0.0, %v2875
  %v2877 = vpop.f32.mrb[0].mxu0
  %2878 = vdwg.mxu0
  %v2879 = vadd.f32 %v349, %v2861
  %v2880 = vadd.f32 %v355, %v2866
  %v2881 = vadd.f32 %v361, %v2871
  %v2882 = vadd.f32 %v367, %v2876
  %2883 = vmatprep.subr.mxu0 0.0
  %2884 = vmatpush1.msra.mxu0 %v2879
  %2885 = vmatprep.subr.mxu0 0.0
  %2886 = vmatpush1.msra.mxu0 %v2880
  %2887 = vmatprep.subr.mxu0 0.0
  %2888 = vmatpush1.msra.mxu0 %v2881
  %2889 = vmatprep.subr.mxu0 0.0
  %2890 = vmatpush1.msra.mxu0 %v2882
  %2891 = vmatprep.subr.mxu0 0.0
  %2892 = vmatpush1.msra.mxu0 0.0
  %2893 = vmatprep.subr.mxu0 0.0
  %2894 = vmatpush1.msra.mxu0 0.0
  %2895 = vmatprep.subr.mxu0 0.0
  %2896 = vmatpush1.msra.mxu0 0.0
  %2897 = vmatprep.subr.mxu0 0.0
  %2898 = vmatpush1.msra.mxu0 0.0
  %2899 = vmatprep.subr.mxu0 0.0
  %2900 = vmatpush1.msra.mxu0 0.0
  %2901 = vmatprep.subr.mxu0 0.0
  %2902 = vmatpush1.msra.mxu0 0.0
  %2903 = vmatprep.subr.mxu0 0.0
  %2904 = vmatpush1.msra.mxu0 0.0
  %2905 = vmatprep.subr.mxu0 0.0
  %2906 = vmatpush1.msra.mxu0 0.0
  %2907 = vmatprep.subr.mxu0 0.0
  %2908 = vmatpush1.msra.mxu0 0.0
  %2909 = vmatprep.subr.mxu0 0.0
  %2910 = vmatpush1.msra.mxu0 0.0
  %2911 = vmatprep.subr.mxu0 0.0
  %2912 = vmatpush1.msra.mxu0 0.0
  %2913 = vmatprep.subr.mxu0 0.0
  %2914 = vmatpush1.msra.mxu0 0.0
  %2915 = vmatprep.subr.mxu0 0.0
  %2916 = vmatpush1.msra.mxu0 0.0
  %2917 = vmatprep.subr.mxu0 0.0
  %2918 = vmatpush1.msra.mxu0 0.0
  %2919 = vmatprep.subr.mxu0 0.0
  %2920 = vmatpush1.msra.mxu0 0.0
  %2921 = vmatprep.subr.mxu0 0.0
  %2922 = vmatpush1.msra.mxu0 0.0
  %2923 = vmatprep.subr.mxu0 0.0
  %2924 = vmatpush1.msra.mxu0 0.0
  %2925 = vmatprep.subr.mxu0 0.0
  %2926 = vmatpush1.msra.mxu0 0.0
  %2927 = vmatprep.subr.mxu0 0.0
  %2928 = vmatpush1.msra.mxu0 0.0
  %2929 = vmatprep.subr.mxu0 0.0
  %2930 = vmatpush1.msra.mxu0 0.0
  %2931 = vmatprep.subr.mxu0 0.0
  %2932 = vmatpush1.msra.mxu0 0.0
  %2933 = vmatprep.subr.mxu0 0.0
  %2934 = vmatpush1.msra.mxu0 0.0
  %2935 = vmatprep.subr.mxu0 0.0
  %2936 = vmatpush1.msra.mxu0 0.0
  %2937 = vmatprep.subr.mxu0 0.0
  %2938 = vmatpush1.msra.mxu0 0.0
  %2939 = vmatprep.subr.mxu0 0.0
  %2940 = vmatpush1.msra.mxu0 0.0
  %2941 = vmatprep.subr.mxu0 0.0
  %2942 = vmatpush1.msra.mxu0 0.0
  %2943 = vmatprep.subr.mxu0 0.0
  %2944 = vmatpush1.msra.mxu0 0.0
  %2945 = vmatprep.subr.mxu0 0.0
  %2946 = vmatpush1.msra.mxu0 0.0
  %2947 = vmatprep.mubr.f32.mxu0 0.0
  %2948 = vmatmul.mubr.f32.gmra.mrb[0].mxu0 %v559
  %v2949 = vpop.f32.mrb[0].mxu0
  %v2950 = vadd.f32 0.0, %v2949
  %v2951 = vpop.f32.mrb[0].mxu0
  %2952 = vmatprep.mubr.f32.mxu0 0.0
  %2953 = vmatmul.mubr.f32.gmra.mrb[0].mxu0 %v562
  %v2954 = vpop.f32.mrb[0].mxu0
  %v2955 = vadd.f32 0.0, %v2954
  %v2956 = vpop.f32.mrb[0].mxu0
  %2957 = vmatprep.mubr.f32.mxu0 0.0
  %2958 = vmatmul.mubr.f32.gmra.mrb[0].mxu0 %v565
  %v2959 = vpop.f32.mrb[0].mxu0
  %v2960 = vadd.f32 0.0, %v2959
  %v2961 = vpop.f32.mrb[0].mxu0
  %2962 = vmatprep.mubr.f32.mxu0 0.0
  %2963 = vmatmul.mubr.f32.gmra.mrb[0].mxu0 %v568
  %v2964 = vpop.f32.mrb[0].mxu0
  %v2965 = vadd.f32 0.0, %v2964
  %v2966 = vpop.f32.mrb[0].mxu0
  %2967 = vdwg.mxu0
  %v2968 = vadd.f32 %v102, %v2950
  %v2969 = vadd.f32 %v102, %v2955
  %v2970 = vadd.f32 %v102, %v2960
  %v2971 = vadd.f32 %v102, %v2965
  %2976 = vrot.lane.b32.xlu0 %v2879, 96
  %v2977 = vpop.permute.xlu0 %2976
  %2978 = vrot.lane.b32.xlu0 %v2880, 96
  %v2979 = vpop.permute.xlu0 %2978
  %2980 = vrot.lane.b32.xlu0 %v2881, 96
  %v2981 = vpop.permute.xlu0 %2980
  %2982 = vrot.lane.b32.xlu0 %v2882, 96
  %v2983 = vpop.permute.xlu0 %2982
  %2988 = vmatprep.subr.mxu0 0.0
  %2989 = vmatpush1.msra.mxu0 %v2977
  %2990 = vmatprep.subr.mxu0 0.0
  %2991 = vmatpush1.msra.mxu0 %v2979
  %2992 = vmatprep.subr.mxu0 0.0
  %2993 = vmatpush1.msra.mxu0 %v2981
  %2994 = vmatprep.subr.mxu0 0.0
  %2995 = vmatpush1.msra.mxu0 %v2983
  %2996 = vmatprep.subr.mxu0 0.0
  %2997 = vmatpush1.msra.mxu0 0.0
  %2998 = vmatprep.subr.mxu0 0.0
  %2999 = vmatpush1.msra.mxu0 0.0
  %3000 = vmatprep.subr.mxu0 0.0
  %3001 = vmatpush1.msra.mxu0 0.0
  %3002 = vmatprep.subr.mxu0 0.0
  %3003 = vmatpush1.msra.mxu0 0.0
  %3004 = vmatprep.subr.mxu0 0.0
  %3005 = vmatpush1.msra.mxu0 0.0
  %3006 = vmatprep.subr.mxu0 0.0
  %3007 = vmatpush1.msra.mxu0 0.0
  %3008 = vmatprep.subr.mxu0 0.0
  %3009 = vmatpush1.msra.mxu0 0.0
  %3010 = vmatprep.subr.mxu0 0.0
  %3011 = vmatpush1.msra.mxu0 0.0
  %3012 = vmatprep.subr.mxu0 0.0
  %3013 = vmatpush1.msra.mxu0 0.0
  %3014 = vmatprep.subr.mxu0 0.0
  %3015 = vmatpush1.msra.mxu0 0.0
  %3016 = vmatprep.subr.mxu0 0.0
  %3017 = vmatpush1.msra.mxu0 0.0
  %3018 = vmatprep.subr.mxu0 0.0
  %3019 = vmatpush1.msra.mxu0 0.0
  %3020 = vmatprep.subr.mxu0 0.0
  %3021 = vmatpush1.msra.mxu0 0.0
  %3022 = vmatprep.subr.mxu0 0.0
  %3023 = vmatpush1.msra.mxu0 0.0
  %3024 = vmatprep.subr.mxu0 0.0
  %3025 = vmatpush1.msra.mxu0 0.0
  %3026 = vmatprep.subr.mxu0 0.0
  %3027 = vmatpush1.msra.mxu0 0.0
  %3028 = vmatprep.subr.mxu0 0.0
  %3029 = vmatpush1.msra.mxu0 0.0
  %3030 = vmatprep.subr.mxu0 0.0
  %3031 = vmatpush1.msra.mxu0 0.0
  %3032 = vmatprep.subr.mxu0 0.0
  %3033 = vmatpush1.msra.mxu0 0.0
  %3034 = vmatprep.subr.mxu0 0.0
  %3035 = vmatpush1.msra.mxu0 0.0
  %3036 = vmatprep.subr.mxu0 0.0
  %3037 = vmatpush1.msra.mxu0 0.0
  %3038 = vmatprep.subr.mxu0 0.0
  %3039 = vmatpush1.msra.mxu0 0.0
  %3040 = vmatprep.subr.mxu0 0.0
  %3041 = vmatpush1.msra.mxu0 0.0
  %3042 = vmatprep.subr.mxu0 0.0
  %3043 = vmatpush1.msra.mxu0 0.0
  %3044 = vmatprep.subr.mxu0 0.0
  %3045 = vmatpush1.msra.mxu0 0.0
  %3046 = vmatprep.subr.mxu0 0.0
  %3047 = vmatpush1.msra.mxu0 0.0
  %3048 = vmatprep.subr.mxu0 0.0
  %3049 = vmatpush1.msra.mxu0 0.0
  %3050 = vmatprep.subr.mxu0 0.0
  %3051 = vmatpush1.msra.mxu0 0.0
  %3052 = vmatprep.mubr.f32.mxu0 0.0
  %3053 = vmatmul.mubr.f32.gmra.mrb[0].mxu0 %v676
  %v3054 = vpop.f32.mrb[0].mxu0
  %v3055 = vadd.f32 0.0, %v3054
  %v3056 = vpop.f32.mrb[0].mxu0
  %3057 = vmatprep.mubr.f32.mxu0 0.0
  %3058 = vmatmul.mubr.f32.gmra.mrb[0].mxu0 %v679
  %v3059 = vpop.f32.mrb[0].mxu0
  %v3060 = vadd.f32 0.0, %v3059
  %v3061 = vpop.f32.mrb[0].mxu0
  %3062 = vmatprep.mubr.f32.mxu0 0.0
  %3063 = vmatmul.mubr.f32.gmra.mrb[0].mxu0 %v682
  %v3064 = vpop.f32.mrb[0].mxu0
  %v3065 = vadd.f32 0.0, %v3064
  %v3066 = vpop.f32.mrb[0].mxu0
  %3067 = vmatprep.mubr.f32.mxu0 0.0
  %3068 = vmatmul.mubr.f32.gmra.mrb[0].mxu0 %v685
  %v3069 = vpop.f32.mrb[0].mxu0
  %v3070 = vadd.f32 0.0, %v3069
  %v3071 = vpop.f32.mrb[0].mxu0
  %3072 = vdwg.mxu0
  %v3073 = vadd.f32 %v2968, %v3055
  %v3074 = vadd.f32 %v2969, %v3060
  %v3075 = vadd.f32 %v2970, %v3065
  %v3076 = vadd.f32 %v2971, %v3070
  %v3077 = vtanh.pop %v3073
  %v3078 = vtanh.pop %v3074
  %v3079 = vtanh.pop %v3075
  %v3080 = vtanh.pop %v3076
  %v3081 = vsub.f32 %v3077, %v2431
  %v3082 = vsub.f32 %v3078, %v2432
  %v3083 = vsub.f32 %v3079, %v2433
  %v3084 = vsub.f32 %v3080, %v2434
  %v3085 = vmul.f32 %v2751, %v3081
  %v3086 = vmul.f32 %v2753, %v3082
  %v3087 = vmul.f32 %v2755, %v3083
  %v3088 = vmul.f32 %v2757, %v3084
  %v3089 = vadd.f32 %v2431, %v3085
  %v3090 = vadd.f32 %v2432, %v3086
  %v3091 = vadd.f32 %v2433, %v3087
  %v3092 = vadd.f32 %v2434, %v3088
  %3093 = vst.msk [vmem:[#allocation2 + $0x60] sm:$0xff] %vm465, %v3089
  %3094 = vst.msk [vmem:[#allocation2 + $0x68] sm:$0xff] %vm465, %v3090
  %3095 = vst.msk [vmem:[#allocation2 + $0x70] sm:$0xff] %vm465, %v3091
  %3096 = vst.msk [vmem:[#allocation2 + $0x78] sm:$0xff] %vm465, %v3092
  %v3098 = vsel %vm465, %v3089, 0
  %v3101 = vsel %vm465, %v3090, 0
  %v3104 = vsel %vm465, %v3091, 0
  %v3107 = vsel %vm465, %v3092, 0
  %3109 = vmatprep.subr.mxu0 0.0
  %3110 = vmatpush1.msra.mxu0 %v82
  %3111 = vmatprep.subr.mxu0 0.0
  %3112 = vmatpush1.msra.mxu0 %v83
  %3113 = vmatprep.subr.mxu0 0.0
  %3114 = vmatpush1.msra.mxu0 %v84
  %3115 = vmatprep.subr.mxu0 0.0
  %3116 = vmatpush1.msra.mxu0 %v85
  %3117 = vmatprep.subr.mxu0 0.0
  %3118 = vmatpush1.msra.mxu0 0.0
  %3119 = vmatprep.subr.mxu0 0.0
  %3120 = vmatpush1.msra.mxu0 0.0
  %3121 = vmatprep.subr.mxu0 0.0
  %3122 = vmatpush1.msra.mxu0 0.0
  %3123 = vmatprep.subr.mxu0 0.0
  %3124 = vmatpush1.msra.mxu0 0.0
  %3125 = vmatprep.subr.mxu0 0.0
  %3126 = vmatpush1.msra.mxu0 0.0
  %3127 = vmatprep.subr.mxu0 0.0
  %3128 = vmatpush1.msra.mxu0 0.0
  %3129 = vmatprep.subr.mxu0 0.0
  %3130 = vmatpush1.msra.mxu0 0.0
  %3131 = vmatprep.subr.mxu0 0.0
  %3132 = vmatpush1.msra.mxu0 0.0
  %3133 = vmatprep.subr.mxu0 0.0
  %3134 = vmatpush1.msra.mxu0 0.0
  %3135 = vmatprep.subr.mxu0 0.0
  %3136 = vmatpush1.msra.mxu0 0.0
  %3137 = vmatprep.subr.mxu0 0.0
  %3138 = vmatpush1.msra.mxu0 0.0
  %3139 = vmatprep.subr.mxu0 0.0
  %3140 = vmatpush1.msra.mxu0 0.0
  %3141 = vmatprep.subr.mxu0 0.0
  %3142 = vmatpush1.msra.mxu0 0.0
  %3143 = vmatprep.subr.mxu0 0.0
  %3144 = vmatpush1.msra.mxu0 0.0
  %3145 = vmatprep.subr.mxu0 0.0
  %3146 = vmatpush1.msra.mxu0 0.0
  %3147 = vmatprep.subr.mxu0 0.0
  %3148 = vmatpush1.msra.mxu0 0.0
  %3149 = vmatprep.subr.mxu0 0.0
  %3150 = vmatpush1.msra.mxu0 0.0
  %3151 = vmatprep.subr.mxu0 0.0
  %3152 = vmatpush1.msra.mxu0 0.0
  %3153 = vmatprep.subr.mxu0 0.0
  %3154 = vmatpush1.msra.mxu0 0.0
  %3155 = vmatprep.subr.mxu0 0.0
  %3156 = vmatpush1.msra.mxu0 0.0
  %3157 = vmatprep.subr.mxu0 0.0
  %3158 = vmatpush1.msra.mxu0 0.0
  %3159 = vmatprep.subr.mxu0 0.0
  %3160 = vmatpush1.msra.mxu0 0.0
  %3161 = vmatprep.subr.mxu0 0.0
  %3162 = vmatpush1.msra.mxu0 0.0
  %3163 = vmatprep.subr.mxu0 0.0
  %3164 = vmatpush1.msra.mxu0 0.0
  %3165 = vmatprep.subr.mxu0 0.0
  %3166 = vmatpush1.msra.mxu0 0.0
  %3167 = vmatprep.subr.mxu0 0.0
  %3168 = vmatpush1.msra.mxu0 0.0
  %3169 = vmatprep.subr.mxu0 0.0
  %3170 = vmatpush1.msra.mxu0 0.0
  %3171 = vmatprep.subr.mxu0 0.0
  %3172 = vmatpush1.msra.mxu0 0.0
  %3173 = vmatprep.mubr.f32.mxu0 0.0
  %3174 = vmatmul.mubr.f32.gmra.mrb[0].mxu0 %v3098
  %v3175 = vpop.f32.mrb[0].mxu0
  %v3176 = vadd.f32 0.0, %v3175
  %v3177 = vpop.f32.mrb[0].mxu0
  %3178 = vmatprep.mubr.f32.mxu0 0.0
  %3179 = vmatmul.mubr.f32.gmra.mrb[0].mxu0 %v3101
  %v3180 = vpop.f32.mrb[0].mxu0
  %v3181 = vadd.f32 0.0, %v3180
  %v3182 = vpop.f32.mrb[0].mxu0
  %3183 = vmatprep.mubr.f32.mxu0 0.0
  %3184 = vmatmul.mubr.f32.gmra.mrb[0].mxu0 %v3104
  %v3185 = vpop.f32.mrb[0].mxu0
  %v3186 = vadd.f32 0.0, %v3185
  %v3187 = vpop.f32.mrb[0].mxu0
  %3188 = vmatprep.mubr.f32.mxu0 0.0
  %3189 = vmatmul.mubr.f32.gmra.mrb[0].mxu0 %v3107
  %v3190 = vpop.f32.mrb[0].mxu0
  %v3191 = vadd.f32 0.0, %v3190
  %v3192 = vpop.f32.mrb[0].mxu0
  %3193 = vdwg.mxu0
  %v3194 = vadd.f32 %v371, %v3176
  %v3195 = vadd.f32 %v377, %v3181
  %v3196 = vadd.f32 %v383, %v3186
  %v3197 = vadd.f32 %v389, %v3191
  %3198 = vmatprep.subr.mxu0 0.0
  %3199 = vmatpush1.msra.mxu0 %v3194
  %3200 = vmatprep.subr.mxu0 0.0
  %3201 = vmatpush1.msra.mxu0 %v3195
  %3202 = vmatprep.subr.mxu0 0.0
  %3203 = vmatpush1.msra.mxu0 %v3196
  %3204 = vmatprep.subr.mxu0 0.0
  %3205 = vmatpush1.msra.mxu0 %v3197
  %3206 = vmatprep.subr.mxu0 0.0
  %3207 = vmatpush1.msra.mxu0 0.0
  %3208 = vmatprep.subr.mxu0 0.0
  %3209 = vmatpush1.msra.mxu0 0.0
  %3210 = vmatprep.subr.mxu0 0.0
  %3211 = vmatpush1.msra.mxu0 0.0
  %3212 = vmatprep.subr.mxu0 0.0
  %3213 = vmatpush1.msra.mxu0 0.0
  %3214 = vmatprep.subr.mxu0 0.0
  %3215 = vmatpush1.msra.mxu0 0.0
  %3216 = vmatprep.subr.mxu0 0.0
  %3217 = vmatpush1.msra.mxu0 0.0
  %3218 = vmatprep.subr.mxu0 0.0
  %3219 = vmatpush1.msra.mxu0 0.0
  %3220 = vmatprep.subr.mxu0 0.0
  %3221 = vmatpush1.msra.mxu0 0.0
  %3222 = vmatprep.subr.mxu0 0.0
  %3223 = vmatpush1.msra.mxu0 0.0
  %3224 = vmatprep.subr.mxu0 0.0
  %3225 = vmatpush1.msra.mxu0 0.0
  %3226 = vmatprep.subr.mxu0 0.0
  %3227 = vmatpush1.msra.mxu0 0.0
  %3228 = vmatprep.subr.mxu0 0.0
  %3229 = vmatpush1.msra.mxu0 0.0
  %3230 = vmatprep.subr.mxu0 0.0
  %3231 = vmatpush1.msra.mxu0 0.0
  %3232 = vmatprep.subr.mxu0 0.0
  %3233 = vmatpush1.msra.mxu0 0.0
  %3234 = vmatprep.subr.mxu0 0.0
  %3235 = vmatpush1.msra.mxu0 0.0
  %3236 = vmatprep.subr.mxu0 0.0
  %3237 = vmatpush1.msra.mxu0 0.0
  %3238 = vmatprep.subr.mxu0 0.0
  %3239 = vmatpush1.msra.mxu0 0.0
  %3240 = vmatprep.subr.mxu0 0.0
  %3241 = vmatpush1.msra.mxu0 0.0
  %3242 = vmatprep.subr.mxu0 0.0
  %3243 = vmatpush1.msra.mxu0 0.0
  %3244 = vmatprep.subr.mxu0 0.0
  %3245 = vmatpush1.msra.mxu0 0.0
  %3246 = vmatprep.subr.mxu0 0.0
  %3247 = vmatpush1.msra.mxu0 0.0
  %3248 = vmatprep.subr.mxu0 0.0
  %3249 = vmatpush1.msra.mxu0 0.0
  %3250 = vmatprep.subr.mxu0 0.0
  %3251 = vmatpush1.msra.mxu0 0.0
  %3252 = vmatprep.subr.mxu0 0.0
  %3253 = vmatpush1.msra.mxu0 0.0
  %3254 = vmatprep.subr.mxu0 0.0
  %3255 = vmatpush1.msra.mxu0 0.0
  %3256 = vmatprep.subr.mxu0 0.0
  %3257 = vmatpush1.msra.mxu0 0.0
  %3258 = vmatprep.subr.mxu0 0.0
  %3259 = vmatpush1.msra.mxu0 0.0
  %3260 = vmatprep.subr.mxu0 0.0
  %3261 = vmatpush1.msra.mxu0 0.0
  %3262 = vmatprep.mubr.f32.mxu0 0.0
  %3263 = vmatmul.mubr.f32.gmra.mrb[0].mxu0 %v559
  %v3264 = vpop.f32.mrb[0].mxu0
  %v3265 = vadd.f32 0.0, %v3264
  %v3266 = vpop.f32.mrb[0].mxu0
  %3267 = vmatprep.mubr.f32.mxu0 0.0
  %3268 = vmatmul.mubr.f32.gmra.mrb[0].mxu0 %v562
  %v3269 = vpop.f32.mrb[0].mxu0
  %v3270 = vadd.f32 0.0, %v3269
  %v3271 = vpop.f32.mrb[0].mxu0
  %3272 = vmatprep.mubr.f32.mxu0 0.0
  %3273 = vmatmul.mubr.f32.gmra.mrb[0].mxu0 %v565
  %v3274 = vpop.f32.mrb[0].mxu0
  %v3275 = vadd.f32 0.0, %v3274
  %v3276 = vpop.f32.mrb[0].mxu0
  %3277 = vmatprep.mubr.f32.mxu0 0.0
  %3278 = vmatmul.mubr.f32.gmra.mrb[0].mxu0 %v568
  %v3279 = vpop.f32.mrb[0].mxu0
  %v3280 = vadd.f32 0.0, %v3279
  %v3281 = vpop.f32.mrb[0].mxu0
  %3282 = vdwg.mxu0
  %v3283 = vadd.f32 %v95, %v3265
  %v3284 = vadd.f32 %v95, %v3270
  %v3285 = vadd.f32 %v95, %v3275
  %v3286 = vadd.f32 %v95, %v3280
  %3291 = vrot.lane.b32.xlu0 %v3194, 64
  %v3292 = vpop.permute.xlu0 %3291
  %3293 = vrot.lane.b32.xlu0 %v3195, 64
  %v3294 = vpop.permute.xlu0 %3293
  %3295 = vrot.lane.b32.xlu0 %v3196, 64
  %v3296 = vpop.permute.xlu0 %3295
  %3297 = vrot.lane.b32.xlu0 %v3197, 64
  %v3298 = vpop.permute.xlu0 %3297
  %3303 = vmatprep.subr.mxu0 0.0
  %3304 = vmatpush1.msra.mxu0 %v3292
  %3305 = vmatprep.subr.mxu0 0.0
  %3306 = vmatpush1.msra.mxu0 %v3294
  %3307 = vmatprep.subr.mxu0 0.0
  %3308 = vmatpush1.msra.mxu0 %v3296
  %3309 = vmatprep.subr.mxu0 0.0
  %3310 = vmatpush1.msra.mxu0 %v3298
  %3311 = vmatprep.subr.mxu0 0.0
  %3312 = vmatpush1.msra.mxu0 0.0
  %3313 = vmatprep.subr.mxu0 0.0
  %3314 = vmatpush1.msra.mxu0 0.0
  %3315 = vmatprep.subr.mxu0 0.0
  %3316 = vmatpush1.msra.mxu0 0.0
  %3317 = vmatprep.subr.mxu0 0.0
  %3318 = vmatpush1.msra.mxu0 0.0
  %3319 = vmatprep.subr.mxu0 0.0
  %3320 = vmatpush1.msra.mxu0 0.0
  %3321 = vmatprep.subr.mxu0 0.0
  %3322 = vmatpush1.msra.mxu0 0.0
  %3323 = vmatprep.subr.mxu0 0.0
  %3324 = vmatpush1.msra.mxu0 0.0
  %3325 = vmatprep.subr.mxu0 0.0
  %3326 = vmatpush1.msra.mxu0 0.0
  %3327 = vmatprep.subr.mxu0 0.0
  %3328 = vmatpush1.msra.mxu0 0.0
  %3329 = vmatprep.subr.mxu0 0.0
  %3330 = vmatpush1.msra.mxu0 0.0
  %3331 = vmatprep.subr.mxu0 0.0
  %3332 = vmatpush1.msra.mxu0 0.0
  %3333 = vmatprep.subr.mxu0 0.0
  %3334 = vmatpush1.msra.mxu0 0.0
  %3335 = vmatprep.subr.mxu0 0.0
  %3336 = vmatpush1.msra.mxu0 0.0
  %3337 = vmatprep.subr.mxu0 0.0
  %3338 = vmatpush1.msra.mxu0 0.0
  %3339 = vmatprep.subr.mxu0 0.0
  %3340 = vmatpush1.msra.mxu0 0.0
  %3341 = vmatprep.subr.mxu0 0.0
  %3342 = vmatpush1.msra.mxu0 0.0
  %3343 = vmatprep.subr.mxu0 0.0
  %3344 = vmatpush1.msra.mxu0 0.0
  %3345 = vmatprep.subr.mxu0 0.0
  %3346 = vmatpush1.msra.mxu0 0.0
  %3347 = vmatprep.subr.mxu0 0.0
  %3348 = vmatpush1.msra.mxu0 0.0
  %3349 = vmatprep.subr.mxu0 0.0
  %3350 = vmatpush1.msra.mxu0 0.0
  %3351 = vmatprep.subr.mxu0 0.0
  %3352 = vmatpush1.msra.mxu0 0.0
  %3353 = vmatprep.subr.mxu0 0.0
  %3354 = vmatpush1.msra.mxu0 0.0
  %3355 = vmatprep.subr.mxu0 0.0
  %3356 = vmatpush1.msra.mxu0 0.0
  %3357 = vmatprep.subr.mxu0 0.0
  %3358 = vmatpush1.msra.mxu0 0.0
  %3359 = vmatprep.subr.mxu0 0.0
  %3360 = vmatpush1.msra.mxu0 0.0
  %3361 = vmatprep.subr.mxu0 0.0
  %3362 = vmatpush1.msra.mxu0 0.0
  %3363 = vmatprep.subr.mxu0 0.0
  %3364 = vmatpush1.msra.mxu0 0.0
  %3365 = vmatprep.subr.mxu0 0.0
  %3366 = vmatpush1.msra.mxu0 0.0
  %3367 = vmatprep.mubr.f32.mxu0 0.0
  %3368 = vmatmul.mubr.f32.gmra.mrb[0].mxu0 %v676
  %v3369 = vpop.f32.mrb[0].mxu0
  %v3370 = vadd.f32 0.0, %v3369
  %v3371 = vpop.f32.mrb[0].mxu0
  %3372 = vmatprep.mubr.f32.mxu0 0.0
  %3373 = vmatmul.mubr.f32.gmra.mrb[0].mxu0 %v679
  %v3374 = vpop.f32.mrb[0].mxu0
  %v3375 = vadd.f32 0.0, %v3374
  %v3376 = vpop.f32.mrb[0].mxu0
  %3377 = vmatprep.mubr.f32.mxu0 0.0
  %3378 = vmatmul.mubr.f32.gmra.mrb[0].mxu0 %v682
  %v3379 = vpop.f32.mrb[0].mxu0
  %v3380 = vadd.f32 0.0, %v3379
  %v3381 = vpop.f32.mrb[0].mxu0
  %3382 = vmatprep.mubr.f32.mxu0 0.0
  %3383 = vmatmul.mubr.f32.gmra.mrb[0].mxu0 %v685
  %v3384 = vpop.f32.mrb[0].mxu0
  %v3385 = vadd.f32 0.0, %v3384
  %v3386 = vpop.f32.mrb[0].mxu0
  %3387 = vdwg.mxu0
  %v3388 = vadd.f32 %v3283, %v3370
  %v3389 = vadd.f32 %v3284, %v3375
  %v3390 = vadd.f32 %v3285, %v3380
  %v3391 = vadd.f32 %v3286, %v3385
  %v3392 = vxor.u32 %v3388, 2147483648
  %v3393 = vxor.u32 %v3389, 2147483648
  %v3394 = vxor.u32 %v3390, 2147483648
  %v3395 = vxor.u32 %v3391, 2147483648
  %v3396 = vmul.f32 %v3392, 1.442695
  %v3397 = vpow.pop %v3396
  %v3398 = vmul.f32 %v3393, 1.442695
  %v3399 = vpow.pop %v3398
  %v3400 = vmul.f32 %v3394, 1.442695
  %v3401 = vpow.pop %v3400
  %v3402 = vmul.f32 %v3395, 1.442695
  %v3403 = vpow.pop %v3402
  %v3404 = vadd.f32 %v3397, 1.0
  %v3405 = vadd.f32 %v3399, 1.0
  %v3406 = vadd.f32 %v3401, 1.0
  %v3407 = vadd.f32 %v3403, 1.0
  %v3408 = vrcp.pop %v3404
  %v3409 = vmul.f32 1.0, %v3408
  %v3410 = vrcp.pop %v3405
  %v3411 = vmul.f32 1.0, %v3410
  %v3412 = vrcp.pop %v3406
  %v3413 = vmul.f32 1.0, %v3412
  %v3414 = vrcp.pop %v3407
  %v3415 = vmul.f32 1.0, %v3414
  %3416 = vrot.lane.b32.xlu0 %v3089, 32
  %v3417 = vpop.permute.xlu0 %3416
  %3418 = vrot.lane.b32.xlu0 %v3090, 32
  %v3419 = vpop.permute.xlu0 %3418
  %3420 = vrot.lane.b32.xlu0 %v3091, 32
  %v3421 = vpop.permute.xlu0 %3420
  %3422 = vrot.lane.b32.xlu0 %v3092, 32
  %v3423 = vpop.permute.xlu0 %3422
  %v3428 = vmul.f32 %v3409, %v3417
  %v3429 = vmul.f32 %v3411, %v3419
  %v3430 = vmul.f32 %v3413, %v3421
  %v3431 = vmul.f32 %v3415, %v3423
  %3436 = vrot.lane.b32.xlu0 %v3428, 96
  %v3437 = vpop.permute.xlu0 %3436
  %3438 = vrot.lane.b32.xlu0 %v3429, 96
  %v3439 = vpop.permute.xlu0 %3438
  %3440 = vrot.lane.b32.xlu0 %v3430, 96
  %v3441 = vpop.permute.xlu0 %3440
  %3442 = vrot.lane.b32.xlu0 %v3431, 96
  %v3443 = vpop.permute.xlu0 %3442
  %v3444 = vsel %vm465, %v3437, 0
  %v3446 = vsel %vm465, %v3439, 0
  %v3448 = vsel %vm465, %v3441, 0
  %v3450 = vsel %vm465, %v3443, 0
  %3452 = vmatprep.subr.mxu0 0.0
  %3453 = vmatpush1.msra.mxu0 %v86
  %3454 = vmatprep.subr.mxu0 0.0
  %3455 = vmatpush1.msra.mxu0 %v87
  %3456 = vmatprep.subr.mxu0 0.0
  %3457 = vmatpush1.msra.mxu0 %v88
  %3458 = vmatprep.subr.mxu0 0.0
  %3459 = vmatpush1.msra.mxu0 %v89
  %3460 = vmatprep.subr.mxu0 0.0
  %3461 = vmatpush1.msra.mxu0 0.0
  %3462 = vmatprep.subr.mxu0 0.0
  %3463 = vmatpush1.msra.mxu0 0.0
  %3464 = vmatprep.subr.mxu0 0.0
  %3465 = vmatpush1.msra.mxu0 0.0
  %3466 = vmatprep.subr.mxu0 0.0
  %3467 = vmatpush1.msra.mxu0 0.0
  %3468 = vmatprep.subr.mxu0 0.0
  %3469 = vmatpush1.msra.mxu0 0.0
  %3470 = vmatprep.subr.mxu0 0.0
  %3471 = vmatpush1.msra.mxu0 0.0
  %3472 = vmatprep.subr.mxu0 0.0
  %3473 = vmatpush1.msra.mxu0 0.0
  %3474 = vmatprep.subr.mxu0 0.0
  %3475 = vmatpush1.msra.mxu0 0.0
  %3476 = vmatprep.subr.mxu0 0.0
  %3477 = vmatpush1.msra.mxu0 0.0
  %3478 = vmatprep.subr.mxu0 0.0
  %3479 = vmatpush1.msra.mxu0 0.0
  %3480 = vmatprep.subr.mxu0 0.0
  %3481 = vmatpush1.msra.mxu0 0.0
  %3482 = vmatprep.subr.mxu0 0.0
  %3483 = vmatpush1.msra.mxu0 0.0
  %3484 = vmatprep.subr.mxu0 0.0
  %3485 = vmatpush1.msra.mxu0 0.0
  %3486 = vmatprep.subr.mxu0 0.0
  %3487 = vmatpush1.msra.mxu0 0.0
  %3488 = vmatprep.subr.mxu0 0.0
  %3489 = vmatpush1.msra.mxu0 0.0
  %3490 = vmatprep.subr.mxu0 0.0
  %3491 = vmatpush1.msra.mxu0 0.0
  %3492 = vmatprep.subr.mxu0 0.0
  %3493 = vmatpush1.msra.mxu0 0.0
  %3494 = vmatprep.subr.mxu0 0.0
  %3495 = vmatpush1.msra.mxu0 0.0
  %3496 = vmatprep.subr.mxu0 0.0
  %3497 = vmatpush1.msra.mxu0 0.0
  %3498 = vmatprep.subr.mxu0 0.0
  %3499 = vmatpush1.msra.mxu0 0.0
  %3500 = vmatprep.subr.mxu0 0.0
  %3501 = vmatpush1.msra.mxu0 0.0
  %3502 = vmatprep.subr.mxu0 0.0
  %3503 = vmatpush1.msra.mxu0 0.0
  %3504 = vmatprep.subr.mxu0 0.0
  %3505 = vmatpush1.msra.mxu0 0.0
  %3506 = vmatprep.subr.mxu0 0.0
  %3507 = vmatpush1.msra.mxu0 0.0
  %3508 = vmatprep.subr.mxu0 0.0
  %3509 = vmatpush1.msra.mxu0 0.0
  %3510 = vmatprep.subr.mxu0 0.0
  %3511 = vmatpush1.msra.mxu0 0.0
  %3512 = vmatprep.subr.mxu0 0.0
  %3513 = vmatpush1.msra.mxu0 0.0
  %3514 = vmatprep.subr.mxu0 0.0
  %3515 = vmatpush1.msra.mxu0 0.0
  %3516 = vmatprep.mubr.f32.mxu0 0.0
  %3517 = vmatmul.mubr.f32.gmra.mrb[0].mxu0 %v3444
  %v3518 = vpop.f32.mrb[0].mxu0
  %v3519 = vadd.f32 0.0, %v3518
  %v3520 = vpop.f32.mrb[0].mxu0
  %3521 = vmatprep.mubr.f32.mxu0 0.0
  %3522 = vmatmul.mubr.f32.gmra.mrb[0].mxu0 %v3446
  %v3523 = vpop.f32.mrb[0].mxu0
  %v3524 = vadd.f32 0.0, %v3523
  %v3525 = vpop.f32.mrb[0].mxu0
  %3526 = vmatprep.mubr.f32.mxu0 0.0
  %3527 = vmatmul.mubr.f32.gmra.mrb[0].mxu0 %v3448
  %v3528 = vpop.f32.mrb[0].mxu0
  %v3529 = vadd.f32 0.0, %v3528
  %v3530 = vpop.f32.mrb[0].mxu0
  %3531 = vmatprep.mubr.f32.mxu0 0.0
  %3532 = vmatmul.mubr.f32.gmra.mrb[0].mxu0 %v3450
  %v3533 = vpop.f32.mrb[0].mxu0
  %v3534 = vadd.f32 0.0, %v3533
  %v3535 = vpop.f32.mrb[0].mxu0
  %3536 = vdwg.mxu0
  %v3537 = vadd.f32 %v373, %v3519
  %v3538 = vadd.f32 %v379, %v3524
  %v3539 = vadd.f32 %v385, %v3529
  %v3540 = vadd.f32 %v391, %v3534
  %3541 = vmatprep.subr.mxu0 0.0
  %3542 = vmatpush1.msra.mxu0 %v3537
  %3543 = vmatprep.subr.mxu0 0.0
  %3544 = vmatpush1.msra.mxu0 %v3538
  %3545 = vmatprep.subr.mxu0 0.0
  %3546 = vmatpush1.msra.mxu0 %v3539
  %3547 = vmatprep.subr.mxu0 0.0
  %3548 = vmatpush1.msra.mxu0 %v3540
  %3549 = vmatprep.subr.mxu0 0.0
  %3550 = vmatpush1.msra.mxu0 0.0
  %3551 = vmatprep.subr.mxu0 0.0
  %3552 = vmatpush1.msra.mxu0 0.0
  %3553 = vmatprep.subr.mxu0 0.0
  %3554 = vmatpush1.msra.mxu0 0.0
  %3555 = vmatprep.subr.mxu0 0.0
  %3556 = vmatpush1.msra.mxu0 0.0
  %3557 = vmatprep.subr.mxu0 0.0
  %3558 = vmatpush1.msra.mxu0 0.0
  %3559 = vmatprep.subr.mxu0 0.0
  %3560 = vmatpush1.msra.mxu0 0.0
  %3561 = vmatprep.subr.mxu0 0.0
  %3562 = vmatpush1.msra.mxu0 0.0
  %3563 = vmatprep.subr.mxu0 0.0
  %3564 = vmatpush1.msra.mxu0 0.0
  %3565 = vmatprep.subr.mxu0 0.0
  %3566 = vmatpush1.msra.mxu0 0.0
  %3567 = vmatprep.subr.mxu0 0.0
  %3568 = vmatpush1.msra.mxu0 0.0
  %3569 = vmatprep.subr.mxu0 0.0
  %3570 = vmatpush1.msra.mxu0 0.0
  %3571 = vmatprep.subr.mxu0 0.0
  %3572 = vmatpush1.msra.mxu0 0.0
  %3573 = vmatprep.subr.mxu0 0.0
  %3574 = vmatpush1.msra.mxu0 0.0
  %3575 = vmatprep.subr.mxu0 0.0
  %3576 = vmatpush1.msra.mxu0 0.0
  %3577 = vmatprep.subr.mxu0 0.0
  %3578 = vmatpush1.msra.mxu0 0.0
  %3579 = vmatprep.subr.mxu0 0.0
  %3580 = vmatpush1.msra.mxu0 0.0
  %3581 = vmatprep.subr.mxu0 0.0
  %3582 = vmatpush1.msra.mxu0 0.0
  %3583 = vmatprep.subr.mxu0 0.0
  %3584 = vmatpush1.msra.mxu0 0.0
  %3585 = vmatprep.subr.mxu0 0.0
  %3586 = vmatpush1.msra.mxu0 0.0
  %3587 = vmatprep.subr.mxu0 0.0
  %3588 = vmatpush1.msra.mxu0 0.0
  %3589 = vmatprep.subr.mxu0 0.0
  %3590 = vmatpush1.msra.mxu0 0.0
  %3591 = vmatprep.subr.mxu0 0.0
  %3592 = vmatpush1.msra.mxu0 0.0
  %3593 = vmatprep.subr.mxu0 0.0
  %3594 = vmatpush1.msra.mxu0 0.0
  %3595 = vmatprep.subr.mxu0 0.0
  %3596 = vmatpush1.msra.mxu0 0.0
  %3597 = vmatprep.subr.mxu0 0.0
  %3598 = vmatpush1.msra.mxu0 0.0
  %3599 = vmatprep.subr.mxu0 0.0
  %3600 = vmatpush1.msra.mxu0 0.0
  %3601 = vmatprep.subr.mxu0 0.0
  %3602 = vmatpush1.msra.mxu0 0.0
  %3603 = vmatprep.subr.mxu0 0.0
  %3604 = vmatpush1.msra.mxu0 0.0
  %3605 = vmatprep.mubr.f32.mxu0 0.0
  %3606 = vmatmul.mubr.f32.gmra.mrb[0].mxu0 %v559
  %v3607 = vpop.f32.mrb[0].mxu0
  %v3608 = vadd.f32 0.0, %v3607
  %v3609 = vpop.f32.mrb[0].mxu0
  %3610 = vmatprep.mubr.f32.mxu0 0.0
  %3611 = vmatmul.mubr.f32.gmra.mrb[0].mxu0 %v562
  %v3612 = vpop.f32.mrb[0].mxu0
  %v3613 = vadd.f32 0.0, %v3612
  %v3614 = vpop.f32.mrb[0].mxu0
  %3615 = vmatprep.mubr.f32.mxu0 0.0
  %3616 = vmatmul.mubr.f32.gmra.mrb[0].mxu0 %v565
  %v3617 = vpop.f32.mrb[0].mxu0
  %v3618 = vadd.f32 0.0, %v3617
  %v3619 = vpop.f32.mrb[0].mxu0
  %3620 = vmatprep.mubr.f32.mxu0 0.0
  %3621 = vmatmul.mubr.f32.gmra.mrb[0].mxu0 %v568
  %v3622 = vpop.f32.mrb[0].mxu0
  %v3623 = vadd.f32 0.0, %v3622
  %v3624 = vpop.f32.mrb[0].mxu0
  %3625 = vdwg.mxu0
  %v3626 = vadd.f32 %v102, %v3608
  %v3627 = vadd.f32 %v102, %v3613
  %v3628 = vadd.f32 %v102, %v3618
  %v3629 = vadd.f32 %v102, %v3623
  %3634 = vrot.lane.b32.xlu0 %v3537, 96
  %v3635 = vpop.permute.xlu0 %3634
  %3636 = vrot.lane.b32.xlu0 %v3538, 96
  %v3637 = vpop.permute.xlu0 %3636
  %3638 = vrot.lane.b32.xlu0 %v3539, 96
  %v3639 = vpop.permute.xlu0 %3638
  %3640 = vrot.lane.b32.xlu0 %v3540, 96
  %v3641 = vpop.permute.xlu0 %3640
  %3646 = vmatprep.subr.mxu0 0.0
  %3647 = vmatpush1.msra.mxu0 %v3635
  %3648 = vmatprep.subr.mxu0 0.0
  %3649 = vmatpush1.msra.mxu0 %v3637
  %3650 = vmatprep.subr.mxu0 0.0
  %3651 = vmatpush1.msra.mxu0 %v3639
  %3652 = vmatprep.subr.mxu0 0.0
  %3653 = vmatpush1.msra.mxu0 %v3641
  %3654 = vmatprep.subr.mxu0 0.0
  %3655 = vmatpush1.msra.mxu0 0.0
  %3656 = vmatprep.subr.mxu0 0.0
  %3657 = vmatpush1.msra.mxu0 0.0
  %3658 = vmatprep.subr.mxu0 0.0
  %3659 = vmatpush1.msra.mxu0 0.0
  %3660 = vmatprep.subr.mxu0 0.0
  %3661 = vmatpush1.msra.mxu0 0.0
  %3662 = vmatprep.subr.mxu0 0.0
  %3663 = vmatpush1.msra.mxu0 0.0
  %3664 = vmatprep.subr.mxu0 0.0
  %3665 = vmatpush1.msra.mxu0 0.0
  %3666 = vmatprep.subr.mxu0 0.0
  %3667 = vmatpush1.msra.mxu0 0.0
  %3668 = vmatprep.subr.mxu0 0.0
  %3669 = vmatpush1.msra.mxu0 0.0
  %3670 = vmatprep.subr.mxu0 0.0
  %3671 = vmatpush1.msra.mxu0 0.0
  %3672 = vmatprep.subr.mxu0 0.0
  %3673 = vmatpush1.msra.mxu0 0.0
  %3674 = vmatprep.subr.mxu0 0.0
  %3675 = vmatpush1.msra.mxu0 0.0
  %3676 = vmatprep.subr.mxu0 0.0
  %3677 = vmatpush1.msra.mxu0 0.0
  %3678 = vmatprep.subr.mxu0 0.0
  %3679 = vmatpush1.msra.mxu0 0.0
  %3680 = vmatprep.subr.mxu0 0.0
  %3681 = vmatpush1.msra.mxu0 0.0
  %3682 = vmatprep.subr.mxu0 0.0
  %3683 = vmatpush1.msra.mxu0 0.0
  %3684 = vmatprep.subr.mxu0 0.0
  %3685 = vmatpush1.msra.mxu0 0.0
  %3686 = vmatprep.subr.mxu0 0.0
  %3687 = vmatpush1.msra.mxu0 0.0
  %3688 = vmatprep.subr.mxu0 0.0
  %3689 = vmatpush1.msra.mxu0 0.0
  %3690 = vmatprep.subr.mxu0 0.0
  %3691 = vmatpush1.msra.mxu0 0.0
  %3692 = vmatprep.subr.mxu0 0.0
  %3693 = vmatpush1.msra.mxu0 0.0
  %3694 = vmatprep.subr.mxu0 0.0
  %3695 = vmatpush1.msra.mxu0 0.0
  %3696 = vmatprep.subr.mxu0 0.0
  %3697 = vmatpush1.msra.mxu0 0.0
  %3698 = vmatprep.subr.mxu0 0.0
  %3699 = vmatpush1.msra.mxu0 0.0
  %3700 = vmatprep.subr.mxu0 0.0
  %3701 = vmatpush1.msra.mxu0 0.0
  %3702 = vmatprep.subr.mxu0 0.0
  %3703 = vmatpush1.msra.mxu0 0.0
  %3704 = vmatprep.subr.mxu0 0.0
  %3705 = vmatpush1.msra.mxu0 0.0
  %3706 = vmatprep.subr.mxu0 0.0
  %3707 = vmatpush1.msra.mxu0 0.0
  %3708 = vmatprep.subr.mxu0 0.0
  %3709 = vmatpush1.msra.mxu0 0.0
  %3710 = vmatprep.mubr.f32.mxu0 0.0
  %3711 = vmatmul.mubr.f32.gmra.mrb[0].mxu0 %v676
  %v3712 = vpop.f32.mrb[0].mxu0
  %v3713 = vadd.f32 0.0, %v3712
  %v3714 = vpop.f32.mrb[0].mxu0
  %3715 = vmatprep.mubr.f32.mxu0 0.0
  %3716 = vmatmul.mubr.f32.gmra.mrb[0].mxu0 %v679
  %v3717 = vpop.f32.mrb[0].mxu0
  %v3718 = vadd.f32 0.0, %v3717
  %v3719 = vpop.f32.mrb[0].mxu0
  %3720 = vmatprep.mubr.f32.mxu0 0.0
  %3721 = vmatmul.mubr.f32.gmra.mrb[0].mxu0 %v682
  %v3722 = vpop.f32.mrb[0].mxu0
  %v3723 = vadd.f32 0.0, %v3722
  %v3724 = vpop.f32.mrb[0].mxu0
  %3725 = vmatprep.mubr.f32.mxu0 0.0
  %3726 = vmatmul.mubr.f32.gmra.mrb[0].mxu0 %v685
  %v3727 = vpop.f32.mrb[0].mxu0
  %v3728 = vadd.f32 0.0, %v3727
  %v3729 = vpop.f32.mrb[0].mxu0
  %3730 = vdwg.mxu0
  %v3731 = vadd.f32 %v3626, %v3713
  %v3732 = vadd.f32 %v3627, %v3718
  %v3733 = vadd.f32 %v3628, %v3723
  %v3734 = vadd.f32 %v3629, %v3728
  %v3735 = vtanh.pop %v3731
  %v3736 = vtanh.pop %v3732
  %v3737 = vtanh.pop %v3733
  %v3738 = vtanh.pop %v3734
  %v3739 = vsub.f32 %v3735, %v3089
  %v3740 = vsub.f32 %v3736, %v3090
  %v3741 = vsub.f32 %v3737, %v3091
  %v3742 = vsub.f32 %v3738, %v3092
  %v3743 = vmul.f32 %v3409, %v3739
  %v3744 = vmul.f32 %v3411, %v3740
  %v3745 = vmul.f32 %v3413, %v3741
  %v3746 = vmul.f32 %v3415, %v3742
  %v3747 = vadd.f32 %v3089, %v3743
  %v3748 = vadd.f32 %v3090, %v3744
  %v3749 = vadd.f32 %v3091, %v3745
  %v3750 = vadd.f32 %v3092, %v3746
  %3751 = vst.msk [vmem:[#allocation2 + $0x80] sm:$0xff] %vm465, %v3747
  %3752 = vst.msk [vmem:[#allocation2 + $0x88] sm:$0xff] %vm465, %v3748
  %3753 = vst.msk [vmem:[#allocation2 + $0x90] sm:$0xff] %vm465, %v3749
  %3754 = vst.msk [vmem:[#allocation2 + $0x98] sm:$0xff] %vm465, %v3750
  %v3756 = vsel %vm465, %v3747, 0
  %v3759 = vsel %vm465, %v3748, 0
  %v3762 = vsel %vm465, %v3749, 0
  %v3765 = vsel %vm465, %v3750, 0
  %3767 = vmatprep.subr.mxu0 0.0
  %3768 = vmatpush1.msra.mxu0 %v82
  %3769 = vmatprep.subr.mxu0 0.0
  %3770 = vmatpush1.msra.mxu0 %v83
  %3771 = vmatprep.subr.mxu0 0.0
  %3772 = vmatpush1.msra.mxu0 %v84
  %3773 = vmatprep.subr.mxu0 0.0
  %3774 = vmatpush1.msra.mxu0 %v85
  %3775 = vmatprep.subr.mxu0 0.0
  %3776 = vmatpush1.msra.mxu0 0.0
  %3777 = vmatprep.subr.mxu0 0.0
  %3778 = vmatpush1.msra.mxu0 0.0
  %3779 = vmatprep.subr.mxu0 0.0
  %3780 = vmatpush1.msra.mxu0 0.0
  %3781 = vmatprep.subr.mxu0 0.0
  %3782 = vmatpush1.msra.mxu0 0.0
  %3783 = vmatprep.subr.mxu0 0.0
  %3784 = vmatpush1.msra.mxu0 0.0
  %3785 = vmatprep.subr.mxu0 0.0
  %3786 = vmatpush1.msra.mxu0 0.0
  %3787 = vmatprep.subr.mxu0 0.0
  %3788 = vmatpush1.msra.mxu0 0.0
  %3789 = vmatprep.subr.mxu0 0.0
  %3790 = vmatpush1.msra.mxu0 0.0
  %3791 = vmatprep.subr.mxu0 0.0
  %3792 = vmatpush1.msra.mxu0 0.0
  %3793 = vmatprep.subr.mxu0 0.0
  %3794 = vmatpush1.msra.mxu0 0.0
  %3795 = vmatprep.subr.mxu0 0.0
  %3796 = vmatpush1.msra.mxu0 0.0
  %3797 = vmatprep.subr.mxu0 0.0
  %3798 = vmatpush1.msra.mxu0 0.0
  %3799 = vmatprep.subr.mxu0 0.0
  %3800 = vmatpush1.msra.mxu0 0.0
  %3801 = vmatprep.subr.mxu0 0.0
  %3802 = vmatpush1.msra.mxu0 0.0
  %3803 = vmatprep.subr.mxu0 0.0
  %3804 = vmatpush1.msra.mxu0 0.0
  %3805 = vmatprep.subr.mxu0 0.0
  %3806 = vmatpush1.msra.mxu0 0.0
  %3807 = vmatprep.subr.mxu0 0.0
  %3808 = vmatpush1.msra.mxu0 0.0
  %3809 = vmatprep.subr.mxu0 0.0
  %3810 = vmatpush1.msra.mxu0 0.0
  %3811 = vmatprep.subr.mxu0 0.0
  %3812 = vmatpush1.msra.mxu0 0.0
  %3813 = vmatprep.subr.mxu0 0.0
  %3814 = vmatpush1.msra.mxu0 0.0
  %3815 = vmatprep.subr.mxu0 0.0
  %3816 = vmatpush1.msra.mxu0 0.0
  %3817 = vmatprep.subr.mxu0 0.0
  %3818 = vmatpush1.msra.mxu0 0.0
  %3819 = vmatprep.subr.mxu0 0.0
  %3820 = vmatpush1.msra.mxu0 0.0
  %3821 = vmatprep.subr.mxu0 0.0
  %3822 = vmatpush1.msra.mxu0 0.0
  %3823 = vmatprep.subr.mxu0 0.0
  %3824 = vmatpush1.msra.mxu0 0.0
  %3825 = vmatprep.subr.mxu0 0.0
  %3826 = vmatpush1.msra.mxu0 0.0
  %3827 = vmatprep.subr.mxu0 0.0
  %3828 = vmatpush1.msra.mxu0 0.0
  %3829 = vmatprep.subr.mxu0 0.0
  %3830 = vmatpush1.msra.mxu0 0.0
  %3831 = vmatprep.mubr.f32.mxu0 0.0
  %3832 = vmatmul.mubr.f32.gmra.mrb[0].mxu0 %v3756
  %v3833 = vpop.f32.mrb[0].mxu0
  %v3834 = vadd.f32 0.0, %v3833
  %v3835 = vpop.f32.mrb[0].mxu0
  %3836 = vmatprep.mubr.f32.mxu0 0.0
  %3837 = vmatmul.mubr.f32.gmra.mrb[0].mxu0 %v3759
  %v3838 = vpop.f32.mrb[0].mxu0
  %v3839 = vadd.f32 0.0, %v3838
  %v3840 = vpop.f32.mrb[0].mxu0
  %3841 = vmatprep.mubr.f32.mxu0 0.0
  %3842 = vmatmul.mubr.f32.gmra.mrb[0].mxu0 %v3762
  %v3843 = vpop.f32.mrb[0].mxu0
  %v3844 = vadd.f32 0.0, %v3843
  %v3845 = vpop.f32.mrb[0].mxu0
  %3846 = vmatprep.mubr.f32.mxu0 0.0
  %3847 = vmatmul.mubr.f32.gmra.mrb[0].mxu0 %v3765
  %v3848 = vpop.f32.mrb[0].mxu0
  %v3849 = vadd.f32 0.0, %v3848
  %v3850 = vpop.f32.mrb[0].mxu0
  %3851 = vdwg.mxu0
  %v3852 = vadd.f32 %v395, %v3834
  %v3853 = vadd.f32 %v401, %v3839
  %v3854 = vadd.f32 %v407, %v3844
  %v3855 = vadd.f32 %v413, %v3849
  %3856 = vmatprep.subr.mxu0 0.0
  %3857 = vmatpush1.msra.mxu0 %v3852
  %3858 = vmatprep.subr.mxu0 0.0
  %3859 = vmatpush1.msra.mxu0 %v3853
  %3860 = vmatprep.subr.mxu0 0.0
  %3861 = vmatpush1.msra.mxu0 %v3854
  %3862 = vmatprep.subr.mxu0 0.0
  %3863 = vmatpush1.msra.mxu0 %v3855
  %3864 = vmatprep.subr.mxu0 0.0
  %3865 = vmatpush1.msra.mxu0 0.0
  %3866 = vmatprep.subr.mxu0 0.0
  %3867 = vmatpush1.msra.mxu0 0.0
  %3868 = vmatprep.subr.mxu0 0.0
  %3869 = vmatpush1.msra.mxu0 0.0
  %3870 = vmatprep.subr.mxu0 0.0
  %3871 = vmatpush1.msra.mxu0 0.0
  %3872 = vmatprep.subr.mxu0 0.0
  %3873 = vmatpush1.msra.mxu0 0.0
  %3874 = vmatprep.subr.mxu0 0.0
  %3875 = vmatpush1.msra.mxu0 0.0
  %3876 = vmatprep.subr.mxu0 0.0
  %3877 = vmatpush1.msra.mxu0 0.0
  %3878 = vmatprep.subr.mxu0 0.0
  %3879 = vmatpush1.msra.mxu0 0.0
  %3880 = vmatprep.subr.mxu0 0.0
  %3881 = vmatpush1.msra.mxu0 0.0
  %3882 = vmatprep.subr.mxu0 0.0
  %3883 = vmatpush1.msra.mxu0 0.0
  %3884 = vmatprep.subr.mxu0 0.0
  %3885 = vmatpush1.msra.mxu0 0.0
  %3886 = vmatprep.subr.mxu0 0.0
  %3887 = vmatpush1.msra.mxu0 0.0
  %3888 = vmatprep.subr.mxu0 0.0
  %3889 = vmatpush1.msra.mxu0 0.0
  %3890 = vmatprep.subr.mxu0 0.0
  %3891 = vmatpush1.msra.mxu0 0.0
  %3892 = vmatprep.subr.mxu0 0.0
  %3893 = vmatpush1.msra.mxu0 0.0
  %3894 = vmatprep.subr.mxu0 0.0
  %3895 = vmatpush1.msra.mxu0 0.0
  %3896 = vmatprep.subr.mxu0 0.0
  %3897 = vmatpush1.msra.mxu0 0.0
  %3898 = vmatprep.subr.mxu0 0.0
  %3899 = vmatpush1.msra.mxu0 0.0
  %3900 = vmatprep.subr.mxu0 0.0
  %3901 = vmatpush1.msra.mxu0 0.0
  %3902 = vmatprep.subr.mxu0 0.0
  %3903 = vmatpush1.msra.mxu0 0.0
  %3904 = vmatprep.subr.mxu0 0.0
  %3905 = vmatpush1.msra.mxu0 0.0
  %3906 = vmatprep.subr.mxu0 0.0
  %3907 = vmatpush1.msra.mxu0 0.0
  %3908 = vmatprep.subr.mxu0 0.0
  %3909 = vmatpush1.msra.mxu0 0.0
  %3910 = vmatprep.subr.mxu0 0.0
  %3911 = vmatpush1.msra.mxu0 0.0
  %3912 = vmatprep.subr.mxu0 0.0
  %3913 = vmatpush1.msra.mxu0 0.0
  %3914 = vmatprep.subr.mxu0 0.0
  %3915 = vmatpush1.msra.mxu0 0.0
  %3916 = vmatprep.subr.mxu0 0.0
  %3917 = vmatpush1.msra.mxu0 0.0
  %3918 = vmatprep.subr.mxu0 0.0
  %3919 = vmatpush1.msra.mxu0 0.0
  %3920 = vmatprep.mubr.f32.mxu0 0.0
  %3921 = vmatmul.mubr.f32.gmra.mrb[0].mxu0 %v559
  %v3922 = vpop.f32.mrb[0].mxu0
  %v3923 = vadd.f32 0.0, %v3922
  %v3924 = vpop.f32.mrb[0].mxu0
  %3925 = vmatprep.mubr.f32.mxu0 0.0
  %3926 = vmatmul.mubr.f32.gmra.mrb[0].mxu0 %v562
  %v3927 = vpop.f32.mrb[0].mxu0
  %v3928 = vadd.f32 0.0, %v3927
  %v3929 = vpop.f32.mrb[0].mxu0
  %3930 = vmatprep.mubr.f32.mxu0 0.0
  %3931 = vmatmul.mubr.f32.gmra.mrb[0].mxu0 %v565
  %v3932 = vpop.f32.mrb[0].mxu0
  %v3933 = vadd.f32 0.0, %v3932
  %v3934 = vpop.f32.mrb[0].mxu0
  %3935 = vmatprep.mubr.f32.mxu0 0.0
  %3936 = vmatmul.mubr.f32.gmra.mrb[0].mxu0 %v568
  %v3937 = vpop.f32.mrb[0].mxu0
  %v3938 = vadd.f32 0.0, %v3937
  %v3939 = vpop.f32.mrb[0].mxu0
  %3940 = vdwg.mxu0
  %v3941 = vadd.f32 %v95, %v3923
  %v3942 = vadd.f32 %v95, %v3928
  %v3943 = vadd.f32 %v95, %v3933
  %v3944 = vadd.f32 %v95, %v3938
  %3949 = vrot.lane.b32.xlu0 %v3852, 64
  %v3950 = vpop.permute.xlu0 %3949
  %3951 = vrot.lane.b32.xlu0 %v3853, 64
  %v3952 = vpop.permute.xlu0 %3951
  %3953 = vrot.lane.b32.xlu0 %v3854, 64
  %v3954 = vpop.permute.xlu0 %3953
  %3955 = vrot.lane.b32.xlu0 %v3855, 64
  %v3956 = vpop.permute.xlu0 %3955
  %3961 = vmatprep.subr.mxu0 0.0
  %3962 = vmatpush1.msra.mxu0 %v3950
  %3963 = vmatprep.subr.mxu0 0.0
  %3964 = vmatpush1.msra.mxu0 %v3952
  %3965 = vmatprep.subr.mxu0 0.0
  %3966 = vmatpush1.msra.mxu0 %v3954
  %3967 = vmatprep.subr.mxu0 0.0
  %3968 = vmatpush1.msra.mxu0 %v3956
  %3969 = vmatprep.subr.mxu0 0.0
  %3970 = vmatpush1.msra.mxu0 0.0
  %3971 = vmatprep.subr.mxu0 0.0
  %3972 = vmatpush1.msra.mxu0 0.0
  %3973 = vmatprep.subr.mxu0 0.0
  %3974 = vmatpush1.msra.mxu0 0.0
  %3975 = vmatprep.subr.mxu0 0.0
  %3976 = vmatpush1.msra.mxu0 0.0
  %3977 = vmatprep.subr.mxu0 0.0
  %3978 = vmatpush1.msra.mxu0 0.0
  %3979 = vmatprep.subr.mxu0 0.0
  %3980 = vmatpush1.msra.mxu0 0.0
  %3981 = vmatprep.subr.mxu0 0.0
  %3982 = vmatpush1.msra.mxu0 0.0
  %3983 = vmatprep.subr.mxu0 0.0
  %3984 = vmatpush1.msra.mxu0 0.0
  %3985 = vmatprep.subr.mxu0 0.0
  %3986 = vmatpush1.msra.mxu0 0.0
  %3987 = vmatprep.subr.mxu0 0.0
  %3988 = vmatpush1.msra.mxu0 0.0
  %3989 = vmatprep.subr.mxu0 0.0
  %3990 = vmatpush1.msra.mxu0 0.0
  %3991 = vmatprep.subr.mxu0 0.0
  %3992 = vmatpush1.msra.mxu0 0.0
  %3993 = vmatprep.subr.mxu0 0.0
  %3994 = vmatpush1.msra.mxu0 0.0
  %3995 = vmatprep.subr.mxu0 0.0
  %3996 = vmatpush1.msra.mxu0 0.0
  %3997 = vmatprep.subr.mxu0 0.0
  %3998 = vmatpush1.msra.mxu0 0.0
  %3999 = vmatprep.subr.mxu0 0.0
  %4000 = vmatpush1.msra.mxu0 0.0
  %4001 = vmatprep.subr.mxu0 0.0
  %4002 = vmatpush1.msra.mxu0 0.0
  %4003 = vmatprep.subr.mxu0 0.0
  %4004 = vmatpush1.msra.mxu0 0.0
  %4005 = vmatprep.subr.mxu0 0.0
  %4006 = vmatpush1.msra.mxu0 0.0
  %4007 = vmatprep.subr.mxu0 0.0
  %4008 = vmatpush1.msra.mxu0 0.0
  %4009 = vmatprep.subr.mxu0 0.0
  %4010 = vmatpush1.msra.mxu0 0.0
  %4011 = vmatprep.subr.mxu0 0.0
  %4012 = vmatpush1.msra.mxu0 0.0
  %4013 = vmatprep.subr.mxu0 0.0
  %4014 = vmatpush1.msra.mxu0 0.0
  %4015 = vmatprep.subr.mxu0 0.0
  %4016 = vmatpush1.msra.mxu0 0.0
  %4017 = vmatprep.subr.mxu0 0.0
  %4018 = vmatpush1.msra.mxu0 0.0
  %4019 = vmatprep.subr.mxu0 0.0
  %4020 = vmatpush1.msra.mxu0 0.0
  %4021 = vmatprep.subr.mxu0 0.0
  %4022 = vmatpush1.msra.mxu0 0.0
  %4023 = vmatprep.subr.mxu0 0.0
  %4024 = vmatpush1.msra.mxu0 0.0
  %4025 = vmatprep.mubr.f32.mxu0 0.0
  %4026 = vmatmul.mubr.f32.gmra.mrb[0].mxu0 %v676
  %v4027 = vpop.f32.mrb[0].mxu0
  %v4028 = vadd.f32 0.0, %v4027
  %v4029 = vpop.f32.mrb[0].mxu0
  %4030 = vmatprep.mubr.f32.mxu0 0.0
  %4031 = vmatmul.mubr.f32.gmra.mrb[0].mxu0 %v679
  %v4032 = vpop.f32.mrb[0].mxu0
  %v4033 = vadd.f32 0.0, %v4032
  %v4034 = vpop.f32.mrb[0].mxu0
  %4035 = vmatprep.mubr.f32.mxu0 0.0
  %4036 = vmatmul.mubr.f32.gmra.mrb[0].mxu0 %v682
  %v4037 = vpop.f32.mrb[0].mxu0
  %v4038 = vadd.f32 0.0, %v4037
  %v4039 = vpop.f32.mrb[0].mxu0
  %4040 = vmatprep.mubr.f32.mxu0 0.0
  %4041 = vmatmul.mubr.f32.gmra.mrb[0].mxu0 %v685
  %v4042 = vpop.f32.mrb[0].mxu0
  %v4043 = vadd.f32 0.0, %v4042
  %v4044 = vpop.f32.mrb[0].mxu0
  %4045 = vdwg.mxu0
  %v4046 = vadd.f32 %v3941, %v4028
  %v4047 = vadd.f32 %v3942, %v4033
  %v4048 = vadd.f32 %v3943, %v4038
  %v4049 = vadd.f32 %v3944, %v4043
  %v4050 = vxor.u32 %v4046, 2147483648
  %v4051 = vxor.u32 %v4047, 2147483648
  %v4052 = vxor.u32 %v4048, 2147483648
  %v4053 = vxor.u32 %v4049, 2147483648
  %v4054 = vmul.f32 %v4050, 1.442695
  %v4055 = vpow.pop %v4054
  %v4056 = vmul.f32 %v4051, 1.442695
  %v4057 = vpow.pop %v4056
  %v4058 = vmul.f32 %v4052, 1.442695
  %v4059 = vpow.pop %v4058
  %v4060 = vmul.f32 %v4053, 1.442695
  %v4061 = vpow.pop %v4060
  %v4062 = vadd.f32 %v4055, 1.0
  %v4063 = vadd.f32 %v4057, 1.0
  %v4064 = vadd.f32 %v4059, 1.0
  %v4065 = vadd.f32 %v4061, 1.0
  %v4066 = vrcp.pop %v4062
  %v4067 = vmul.f32 1.0, %v4066
  %v4068 = vrcp.pop %v4063
  %v4069 = vmul.f32 1.0, %v4068
  %v4070 = vrcp.pop %v4064
  %v4071 = vmul.f32 1.0, %v4070
  %v4072 = vrcp.pop %v4065
  %v4073 = vmul.f32 1.0, %v4072
  %4074 = vrot.lane.b32.xlu0 %v3747, 32
  %v4075 = vpop.permute.xlu0 %4074
  %4076 = vrot.lane.b32.xlu0 %v3748, 32
  %v4077 = vpop.permute.xlu0 %4076
  %4078 = vrot.lane.b32.xlu0 %v3749, 32
  %v4079 = vpop.permute.xlu0 %4078
  %4080 = vrot.lane.b32.xlu0 %v3750, 32
  %v4081 = vpop.permute.xlu0 %4080
  %v4086 = vmul.f32 %v4067, %v4075
  %v4087 = vmul.f32 %v4069, %v4077
  %v4088 = vmul.f32 %v4071, %v4079
  %v4089 = vmul.f32 %v4073, %v4081
  %4094 = vrot.lane.b32.xlu0 %v4086, 96
  %v4095 = vpop.permute.xlu0 %4094
  %4096 = vrot.lane.b32.xlu0 %v4087, 96
  %v4097 = vpop.permute.xlu0 %4096
  %4098 = vrot.lane.b32.xlu0 %v4088, 96
  %v4099 = vpop.permute.xlu0 %4098
  %4100 = vrot.lane.b32.xlu0 %v4089, 96
  %v4101 = vpop.permute.xlu0 %4100
  %v4102 = vsel %vm465, %v4095, 0
  %v4104 = vsel %vm465, %v4097, 0
  %v4106 = vsel %vm465, %v4099, 0
  %v4108 = vsel %vm465, %v4101, 0
  %4110 = vmatprep.subr.mxu0 0.0
  %4111 = vmatpush1.msra.mxu0 %v86
  %4112 = vmatprep.subr.mxu0 0.0
  %4113 = vmatpush1.msra.mxu0 %v87
  %4114 = vmatprep.subr.mxu0 0.0
  %4115 = vmatpush1.msra.mxu0 %v88
  %4116 = vmatprep.subr.mxu0 0.0
  %4117 = vmatpush1.msra.mxu0 %v89
  %4118 = vmatprep.subr.mxu0 0.0
  %4119 = vmatpush1.msra.mxu0 0.0
  %4120 = vmatprep.subr.mxu0 0.0
  %4121 = vmatpush1.msra.mxu0 0.0
  %4122 = vmatprep.subr.mxu0 0.0
  %4123 = vmatpush1.msra.mxu0 0.0
  %4124 = vmatprep.subr.mxu0 0.0
  %4125 = vmatpush1.msra.mxu0 0.0
  %4126 = vmatprep.subr.mxu0 0.0
  %4127 = vmatpush1.msra.mxu0 0.0
  %4128 = vmatprep.subr.mxu0 0.0
  %4129 = vmatpush1.msra.mxu0 0.0
  %4130 = vmatprep.subr.mxu0 0.0
  %4131 = vmatpush1.msra.mxu0 0.0
  %4132 = vmatprep.subr.mxu0 0.0
  %4133 = vmatpush1.msra.mxu0 0.0
  %4134 = vmatprep.subr.mxu0 0.0
  %4135 = vmatpush1.msra.mxu0 0.0
  %4136 = vmatprep.subr.mxu0 0.0
  %4137 = vmatpush1.msra.mxu0 0.0
  %4138 = vmatprep.subr.mxu0 0.0
  %4139 = vmatpush1.msra.mxu0 0.0
  %4140 = vmatprep.subr.mxu0 0.0
  %4141 = vmatpush1.msra.mxu0 0.0
  %4142 = vmatprep.subr.mxu0 0.0
  %4143 = vmatpush1.msra.mxu0 0.0
  %4144 = vmatprep.subr.mxu0 0.0
  %4145 = vmatpush1.msra.mxu0 0.0
  %4146 = vmatprep.subr.mxu0 0.0
  %4147 = vmatpush1.msra.mxu0 0.0
  %4148 = vmatprep.subr.mxu0 0.0
  %4149 = vmatpush1.msra.mxu0 0.0
  %4150 = vmatprep.subr.mxu0 0.0
  %4151 = vmatpush1.msra.mxu0 0.0
  %4152 = vmatprep.subr.mxu0 0.0
  %4153 = vmatpush1.msra.mxu0 0.0
  %4154 = vmatprep.subr.mxu0 0.0
  %4155 = vmatpush1.msra.mxu0 0.0
  %4156 = vmatprep.subr.mxu0 0.0
  %4157 = vmatpush1.msra.mxu0 0.0
  %4158 = vmatprep.subr.mxu0 0.0
  %4159 = vmatpush1.msra.mxu0 0.0
  %4160 = vmatprep.subr.mxu0 0.0
  %4161 = vmatpush1.msra.mxu0 0.0
  %4162 = vmatprep.subr.mxu0 0.0
  %4163 = vmatpush1.msra.mxu0 0.0
  %4164 = vmatprep.subr.mxu0 0.0
  %4165 = vmatpush1.msra.mxu0 0.0
  %4166 = vmatprep.subr.mxu0 0.0
  %4167 = vmatpush1.msra.mxu0 0.0
  %4168 = vmatprep.subr.mxu0 0.0
  %4169 = vmatpush1.msra.mxu0 0.0
  %4170 = vmatprep.subr.mxu0 0.0
  %4171 = vmatpush1.msra.mxu0 0.0
  %4172 = vmatprep.subr.mxu0 0.0
  %4173 = vmatpush1.msra.mxu0 0.0
  %4174 = vmatprep.mubr.f32.mxu0 0.0
  %4175 = vmatmul.mubr.f32.gmra.mrb[0].mxu0 %v4102
  %v4176 = vpop.f32.mrb[0].mxu0
  %v4177 = vadd.f32 0.0, %v4176
  %v4178 = vpop.f32.mrb[0].mxu0
  %4179 = vmatprep.mubr.f32.mxu0 0.0
  %4180 = vmatmul.mubr.f32.gmra.mrb[0].mxu0 %v4104
  %v4181 = vpop.f32.mrb[0].mxu0
  %v4182 = vadd.f32 0.0, %v4181
  %v4183 = vpop.f32.mrb[0].mxu0
  %4184 = vmatprep.mubr.f32.mxu0 0.0
  %4185 = vmatmul.mubr.f32.gmra.mrb[0].mxu0 %v4106
  %v4186 = vpop.f32.mrb[0].mxu0
  %v4187 = vadd.f32 0.0, %v4186
  %v4188 = vpop.f32.mrb[0].mxu0
  %4189 = vmatprep.mubr.f32.mxu0 0.0
  %4190 = vmatmul.mubr.f32.gmra.mrb[0].mxu0 %v4108
  %v4191 = vpop.f32.mrb[0].mxu0
  %v4192 = vadd.f32 0.0, %v4191
  %v4193 = vpop.f32.mrb[0].mxu0
  %4194 = vdwg.mxu0
  %v4195 = vadd.f32 %v397, %v4177
  %v4196 = vadd.f32 %v403, %v4182
  %v4197 = vadd.f32 %v409, %v4187
  %v4198 = vadd.f32 %v415, %v4192
  %4199 = vmatprep.subr.mxu0 0.0
  %4200 = vmatpush1.msra.mxu0 %v4195
  %4201 = vmatprep.subr.mxu0 0.0
  %4202 = vmatpush1.msra.mxu0 %v4196
  %4203 = vmatprep.subr.mxu0 0.0
  %4204 = vmatpush1.msra.mxu0 %v4197
  %4205 = vmatprep.subr.mxu0 0.0
  %4206 = vmatpush1.msra.mxu0 %v4198
  %4207 = vmatprep.subr.mxu0 0.0
  %4208 = vmatpush1.msra.mxu0 0.0
  %4209 = vmatprep.subr.mxu0 0.0
  %4210 = vmatpush1.msra.mxu0 0.0
  %4211 = vmatprep.subr.mxu0 0.0
  %4212 = vmatpush1.msra.mxu0 0.0
  %4213 = vmatprep.subr.mxu0 0.0
  %4214 = vmatpush1.msra.mxu0 0.0
  %4215 = vmatprep.subr.mxu0 0.0
  %4216 = vmatpush1.msra.mxu0 0.0
  %4217 = vmatprep.subr.mxu0 0.0
  %4218 = vmatpush1.msra.mxu0 0.0
  %4219 = vmatprep.subr.mxu0 0.0
  %4220 = vmatpush1.msra.mxu0 0.0
  %4221 = vmatprep.subr.mxu0 0.0
  %4222 = vmatpush1.msra.mxu0 0.0
  %4223 = vmatprep.subr.mxu0 0.0
  %4224 = vmatpush1.msra.mxu0 0.0
  %4225 = vmatprep.subr.mxu0 0.0
  %4226 = vmatpush1.msra.mxu0 0.0
  %4227 = vmatprep.subr.mxu0 0.0
  %4228 = vmatpush1.msra.mxu0 0.0
  %4229 = vmatprep.subr.mxu0 0.0
  %4230 = vmatpush1.msra.mxu0 0.0
  %4231 = vmatprep.subr.mxu0 0.0
  %4232 = vmatpush1.msra.mxu0 0.0
  %4233 = vmatprep.subr.mxu0 0.0
  %4234 = vmatpush1.msra.mxu0 0.0
  %4235 = vmatprep.subr.mxu0 0.0
  %4236 = vmatpush1.msra.mxu0 0.0
  %4237 = vmatprep.subr.mxu0 0.0
  %4238 = vmatpush1.msra.mxu0 0.0
  %4239 = vmatprep.subr.mxu0 0.0
  %4240 = vmatpush1.msra.mxu0 0.0
  %4241 = vmatprep.subr.mxu0 0.0
  %4242 = vmatpush1.msra.mxu0 0.0
  %4243 = vmatprep.subr.mxu0 0.0
  %4244 = vmatpush1.msra.mxu0 0.0
  %4245 = vmatprep.subr.mxu0 0.0
  %4246 = vmatpush1.msra.mxu0 0.0
  %4247 = vmatprep.subr.mxu0 0.0
  %4248 = vmatpush1.msra.mxu0 0.0
  %4249 = vmatprep.subr.mxu0 0.0
  %4250 = vmatpush1.msra.mxu0 0.0
  %4251 = vmatprep.subr.mxu0 0.0
  %4252 = vmatpush1.msra.mxu0 0.0
  %4253 = vmatprep.subr.mxu0 0.0
  %4254 = vmatpush1.msra.mxu0 0.0
  %4255 = vmatprep.subr.mxu0 0.0
  %4256 = vmatpush1.msra.mxu0 0.0
  %4257 = vmatprep.subr.mxu0 0.0
  %4258 = vmatpush1.msra.mxu0 0.0
  %4259 = vmatprep.subr.mxu0 0.0
  %4260 = vmatpush1.msra.mxu0 0.0
  %4261 = vmatprep.subr.mxu0 0.0
  %4262 = vmatpush1.msra.mxu0 0.0
  %4263 = vmatprep.mubr.f32.mxu0 0.0
  %4264 = vmatmul.mubr.f32.gmra.mrb[0].mxu0 %v559
  %v4265 = vpop.f32.mrb[0].mxu0
  %v4266 = vadd.f32 0.0, %v4265
  %v4267 = vpop.f32.mrb[0].mxu0
  %4268 = vmatprep.mubr.f32.mxu0 0.0
  %4269 = vmatmul.mubr.f32.gmra.mrb[0].mxu0 %v562
  %v4270 = vpop.f32.mrb[0].mxu0
  %v4271 = vadd.f32 0.0, %v4270
  %v4272 = vpop.f32.mrb[0].mxu0
  %4273 = vmatprep.mubr.f32.mxu0 0.0
  %4274 = vmatmul.mubr.f32.gmra.mrb[0].mxu0 %v565
  %v4275 = vpop.f32.mrb[0].mxu0
  %v4276 = vadd.f32 0.0, %v4275
  %v4277 = vpop.f32.mrb[0].mxu0
  %4278 = vmatprep.mubr.f32.mxu0 0.0
  %4279 = vmatmul.mubr.f32.gmra.mrb[0].mxu0 %v568
  %v4280 = vpop.f32.mrb[0].mxu0
  %v4281 = vadd.f32 0.0, %v4280
  %v4282 = vpop.f32.mrb[0].mxu0
  %4283 = vdwg.mxu0
  %v4284 = vadd.f32 %v102, %v4266
  %v4285 = vadd.f32 %v102, %v4271
  %v4286 = vadd.f32 %v102, %v4276
  %v4287 = vadd.f32 %v102, %v4281
  %4292 = vrot.lane.b32.xlu0 %v4195, 96
  %v4293 = vpop.permute.xlu0 %4292
  %4294 = vrot.lane.b32.xlu0 %v4196, 96
  %v4295 = vpop.permute.xlu0 %4294
  %4296 = vrot.lane.b32.xlu0 %v4197, 96
  %v4297 = vpop.permute.xlu0 %4296
  %4298 = vrot.lane.b32.xlu0 %v4198, 96
  %v4299 = vpop.permute.xlu0 %4298
  %4304 = vmatprep.subr.mxu0 0.0
  %4305 = vmatpush1.msra.mxu0 %v4293
  %4306 = vmatprep.subr.mxu0 0.0
  %4307 = vmatpush1.msra.mxu0 %v4295
  %4308 = vmatprep.subr.mxu0 0.0
  %4309 = vmatpush1.msra.mxu0 %v4297
  %4310 = vmatprep.subr.mxu0 0.0
  %4311 = vmatpush1.msra.mxu0 %v4299
  %4312 = vmatprep.subr.mxu0 0.0
  %4313 = vmatpush1.msra.mxu0 0.0
  %4314 = vmatprep.subr.mxu0 0.0
  %4315 = vmatpush1.msra.mxu0 0.0
  %4316 = vmatprep.subr.mxu0 0.0
  %4317 = vmatpush1.msra.mxu0 0.0
  %4318 = vmatprep.subr.mxu0 0.0
  %4319 = vmatpush1.msra.mxu0 0.0
  %4320 = vmatprep.subr.mxu0 0.0
  %4321 = vmatpush1.msra.mxu0 0.0
  %4322 = vmatprep.subr.mxu0 0.0
  %4323 = vmatpush1.msra.mxu0 0.0
  %4324 = vmatprep.subr.mxu0 0.0
  %4325 = vmatpush1.msra.mxu0 0.0
  %4326 = vmatprep.subr.mxu0 0.0
  %4327 = vmatpush1.msra.mxu0 0.0
  %4328 = vmatprep.subr.mxu0 0.0
  %4329 = vmatpush1.msra.mxu0 0.0
  %4330 = vmatprep.subr.mxu0 0.0
  %4331 = vmatpush1.msra.mxu0 0.0
  %4332 = vmatprep.subr.mxu0 0.0
  %4333 = vmatpush1.msra.mxu0 0.0
  %4334 = vmatprep.subr.mxu0 0.0
  %4335 = vmatpush1.msra.mxu0 0.0
  %4336 = vmatprep.subr.mxu0 0.0
  %4337 = vmatpush1.msra.mxu0 0.0
  %4338 = vmatprep.subr.mxu0 0.0
  %4339 = vmatpush1.msra.mxu0 0.0
  %4340 = vmatprep.subr.mxu0 0.0
  %4341 = vmatpush1.msra.mxu0 0.0
  %4342 = vmatprep.subr.mxu0 0.0
  %4343 = vmatpush1.msra.mxu0 0.0
  %4344 = vmatprep.subr.mxu0 0.0
  %4345 = vmatpush1.msra.mxu0 0.0
  %4346 = vmatprep.subr.mxu0 0.0
  %4347 = vmatpush1.msra.mxu0 0.0
  %4348 = vmatprep.subr.mxu0 0.0
  %4349 = vmatpush1.msra.mxu0 0.0
  %4350 = vmatprep.subr.mxu0 0.0
  %4351 = vmatpush1.msra.mxu0 0.0
  %4352 = vmatprep.subr.mxu0 0.0
  %4353 = vmatpush1.msra.mxu0 0.0
  %4354 = vmatprep.subr.mxu0 0.0
  %4355 = vmatpush1.msra.mxu0 0.0
  %4356 = vmatprep.subr.mxu0 0.0
  %4357 = vmatpush1.msra.mxu0 0.0
  %4358 = vmatprep.subr.mxu0 0.0
  %4359 = vmatpush1.msra.mxu0 0.0
  %4360 = vmatprep.subr.mxu0 0.0
  %4361 = vmatpush1.msra.mxu0 0.0
  %4362 = vmatprep.subr.mxu0 0.0
  %4363 = vmatpush1.msra.mxu0 0.0
  %4364 = vmatprep.subr.mxu0 0.0
  %4365 = vmatpush1.msra.mxu0 0.0
  %4366 = vmatprep.subr.mxu0 0.0
  %4367 = vmatpush1.msra.mxu0 0.0
  %4368 = vmatprep.mubr.f32.mxu0 0.0
  %4369 = vmatmul.mubr.f32.gmra.mrb[0].mxu0 %v676
  %v4370 = vpop.f32.mrb[0].mxu0
  %v4371 = vadd.f32 0.0, %v4370
  %v4372 = vpop.f32.mrb[0].mxu0
  %4373 = vmatprep.mubr.f32.mxu0 0.0
  %4374 = vmatmul.mubr.f32.gmra.mrb[0].mxu0 %v679
  %v4375 = vpop.f32.mrb[0].mxu0
  %v4376 = vadd.f32 0.0, %v4375
  %v4377 = vpop.f32.mrb[0].mxu0
  %4378 = vmatprep.mubr.f32.mxu0 0.0
  %4379 = vmatmul.mubr.f32.gmra.mrb[0].mxu0 %v682
  %v4380 = vpop.f32.mrb[0].mxu0
  %v4381 = vadd.f32 0.0, %v4380
  %v4382 = vpop.f32.mrb[0].mxu0
  %4383 = vmatprep.mubr.f32.mxu0 0.0
  %4384 = vmatmul.mubr.f32.gmra.mrb[0].mxu0 %v685
  %v4385 = vpop.f32.mrb[0].mxu0
  %v4386 = vadd.f32 0.0, %v4385
  %v4387 = vpop.f32.mrb[0].mxu0
  %4388 = vdwg.mxu0
  %v4389 = vadd.f32 %v4284, %v4371
  %v4390 = vadd.f32 %v4285, %v4376
  %v4391 = vadd.f32 %v4286, %v4381
  %v4392 = vadd.f32 %v4287, %v4386
  %v4393 = vtanh.pop %v4389
  %v4394 = vtanh.pop %v4390
  %v4395 = vtanh.pop %v4391
  %v4396 = vtanh.pop %v4392
  %v4397 = vsub.f32 %v4393, %v3747
  %v4398 = vsub.f32 %v4394, %v3748
  %v4399 = vsub.f32 %v4395, %v3749
  %v4400 = vsub.f32 %v4396, %v3750
  %v4401 = vmul.f32 %v4067, %v4397
  %v4402 = vmul.f32 %v4069, %v4398
  %v4403 = vmul.f32 %v4071, %v4399
  %v4404 = vmul.f32 %v4073, %v4400
  %v4405 = vadd.f32 %v3747, %v4401
  %v4406 = vadd.f32 %v3748, %v4402
  %v4407 = vadd.f32 %v3749, %v4403
  %v4408 = vadd.f32 %v3750, %v4404
  %4409 = vst.msk [vmem:[#allocation2 + $0xa0] sm:$0xff] %vm465, %v4405
  %4410 = vst.msk [vmem:[#allocation2 + $0xa8] sm:$0xff] %vm465, %v4406
  %4411 = vst.msk [vmem:[#allocation2 + $0xb0] sm:$0xff] %vm465, %v4407
  %4412 = vst.msk [vmem:[#allocation2 + $0xb8] sm:$0xff] %vm465, %v4408
  %v4414 = vsel %vm465, %v4405, 0
  %v4417 = vsel %vm465, %v4406, 0
  %v4420 = vsel %vm465, %v4407, 0
  %v4423 = vsel %vm465, %v4408, 0
  %4425 = vmatprep.subr.mxu0 0.0
  %4426 = vmatpush1.msra.mxu0 %v82
  %4427 = vmatprep.subr.mxu0 0.0
  %4428 = vmatpush1.msra.mxu0 %v83
  %4429 = vmatprep.subr.mxu0 0.0
  %4430 = vmatpush1.msra.mxu0 %v84
  %4431 = vmatprep.subr.mxu0 0.0
  %4432 = vmatpush1.msra.mxu0 %v85
  %4433 = vmatprep.subr.mxu0 0.0
  %4434 = vmatpush1.msra.mxu0 0.0
  %4435 = vmatprep.subr.mxu0 0.0
  %4436 = vmatpush1.msra.mxu0 0.0
  %4437 = vmatprep.subr.mxu0 0.0
  %4438 = vmatpush1.msra.mxu0 0.0
  %4439 = vmatprep.subr.mxu0 0.0
  %4440 = vmatpush1.msra.mxu0 0.0
  %4441 = vmatprep.subr.mxu0 0.0
  %4442 = vmatpush1.msra.mxu0 0.0
  %4443 = vmatprep.subr.mxu0 0.0
  %4444 = vmatpush1.msra.mxu0 0.0
  %4445 = vmatprep.subr.mxu0 0.0
  %4446 = vmatpush1.msra.mxu0 0.0
  %4447 = vmatprep.subr.mxu0 0.0
  %4448 = vmatpush1.msra.mxu0 0.0
  %4449 = vmatprep.subr.mxu0 0.0
  %4450 = vmatpush1.msra.mxu0 0.0
  %4451 = vmatprep.subr.mxu0 0.0
  %4452 = vmatpush1.msra.mxu0 0.0
  %4453 = vmatprep.subr.mxu0 0.0
  %4454 = vmatpush1.msra.mxu0 0.0
  %4455 = vmatprep.subr.mxu0 0.0
  %4456 = vmatpush1.msra.mxu0 0.0
  %4457 = vmatprep.subr.mxu0 0.0
  %4458 = vmatpush1.msra.mxu0 0.0
  %4459 = vmatprep.subr.mxu0 0.0
  %4460 = vmatpush1.msra.mxu0 0.0
  %4461 = vmatprep.subr.mxu0 0.0
  %4462 = vmatpush1.msra.mxu0 0.0
  %4463 = vmatprep.subr.mxu0 0.0
  %4464 = vmatpush1.msra.mxu0 0.0
  %4465 = vmatprep.subr.mxu0 0.0
  %4466 = vmatpush1.msra.mxu0 0.0
  %4467 = vmatprep.subr.mxu0 0.0
  %4468 = vmatpush1.msra.mxu0 0.0
  %4469 = vmatprep.subr.mxu0 0.0
  %4470 = vmatpush1.msra.mxu0 0.0
  %4471 = vmatprep.subr.mxu0 0.0
  %4472 = vmatpush1.msra.mxu0 0.0
  %4473 = vmatprep.subr.mxu0 0.0
  %4474 = vmatpush1.msra.mxu0 0.0
  %4475 = vmatprep.subr.mxu0 0.0
  %4476 = vmatpush1.msra.mxu0 0.0
  %4477 = vmatprep.subr.mxu0 0.0
  %4478 = vmatpush1.msra.mxu0 0.0
  %4479 = vmatprep.subr.mxu0 0.0
  %4480 = vmatpush1.msra.mxu0 0.0
  %4481 = vmatprep.subr.mxu0 0.0
  %4482 = vmatpush1.msra.mxu0 0.0
  %4483 = vmatprep.subr.mxu0 0.0
  %4484 = vmatpush1.msra.mxu0 0.0
  %4485 = vmatprep.subr.mxu0 0.0
  %4486 = vmatpush1.msra.mxu0 0.0
  %4487 = vmatprep.subr.mxu0 0.0
  %4488 = vmatpush1.msra.mxu0 0.0
  %4489 = vmatprep.mubr.f32.mxu0 0.0
  %4490 = vmatmul.mubr.f32.gmra.mrb[0].mxu0 %v4414
  %v4491 = vpop.f32.mrb[0].mxu0
  %v4492 = vadd.f32 0.0, %v4491
  %v4493 = vpop.f32.mrb[0].mxu0
  %4494 = vmatprep.mubr.f32.mxu0 0.0
  %4495 = vmatmul.mubr.f32.gmra.mrb[0].mxu0 %v4417
  %v4496 = vpop.f32.mrb[0].mxu0
  %v4497 = vadd.f32 0.0, %v4496
  %v4498 = vpop.f32.mrb[0].mxu0
  %4499 = vmatprep.mubr.f32.mxu0 0.0
  %4500 = vmatmul.mubr.f32.gmra.mrb[0].mxu0 %v4420
  %v4501 = vpop.f32.mrb[0].mxu0
  %v4502 = vadd.f32 0.0, %v4501
  %v4503 = vpop.f32.mrb[0].mxu0
  %4504 = vmatprep.mubr.f32.mxu0 0.0
  %4505 = vmatmul.mubr.f32.gmra.mrb[0].mxu0 %v4423
  %v4506 = vpop.f32.mrb[0].mxu0
  %v4507 = vadd.f32 0.0, %v4506
  %v4508 = vpop.f32.mrb[0].mxu0
  %4509 = vdwg.mxu0
  %v4510 = vadd.f32 %v419, %v4492
  %v4511 = vadd.f32 %v425, %v4497
  %v4512 = vadd.f32 %v431, %v4502
  %v4513 = vadd.f32 %v437, %v4507
  %4514 = vmatprep.subr.mxu0 0.0
  %4515 = vmatpush1.msra.mxu0 %v4510
  %4516 = vmatprep.subr.mxu0 0.0
  %4517 = vmatpush1.msra.mxu0 %v4511
  %4518 = vmatprep.subr.mxu0 0.0
  %4519 = vmatpush1.msra.mxu0 %v4512
  %4520 = vmatprep.subr.mxu0 0.0
  %4521 = vmatpush1.msra.mxu0 %v4513
  %4522 = vmatprep.subr.mxu0 0.0
  %4523 = vmatpush1.msra.mxu0 0.0
  %4524 = vmatprep.subr.mxu0 0.0
  %4525 = vmatpush1.msra.mxu0 0.0
  %4526 = vmatprep.subr.mxu0 0.0
  %4527 = vmatpush1.msra.mxu0 0.0
  %4528 = vmatprep.subr.mxu0 0.0
  %4529 = vmatpush1.msra.mxu0 0.0
  %4530 = vmatprep.subr.mxu0 0.0
  %4531 = vmatpush1.msra.mxu0 0.0
  %4532 = vmatprep.subr.mxu0 0.0
  %4533 = vmatpush1.msra.mxu0 0.0
  %4534 = vmatprep.subr.mxu0 0.0
  %4535 = vmatpush1.msra.mxu0 0.0
  %4536 = vmatprep.subr.mxu0 0.0
  %4537 = vmatpush1.msra.mxu0 0.0
  %4538 = vmatprep.subr.mxu0 0.0
  %4539 = vmatpush1.msra.mxu0 0.0
  %4540 = vmatprep.subr.mxu0 0.0
  %4541 = vmatpush1.msra.mxu0 0.0
  %4542 = vmatprep.subr.mxu0 0.0
  %4543 = vmatpush1.msra.mxu0 0.0
  %4544 = vmatprep.subr.mxu0 0.0
  %4545 = vmatpush1.msra.mxu0 0.0
  %4546 = vmatprep.subr.mxu0 0.0
  %4547 = vmatpush1.msra.mxu0 0.0
  %4548 = vmatprep.subr.mxu0 0.0
  %4549 = vmatpush1.msra.mxu0 0.0
  %4550 = vmatprep.subr.mxu0 0.0
  %4551 = vmatpush1.msra.mxu0 0.0
  %4552 = vmatprep.subr.mxu0 0.0
  %4553 = vmatpush1.msra.mxu0 0.0
  %4554 = vmatprep.subr.mxu0 0.0
  %4555 = vmatpush1.msra.mxu0 0.0
  %4556 = vmatprep.subr.mxu0 0.0
  %4557 = vmatpush1.msra.mxu0 0.0
  %4558 = vmatprep.subr.mxu0 0.0
  %4559 = vmatpush1.msra.mxu0 0.0
  %4560 = vmatprep.subr.mxu0 0.0
  %4561 = vmatpush1.msra.mxu0 0.0
  %4562 = vmatprep.subr.mxu0 0.0
  %4563 = vmatpush1.msra.mxu0 0.0
  %4564 = vmatprep.subr.mxu0 0.0
  %4565 = vmatpush1.msra.mxu0 0.0
  %4566 = vmatprep.subr.mxu0 0.0
  %4567 = vmatpush1.msra.mxu0 0.0
  %4568 = vmatprep.subr.mxu0 0.0
  %4569 = vmatpush1.msra.mxu0 0.0
  %4570 = vmatprep.subr.mxu0 0.0
  %4571 = vmatpush1.msra.mxu0 0.0
  %4572 = vmatprep.subr.mxu0 0.0
  %4573 = vmatpush1.msra.mxu0 0.0
  %4574 = vmatprep.subr.mxu0 0.0
  %4575 = vmatpush1.msra.mxu0 0.0
  %4576 = vmatprep.subr.mxu0 0.0
  %4577 = vmatpush1.msra.mxu0 0.0
  %4578 = vmatprep.mubr.f32.mxu0 0.0
  %4579 = vmatmul.mubr.f32.gmra.mrb[0].mxu0 %v559
  %v4580 = vpop.f32.mrb[0].mxu0
  %v4581 = vadd.f32 0.0, %v4580
  %v4582 = vpop.f32.mrb[0].mxu0
  %4583 = vmatprep.mubr.f32.mxu0 0.0
  %4584 = vmatmul.mubr.f32.gmra.mrb[0].mxu0 %v562
  %v4585 = vpop.f32.mrb[0].mxu0
  %v4586 = vadd.f32 0.0, %v4585
  %v4587 = vpop.f32.mrb[0].mxu0
  %4588 = vmatprep.mubr.f32.mxu0 0.0
  %4589 = vmatmul.mubr.f32.gmra.mrb[0].mxu0 %v565
  %v4590 = vpop.f32.mrb[0].mxu0
  %v4591 = vadd.f32 0.0, %v4590
  %v4592 = vpop.f32.mrb[0].mxu0
  %4593 = vmatprep.mubr.f32.mxu0 0.0
  %4594 = vmatmul.mubr.f32.gmra.mrb[0].mxu0 %v568
  %v4595 = vpop.f32.mrb[0].mxu0
  %v4596 = vadd.f32 0.0, %v4595
  %v4597 = vpop.f32.mrb[0].mxu0
  %4598 = vdwg.mxu0
  %v4599 = vadd.f32 %v95, %v4581
  %v4600 = vadd.f32 %v95, %v4586
  %v4601 = vadd.f32 %v95, %v4591
  %v4602 = vadd.f32 %v95, %v4596
  %4607 = vrot.lane.b32.xlu0 %v4510, 64
  %v4608 = vpop.permute.xlu0 %4607
  %4609 = vrot.lane.b32.xlu0 %v4511, 64
  %v4610 = vpop.permute.xlu0 %4609
  %4611 = vrot.lane.b32.xlu0 %v4512, 64
  %v4612 = vpop.permute.xlu0 %4611
  %4613 = vrot.lane.b32.xlu0 %v4513, 64
  %v4614 = vpop.permute.xlu0 %4613
  %4619 = vmatprep.subr.mxu0 0.0
  %4620 = vmatpush1.msra.mxu0 %v4608
  %4621 = vmatprep.subr.mxu0 0.0
  %4622 = vmatpush1.msra.mxu0 %v4610
  %4623 = vmatprep.subr.mxu0 0.0
  %4624 = vmatpush1.msra.mxu0 %v4612
  %4625 = vmatprep.subr.mxu0 0.0
  %4626 = vmatpush1.msra.mxu0 %v4614
  %4627 = vmatprep.subr.mxu0 0.0
  %4628 = vmatpush1.msra.mxu0 0.0
  %4629 = vmatprep.subr.mxu0 0.0
  %4630 = vmatpush1.msra.mxu0 0.0
  %4631 = vmatprep.subr.mxu0 0.0
  %4632 = vmatpush1.msra.mxu0 0.0
  %4633 = vmatprep.subr.mxu0 0.0
  %4634 = vmatpush1.msra.mxu0 0.0
  %4635 = vmatprep.subr.mxu0 0.0
  %4636 = vmatpush1.msra.mxu0 0.0
  %4637 = vmatprep.subr.mxu0 0.0
  %4638 = vmatpush1.msra.mxu0 0.0
  %4639 = vmatprep.subr.mxu0 0.0
  %4640 = vmatpush1.msra.mxu0 0.0
  %4641 = vmatprep.subr.mxu0 0.0
  %4642 = vmatpush1.msra.mxu0 0.0
  %4643 = vmatprep.subr.mxu0 0.0
  %4644 = vmatpush1.msra.mxu0 0.0
  %4645 = vmatprep.subr.mxu0 0.0
  %4646 = vmatpush1.msra.mxu0 0.0
  %4647 = vmatprep.subr.mxu0 0.0
  %4648 = vmatpush1.msra.mxu0 0.0
  %4649 = vmatprep.subr.mxu0 0.0
  %4650 = vmatpush1.msra.mxu0 0.0
  %4651 = vmatprep.subr.mxu0 0.0
  %4652 = vmatpush1.msra.mxu0 0.0
  %4653 = vmatprep.subr.mxu0 0.0
  %4654 = vmatpush1.msra.mxu0 0.0
  %4655 = vmatprep.subr.mxu0 0.0
  %4656 = vmatpush1.msra.mxu0 0.0
  %4657 = vmatprep.subr.mxu0 0.0
  %4658 = vmatpush1.msra.mxu0 0.0
  %4659 = vmatprep.subr.mxu0 0.0
  %4660 = vmatpush1.msra.mxu0 0.0
  %4661 = vmatprep.subr.mxu0 0.0
  %4662 = vmatpush1.msra.mxu0 0.0
  %4663 = vmatprep.subr.mxu0 0.0
  %4664 = vmatpush1.msra.mxu0 0.0
  %4665 = vmatprep.subr.mxu0 0.0
  %4666 = vmatpush1.msra.mxu0 0.0
  %4667 = vmatprep.subr.mxu0 0.0
  %4668 = vmatpush1.msra.mxu0 0.0
  %4669 = vmatprep.subr.mxu0 0.0
  %4670 = vmatpush1.msra.mxu0 0.0
  %4671 = vmatprep.subr.mxu0 0.0
  %4672 = vmatpush1.msra.mxu0 0.0
  %4673 = vmatprep.subr.mxu0 0.0
  %4674 = vmatpush1.msra.mxu0 0.0
  %4675 = vmatprep.subr.mxu0 0.0
  %4676 = vmatpush1.msra.mxu0 0.0
  %4677 = vmatprep.subr.mxu0 0.0
  %4678 = vmatpush1.msra.mxu0 0.0
  %4679 = vmatprep.subr.mxu0 0.0
  %4680 = vmatpush1.msra.mxu0 0.0
  %4681 = vmatprep.subr.mxu0 0.0
  %4682 = vmatpush1.msra.mxu0 0.0
  %4683 = vmatprep.mubr.f32.mxu0 0.0
  %4684 = vmatmul.mubr.f32.gmra.mrb[0].mxu0 %v676
  %v4685 = vpop.f32.mrb[0].mxu0
  %v4686 = vadd.f32 0.0, %v4685
  %v4687 = vpop.f32.mrb[0].mxu0
  %4688 = vmatprep.mubr.f32.mxu0 0.0
  %4689 = vmatmul.mubr.f32.gmra.mrb[0].mxu0 %v679
  %v4690 = vpop.f32.mrb[0].mxu0
  %v4691 = vadd.f32 0.0, %v4690
  %v4692 = vpop.f32.mrb[0].mxu0
  %4693 = vmatprep.mubr.f32.mxu0 0.0
  %4694 = vmatmul.mubr.f32.gmra.mrb[0].mxu0 %v682
  %v4695 = vpop.f32.mrb[0].mxu0
  %v4696 = vadd.f32 0.0, %v4695
  %v4697 = vpop.f32.mrb[0].mxu0
  %4698 = vmatprep.mubr.f32.mxu0 0.0
  %4699 = vmatmul.mubr.f32.gmra.mrb[0].mxu0 %v685
  %v4700 = vpop.f32.mrb[0].mxu0
  %v4701 = vadd.f32 0.0, %v4700
  %v4702 = vpop.f32.mrb[0].mxu0
  %4703 = vdwg.mxu0
  %v4704 = vadd.f32 %v4599, %v4686
  %v4705 = vadd.f32 %v4600, %v4691
  %v4706 = vadd.f32 %v4601, %v4696
  %v4707 = vadd.f32 %v4602, %v4701
  %v4708 = vxor.u32 %v4704, 2147483648
  %v4709 = vxor.u32 %v4705, 2147483648
  %v4710 = vxor.u32 %v4706, 2147483648
  %v4711 = vxor.u32 %v4707, 2147483648
  %v4712 = vmul.f32 %v4708, 1.442695
  %v4713 = vpow.pop %v4712
  %v4714 = vmul.f32 %v4709, 1.442695
  %v4715 = vpow.pop %v4714
  %v4716 = vmul.f32 %v4710, 1.442695
  %v4717 = vpow.pop %v4716
  %v4718 = vmul.f32 %v4711, 1.442695
  %v4719 = vpow.pop %v4718
  %v4720 = vadd.f32 %v4713, 1.0
  %v4721 = vadd.f32 %v4715, 1.0
  %v4722 = vadd.f32 %v4717, 1.0
  %v4723 = vadd.f32 %v4719, 1.0
  %v4724 = vrcp.pop %v4720
  %v4725 = vmul.f32 1.0, %v4724
  %v4726 = vrcp.pop %v4721
  %v4727 = vmul.f32 1.0, %v4726
  %v4728 = vrcp.pop %v4722
  %v4729 = vmul.f32 1.0, %v4728
  %v4730 = vrcp.pop %v4723
  %v4731 = vmul.f32 1.0, %v4730
  %4732 = vrot.lane.b32.xlu0 %v4405, 32
  %v4733 = vpop.permute.xlu0 %4732
  %4734 = vrot.lane.b32.xlu0 %v4406, 32
  %v4735 = vpop.permute.xlu0 %4734
  %4736 = vrot.lane.b32.xlu0 %v4407, 32
  %v4737 = vpop.permute.xlu0 %4736
  %4738 = vrot.lane.b32.xlu0 %v4408, 32
  %v4739 = vpop.permute.xlu0 %4738
  %v4744 = vmul.f32 %v4725, %v4733
  %v4745 = vmul.f32 %v4727, %v4735
  %v4746 = vmul.f32 %v4729, %v4737
  %v4747 = vmul.f32 %v4731, %v4739
  %4752 = vrot.lane.b32.xlu0 %v4744, 96
  %v4753 = vpop.permute.xlu0 %4752
  %4754 = vrot.lane.b32.xlu0 %v4745, 96
  %v4755 = vpop.permute.xlu0 %4754
  %4756 = vrot.lane.b32.xlu0 %v4746, 96
  %v4757 = vpop.permute.xlu0 %4756
  %4758 = vrot.lane.b32.xlu0 %v4747, 96
  %v4759 = vpop.permute.xlu0 %4758
  %v4760 = vsel %vm465, %v4753, 0
  %v4762 = vsel %vm465, %v4755, 0
  %v4764 = vsel %vm465, %v4757, 0
  %v4766 = vsel %vm465, %v4759, 0
  %4768 = vmatprep.subr.mxu0 0.0
  %4769 = vmatpush1.msra.mxu0 %v86
  %4770 = vmatprep.subr.mxu0 0.0
  %4771 = vmatpush1.msra.mxu0 %v87
  %4772 = vmatprep.subr.mxu0 0.0
  %4773 = vmatpush1.msra.mxu0 %v88
  %4774 = vmatprep.subr.mxu0 0.0
  %4775 = vmatpush1.msra.mxu0 %v89
  %4776 = vmatprep.subr.mxu0 0.0
  %4777 = vmatpush1.msra.mxu0 0.0
  %4778 = vmatprep.subr.mxu0 0.0
  %4779 = vmatpush1.msra.mxu0 0.0
  %4780 = vmatprep.subr.mxu0 0.0
  %4781 = vmatpush1.msra.mxu0 0.0
  %4782 = vmatprep.subr.mxu0 0.0
  %4783 = vmatpush1.msra.mxu0 0.0
  %4784 = vmatprep.subr.mxu0 0.0
  %4785 = vmatpush1.msra.mxu0 0.0
  %4786 = vmatprep.subr.mxu0 0.0
  %4787 = vmatpush1.msra.mxu0 0.0
  %4788 = vmatprep.subr.mxu0 0.0
  %4789 = vmatpush1.msra.mxu0 0.0
  %4790 = vmatprep.subr.mxu0 0.0
  %4791 = vmatpush1.msra.mxu0 0.0
  %4792 = vmatprep.subr.mxu0 0.0
  %4793 = vmatpush1.msra.mxu0 0.0
  %4794 = vmatprep.subr.mxu0 0.0
  %4795 = vmatpush1.msra.mxu0 0.0
  %4796 = vmatprep.subr.mxu0 0.0
  %4797 = vmatpush1.msra.mxu0 0.0
  %4798 = vmatprep.subr.mxu0 0.0
  %4799 = vmatpush1.msra.mxu0 0.0
  %4800 = vmatprep.subr.mxu0 0.0
  %4801 = vmatpush1.msra.mxu0 0.0
  %4802 = vmatprep.subr.mxu0 0.0
  %4803 = vmatpush1.msra.mxu0 0.0
  %4804 = vmatprep.subr.mxu0 0.0
  %4805 = vmatpush1.msra.mxu0 0.0
  %4806 = vmatprep.subr.mxu0 0.0
  %4807 = vmatpush1.msra.mxu0 0.0
  %4808 = vmatprep.subr.mxu0 0.0
  %4809 = vmatpush1.msra.mxu0 0.0
  %4810 = vmatprep.subr.mxu0 0.0
  %4811 = vmatpush1.msra.mxu0 0.0
  %4812 = vmatprep.subr.mxu0 0.0
  %4813 = vmatpush1.msra.mxu0 0.0
  %4814 = vmatprep.subr.mxu0 0.0
  %4815 = vmatpush1.msra.mxu0 0.0
  %4816 = vmatprep.subr.mxu0 0.0
  %4817 = vmatpush1.msra.mxu0 0.0
  %4818 = vmatprep.subr.mxu0 0.0
  %4819 = vmatpush1.msra.mxu0 0.0
  %4820 = vmatprep.subr.mxu0 0.0
  %4821 = vmatpush1.msra.mxu0 0.0
  %4822 = vmatprep.subr.mxu0 0.0
  %4823 = vmatpush1.msra.mxu0 0.0
  %4824 = vmatprep.subr.mxu0 0.0
  %4825 = vmatpush1.msra.mxu0 0.0
  %4826 = vmatprep.subr.mxu0 0.0
  %4827 = vmatpush1.msra.mxu0 0.0
  %4828 = vmatprep.subr.mxu0 0.0
  %4829 = vmatpush1.msra.mxu0 0.0
  %4830 = vmatprep.subr.mxu0 0.0
  %4831 = vmatpush1.msra.mxu0 0.0
  %4832 = vmatprep.mubr.f32.mxu0 0.0
  %4833 = vmatmul.mubr.f32.gmra.mrb[0].mxu0 %v4760
  %v4834 = vpop.f32.mrb[0].mxu0
  %v4835 = vadd.f32 0.0, %v4834
  %v4836 = vpop.f32.mrb[0].mxu0
  %4837 = vmatprep.mubr.f32.mxu0 0.0
  %4838 = vmatmul.mubr.f32.gmra.mrb[0].mxu0 %v4762
  %v4839 = vpop.f32.mrb[0].mxu0
  %v4840 = vadd.f32 0.0, %v4839
  %v4841 = vpop.f32.mrb[0].mxu0
  %4842 = vmatprep.mubr.f32.mxu0 0.0
  %4843 = vmatmul.mubr.f32.gmra.mrb[0].mxu0 %v4764
  %v4844 = vpop.f32.mrb[0].mxu0
  %v4845 = vadd.f32 0.0, %v4844
  %v4846 = vpop.f32.mrb[0].mxu0
  %4847 = vmatprep.mubr.f32.mxu0 0.0
  %4848 = vmatmul.mubr.f32.gmra.mrb[0].mxu0 %v4766
  %v4849 = vpop.f32.mrb[0].mxu0
  %v4850 = vadd.f32 0.0, %v4849
  %v4851 = vpop.f32.mrb[0].mxu0
  %4852 = vdwg.mxu0
  %v4853 = vadd.f32 %v421, %v4835
  %v4854 = vadd.f32 %v427, %v4840
  %v4855 = vadd.f32 %v433, %v4845
  %v4856 = vadd.f32 %v439, %v4850
  %4857 = vmatprep.subr.mxu0 0.0
  %4858 = vmatpush1.msra.mxu0 %v4853
  %4859 = vmatprep.subr.mxu0 0.0
  %4860 = vmatpush1.msra.mxu0 %v4854
  %4861 = vmatprep.subr.mxu0 0.0
  %4862 = vmatpush1.msra.mxu0 %v4855
  %4863 = vmatprep.subr.mxu0 0.0
  %4864 = vmatpush1.msra.mxu0 %v4856
  %4865 = vmatprep.subr.mxu0 0.0
  %4866 = vmatpush1.msra.mxu0 0.0
  %4867 = vmatprep.subr.mxu0 0.0
  %4868 = vmatpush1.msra.mxu0 0.0
  %4869 = vmatprep.subr.mxu0 0.0
  %4870 = vmatpush1.msra.mxu0 0.0
  %4871 = vmatprep.subr.mxu0 0.0
  %4872 = vmatpush1.msra.mxu0 0.0
  %4873 = vmatprep.subr.mxu0 0.0
  %4874 = vmatpush1.msra.mxu0 0.0
  %4875 = vmatprep.subr.mxu0 0.0
  %4876 = vmatpush1.msra.mxu0 0.0
  %4877 = vmatprep.subr.mxu0 0.0
  %4878 = vmatpush1.msra.mxu0 0.0
  %4879 = vmatprep.subr.mxu0 0.0
  %4880 = vmatpush1.msra.mxu0 0.0
  %4881 = vmatprep.subr.mxu0 0.0
  %4882 = vmatpush1.msra.mxu0 0.0
  %4883 = vmatprep.subr.mxu0 0.0
  %4884 = vmatpush1.msra.mxu0 0.0
  %4885 = vmatprep.subr.mxu0 0.0
  %4886 = vmatpush1.msra.mxu0 0.0
  %4887 = vmatprep.subr.mxu0 0.0
  %4888 = vmatpush1.msra.mxu0 0.0
  %4889 = vmatprep.subr.mxu0 0.0
  %4890 = vmatpush1.msra.mxu0 0.0
  %4891 = vmatprep.subr.mxu0 0.0
  %4892 = vmatpush1.msra.mxu0 0.0
  %4893 = vmatprep.subr.mxu0 0.0
  %4894 = vmatpush1.msra.mxu0 0.0
  %4895 = vmatprep.subr.mxu0 0.0
  %4896 = vmatpush1.msra.mxu0 0.0
  %4897 = vmatprep.subr.mxu0 0.0
  %4898 = vmatpush1.msra.mxu0 0.0
  %4899 = vmatprep.subr.mxu0 0.0
  %4900 = vmatpush1.msra.mxu0 0.0
  %4901 = vmatprep.subr.mxu0 0.0
  %4902 = vmatpush1.msra.mxu0 0.0
  %4903 = vmatprep.subr.mxu0 0.0
  %4904 = vmatpush1.msra.mxu0 0.0
  %4905 = vmatprep.subr.mxu0 0.0
  %4906 = vmatpush1.msra.mxu0 0.0
  %4907 = vmatprep.subr.mxu0 0.0
  %4908 = vmatpush1.msra.mxu0 0.0
  %4909 = vmatprep.subr.mxu0 0.0
  %4910 = vmatpush1.msra.mxu0 0.0
  %4911 = vmatprep.subr.mxu0 0.0
  %4912 = vmatpush1.msra.mxu0 0.0
  %4913 = vmatprep.subr.mxu0 0.0
  %4914 = vmatpush1.msra.mxu0 0.0
  %4915 = vmatprep.subr.mxu0 0.0
  %4916 = vmatpush1.msra.mxu0 0.0
  %4917 = vmatprep.subr.mxu0 0.0
  %4918 = vmatpush1.msra.mxu0 0.0
  %4919 = vmatprep.subr.mxu0 0.0
  %4920 = vmatpush1.msra.mxu0 0.0
  %4921 = vmatprep.mubr.f32.mxu0 0.0
  %4922 = vmatmul.mubr.f32.gmra.mrb[0].mxu0 %v559
  %v4923 = vpop.f32.mrb[0].mxu0
  %v4924 = vadd.f32 0.0, %v4923
  %v4925 = vpop.f32.mrb[0].mxu0
  %4926 = vmatprep.mubr.f32.mxu0 0.0
  %4927 = vmatmul.mubr.f32.gmra.mrb[0].mxu0 %v562
  %v4928 = vpop.f32.mrb[0].mxu0
  %v4929 = vadd.f32 0.0, %v4928
  %v4930 = vpop.f32.mrb[0].mxu0
  %4931 = vmatprep.mubr.f32.mxu0 0.0
  %4932 = vmatmul.mubr.f32.gmra.mrb[0].mxu0 %v565
  %v4933 = vpop.f32.mrb[0].mxu0
  %v4934 = vadd.f32 0.0, %v4933
  %v4935 = vpop.f32.mrb[0].mxu0
  %4936 = vmatprep.mubr.f32.mxu0 0.0
  %4937 = vmatmul.mubr.f32.gmra.mrb[0].mxu0 %v568
  %v4938 = vpop.f32.mrb[0].mxu0
  %v4939 = vadd.f32 0.0, %v4938
  %v4940 = vpop.f32.mrb[0].mxu0
  %4941 = vdwg.mxu0
  %v4942 = vadd.f32 %v102, %v4924
  %v4943 = vadd.f32 %v102, %v4929
  %v4944 = vadd.f32 %v102, %v4934
  %v4945 = vadd.f32 %v102, %v4939
  %4950 = vrot.lane.b32.xlu0 %v4853, 96
  %v4951 = vpop.permute.xlu0 %4950
  %4952 = vrot.lane.b32.xlu0 %v4854, 96
  %v4953 = vpop.permute.xlu0 %4952
  %4954 = vrot.lane.b32.xlu0 %v4855, 96
  %v4955 = vpop.permute.xlu0 %4954
  %4956 = vrot.lane.b32.xlu0 %v4856, 96
  %v4957 = vpop.permute.xlu0 %4956
  %4962 = vmatprep.subr.mxu0 0.0
  %4963 = vmatpush1.msra.mxu0 %v4951
  %4964 = vmatprep.subr.mxu0 0.0
  %4965 = vmatpush1.msra.mxu0 %v4953
  %4966 = vmatprep.subr.mxu0 0.0
  %4967 = vmatpush1.msra.mxu0 %v4955
  %4968 = vmatprep.subr.mxu0 0.0
  %4969 = vmatpush1.msra.mxu0 %v4957
  %4970 = vmatprep.subr.mxu0 0.0
  %4971 = vmatpush1.msra.mxu0 0.0
  %4972 = vmatprep.subr.mxu0 0.0
  %4973 = vmatpush1.msra.mxu0 0.0
  %4974 = vmatprep.subr.mxu0 0.0
  %4975 = vmatpush1.msra.mxu0 0.0
  %4976 = vmatprep.subr.mxu0 0.0
  %4977 = vmatpush1.msra.mxu0 0.0
  %4978 = vmatprep.subr.mxu0 0.0
  %4979 = vmatpush1.msra.mxu0 0.0
  %4980 = vmatprep.subr.mxu0 0.0
  %4981 = vmatpush1.msra.mxu0 0.0
  %4982 = vmatprep.subr.mxu0 0.0
  %4983 = vmatpush1.msra.mxu0 0.0
  %4984 = vmatprep.subr.mxu0 0.0
  %4985 = vmatpush1.msra.mxu0 0.0
  %4986 = vmatprep.subr.mxu0 0.0
  %4987 = vmatpush1.msra.mxu0 0.0
  %4988 = vmatprep.subr.mxu0 0.0
  %4989 = vmatpush1.msra.mxu0 0.0
  %4990 = vmatprep.subr.mxu0 0.0
  %4991 = vmatpush1.msra.mxu0 0.0
  %4992 = vmatprep.subr.mxu0 0.0
  %4993 = vmatpush1.msra.mxu0 0.0
  %4994 = vmatprep.subr.mxu0 0.0
  %4995 = vmatpush1.msra.mxu0 0.0
  %4996 = vmatprep.subr.mxu0 0.0
  %4997 = vmatpush1.msra.mxu0 0.0
  %4998 = vmatprep.subr.mxu0 0.0
  %4999 = vmatpush1.msra.mxu0 0.0
  %5000 = vmatprep.subr.mxu0 0.0
  %5001 = vmatpush1.msra.mxu0 0.0
  %5002 = vmatprep.subr.mxu0 0.0
  %5003 = vmatpush1.msra.mxu0 0.0
  %5004 = vmatprep.subr.mxu0 0.0
  %5005 = vmatpush1.msra.mxu0 0.0
  %5006 = vmatprep.subr.mxu0 0.0
  %5007 = vmatpush1.msra.mxu0 0.0
  %5008 = vmatprep.subr.mxu0 0.0
  %5009 = vmatpush1.msra.mxu0 0.0
  %5010 = vmatprep.subr.mxu0 0.0
  %5011 = vmatpush1.msra.mxu0 0.0
  %5012 = vmatprep.subr.mxu0 0.0
  %5013 = vmatpush1.msra.mxu0 0.0
  %5014 = vmatprep.subr.mxu0 0.0
  %5015 = vmatpush1.msra.mxu0 0.0
  %5016 = vmatprep.subr.mxu0 0.0
  %5017 = vmatpush1.msra.mxu0 0.0
  %5018 = vmatprep.subr.mxu0 0.0
  %5019 = vmatpush1.msra.mxu0 0.0
  %5020 = vmatprep.subr.mxu0 0.0
  %5021 = vmatpush1.msra.mxu0 0.0
  %5022 = vmatprep.subr.mxu0 0.0
  %5023 = vmatpush1.msra.mxu0 0.0
  %5024 = vmatprep.subr.mxu0 0.0
  %5025 = vmatpush1.msra.mxu0 0.0
  %5026 = vmatprep.mubr.f32.mxu0 0.0
  %5027 = vmatmul.mubr.f32.gmra.mrb[0].mxu0 %v676
  %v5028 = vpop.f32.mrb[0].mxu0
  %v5029 = vadd.f32 0.0, %v5028
  %v5030 = vpop.f32.mrb[0].mxu0
  %5031 = vmatprep.mubr.f32.mxu0 0.0
  %5032 = vmatmul.mubr.f32.gmra.mrb[0].mxu0 %v679
  %v5033 = vpop.f32.mrb[0].mxu0
  %v5034 = vadd.f32 0.0, %v5033
  %v5035 = vpop.f32.mrb[0].mxu0
  %5036 = vmatprep.mubr.f32.mxu0 0.0
  %5037 = vmatmul.mubr.f32.gmra.mrb[0].mxu0 %v682
  %v5038 = vpop.f32.mrb[0].mxu0
  %v5039 = vadd.f32 0.0, %v5038
  %v5040 = vpop.f32.mrb[0].mxu0
  %5041 = vmatprep.mubr.f32.mxu0 0.0
  %5042 = vmatmul.mubr.f32.gmra.mrb[0].mxu0 %v685
  %v5043 = vpop.f32.mrb[0].mxu0
  %v5044 = vadd.f32 0.0, %v5043
  %v5045 = vpop.f32.mrb[0].mxu0
  %5046 = vdwg.mxu0
  %v5047 = vadd.f32 %v4942, %v5029
  %v5048 = vadd.f32 %v4943, %v5034
  %v5049 = vadd.f32 %v4944, %v5039
  %v5050 = vadd.f32 %v4945, %v5044
  %v5051 = vtanh.pop %v5047
  %v5052 = vtanh.pop %v5048
  %v5053 = vtanh.pop %v5049
  %v5054 = vtanh.pop %v5050
  %v5055 = vsub.f32 %v5051, %v4405
  %v5056 = vsub.f32 %v5052, %v4406
  %v5057 = vsub.f32 %v5053, %v4407
  %v5058 = vsub.f32 %v5054, %v4408
  %v5059 = vmul.f32 %v4725, %v5055
  %v5060 = vmul.f32 %v4727, %v5056
  %v5061 = vmul.f32 %v4729, %v5057
  %v5062 = vmul.f32 %v4731, %v5058
  %v5063 = vadd.f32 %v4405, %v5059
  %v5064 = vadd.f32 %v4406, %v5060
  %v5065 = vadd.f32 %v4407, %v5061
  %v5066 = vadd.f32 %v4408, %v5062
  %5067 = vst.msk [vmem:[#allocation2 + $0xc0] sm:$0xff] %vm465, %v5063
  %5068 = vst.msk [vmem:[#allocation2 + $0xc8] sm:$0xff] %vm465, %v5064
  %5069 = vst.msk [vmem:[#allocation2 + $0xd0] sm:$0xff] %vm465, %v5065
  %5070 = vst.msk [vmem:[#allocation2 + $0xd8] sm:$0xff] %vm465, %v5066
  %v5072 = vsel %vm465, %v5063, 0
  %v5075 = vsel %vm465, %v5064, 0
  %v5078 = vsel %vm465, %v5065, 0
  %v5081 = vsel %vm465, %v5066, 0
  %5083 = vmatprep.subr.mxu0 0.0
  %5084 = vmatpush1.msra.mxu0 %v82
  %5085 = vmatprep.subr.mxu0 0.0
  %5086 = vmatpush1.msra.mxu0 %v83
  %5087 = vmatprep.subr.mxu0 0.0
  %5088 = vmatpush1.msra.mxu0 %v84
  %5089 = vmatprep.subr.mxu0 0.0
  %5090 = vmatpush1.msra.mxu0 %v85
  %5091 = vmatprep.subr.mxu0 0.0
  %5092 = vmatpush1.msra.mxu0 0.0
  %5093 = vmatprep.subr.mxu0 0.0
  %5094 = vmatpush1.msra.mxu0 0.0
  %5095 = vmatprep.subr.mxu0 0.0
  %5096 = vmatpush1.msra.mxu0 0.0
  %5097 = vmatprep.subr.mxu0 0.0
  %5098 = vmatpush1.msra.mxu0 0.0
  %5099 = vmatprep.subr.mxu0 0.0
  %5100 = vmatpush1.msra.mxu0 0.0
  %5101 = vmatprep.subr.mxu0 0.0
  %5102 = vmatpush1.msra.mxu0 0.0
  %5103 = vmatprep.subr.mxu0 0.0
  %5104 = vmatpush1.msra.mxu0 0.0
  %5105 = vmatprep.subr.mxu0 0.0
  %5106 = vmatpush1.msra.mxu0 0.0
  %5107 = vmatprep.subr.mxu0 0.0
  %5108 = vmatpush1.msra.mxu0 0.0
  %5109 = vmatprep.subr.mxu0 0.0
  %5110 = vmatpush1.msra.mxu0 0.0
  %5111 = vmatprep.subr.mxu0 0.0
  %5112 = vmatpush1.msra.mxu0 0.0
  %5113 = vmatprep.subr.mxu0 0.0
  %5114 = vmatpush1.msra.mxu0 0.0
  %5115 = vmatprep.subr.mxu0 0.0
  %5116 = vmatpush1.msra.mxu0 0.0
  %5117 = vmatprep.subr.mxu0 0.0
  %5118 = vmatpush1.msra.mxu0 0.0
  %5119 = vmatprep.subr.mxu0 0.0
  %5120 = vmatpush1.msra.mxu0 0.0
  %5121 = vmatprep.subr.mxu0 0.0
  %5122 = vmatpush1.msra.mxu0 0.0
  %5123 = vmatprep.subr.mxu0 0.0
  %5124 = vmatpush1.msra.mxu0 0.0
  %5125 = vmatprep.subr.mxu0 0.0
  %5126 = vmatpush1.msra.mxu0 0.0
  %5127 = vmatprep.subr.mxu0 0.0
  %5128 = vmatpush1.msra.mxu0 0.0
  %5129 = vmatprep.subr.mxu0 0.0
  %5130 = vmatpush1.msra.mxu0 0.0
  %5131 = vmatprep.subr.mxu0 0.0
  %5132 = vmatpush1.msra.mxu0 0.0
  %5133 = vmatprep.subr.mxu0 0.0
  %5134 = vmatpush1.msra.mxu0 0.0
  %5135 = vmatprep.subr.mxu0 0.0
  %5136 = vmatpush1.msra.mxu0 0.0
  %5137 = vmatprep.subr.mxu0 0.0
  %5138 = vmatpush1.msra.mxu0 0.0
  %5139 = vmatprep.subr.mxu0 0.0
  %5140 = vmatpush1.msra.mxu0 0.0
  %5141 = vmatprep.subr.mxu0 0.0
  %5142 = vmatpush1.msra.mxu0 0.0
  %5143 = vmatprep.subr.mxu0 0.0
  %5144 = vmatpush1.msra.mxu0 0.0
  %5145 = vmatprep.subr.mxu0 0.0
  %5146 = vmatpush1.msra.mxu0 0.0
  %5147 = vmatprep.mubr.f32.mxu0 0.0
  %5148 = vmatmul.mubr.f32.gmra.mrb[0].mxu0 %v5072
  %v5149 = vpop.f32.mrb[0].mxu0
  %v5150 = vadd.f32 0.0, %v5149
  %v5151 = vpop.f32.mrb[0].mxu0
  %5152 = vmatprep.mubr.f32.mxu0 0.0
  %5153 = vmatmul.mubr.f32.gmra.mrb[0].mxu0 %v5075
  %v5154 = vpop.f32.mrb[0].mxu0
  %v5155 = vadd.f32 0.0, %v5154
  %v5156 = vpop.f32.mrb[0].mxu0
  %5157 = vmatprep.mubr.f32.mxu0 0.0
  %5158 = vmatmul.mubr.f32.gmra.mrb[0].mxu0 %v5078
  %v5159 = vpop.f32.mrb[0].mxu0
  %v5160 = vadd.f32 0.0, %v5159
  %v5161 = vpop.f32.mrb[0].mxu0
  %5162 = vmatprep.mubr.f32.mxu0 0.0
  %5163 = vmatmul.mubr.f32.gmra.mrb[0].mxu0 %v5081
  %v5164 = vpop.f32.mrb[0].mxu0
  %v5165 = vadd.f32 0.0, %v5164
  %v5166 = vpop.f32.mrb[0].mxu0
  %5167 = vdwg.mxu0
  %v5168 = vadd.f32 %v443, %v5150
  %v5169 = vadd.f32 %v449, %v5155
  %v5170 = vadd.f32 %v455, %v5160
  %v5171 = vadd.f32 %v461, %v5165
  %5172 = vmatprep.subr.mxu0 0.0
  %5173 = vmatpush1.msra.mxu0 %v5168
  %5174 = vmatprep.subr.mxu0 0.0
  %5175 = vmatpush1.msra.mxu0 %v5169
  %5176 = vmatprep.subr.mxu0 0.0
  %5177 = vmatpush1.msra.mxu0 %v5170
  %5178 = vmatprep.subr.mxu0 0.0
  %5179 = vmatpush1.msra.mxu0 %v5171
  %5180 = vmatprep.subr.mxu0 0.0
  %5181 = vmatpush1.msra.mxu0 0.0
  %5182 = vmatprep.subr.mxu0 0.0
  %5183 = vmatpush1.msra.mxu0 0.0
  %5184 = vmatprep.subr.mxu0 0.0
  %5185 = vmatpush1.msra.mxu0 0.0
  %5186 = vmatprep.subr.mxu0 0.0
  %5187 = vmatpush1.msra.mxu0 0.0
  %5188 = vmatprep.subr.mxu0 0.0
  %5189 = vmatpush1.msra.mxu0 0.0
  %5190 = vmatprep.subr.mxu0 0.0
  %5191 = vmatpush1.msra.mxu0 0.0
  %5192 = vmatprep.subr.mxu0 0.0
  %5193 = vmatpush1.msra.mxu0 0.0
  %5194 = vmatprep.subr.mxu0 0.0
  %5195 = vmatpush1.msra.mxu0 0.0
  %5196 = vmatprep.subr.mxu0 0.0
  %5197 = vmatpush1.msra.mxu0 0.0
  %5198 = vmatprep.subr.mxu0 0.0
  %5199 = vmatpush1.msra.mxu0 0.0
  %5200 = vmatprep.subr.mxu0 0.0
  %5201 = vmatpush1.msra.mxu0 0.0
  %5202 = vmatprep.subr.mxu0 0.0
  %5203 = vmatpush1.msra.mxu0 0.0
  %5204 = vmatprep.subr.mxu0 0.0
  %5205 = vmatpush1.msra.mxu0 0.0
  %5206 = vmatprep.subr.mxu0 0.0
  %5207 = vmatpush1.msra.mxu0 0.0
  %5208 = vmatprep.subr.mxu0 0.0
  %5209 = vmatpush1.msra.mxu0 0.0
  %5210 = vmatprep.subr.mxu0 0.0
  %5211 = vmatpush1.msra.mxu0 0.0
  %5212 = vmatprep.subr.mxu0 0.0
  %5213 = vmatpush1.msra.mxu0 0.0
  %5214 = vmatprep.subr.mxu0 0.0
  %5215 = vmatpush1.msra.mxu0 0.0
  %5216 = vmatprep.subr.mxu0 0.0
  %5217 = vmatpush1.msra.mxu0 0.0
  %5218 = vmatprep.subr.mxu0 0.0
  %5219 = vmatpush1.msra.mxu0 0.0
  %5220 = vmatprep.subr.mxu0 0.0
  %5221 = vmatpush1.msra.mxu0 0.0
  %5222 = vmatprep.subr.mxu0 0.0
  %5223 = vmatpush1.msra.mxu0 0.0
  %5224 = vmatprep.subr.mxu0 0.0
  %5225 = vmatpush1.msra.mxu0 0.0
  %5226 = vmatprep.subr.mxu0 0.0
  %5227 = vmatpush1.msra.mxu0 0.0
  %5228 = vmatprep.subr.mxu0 0.0
  %5229 = vmatpush1.msra.mxu0 0.0
  %5230 = vmatprep.subr.mxu0 0.0
  %5231 = vmatpush1.msra.mxu0 0.0
  %5232 = vmatprep.subr.mxu0 0.0
  %5233 = vmatpush1.msra.mxu0 0.0
  %5234 = vmatprep.subr.mxu0 0.0
  %5235 = vmatpush1.msra.mxu0 0.0
  %5236 = vmatprep.mubr.f32.mxu0 0.0
  %5237 = vmatmul.mubr.f32.gmra.mrb[0].mxu0 %v559
  %v5238 = vpop.f32.mrb[0].mxu0
  %v5239 = vadd.f32 0.0, %v5238
  %v5240 = vpop.f32.mrb[0].mxu0
  %5241 = vmatprep.mubr.f32.mxu0 0.0
  %5242 = vmatmul.mubr.f32.gmra.mrb[0].mxu0 %v562
  %v5243 = vpop.f32.mrb[0].mxu0
  %v5244 = vadd.f32 0.0, %v5243
  %v5245 = vpop.f32.mrb[0].mxu0
  %5246 = vmatprep.mubr.f32.mxu0 0.0
  %5247 = vmatmul.mubr.f32.gmra.mrb[0].mxu0 %v565
  %v5248 = vpop.f32.mrb[0].mxu0
  %v5249 = vadd.f32 0.0, %v5248
  %v5250 = vpop.f32.mrb[0].mxu0
  %5251 = vmatprep.mubr.f32.mxu0 0.0
  %5252 = vmatmul.mubr.f32.gmra.mrb[0].mxu0 %v568
  %v5253 = vpop.f32.mrb[0].mxu0
  %v5254 = vadd.f32 0.0, %v5253
  %v5255 = vpop.f32.mrb[0].mxu0
  %5256 = vdwg.mxu0
  %v5257 = vadd.f32 %v95, %v5239
  %v5258 = vadd.f32 %v95, %v5244
  %v5259 = vadd.f32 %v95, %v5249
  %v5260 = vadd.f32 %v95, %v5254
  %5265 = vrot.lane.b32.xlu0 %v5168, 64
  %v5266 = vpop.permute.xlu0 %5265
  %5267 = vrot.lane.b32.xlu0 %v5169, 64
  %v5268 = vpop.permute.xlu0 %5267
  %5269 = vrot.lane.b32.xlu0 %v5170, 64
  %v5270 = vpop.permute.xlu0 %5269
  %5271 = vrot.lane.b32.xlu0 %v5171, 64
  %v5272 = vpop.permute.xlu0 %5271
  %5277 = vmatprep.subr.mxu0 0.0
  %5278 = vmatpush1.msra.mxu0 %v5266
  %5279 = vmatprep.subr.mxu0 0.0
  %5280 = vmatpush1.msra.mxu0 %v5268
  %5281 = vmatprep.subr.mxu0 0.0
  %5282 = vmatpush1.msra.mxu0 %v5270
  %5283 = vmatprep.subr.mxu0 0.0
  %5284 = vmatpush1.msra.mxu0 %v5272
  %5285 = vmatprep.subr.mxu0 0.0
  %5286 = vmatpush1.msra.mxu0 0.0
  %5287 = vmatprep.subr.mxu0 0.0
  %5288 = vmatpush1.msra.mxu0 0.0
  %5289 = vmatprep.subr.mxu0 0.0
  %5290 = vmatpush1.msra.mxu0 0.0
  %5291 = vmatprep.subr.mxu0 0.0
  %5292 = vmatpush1.msra.mxu0 0.0
  %5293 = vmatprep.subr.mxu0 0.0
  %5294 = vmatpush1.msra.mxu0 0.0
  %5295 = vmatprep.subr.mxu0 0.0
  %5296 = vmatpush1.msra.mxu0 0.0
  %5297 = vmatprep.subr.mxu0 0.0
  %5298 = vmatpush1.msra.mxu0 0.0
  %5299 = vmatprep.subr.mxu0 0.0
  %5300 = vmatpush1.msra.mxu0 0.0
  %5301 = vmatprep.subr.mxu0 0.0
  %5302 = vmatpush1.msra.mxu0 0.0
  %5303 = vmatprep.subr.mxu0 0.0
  %5304 = vmatpush1.msra.mxu0 0.0
  %5305 = vmatprep.subr.mxu0 0.0
  %5306 = vmatpush1.msra.mxu0 0.0
  %5307 = vmatprep.subr.mxu0 0.0
  %5308 = vmatpush1.msra.mxu0 0.0
  %5309 = vmatprep.subr.mxu0 0.0
  %5310 = vmatpush1.msra.mxu0 0.0
  %5311 = vmatprep.subr.mxu0 0.0
  %5312 = vmatpush1.msra.mxu0 0.0
  %5313 = vmatprep.subr.mxu0 0.0
  %5314 = vmatpush1.msra.mxu0 0.0
  %5315 = vmatprep.subr.mxu0 0.0
  %5316 = vmatpush1.msra.mxu0 0.0
  %5317 = vmatprep.subr.mxu0 0.0
  %5318 = vmatpush1.msra.mxu0 0.0
  %5319 = vmatprep.subr.mxu0 0.0
  %5320 = vmatpush1.msra.mxu0 0.0
  %5321 = vmatprep.subr.mxu0 0.0
  %5322 = vmatpush1.msra.mxu0 0.0
  %5323 = vmatprep.subr.mxu0 0.0
  %5324 = vmatpush1.msra.mxu0 0.0
  %5325 = vmatprep.subr.mxu0 0.0
  %5326 = vmatpush1.msra.mxu0 0.0
  %5327 = vmatprep.subr.mxu0 0.0
  %5328 = vmatpush1.msra.mxu0 0.0
  %5329 = vmatprep.subr.mxu0 0.0
  %5330 = vmatpush1.msra.mxu0 0.0
  %5331 = vmatprep.subr.mxu0 0.0
  %5332 = vmatpush1.msra.mxu0 0.0
  %5333 = vmatprep.subr.mxu0 0.0
  %5334 = vmatpush1.msra.mxu0 0.0
  %5335 = vmatprep.subr.mxu0 0.0
  %5336 = vmatpush1.msra.mxu0 0.0
  %5337 = vmatprep.subr.mxu0 0.0
  %5338 = vmatpush1.msra.mxu0 0.0
  %5339 = vmatprep.subr.mxu0 0.0
  %5340 = vmatpush1.msra.mxu0 0.0
  %5341 = vmatprep.mubr.f32.mxu0 0.0
  %5342 = vmatmul.mubr.f32.gmra.mrb[0].mxu0 %v676
  %v5343 = vpop.f32.mrb[0].mxu0
  %v5344 = vadd.f32 0.0, %v5343
  %v5345 = vpop.f32.mrb[0].mxu0
  %5346 = vmatprep.mubr.f32.mxu0 0.0
  %5347 = vmatmul.mubr.f32.gmra.mrb[0].mxu0 %v679
  %v5348 = vpop.f32.mrb[0].mxu0
  %v5349 = vadd.f32 0.0, %v5348
  %v5350 = vpop.f32.mrb[0].mxu0
  %5351 = vmatprep.mubr.f32.mxu0 0.0
  %5352 = vmatmul.mubr.f32.gmra.mrb[0].mxu0 %v682
  %v5353 = vpop.f32.mrb[0].mxu0
  %v5354 = vadd.f32 0.0, %v5353
  %v5355 = vpop.f32.mrb[0].mxu0
  %5356 = vmatprep.mubr.f32.mxu0 0.0
  %5357 = vmatmul.mubr.f32.gmra.mrb[0].mxu0 %v685
  %v5358 = vpop.f32.mrb[0].mxu0
  %v5359 = vadd.f32 0.0, %v5358
  %v5360 = vpop.f32.mrb[0].mxu0
  %5361 = vdwg.mxu0
  %v5362 = vadd.f32 %v5257, %v5344
  %v5363 = vadd.f32 %v5258, %v5349
  %v5364 = vadd.f32 %v5259, %v5354
  %v5365 = vadd.f32 %v5260, %v5359
  %v5366 = vxor.u32 %v5362, 2147483648
  %v5367 = vxor.u32 %v5363, 2147483648
  %v5368 = vxor.u32 %v5364, 2147483648
  %v5369 = vxor.u32 %v5365, 2147483648
  %v5370 = vmul.f32 %v5366, 1.442695
  %v5371 = vpow.pop %v5370
  %v5372 = vmul.f32 %v5367, 1.442695
  %v5373 = vpow.pop %v5372
  %v5374 = vmul.f32 %v5368, 1.442695
  %v5375 = vpow.pop %v5374
  %v5376 = vmul.f32 %v5369, 1.442695
  %v5377 = vpow.pop %v5376
  %v5378 = vadd.f32 %v5371, 1.0
  %v5379 = vadd.f32 %v5373, 1.0
  %v5380 = vadd.f32 %v5375, 1.0
  %v5381 = vadd.f32 %v5377, 1.0
  %v5382 = vrcp.pop %v5378
  %v5383 = vmul.f32 1.0, %v5382
  %v5384 = vrcp.pop %v5379
  %v5385 = vmul.f32 1.0, %v5384
  %v5386 = vrcp.pop %v5380
  %v5387 = vmul.f32 1.0, %v5386
  %v5388 = vrcp.pop %v5381
  %v5389 = vmul.f32 1.0, %v5388
  %5390 = vrot.lane.b32.xlu0 %v5063, 32
  %v5391 = vpop.permute.xlu0 %5390
  %5392 = vrot.lane.b32.xlu0 %v5064, 32
  %v5393 = vpop.permute.xlu0 %5392
  %5394 = vrot.lane.b32.xlu0 %v5065, 32
  %v5395 = vpop.permute.xlu0 %5394
  %5396 = vrot.lane.b32.xlu0 %v5066, 32
  %v5397 = vpop.permute.xlu0 %5396
  %v5402 = vmul.f32 %v5383, %v5391
  %v5403 = vmul.f32 %v5385, %v5393
  %v5404 = vmul.f32 %v5387, %v5395
  %v5405 = vmul.f32 %v5389, %v5397
  %5410 = vrot.lane.b32.xlu0 %v5402, 96
  %v5411 = vpop.permute.xlu0 %5410
  %5412 = vrot.lane.b32.xlu0 %v5403, 96
  %v5413 = vpop.permute.xlu0 %5412
  %5414 = vrot.lane.b32.xlu0 %v5404, 96
  %v5415 = vpop.permute.xlu0 %5414
  %5416 = vrot.lane.b32.xlu0 %v5405, 96
  %v5417 = vpop.permute.xlu0 %5416
  %v5418 = vsel %vm465, %v5411, 0
  %v5420 = vsel %vm465, %v5413, 0
  %v5422 = vsel %vm465, %v5415, 0
  %v5424 = vsel %vm465, %v5417, 0
  %5426 = vmatprep.subr.mxu0 0.0
  %5427 = vmatpush1.msra.mxu0 %v86
  %5428 = vmatprep.subr.mxu0 0.0
  %5429 = vmatpush1.msra.mxu0 %v87
  %5430 = vmatprep.subr.mxu0 0.0
  %5431 = vmatpush1.msra.mxu0 %v88
  %5432 = vmatprep.subr.mxu0 0.0
  %5433 = vmatpush1.msra.mxu0 %v89
  %5434 = vmatprep.subr.mxu0 0.0
  %5435 = vmatpush1.msra.mxu0 0.0
  %5436 = vmatprep.subr.mxu0 0.0
  %5437 = vmatpush1.msra.mxu0 0.0
  %5438 = vmatprep.subr.mxu0 0.0
  %5439 = vmatpush1.msra.mxu0 0.0
  %5440 = vmatprep.subr.mxu0 0.0
  %5441 = vmatpush1.msra.mxu0 0.0
  %5442 = vmatprep.subr.mxu0 0.0
  %5443 = vmatpush1.msra.mxu0 0.0
  %5444 = vmatprep.subr.mxu0 0.0
  %5445 = vmatpush1.msra.mxu0 0.0
  %5446 = vmatprep.subr.mxu0 0.0
  %5447 = vmatpush1.msra.mxu0 0.0
  %5448 = vmatprep.subr.mxu0 0.0
  %5449 = vmatpush1.msra.mxu0 0.0
  %5450 = vmatprep.subr.mxu0 0.0
  %5451 = vmatpush1.msra.mxu0 0.0
  %5452 = vmatprep.subr.mxu0 0.0
  %5453 = vmatpush1.msra.mxu0 0.0
  %5454 = vmatprep.subr.mxu0 0.0
  %5455 = vmatpush1.msra.mxu0 0.0
  %5456 = vmatprep.subr.mxu0 0.0
  %5457 = vmatpush1.msra.mxu0 0.0
  %5458 = vmatprep.subr.mxu0 0.0
  %5459 = vmatpush1.msra.mxu0 0.0
  %5460 = vmatprep.subr.mxu0 0.0
  %5461 = vmatpush1.msra.mxu0 0.0
  %5462 = vmatprep.subr.mxu0 0.0
  %5463 = vmatpush1.msra.mxu0 0.0
  %5464 = vmatprep.subr.mxu0 0.0
  %5465 = vmatpush1.msra.mxu0 0.0
  %5466 = vmatprep.subr.mxu0 0.0
  %5467 = vmatpush1.msra.mxu0 0.0
  %5468 = vmatprep.subr.mxu0 0.0
  %5469 = vmatpush1.msra.mxu0 0.0
  %5470 = vmatprep.subr.mxu0 0.0
  %5471 = vmatpush1.msra.mxu0 0.0
  %5472 = vmatprep.subr.mxu0 0.0
  %5473 = vmatpush1.msra.mxu0 0.0
  %5474 = vmatprep.subr.mxu0 0.0
  %5475 = vmatpush1.msra.mxu0 0.0
  %5476 = vmatprep.subr.mxu0 0.0
  %5477 = vmatpush1.msra.mxu0 0.0
  %5478 = vmatprep.subr.mxu0 0.0
  %5479 = vmatpush1.msra.mxu0 0.0
  %5480 = vmatprep.subr.mxu0 0.0
  %5481 = vmatpush1.msra.mxu0 0.0
  %5482 = vmatprep.subr.mxu0 0.0
  %5483 = vmatpush1.msra.mxu0 0.0
  %5484 = vmatprep.subr.mxu0 0.0
  %5485 = vmatpush1.msra.mxu0 0.0
  %5486 = vmatprep.subr.mxu0 0.0
  %5487 = vmatpush1.msra.mxu0 0.0
  %5488 = vmatprep.subr.mxu0 0.0
  %5489 = vmatpush1.msra.mxu0 0.0
  %5490 = vmatprep.mubr.f32.mxu0 0.0
  %5491 = vmatmul.mubr.f32.gmra.mrb[0].mxu0 %v5418
  %v5492 = vpop.f32.mrb[0].mxu0
  %v5493 = vadd.f32 0.0, %v5492
  %v5494 = vpop.f32.mrb[0].mxu0
  %5495 = vmatprep.mubr.f32.mxu0 0.0
  %5496 = vmatmul.mubr.f32.gmra.mrb[0].mxu0 %v5420
  %v5497 = vpop.f32.mrb[0].mxu0
  %v5498 = vadd.f32 0.0, %v5497
  %v5499 = vpop.f32.mrb[0].mxu0
  %5500 = vmatprep.mubr.f32.mxu0 0.0
  %5501 = vmatmul.mubr.f32.gmra.mrb[0].mxu0 %v5422
  %v5502 = vpop.f32.mrb[0].mxu0
  %v5503 = vadd.f32 0.0, %v5502
  %v5504 = vpop.f32.mrb[0].mxu0
  %5505 = vmatprep.mubr.f32.mxu0 0.0
  %5506 = vmatmul.mubr.f32.gmra.mrb[0].mxu0 %v5424
  %v5507 = vpop.f32.mrb[0].mxu0
  %v5508 = vadd.f32 0.0, %v5507
  %v5509 = vpop.f32.mrb[0].mxu0
  %5510 = vdwg.mxu0
  %v5511 = vadd.f32 %v445, %v5493
  %v5512 = vadd.f32 %v451, %v5498
  %v5513 = vadd.f32 %v457, %v5503
  %v5514 = vadd.f32 %v463, %v5508
  %5515 = vmatprep.subr.mxu0 0.0
  %5516 = vmatpush1.msra.mxu0 %v5511
  %5517 = vmatprep.subr.mxu0 0.0
  %5518 = vmatpush1.msra.mxu0 %v5512
  %5519 = vmatprep.subr.mxu0 0.0
  %5520 = vmatpush1.msra.mxu0 %v5513
  %5521 = vmatprep.subr.mxu0 0.0
  %5522 = vmatpush1.msra.mxu0 %v5514
  %5523 = vmatprep.subr.mxu0 0.0
  %5524 = vmatpush1.msra.mxu0 0.0
  %5525 = vmatprep.subr.mxu0 0.0
  %5526 = vmatpush1.msra.mxu0 0.0
  %5527 = vmatprep.subr.mxu0 0.0
  %5528 = vmatpush1.msra.mxu0 0.0
  %5529 = vmatprep.subr.mxu0 0.0
  %5530 = vmatpush1.msra.mxu0 0.0
  %5531 = vmatprep.subr.mxu0 0.0
  %5532 = vmatpush1.msra.mxu0 0.0
  %5533 = vmatprep.subr.mxu0 0.0
  %5534 = vmatpush1.msra.mxu0 0.0
  %5535 = vmatprep.subr.mxu0 0.0
  %5536 = vmatpush1.msra.mxu0 0.0
  %5537 = vmatprep.subr.mxu0 0.0
  %5538 = vmatpush1.msra.mxu0 0.0
  %5539 = vmatprep.subr.mxu0 0.0
  %5540 = vmatpush1.msra.mxu0 0.0
  %5541 = vmatprep.subr.mxu0 0.0
  %5542 = vmatpush1.msra.mxu0 0.0
  %5543 = vmatprep.subr.mxu0 0.0
  %5544 = vmatpush1.msra.mxu0 0.0
  %5545 = vmatprep.subr.mxu0 0.0
  %5546 = vmatpush1.msra.mxu0 0.0
  %5547 = vmatprep.subr.mxu0 0.0
  %5548 = vmatpush1.msra.mxu0 0.0
  %5549 = vmatprep.subr.mxu0 0.0
  %5550 = vmatpush1.msra.mxu0 0.0
  %5551 = vmatprep.subr.mxu0 0.0
  %5552 = vmatpush1.msra.mxu0 0.0
  %5553 = vmatprep.subr.mxu0 0.0
  %5554 = vmatpush1.msra.mxu0 0.0
  %5555 = vmatprep.subr.mxu0 0.0
  %5556 = vmatpush1.msra.mxu0 0.0
  %5557 = vmatprep.subr.mxu0 0.0
  %5558 = vmatpush1.msra.mxu0 0.0
  %5559 = vmatprep.subr.mxu0 0.0
  %5560 = vmatpush1.msra.mxu0 0.0
  %5561 = vmatprep.subr.mxu0 0.0
  %5562 = vmatpush1.msra.mxu0 0.0
  %5563 = vmatprep.subr.mxu0 0.0
  %5564 = vmatpush1.msra.mxu0 0.0
  %5565 = vmatprep.subr.mxu0 0.0
  %5566 = vmatpush1.msra.mxu0 0.0
  %5567 = vmatprep.subr.mxu0 0.0
  %5568 = vmatpush1.msra.mxu0 0.0
  %5569 = vmatprep.subr.mxu0 0.0
  %5570 = vmatpush1.msra.mxu0 0.0
  %5571 = vmatprep.subr.mxu0 0.0
  %5572 = vmatpush1.msra.mxu0 0.0
  %5573 = vmatprep.subr.mxu0 0.0
  %5574 = vmatpush1.msra.mxu0 0.0
  %5575 = vmatprep.subr.mxu0 0.0
  %5576 = vmatpush1.msra.mxu0 0.0
  %5577 = vmatprep.subr.mxu0 0.0
  %5578 = vmatpush1.msra.mxu0 0.0
  %5579 = vmatprep.mubr.f32.mxu0 0.0
  %5580 = vmatmul.mubr.f32.gmra.mrb[0].mxu0 %v559
  %v5581 = vpop.f32.mrb[0].mxu0
  %v5582 = vadd.f32 0.0, %v5581
  %v5583 = vpop.f32.mrb[0].mxu0
  %5584 = vmatprep.mubr.f32.mxu0 0.0
  %5585 = vmatmul.mubr.f32.gmra.mrb[0].mxu0 %v562
  %v5586 = vpop.f32.mrb[0].mxu0
  %v5587 = vadd.f32 0.0, %v5586
  %v5588 = vpop.f32.mrb[0].mxu0
  %5589 = vmatprep.mubr.f32.mxu0 0.0
  %5590 = vmatmul.mubr.f32.gmra.mrb[0].mxu0 %v565
  %v5591 = vpop.f32.mrb[0].mxu0
  %v5592 = vadd.f32 0.0, %v5591
  %v5593 = vpop.f32.mrb[0].mxu0
  %5594 = vmatprep.mubr.f32.mxu0 0.0
  %5595 = vmatmul.mubr.f32.gmra.mrb[0].mxu0 %v568
  %v5596 = vpop.f32.mrb[0].mxu0
  %v5597 = vadd.f32 0.0, %v5596
  %v5598 = vpop.f32.mrb[0].mxu0
  %5599 = vdwg.mxu0
  %v5600 = vadd.f32 %v102, %v5582
  %v5601 = vadd.f32 %v102, %v5587
  %v5602 = vadd.f32 %v102, %v5592
  %v5603 = vadd.f32 %v102, %v5597
  %5608 = vrot.lane.b32.xlu0 %v5511, 96
  %v5609 = vpop.permute.xlu0 %5608
  %5610 = vrot.lane.b32.xlu0 %v5512, 96
  %v5611 = vpop.permute.xlu0 %5610
  %5612 = vrot.lane.b32.xlu0 %v5513, 96
  %v5613 = vpop.permute.xlu0 %5612
  %5614 = vrot.lane.b32.xlu0 %v5514, 96
  %v5615 = vpop.permute.xlu0 %5614
  %5620 = vmatprep.subr.mxu0 0.0
  %5621 = vmatpush1.msra.mxu0 %v5609
  %5622 = vmatprep.subr.mxu0 0.0
  %5623 = vmatpush1.msra.mxu0 %v5611
  %5624 = vmatprep.subr.mxu0 0.0
  %5625 = vmatpush1.msra.mxu0 %v5613
  %5626 = vmatprep.subr.mxu0 0.0
  %5627 = vmatpush1.msra.mxu0 %v5615
  %5628 = vmatprep.subr.mxu0 0.0
  %5629 = vmatpush1.msra.mxu0 0.0
  %5630 = vmatprep.subr.mxu0 0.0
  %5631 = vmatpush1.msra.mxu0 0.0
  %5632 = vmatprep.subr.mxu0 0.0
  %5633 = vmatpush1.msra.mxu0 0.0
  %5634 = vmatprep.subr.mxu0 0.0
  %5635 = vmatpush1.msra.mxu0 0.0
  %5636 = vmatprep.subr.mxu0 0.0
  %5637 = vmatpush1.msra.mxu0 0.0
  %5638 = vmatprep.subr.mxu0 0.0
  %5639 = vmatpush1.msra.mxu0 0.0
  %5640 = vmatprep.subr.mxu0 0.0
  %5641 = vmatpush1.msra.mxu0 0.0
  %5642 = vmatprep.subr.mxu0 0.0
  %5643 = vmatpush1.msra.mxu0 0.0
  %5644 = vmatprep.subr.mxu0 0.0
  %5645 = vmatpush1.msra.mxu0 0.0
  %5646 = vmatprep.subr.mxu0 0.0
  %5647 = vmatpush1.msra.mxu0 0.0
  %5648 = vmatprep.subr.mxu0 0.0
  %5649 = vmatpush1.msra.mxu0 0.0
  %5650 = vmatprep.subr.mxu0 0.0
  %5651 = vmatpush1.msra.mxu0 0.0
  %5652 = vmatprep.subr.mxu0 0.0
  %5653 = vmatpush1.msra.mxu0 0.0
  %5654 = vmatprep.subr.mxu0 0.0
  %5655 = vmatpush1.msra.mxu0 0.0
  %5656 = vmatprep.subr.mxu0 0.0
  %5657 = vmatpush1.msra.mxu0 0.0
  %5658 = vmatprep.subr.mxu0 0.0
  %5659 = vmatpush1.msra.mxu0 0.0
  %5660 = vmatprep.subr.mxu0 0.0
  %5661 = vmatpush1.msra.mxu0 0.0
  %5662 = vmatprep.subr.mxu0 0.0
  %5663 = vmatpush1.msra.mxu0 0.0
  %5664 = vmatprep.subr.mxu0 0.0
  %5665 = vmatpush1.msra.mxu0 0.0
  %5666 = vmatprep.subr.mxu0 0.0
  %5667 = vmatpush1.msra.mxu0 0.0
  %5668 = vmatprep.subr.mxu0 0.0
  %5669 = vmatpush1.msra.mxu0 0.0
  %5670 = vmatprep.subr.mxu0 0.0
  %5671 = vmatpush1.msra.mxu0 0.0
  %5672 = vmatprep.subr.mxu0 0.0
  %5673 = vmatpush1.msra.mxu0 0.0
  %5674 = vmatprep.subr.mxu0 0.0
  %5675 = vmatpush1.msra.mxu0 0.0
  %5676 = vmatprep.subr.mxu0 0.0
  %5677 = vmatpush1.msra.mxu0 0.0
  %5678 = vmatprep.subr.mxu0 0.0
  %5679 = vmatpush1.msra.mxu0 0.0
  %5680 = vmatprep.subr.mxu0 0.0
  %5681 = vmatpush1.msra.mxu0 0.0
  %5682 = vmatprep.subr.mxu0 0.0
  %5683 = vmatpush1.msra.mxu0 0.0
  %5684 = vmatprep.mubr.f32.mxu0 0.0
  %5685 = vmatmul.mubr.f32.gmra.mrb[0].mxu0 %v676
  %v5686 = vpop.f32.mrb[0].mxu0
  %v5687 = vadd.f32 0.0, %v5686
  %v5688 = vpop.f32.mrb[0].mxu0
  %5689 = vmatprep.mubr.f32.mxu0 0.0
  %5690 = vmatmul.mubr.f32.gmra.mrb[0].mxu0 %v679
  %v5691 = vpop.f32.mrb[0].mxu0
  %v5692 = vadd.f32 0.0, %v5691
  %v5693 = vpop.f32.mrb[0].mxu0
  %5694 = vmatprep.mubr.f32.mxu0 0.0
  %5695 = vmatmul.mubr.f32.gmra.mrb[0].mxu0 %v682
  %v5696 = vpop.f32.mrb[0].mxu0
  %v5697 = vadd.f32 0.0, %v5696
  %v5698 = vpop.f32.mrb[0].mxu0
  %5699 = vmatprep.mubr.f32.mxu0 0.0
  %5700 = vmatmul.mubr.f32.gmra.mrb[0].mxu0 %v685
  %v5701 = vpop.f32.mrb[0].mxu0
  %v5702 = vadd.f32 0.0, %v5701
  %v5703 = vpop.f32.mrb[0].mxu0
  %5704 = vdwg.mxu0
  %v5705 = vadd.f32 %v5600, %v5687
  %v5706 = vadd.f32 %v5601, %v5692
  %v5707 = vadd.f32 %v5602, %v5697
  %v5708 = vadd.f32 %v5603, %v5702
  %v5709 = vtanh.pop %v5705
  %v5710 = vtanh.pop %v5706
  %v5711 = vtanh.pop %v5707
  %v5712 = vtanh.pop %v5708
  %v5713 = vsub.f32 %v5709, %v5063
  %v5714 = vsub.f32 %v5710, %v5064
  %v5715 = vsub.f32 %v5711, %v5065
  %v5716 = vsub.f32 %v5712, %v5066
  %v5717 = vmul.f32 %v5383, %v5713
  %v5718 = vmul.f32 %v5385, %v5714
  %v5719 = vmul.f32 %v5387, %v5715
  %v5720 = vmul.f32 %v5389, %v5716
  %v5721 = vadd.f32 %v5063, %v5717
  %v5722 = vadd.f32 %v5064, %v5718
  %v5723 = vadd.f32 %v5065, %v5719
  %v5724 = vadd.f32 %v5066, %v5720
  %5725 = vst.msk [vmem:[#allocation2 + $0xe0] sm:$0xff] %vm465, %v5721
  %5726 = vst.msk [vmem:[#allocation2 + $0xe8] sm:$0xff] %vm465, %v5722
  %5727 = vst.msk [vmem:[#allocation2 + $0xf0] sm:$0xff] %vm465, %v5723
  %5728 = vst.msk [vmem:[#allocation2 + $0xf8] sm:$0xff] %vm465, %v5724
  %v5729 = vld [vmem:[#allocation2] sm:$0xff]
  %v5730 = vld [vmem:[#allocation2 + $0x8] sm:$0xff]
  %v5731 = vld [vmem:[#allocation2 + $0x10] sm:$0xff]
  %v5732 = vld [vmem:[#allocation2 + $0x18] sm:$0xff]
  %v5733 = vld [vmem:[#allocation2 + $0x20] sm:$0xff]
  %v5734 = vld [vmem:[#allocation2 + $0x28] sm:$0xff]
  %v5735 = vld [vmem:[#allocation2 + $0x30] sm:$0xff]
  %v5736 = vld [vmem:[#allocation2 + $0x38] sm:$0xff]
  %v5737 = vld [vmem:[#allocation2 + $0x40] sm:$0xff]
  %v5738 = vld [vmem:[#allocation2 + $0x48] sm:$0xff]
  %v5739 = vld [vmem:[#allocation2 + $0x50] sm:$0xff]
  %v5740 = vld [vmem:[#allocation2 + $0x58] sm:$0xff]
  %v5741 = vld [vmem:[#allocation2 + $0x60] sm:$0xff]
  %v5742 = vld [vmem:[#allocation2 + $0x68] sm:$0xff]
  %v5743 = vld [vmem:[#allocation2 + $0x70] sm:$0xff]
  %v5744 = vld [vmem:[#allocation2 + $0x78] sm:$0xff]
  %v5745 = vld [vmem:[#allocation2 + $0x80] sm:$0xff]
  %v5746 = vld [vmem:[#allocation2 + $0x88] sm:$0xff]
  %v5747 = vld [vmem:[#allocation2 + $0x90] sm:$0xff]
  %v5748 = vld [vmem:[#allocation2 + $0x98] sm:$0xff]
  %v5749 = vld [vmem:[#allocation2 + $0xa0] sm:$0xff]
  %v5750 = vld [vmem:[#allocation2 + $0xa8] sm:$0xff]
  %v5751 = vld [vmem:[#allocation2 + $0xb0] sm:$0xff]
  %v5752 = vld [vmem:[#allocation2 + $0xb8] sm:$0xff]
  %v5753 = vld [vmem:[#allocation2 + $0xc0] sm:$0xff]
  %v5754 = vld [vmem:[#allocation2 + $0xc8] sm:$0xff]
  %v5755 = vld [vmem:[#allocation2 + $0xd0] sm:$0xff]
  %v5756 = vld [vmem:[#allocation2 + $0xd8] sm:$0xff]
  %v5757 = vld [vmem:[#allocation2 + $0xe0] sm:$0xff]
  %v5758 = vld [vmem:[#allocation2 + $0xe8] sm:$0xff]
  %v5759 = vld [vmem:[#allocation2 + $0xf0] sm:$0xff]
  %v5760 = vld [vmem:[#allocation2 + $0xf8] sm:$0xff]
  %v5761 = vld [vmem:[%s7] sm:$0xff]
  %v5762 = vld [vmem:[%s7 + $0x8] sm:$0xff]
  %v5763 = vld [vmem:[%s7 + $0x10] sm:$0xff]
  %v5764 = vld [vmem:[%s7 + $0x18] sm:$0xff]
  %v5765 = vld [vmem:[%s7 + $0x20] sm:$0xff]
  %v5766 = vld [vmem:[%s7 + $0x28] sm:$0xff]
  %v5767 = vld [vmem:[%s7 + $0x30] sm:$0xff]
  %v5768 = vld [vmem:[%s7 + $0x38] sm:$0xff]
  %v5769 = vld [vmem:[%s8] sm:$0xff]
  %v5770 = vld [vmem:[%s8 + $0x8] sm:$0xff]
  %v5771 = vld [vmem:[%s8 + $0x10] sm:$0xff]
  %v5772 = vld [vmem:[%s8 + $0x18] sm:$0xff]
  %v5773 = vld [vmem:[%s9] sm:$0xff]
  %v5774 = vld [vmem:[%s9 + $0x8] sm:$0xff]
  %v5775 = vld [vmem:[%s9 + $0x10] sm:$0xff]
  %v5776 = vld [vmem:[%s9 + $0x18] sm:$0xff]
  %v5777 = vld [vmem:[%s10] sm:$0x1]
  %v5779 = vlaneseq
  %v5780 = vshrl.u32 %v5779, 7
  %v5781 = vsub.s32 0, %v5780
  %v5782 = vrot.slane %v5777, %v5781
  %v5784 = vld [vmem:[%s11] sm:$0x1]
  %v5786 = vlaneseq
  %v5787 = vshrl.u32 %v5786, 7
  %v5788 = vsub.s32 0, %v5787
  %v5789 = vrot.slane %v5784, %v5788
  %v5792 = vsel %vm465, %v5729, 0
  %v5795 = vsel %vm465, %v5730, 0
  %v5798 = vsel %vm465, %v5731, 0
  %v5801 = vsel %vm465, %v5732, 0
  %v5804 = vsel %vm465, %v5733, 0
  %v5807 = vsel %vm465, %v5734, 0
  %v5810 = vsel %vm465, %v5735, 0
  %v5813 = vsel %vm465, %v5736, 0
  %v5816 = vsel %vm465, %v5737, 0
  %v5819 = vsel %vm465, %v5738, 0
  %v5822 = vsel %vm465, %v5739, 0
  %v5825 = vsel %vm465, %v5740, 0
  %v5828 = vsel %vm465, %v5741, 0
  %v5831 = vsel %vm465, %v5742, 0
  %v5834 = vsel %vm465, %v5743, 0
  %v5837 = vsel %vm465, %v5744, 0
  %v5840 = vsel %vm465, %v5745, 0
  %v5843 = vsel %vm465, %v5746, 0
  %v5846 = vsel %vm465, %v5747, 0
  %v5849 = vsel %vm465, %v5748, 0
  %v5852 = vsel %vm465, %v5749, 0
  %v5855 = vsel %vm465, %v5750, 0
  %v5858 = vsel %vm465, %v5751, 0
  %v5861 = vsel %vm465, %v5752, 0
  %v5864 = vsel %vm465, %v5753, 0
  %v5867 = vsel %vm465, %v5754, 0
  %v5870 = vsel %vm465, %v5755, 0
  %v5873 = vsel %vm465, %v5756, 0
  %v5876 = vsel %vm465, %v5757, 0
  %v5879 = vsel %vm465, %v5758, 0
  %v5882 = vsel %vm465, %v5759, 0
  %v5885 = vsel %vm465, %v5760, 0
  %5887 = vmatprep.subr.mxu0 %v5762
  %5888 = vmatpush1.msra.mxu0 %v5761
  %5889 = vmatprep.subr.mxu0 %v5764
  %5890 = vmatpush1.msra.mxu0 %v5763
  %5891 = vmatprep.subr.mxu0 %v5766
  %5892 = vmatpush1.msra.mxu0 %v5765
  %5893 = vmatprep.subr.mxu0 %v5768
  %5894 = vmatpush1.msra.mxu0 %v5767
  %5895 = vmatprep.subr.mxu0 0.0
  %5896 = vmatpush1.msra.mxu0 0.0
  %5897 = vmatprep.subr.mxu0 0.0
  %5898 = vmatpush1.msra.mxu0 0.0
  %5899 = vmatprep.subr.mxu0 0.0
  %5900 = vmatpush1.msra.mxu0 0.0
  %5901 = vmatprep.subr.mxu0 0.0
  %5902 = vmatpush1.msra.mxu0 0.0
  %5903 = vmatprep.subr.mxu0 0.0
  %5904 = vmatpush1.msra.mxu0 0.0
  %5905 = vmatprep.subr.mxu0 0.0
  %5906 = vmatpush1.msra.mxu0 0.0
  %5907 = vmatprep.subr.mxu0 0.0
  %5908 = vmatpush1.msra.mxu0 0.0
  %5909 = vmatprep.subr.mxu0 0.0
  %5910 = vmatpush1.msra.mxu0 0.0
  %5911 = vmatprep.subr.mxu0 0.0
  %5912 = vmatpush1.msra.mxu0 0.0
  %5913 = vmatprep.subr.mxu0 0.0
  %5914 = vmatpush1.msra.mxu0 0.0
  %5915 = vmatprep.subr.mxu0 0.0
  %5916 = vmatpush1.msra.mxu0 0.0
  %5917 = vmatprep.subr.mxu0 0.0
  %5918 = vmatpush1.msra.mxu0 0.0
  %5919 = vmatprep.subr.mxu0 0.0
  %5920 = vmatpush1.msra.mxu0 0.0
  %5921 = vmatprep.subr.mxu0 0.0
  %5922 = vmatpush1.msra.mxu0 0.0
  %5923 = vmatprep.subr.mxu0 0.0
  %5924 = vmatpush1.msra.mxu0 0.0
  %5925 = vmatprep.subr.mxu0 0.0
  %5926 = vmatpush1.msra.mxu0 0.0
  %5927 = vmatprep.subr.mxu0 0.0
  %5928 = vmatpush1.msra.mxu0 0.0
  %5929 = vmatprep.subr.mxu0 0.0
  %5930 = vmatpush1.msra.mxu0 0.0
  %5931 = vmatprep.subr.mxu0 0.0
  %5932 = vmatpush1.msra.mxu0 0.0
  %5933 = vmatprep.subr.mxu0 0.0
  %5934 = vmatpush1.msra.mxu0 0.0
  %5935 = vmatprep.subr.mxu0 0.0
  %5936 = vmatpush1.msra.mxu0 0.0
  %5937 = vmatprep.subr.mxu0 0.0
  %5938 = vmatpush1.msra.mxu0 0.0
  %5939 = vmatprep.subr.mxu0 0.0
  %5940 = vmatpush1.msra.mxu0 0.0
  %5941 = vmatprep.subr.mxu0 0.0
  %5942 = vmatpush1.msra.mxu0 0.0
  %5943 = vmatprep.subr.mxu0 0.0
  %5944 = vmatpush1.msra.mxu0 0.0
  %5945 = vmatprep.subr.mxu0 0.0
  %5946 = vmatpush1.msra.mxu0 0.0
  %5947 = vmatprep.subr.mxu0 0.0
  %5948 = vmatpush1.msra.mxu0 0.0
  %5949 = vmatprep.subr.mxu0 0.0
  %5950 = vmatpush1.msra.mxu0 0.0
  %5951 = vmatprep.mubr.f32.mxu0 0.0
  %5952 = vmatmul.mubr.f32.gmra.mrb[0].mxu0 %v5792
  %v5953 = vpop.f32.mrb[0].mxu0
  %v5954 = vadd.f32 0.0, %v5953
  %v5955 = vpop.f32.mrb[0].mxu0
  %v5956 = vadd.f32 0.0, %v5955
  %5957 = vmatprep.mubr.f32.mxu0 0.0
  %5958 = vmatmul.mubr.f32.gmra.mrb[0].mxu0 %v5795
  %v5959 = vpop.f32.mrb[0].mxu0
  %v5960 = vadd.f32 0.0, %v5959
  %v5961 = vpop.f32.mrb[0].mxu0
  %v5962 = vadd.f32 0.0, %v5961
  %5963 = vmatprep.mubr.f32.mxu0 0.0
  %5964 = vmatmul.mubr.f32.gmra.mrb[0].mxu0 %v5798
  %v5965 = vpop.f32.mrb[0].mxu0
  %v5966 = vadd.f32 0.0, %v5965
  %v5967 = vpop.f32.mrb[0].mxu0
  %v5968 = vadd.f32 0.0, %v5967
  %5969 = vmatprep.mubr.f32.mxu0 0.0
  %5970 = vmatmul.mubr.f32.gmra.mrb[0].mxu0 %v5801
  %v5971 = vpop.f32.mrb[0].mxu0
  %v5972 = vadd.f32 0.0, %v5971
  %v5973 = vpop.f32.mrb[0].mxu0
  %v5974 = vadd.f32 0.0, %v5973
  %5975 = vmatprep.mubr.f32.mxu0 0.0
  %5976 = vmatmul.mubr.f32.gmra.mrb[0].mxu0 %v5804
  %v5977 = vpop.f32.mrb[0].mxu0
  %v5978 = vadd.f32 0.0, %v5977
  %v5979 = vpop.f32.mrb[0].mxu0
  %v5980 = vadd.f32 0.0, %v5979
  %5981 = vmatprep.mubr.f32.mxu0 0.0
  %5982 = vmatmul.mubr.f32.gmra.mrb[0].mxu0 %v5807
  %v5983 = vpop.f32.mrb[0].mxu0
  %v5984 = vadd.f32 0.0, %v5983
  %v5985 = vpop.f32.mrb[0].mxu0
  %v5986 = vadd.f32 0.0, %v5985
  %5987 = vmatprep.mubr.f32.mxu0 0.0
  %5988 = vmatmul.mubr.f32.gmra.mrb[0].mxu0 %v5810
  %v5989 = vpop.f32.mrb[0].mxu0
  %v5990 = vadd.f32 0.0, %v5989
  %v5991 = vpop.f32.mrb[0].mxu0
  %v5992 = vadd.f32 0.0, %v5991
  %5993 = vmatprep.mubr.f32.mxu0 0.0
  %5994 = vmatmul.mubr.f32.gmra.mrb[0].mxu0 %v5813
  %v5995 = vpop.f32.mrb[0].mxu0
  %v5996 = vadd.f32 0.0, %v5995
  %v5997 = vpop.f32.mrb[0].mxu0
  %v5998 = vadd.f32 0.0, %v5997
  %5999 = vmatprep.mubr.f32.mxu0 0.0
  %6000 = vmatmul.mubr.f32.gmra.mrb[0].mxu0 %v5816
  %v6001 = vpop.f32.mrb[0].mxu0
  %v6002 = vadd.f32 0.0, %v6001
  %v6003 = vpop.f32.mrb[0].mxu0
  %v6004 = vadd.f32 0.0, %v6003
  %6005 = vmatprep.mubr.f32.mxu0 0.0
  %6006 = vmatmul.mubr.f32.gmra.mrb[0].mxu0 %v5819
  %v6007 = vpop.f32.mrb[0].mxu0
  %v6008 = vadd.f32 0.0, %v6007
  %v6009 = vpop.f32.mrb[0].mxu0
  %v6010 = vadd.f32 0.0, %v6009
  %6011 = vmatprep.mubr.f32.mxu0 0.0
  %6012 = vmatmul.mubr.f32.gmra.mrb[0].mxu0 %v5822
  %v6013 = vpop.f32.mrb[0].mxu0
  %v6014 = vadd.f32 0.0, %v6013
  %v6015 = vpop.f32.mrb[0].mxu0
  %v6016 = vadd.f32 0.0, %v6015
  %6017 = vmatprep.mubr.f32.mxu0 0.0
  %6018 = vmatmul.mubr.f32.gmra.mrb[0].mxu0 %v5825
  %v6019 = vpop.f32.mrb[0].mxu0
  %v6020 = vadd.f32 0.0, %v6019
  %v6021 = vpop.f32.mrb[0].mxu0
  %v6022 = vadd.f32 0.0, %v6021
  %6023 = vmatprep.mubr.f32.mxu0 0.0
  %6024 = vmatmul.mubr.f32.gmra.mrb[0].mxu0 %v5828
  %v6025 = vpop.f32.mrb[0].mxu0
  %v6026 = vadd.f32 0.0, %v6025
  %v6027 = vpop.f32.mrb[0].mxu0
  %v6028 = vadd.f32 0.0, %v6027
  %6029 = vmatprep.mubr.f32.mxu0 0.0
  %6030 = vmatmul.mubr.f32.gmra.mrb[0].mxu0 %v5831
  %v6031 = vpop.f32.mrb[0].mxu0
  %v6032 = vadd.f32 0.0, %v6031
  %v6033 = vpop.f32.mrb[0].mxu0
  %v6034 = vadd.f32 0.0, %v6033
  %6035 = vmatprep.mubr.f32.mxu0 0.0
  %6036 = vmatmul.mubr.f32.gmra.mrb[0].mxu0 %v5834
  %v6037 = vpop.f32.mrb[0].mxu0
  %v6038 = vadd.f32 0.0, %v6037
  %v6039 = vpop.f32.mrb[0].mxu0
  %v6040 = vadd.f32 0.0, %v6039
  %6041 = vmatprep.mubr.f32.mxu0 0.0
  %6042 = vmatmul.mubr.f32.gmra.mrb[0].mxu0 %v5837
  %v6043 = vpop.f32.mrb[0].mxu0
  %v6044 = vadd.f32 0.0, %v6043
  %v6045 = vpop.f32.mrb[0].mxu0
  %v6046 = vadd.f32 0.0, %v6045
  %6047 = vmatprep.mubr.f32.mxu0 0.0
  %6048 = vmatmul.mubr.f32.gmra.mrb[0].mxu0 %v5840
  %v6049 = vpop.f32.mrb[0].mxu0
  %v6050 = vadd.f32 0.0, %v6049
  %v6051 = vpop.f32.mrb[0].mxu0
  %v6052 = vadd.f32 0.0, %v6051
  %6053 = vmatprep.mubr.f32.mxu0 0.0
  %6054 = vmatmul.mubr.f32.gmra.mrb[0].mxu0 %v5843
  %v6055 = vpop.f32.mrb[0].mxu0
  %v6056 = vadd.f32 0.0, %v6055
  %v6057 = vpop.f32.mrb[0].mxu0
  %v6058 = vadd.f32 0.0, %v6057
  %6059 = vmatprep.mubr.f32.mxu0 0.0
  %6060 = vmatmul.mubr.f32.gmra.mrb[0].mxu0 %v5846
  %v6061 = vpop.f32.mrb[0].mxu0
  %v6062 = vadd.f32 0.0, %v6061
  %v6063 = vpop.f32.mrb[0].mxu0
  %v6064 = vadd.f32 0.0, %v6063
  %6065 = vmatprep.mubr.f32.mxu0 0.0
  %6066 = vmatmul.mubr.f32.gmra.mrb[0].mxu0 %v5849
  %v6067 = vpop.f32.mrb[0].mxu0
  %v6068 = vadd.f32 0.0, %v6067
  %v6069 = vpop.f32.mrb[0].mxu0
  %v6070 = vadd.f32 0.0, %v6069
  %6071 = vmatprep.mubr.f32.mxu0 0.0
  %6072 = vmatmul.mubr.f32.gmra.mrb[0].mxu0 %v5852
  %v6073 = vpop.f32.mrb[0].mxu0
  %v6074 = vadd.f32 0.0, %v6073
  %v6075 = vpop.f32.mrb[0].mxu0
  %v6076 = vadd.f32 0.0, %v6075
  %6077 = vmatprep.mubr.f32.mxu0 0.0
  %6078 = vmatmul.mubr.f32.gmra.mrb[0].mxu0 %v5855
  %v6079 = vpop.f32.mrb[0].mxu0
  %v6080 = vadd.f32 0.0, %v6079
  %v6081 = vpop.f32.mrb[0].mxu0
  %v6082 = vadd.f32 0.0, %v6081
  %6083 = vmatprep.mubr.f32.mxu0 0.0
  %6084 = vmatmul.mubr.f32.gmra.mrb[0].mxu0 %v5858
  %v6085 = vpop.f32.mrb[0].mxu0
  %v6086 = vadd.f32 0.0, %v6085
  %v6087 = vpop.f32.mrb[0].mxu0
  %v6088 = vadd.f32 0.0, %v6087
  %6089 = vmatprep.mubr.f32.mxu0 0.0
  %6090 = vmatmul.mubr.f32.gmra.mrb[0].mxu0 %v5861
  %v6091 = vpop.f32.mrb[0].mxu0
  %v6092 = vadd.f32 0.0, %v6091
  %v6093 = vpop.f32.mrb[0].mxu0
  %v6094 = vadd.f32 0.0, %v6093
  %6095 = vmatprep.mubr.f32.mxu0 0.0
  %6096 = vmatmul.mubr.f32.gmra.mrb[0].mxu0 %v5864
  %v6097 = vpop.f32.mrb[0].mxu0
  %v6098 = vadd.f32 0.0, %v6097
  %v6099 = vpop.f32.mrb[0].mxu0
  %v6100 = vadd.f32 0.0, %v6099
  %6101 = vmatprep.mubr.f32.mxu0 0.0
  %6102 = vmatmul.mubr.f32.gmra.mrb[0].mxu0 %v5867
  %v6103 = vpop.f32.mrb[0].mxu0
  %v6104 = vadd.f32 0.0, %v6103
  %v6105 = vpop.f32.mrb[0].mxu0
  %v6106 = vadd.f32 0.0, %v6105
  %6107 = vmatprep.mubr.f32.mxu0 0.0
  %6108 = vmatmul.mubr.f32.gmra.mrb[0].mxu0 %v5870
  %v6109 = vpop.f32.mrb[0].mxu0
  %v6110 = vadd.f32 0.0, %v6109
  %v6111 = vpop.f32.mrb[0].mxu0
  %v6112 = vadd.f32 0.0, %v6111
  %6113 = vmatprep.mubr.f32.mxu0 0.0
  %6114 = vmatmul.mubr.f32.gmra.mrb[0].mxu0 %v5873
  %v6115 = vpop.f32.mrb[0].mxu0
  %v6116 = vadd.f32 0.0, %v6115
  %v6117 = vpop.f32.mrb[0].mxu0
  %v6118 = vadd.f32 0.0, %v6117
  %6119 = vmatprep.mubr.f32.mxu0 0.0
  %6120 = vmatmul.mubr.f32.gmra.mrb[0].mxu0 %v5876
  %v6121 = vpop.f32.mrb[0].mxu0
  %v6122 = vadd.f32 0.0, %v6121
  %v6123 = vpop.f32.mrb[0].mxu0
  %v6124 = vadd.f32 0.0, %v6123
  %6125 = vmatprep.mubr.f32.mxu0 0.0
  %6126 = vmatmul.mubr.f32.gmra.mrb[0].mxu0 %v5879
  %v6127 = vpop.f32.mrb[0].mxu0
  %v6128 = vadd.f32 0.0, %v6127
  %v6129 = vpop.f32.mrb[0].mxu0
  %v6130 = vadd.f32 0.0, %v6129
  %6131 = vmatprep.mubr.f32.mxu0 0.0
  %6132 = vmatmul.mubr.f32.gmra.mrb[0].mxu0 %v5882
  %v6133 = vpop.f32.mrb[0].mxu0
  %v6134 = vadd.f32 0.0, %v6133
  %v6135 = vpop.f32.mrb[0].mxu0
  %v6136 = vadd.f32 0.0, %v6135
  %6137 = vmatprep.mubr.f32.mxu0 0.0
  %6138 = vmatmul.mubr.f32.gmra.mrb[0].mxu0 %v5885
  %v6139 = vpop.f32.mrb[0].mxu0
  %v6140 = vadd.f32 0.0, %v6139
  %v6141 = vpop.f32.mrb[0].mxu0
  %v6142 = vadd.f32 0.0, %v6141
  %6143 = vdwg.mxu0
  %6144 = vmatprep.subr.mxu0 0.0
  %6145 = vmatpush1.msra.mxu0 %v5769
  %6146 = vmatprep.subr.mxu0 0.0
  %6147 = vmatpush1.msra.mxu0 %v5770
  %6148 = vmatprep.subr.mxu0 0.0
  %6149 = vmatpush1.msra.mxu0 %v5771
  %6150 = vmatprep.subr.mxu0 0.0
  %6151 = vmatpush1.msra.mxu0 %v5772
  %6152 = vmatprep.subr.mxu0 0.0
  %6153 = vmatpush1.msra.mxu0 0.0
  %6154 = vmatprep.subr.mxu0 0.0
  %6155 = vmatpush1.msra.mxu0 0.0
  %6156 = vmatprep.subr.mxu0 0.0
  %6157 = vmatpush1.msra.mxu0 0.0
  %6158 = vmatprep.subr.mxu0 0.0
  %6159 = vmatpush1.msra.mxu0 0.0
  %6160 = vmatprep.subr.mxu0 0.0
  %6161 = vmatpush1.msra.mxu0 0.0
  %6162 = vmatprep.subr.mxu0 0.0
  %6163 = vmatpush1.msra.mxu0 0.0
  %6164 = vmatprep.subr.mxu0 0.0
  %6165 = vmatpush1.msra.mxu0 0.0
  %6166 = vmatprep.subr.mxu0 0.0
  %6167 = vmatpush1.msra.mxu0 0.0
  %6168 = vmatprep.subr.mxu0 0.0
  %6169 = vmatpush1.msra.mxu0 0.0
  %6170 = vmatprep.subr.mxu0 0.0
  %6171 = vmatpush1.msra.mxu0 0.0
  %6172 = vmatprep.subr.mxu0 0.0
  %6173 = vmatpush1.msra.mxu0 0.0
  %6174 = vmatprep.subr.mxu0 0.0
  %6175 = vmatpush1.msra.mxu0 0.0
  %6176 = vmatprep.subr.mxu0 0.0
  %6177 = vmatpush1.msra.mxu0 0.0
  %6178 = vmatprep.subr.mxu0 0.0
  %6179 = vmatpush1.msra.mxu0 0.0
  %6180 = vmatprep.subr.mxu0 0.0
  %6181 = vmatpush1.msra.mxu0 0.0
  %6182 = vmatprep.subr.mxu0 0.0
  %6183 = vmatpush1.msra.mxu0 0.0
  %6184 = vmatprep.subr.mxu0 0.0
  %6185 = vmatpush1.msra.mxu0 0.0
  %6186 = vmatprep.subr.mxu0 0.0
  %6187 = vmatpush1.msra.mxu0 0.0
  %6188 = vmatprep.subr.mxu0 0.0
  %6189 = vmatpush1.msra.mxu0 0.0
  %6190 = vmatprep.subr.mxu0 0.0
  %6191 = vmatpush1.msra.mxu0 0.0
  %6192 = vmatprep.subr.mxu0 0.0
  %6193 = vmatpush1.msra.mxu0 0.0
  %6194 = vmatprep.subr.mxu0 0.0
  %6195 = vmatpush1.msra.mxu0 0.0
  %6196 = vmatprep.subr.mxu0 0.0
  %6197 = vmatpush1.msra.mxu0 0.0
  %6198 = vmatprep.subr.mxu0 0.0
  %6199 = vmatpush1.msra.mxu0 0.0
  %6200 = vmatprep.subr.mxu0 0.0
  %6201 = vmatpush1.msra.mxu0 0.0
  %6202 = vmatprep.subr.mxu0 0.0
  %6203 = vmatpush1.msra.mxu0 0.0
  %6204 = vmatprep.subr.mxu0 0.0
  %6205 = vmatpush1.msra.mxu0 0.0
  %6206 = vmatprep.subr.mxu0 0.0
  %6207 = vmatpush1.msra.mxu0 0.0
  %6208 = vmatprep.mubr.f32.mxu0 0.0
  %6209 = vmatmul.mubr.f32.gmra.mrb[0].mxu0 %v467
  %v6210 = vpop.f32.mrb[0].mxu0
  %v6211 = vadd.f32 0.0, %v6210
  %v6212 = vpop.f32.mrb[0].mxu0
  %6213 = vmatprep.mubr.f32.mxu0 0.0
  %6214 = vmatmul.mubr.f32.gmra.mrb[0].mxu0 %v467
  %v6215 = vpop.f32.mrb[0].mxu0
  %v6216 = vadd.f32 0.0, %v6215
  %v6217 = vpop.f32.mrb[0].mxu0
  %6218 = vmatprep.mubr.f32.mxu0 0.0
  %6219 = vmatmul.mubr.f32.gmra.mrb[0].mxu0 %v467
  %v6220 = vpop.f32.mrb[0].mxu0
  %v6221 = vadd.f32 0.0, %v6220
  %v6222 = vpop.f32.mrb[0].mxu0
  %6223 = vmatprep.mubr.f32.mxu0 0.0
  %6224 = vmatmul.mubr.f32.gmra.mrb[0].mxu0 %v467
  %v6225 = vpop.f32.mrb[0].mxu0
  %v6226 = vadd.f32 0.0, %v6225
  %v6227 = vpop.f32.mrb[0].mxu0
  %6228 = vdwg.mxu0
  %v6229 = vadd.f32 %v5954, %v6211
  %v6230 = vadd.f32 %v5960, %v6216
  %v6231 = vadd.f32 %v5966, %v6221
  %v6232 = vadd.f32 %v5972, %v6226
  %6233 = vmatprep.subr.mxu0 0.0
  %6234 = vmatpush1.msra.mxu0 %v6229
  %6235 = vmatprep.subr.mxu0 0.0
  %6236 = vmatpush1.msra.mxu0 %v6230
  %6237 = vmatprep.subr.mxu0 0.0
  %6238 = vmatpush1.msra.mxu0 %v6231
  %6239 = vmatprep.subr.mxu0 0.0
  %6240 = vmatpush1.msra.mxu0 %v6232
  %6241 = vmatprep.subr.mxu0 0.0
  %6242 = vmatpush1.msra.mxu0 0.0
  %6243 = vmatprep.subr.mxu0 0.0
  %6244 = vmatpush1.msra.mxu0 0.0
  %6245 = vmatprep.subr.mxu0 0.0
  %6246 = vmatpush1.msra.mxu0 0.0
  %6247 = vmatprep.subr.mxu0 0.0
  %6248 = vmatpush1.msra.mxu0 0.0
  %6249 = vmatprep.subr.mxu0 0.0
  %6250 = vmatpush1.msra.mxu0 0.0
  %6251 = vmatprep.subr.mxu0 0.0
  %6252 = vmatpush1.msra.mxu0 0.0
  %6253 = vmatprep.subr.mxu0 0.0
  %6254 = vmatpush1.msra.mxu0 0.0
  %6255 = vmatprep.subr.mxu0 0.0
  %6256 = vmatpush1.msra.mxu0 0.0
  %6257 = vmatprep.subr.mxu0 0.0
  %6258 = vmatpush1.msra.mxu0 0.0
  %6259 = vmatprep.subr.mxu0 0.0
  %6260 = vmatpush1.msra.mxu0 0.0
  %6261 = vmatprep.subr.mxu0 0.0
  %6262 = vmatpush1.msra.mxu0 0.0
  %6263 = vmatprep.subr.mxu0 0.0
  %6264 = vmatpush1.msra.mxu0 0.0
  %6265 = vmatprep.subr.mxu0 0.0
  %6266 = vmatpush1.msra.mxu0 0.0
  %6267 = vmatprep.subr.mxu0 0.0
  %6268 = vmatpush1.msra.mxu0 0.0
  %6269 = vmatprep.subr.mxu0 0.0
  %6270 = vmatpush1.msra.mxu0 0.0
  %6271 = vmatprep.subr.mxu0 0.0
  %6272 = vmatpush1.msra.mxu0 0.0
  %6273 = vmatprep.subr.mxu0 0.0
  %6274 = vmatpush1.msra.mxu0 0.0
  %6275 = vmatprep.subr.mxu0 0.0
  %6276 = vmatpush1.msra.mxu0 0.0
  %6277 = vmatprep.subr.mxu0 0.0
  %6278 = vmatpush1.msra.mxu0 0.0
  %6279 = vmatprep.subr.mxu0 0.0
  %6280 = vmatpush1.msra.mxu0 0.0
  %6281 = vmatprep.subr.mxu0 0.0
  %6282 = vmatpush1.msra.mxu0 0.0
  %6283 = vmatprep.subr.mxu0 0.0
  %6284 = vmatpush1.msra.mxu0 0.0
  %6285 = vmatprep.subr.mxu0 0.0
  %6286 = vmatpush1.msra.mxu0 0.0
  %6287 = vmatprep.subr.mxu0 0.0
  %6288 = vmatpush1.msra.mxu0 0.0
  %6289 = vmatprep.subr.mxu0 0.0
  %6290 = vmatpush1.msra.mxu0 0.0
  %6291 = vmatprep.subr.mxu0 0.0
  %6292 = vmatpush1.msra.mxu0 0.0
  %6293 = vmatprep.subr.mxu0 0.0
  %6294 = vmatpush1.msra.mxu0 0.0
  %6295 = vmatprep.subr.mxu0 0.0
  %6296 = vmatpush1.msra.mxu0 0.0
  %6297 = vmatprep.mubr.f32.mxu0 0.0
  %6298 = vmatmul.mubr.f32.gmra.mrb[0].mxu0 %v559
  %v6299 = vpop.f32.mrb[0].mxu0
  %v6300 = vadd.f32 0.0, %v6299
  %v6301 = vpop.f32.mrb[0].mxu0
  %6302 = vmatprep.mubr.f32.mxu0 0.0
  %6303 = vmatmul.mubr.f32.gmra.mrb[0].mxu0 %v562
  %v6304 = vpop.f32.mrb[0].mxu0
  %v6305 = vadd.f32 0.0, %v6304
  %v6306 = vpop.f32.mrb[0].mxu0
  %6307 = vmatprep.mubr.f32.mxu0 0.0
  %6308 = vmatmul.mubr.f32.gmra.mrb[0].mxu0 %v565
  %v6309 = vpop.f32.mrb[0].mxu0
  %v6310 = vadd.f32 0.0, %v6309
  %v6311 = vpop.f32.mrb[0].mxu0
  %6312 = vmatprep.mubr.f32.mxu0 0.0
  %6313 = vmatmul.mubr.f32.gmra.mrb[0].mxu0 %v568
  %v6314 = vpop.f32.mrb[0].mxu0
  %v6315 = vadd.f32 0.0, %v6314
  %v6316 = vpop.f32.mrb[0].mxu0
  %6317 = vdwg.mxu0
  %v6318 = vadd.f32 %v5782, %v6300
  %v6319 = vadd.f32 %v5782, %v6305
  %v6320 = vadd.f32 %v5782, %v6310
  %v6321 = vadd.f32 %v5782, %v6315
  %6326 = vrot.lane.b32.xlu0 %v6229, 64
  %v6327 = vpop.permute.xlu0 %6326
  %6328 = vrot.lane.b32.xlu0 %v6230, 64
  %v6329 = vpop.permute.xlu0 %6328
  %6330 = vrot.lane.b32.xlu0 %v6231, 64
  %v6331 = vpop.permute.xlu0 %6330
  %6332 = vrot.lane.b32.xlu0 %v6232, 64
  %v6333 = vpop.permute.xlu0 %6332
  %6338 = vmatprep.subr.mxu0 0.0
  %6339 = vmatpush1.msra.mxu0 %v6327
  %6340 = vmatprep.subr.mxu0 0.0
  %6341 = vmatpush1.msra.mxu0 %v6329
  %6342 = vmatprep.subr.mxu0 0.0
  %6343 = vmatpush1.msra.mxu0 %v6331
  %6344 = vmatprep.subr.mxu0 0.0
  %6345 = vmatpush1.msra.mxu0 %v6333
  %6346 = vmatprep.subr.mxu0 0.0
  %6347 = vmatpush1.msra.mxu0 0.0
  %6348 = vmatprep.subr.mxu0 0.0
  %6349 = vmatpush1.msra.mxu0 0.0
  %6350 = vmatprep.subr.mxu0 0.0
  %6351 = vmatpush1.msra.mxu0 0.0
  %6352 = vmatprep.subr.mxu0 0.0
  %6353 = vmatpush1.msra.mxu0 0.0
  %6354 = vmatprep.subr.mxu0 0.0
  %6355 = vmatpush1.msra.mxu0 0.0
  %6356 = vmatprep.subr.mxu0 0.0
  %6357 = vmatpush1.msra.mxu0 0.0
  %6358 = vmatprep.subr.mxu0 0.0
  %6359 = vmatpush1.msra.mxu0 0.0
  %6360 = vmatprep.subr.mxu0 0.0
  %6361 = vmatpush1.msra.mxu0 0.0
  %6362 = vmatprep.subr.mxu0 0.0
  %6363 = vmatpush1.msra.mxu0 0.0
  %6364 = vmatprep.subr.mxu0 0.0
  %6365 = vmatpush1.msra.mxu0 0.0
  %6366 = vmatprep.subr.mxu0 0.0
  %6367 = vmatpush1.msra.mxu0 0.0
  %6368 = vmatprep.subr.mxu0 0.0
  %6369 = vmatpush1.msra.mxu0 0.0
  %6370 = vmatprep.subr.mxu0 0.0
  %6371 = vmatpush1.msra.mxu0 0.0
  %6372 = vmatprep.subr.mxu0 0.0
  %6373 = vmatpush1.msra.mxu0 0.0
  %6374 = vmatprep.subr.mxu0 0.0
  %6375 = vmatpush1.msra.mxu0 0.0
  %6376 = vmatprep.subr.mxu0 0.0
  %6377 = vmatpush1.msra.mxu0 0.0
  %6378 = vmatprep.subr.mxu0 0.0
  %6379 = vmatpush1.msra.mxu0 0.0
  %6380 = vmatprep.subr.mxu0 0.0
  %6381 = vmatpush1.msra.mxu0 0.0
  %6382 = vmatprep.subr.mxu0 0.0
  %6383 = vmatpush1.msra.mxu0 0.0
  %6384 = vmatprep.subr.mxu0 0.0
  %6385 = vmatpush1.msra.mxu0 0.0
  %6386 = vmatprep.subr.mxu0 0.0
  %6387 = vmatpush1.msra.mxu0 0.0
  %6388 = vmatprep.subr.mxu0 0.0
  %6389 = vmatpush1.msra.mxu0 0.0
  %6390 = vmatprep.subr.mxu0 0.0
  %6391 = vmatpush1.msra.mxu0 0.0
  %6392 = vmatprep.subr.mxu0 0.0
  %6393 = vmatpush1.msra.mxu0 0.0
  %6394 = vmatprep.subr.mxu0 0.0
  %6395 = vmatpush1.msra.mxu0 0.0
  %6396 = vmatprep.subr.mxu0 0.0
  %6397 = vmatpush1.msra.mxu0 0.0
  %6398 = vmatprep.subr.mxu0 0.0
  %6399 = vmatpush1.msra.mxu0 0.0
  %6400 = vmatprep.subr.mxu0 0.0
  %6401 = vmatpush1.msra.mxu0 0.0
  %6402 = vmatprep.mubr.f32.mxu0 0.0
  %6403 = vmatmul.mubr.f32.gmra.mrb[0].mxu0 %v676
  %v6404 = vpop.f32.mrb[0].mxu0
  %v6405 = vadd.f32 0.0, %v6404
  %v6406 = vpop.f32.mrb[0].mxu0
  %6407 = vmatprep.mubr.f32.mxu0 0.0
  %6408 = vmatmul.mubr.f32.gmra.mrb[0].mxu0 %v679
  %v6409 = vpop.f32.mrb[0].mxu0
  %v6410 = vadd.f32 0.0, %v6409
  %v6411 = vpop.f32.mrb[0].mxu0
  %6412 = vmatprep.mubr.f32.mxu0 0.0
  %6413 = vmatmul.mubr.f32.gmra.mrb[0].mxu0 %v682
  %v6414 = vpop.f32.mrb[0].mxu0
  %v6415 = vadd.f32 0.0, %v6414
  %v6416 = vpop.f32.mrb[0].mxu0
  %6417 = vmatprep.mubr.f32.mxu0 0.0
  %6418 = vmatmul.mubr.f32.gmra.mrb[0].mxu0 %v685
  %v6419 = vpop.f32.mrb[0].mxu0
  %v6420 = vadd.f32 0.0, %v6419
  %v6421 = vpop.f32.mrb[0].mxu0
  %6422 = vdwg.mxu0
  %v6423 = vadd.f32 %v6318, %v6405
  %v6424 = vadd.f32 %v6319, %v6410
  %v6425 = vadd.f32 %v6320, %v6415
  %v6426 = vadd.f32 %v6321, %v6420
  %v6427 = vxor.u32 %v6423, 2147483648
  %v6428 = vxor.u32 %v6424, 2147483648
  %v6429 = vxor.u32 %v6425, 2147483648
  %v6430 = vxor.u32 %v6426, 2147483648
  %v6431 = vmul.f32 %v6427, 1.442695
  %v6432 = vpow.pop %v6431
  %v6433 = vmul.f32 %v6428, 1.442695
  %v6434 = vpow.pop %v6433
  %v6435 = vmul.f32 %v6429, 1.442695
  %v6436 = vpow.pop %v6435
  %v6437 = vmul.f32 %v6430, 1.442695
  %v6438 = vpow.pop %v6437
  %v6439 = vadd.f32 %v6432, 1.0
  %v6440 = vadd.f32 %v6434, 1.0
  %v6441 = vadd.f32 %v6436, 1.0
  %v6442 = vadd.f32 %v6438, 1.0
  %v6443 = vrcp.pop %v6439
  %v6444 = vmul.f32 1.0, %v6443
  %v6445 = vrcp.pop %v6440
  %v6446 = vmul.f32 1.0, %v6445
  %v6447 = vrcp.pop %v6441
  %v6448 = vmul.f32 1.0, %v6447
  %v6449 = vrcp.pop %v6442
  %v6450 = vmul.f32 1.0, %v6449
  %v6451 = vmul.f32 %v6444, 0.0
  %v6452 = vmul.f32 %v6446, 0.0
  %v6453 = vmul.f32 %v6448, 0.0
  %v6454 = vmul.f32 %v6450, 0.0
  %6459 = vrot.lane.b32.xlu0 %v6451, 96
  %v6460 = vpop.permute.xlu0 %6459
  %6461 = vrot.lane.b32.xlu0 %v6452, 96
  %v6462 = vpop.permute.xlu0 %6461
  %6463 = vrot.lane.b32.xlu0 %v6453, 96
  %v6464 = vpop.permute.xlu0 %6463
  %6465 = vrot.lane.b32.xlu0 %v6454, 96
  %v6466 = vpop.permute.xlu0 %6465
  %v6467 = vsel %vm465, %v6460, 0
  %v6469 = vsel %vm465, %v6462, 0
  %v6471 = vsel %vm465, %v6464, 0
  %v6473 = vsel %vm465, %v6466, 0
  %6475 = vmatprep.subr.mxu0 0.0
  %6476 = vmatpush1.msra.mxu0 %v5773
  %6477 = vmatprep.subr.mxu0 0.0
  %6478 = vmatpush1.msra.mxu0 %v5774
  %6479 = vmatprep.subr.mxu0 0.0
  %6480 = vmatpush1.msra.mxu0 %v5775
  %6481 = vmatprep.subr.mxu0 0.0
  %6482 = vmatpush1.msra.mxu0 %v5776
  %6483 = vmatprep.subr.mxu0 0.0
  %6484 = vmatpush1.msra.mxu0 0.0
  %6485 = vmatprep.subr.mxu0 0.0
  %6486 = vmatpush1.msra.mxu0 0.0
  %6487 = vmatprep.subr.mxu0 0.0
  %6488 = vmatpush1.msra.mxu0 0.0
  %6489 = vmatprep.subr.mxu0 0.0
  %6490 = vmatpush1.msra.mxu0 0.0
  %6491 = vmatprep.subr.mxu0 0.0
  %6492 = vmatpush1.msra.mxu0 0.0
  %6493 = vmatprep.subr.mxu0 0.0
  %6494 = vmatpush1.msra.mxu0 0.0
  %6495 = vmatprep.subr.mxu0 0.0
  %6496 = vmatpush1.msra.mxu0 0.0
  %6497 = vmatprep.subr.mxu0 0.0
  %6498 = vmatpush1.msra.mxu0 0.0
  %6499 = vmatprep.subr.mxu0 0.0
  %6500 = vmatpush1.msra.mxu0 0.0
  %6501 = vmatprep.subr.mxu0 0.0
  %6502 = vmatpush1.msra.mxu0 0.0
  %6503 = vmatprep.subr.mxu0 0.0
  %6504 = vmatpush1.msra.mxu0 0.0
  %6505 = vmatprep.subr.mxu0 0.0
  %6506 = vmatpush1.msra.mxu0 0.0
  %6507 = vmatprep.subr.mxu0 0.0
  %6508 = vmatpush1.msra.mxu0 0.0
  %6509 = vmatprep.subr.mxu0 0.0
  %6510 = vmatpush1.msra.mxu0 0.0
  %6511 = vmatprep.subr.mxu0 0.0
  %6512 = vmatpush1.msra.mxu0 0.0
  %6513 = vmatprep.subr.mxu0 0.0
  %6514 = vmatpush1.msra.mxu0 0.0
  %6515 = vmatprep.subr.mxu0 0.0
  %6516 = vmatpush1.msra.mxu0 0.0
  %6517 = vmatprep.subr.mxu0 0.0
  %6518 = vmatpush1.msra.mxu0 0.0
  %6519 = vmatprep.subr.mxu0 0.0
  %6520 = vmatpush1.msra.mxu0 0.0
  %6521 = vmatprep.subr.mxu0 0.0
  %6522 = vmatpush1.msra.mxu0 0.0
  %6523 = vmatprep.subr.mxu0 0.0
  %6524 = vmatpush1.msra.mxu0 0.0
  %6525 = vmatprep.subr.mxu0 0.0
  %6526 = vmatpush1.msra.mxu0 0.0
  %6527 = vmatprep.subr.mxu0 0.0
  %6528 = vmatpush1.msra.mxu0 0.0
  %6529 = vmatprep.subr.mxu0 0.0
  %6530 = vmatpush1.msra.mxu0 0.0
  %6531 = vmatprep.subr.mxu0 0.0
  %6532 = vmatpush1.msra.mxu0 0.0
  %6533 = vmatprep.subr.mxu0 0.0
  %6534 = vmatpush1.msra.mxu0 0.0
  %6535 = vmatprep.subr.mxu0 0.0
  %6536 = vmatpush1.msra.mxu0 0.0
  %6537 = vmatprep.subr.mxu0 0.0
  %6538 = vmatpush1.msra.mxu0 0.0
  %6539 = vmatprep.mubr.f32.mxu0 0.0
  %6540 = vmatmul.mubr.f32.gmra.mrb[0].mxu0 %v6467
  %v6541 = vpop.f32.mrb[0].mxu0
  %v6542 = vadd.f32 0.0, %v6541
  %v6543 = vpop.f32.mrb[0].mxu0
  %6544 = vmatprep.mubr.f32.mxu0 0.0
  %6545 = vmatmul.mubr.f32.gmra.mrb[0].mxu0 %v6469
  %v6546 = vpop.f32.mrb[0].mxu0
  %v6547 = vadd.f32 0.0, %v6546
  %v6548 = vpop.f32.mrb[0].mxu0
  %6549 = vmatprep.mubr.f32.mxu0 0.0
  %6550 = vmatmul.mubr.f32.gmra.mrb[0].mxu0 %v6471
  %v6551 = vpop.f32.mrb[0].mxu0
  %v6552 = vadd.f32 0.0, %v6551
  %v6553 = vpop.f32.mrb[0].mxu0
  %6554 = vmatprep.mubr.f32.mxu0 0.0
  %6555 = vmatmul.mubr.f32.gmra.mrb[0].mxu0 %v6473
  %v6556 = vpop.f32.mrb[0].mxu0
  %v6557 = vadd.f32 0.0, %v6556
  %v6558 = vpop.f32.mrb[0].mxu0
  %6559 = vdwg.mxu0
  %v6560 = vadd.f32 %v5956, %v6542
  %v6561 = vadd.f32 %v5962, %v6547
  %v6562 = vadd.f32 %v5968, %v6552
  %v6563 = vadd.f32 %v5974, %v6557
  %6564 = vmatprep.subr.mxu0 0.0
  %6565 = vmatpush1.msra.mxu0 %v6560
  %6566 = vmatprep.subr.mxu0 0.0
  %6567 = vmatpush1.msra.mxu0 %v6561
  %6568 = vmatprep.subr.mxu0 0.0
  %6569 = vmatpush1.msra.mxu0 %v6562
  %6570 = vmatprep.subr.mxu0 0.0
  %6571 = vmatpush1.msra.mxu0 %v6563
  %6572 = vmatprep.subr.mxu0 0.0
  %6573 = vmatpush1.msra.mxu0 0.0
  %6574 = vmatprep.subr.mxu0 0.0
  %6575 = vmatpush1.msra.mxu0 0.0
  %6576 = vmatprep.subr.mxu0 0.0
  %6577 = vmatpush1.msra.mxu0 0.0
  %6578 = vmatprep.subr.mxu0 0.0
  %6579 = vmatpush1.msra.mxu0 0.0
  %6580 = vmatprep.subr.mxu0 0.0
  %6581 = vmatpush1.msra.mxu0 0.0
  %6582 = vmatprep.subr.mxu0 0.0
  %6583 = vmatpush1.msra.mxu0 0.0
  %6584 = vmatprep.subr.mxu0 0.0
  %6585 = vmatpush1.msra.mxu0 0.0
  %6586 = vmatprep.subr.mxu0 0.0
  %6587 = vmatpush1.msra.mxu0 0.0
  %6588 = vmatprep.subr.mxu0 0.0
  %6589 = vmatpush1.msra.mxu0 0.0
  %6590 = vmatprep.subr.mxu0 0.0
  %6591 = vmatpush1.msra.mxu0 0.0
  %6592 = vmatprep.subr.mxu0 0.0
  %6593 = vmatpush1.msra.mxu0 0.0
  %6594 = vmatprep.subr.mxu0 0.0
  %6595 = vmatpush1.msra.mxu0 0.0
  %6596 = vmatprep.subr.mxu0 0.0
  %6597 = vmatpush1.msra.mxu0 0.0
  %6598 = vmatprep.subr.mxu0 0.0
  %6599 = vmatpush1.msra.mxu0 0.0
  %6600 = vmatprep.subr.mxu0 0.0
  %6601 = vmatpush1.msra.mxu0 0.0
  %6602 = vmatprep.subr.mxu0 0.0
  %6603 = vmatpush1.msra.mxu0 0.0
  %6604 = vmatprep.subr.mxu0 0.0
  %6605 = vmatpush1.msra.mxu0 0.0
  %6606 = vmatprep.subr.mxu0 0.0
  %6607 = vmatpush1.msra.mxu0 0.0
  %6608 = vmatprep.subr.mxu0 0.0
  %6609 = vmatpush1.msra.mxu0 0.0
  %6610 = vmatprep.subr.mxu0 0.0
  %6611 = vmatpush1.msra.mxu0 0.0
  %6612 = vmatprep.subr.mxu0 0.0
  %6613 = vmatpush1.msra.mxu0 0.0
  %6614 = vmatprep.subr.mxu0 0.0
  %6615 = vmatpush1.msra.mxu0 0.0
  %6616 = vmatprep.subr.mxu0 0.0
  %6617 = vmatpush1.msra.mxu0 0.0
  %6618 = vmatprep.subr.mxu0 0.0
  %6619 = vmatpush1.msra.mxu0 0.0
  %6620 = vmatprep.subr.mxu0 0.0
  %6621 = vmatpush1.msra.mxu0 0.0
  %6622 = vmatprep.subr.mxu0 0.0
  %6623 = vmatpush1.msra.mxu0 0.0
  %6624 = vmatprep.subr.mxu0 0.0
  %6625 = vmatpush1.msra.mxu0 0.0
  %6626 = vmatprep.subr.mxu0 0.0
  %6627 = vmatpush1.msra.mxu0 0.0
  %6628 = vmatprep.mubr.f32.mxu0 0.0
  %6629 = vmatmul.mubr.f32.gmra.mrb[0].mxu0 %v559
  %v6630 = vpop.f32.mrb[0].mxu0
  %v6631 = vadd.f32 0.0, %v6630
  %v6632 = vpop.f32.mrb[0].mxu0
  %6633 = vmatprep.mubr.f32.mxu0 0.0
  %6634 = vmatmul.mubr.f32.gmra.mrb[0].mxu0 %v562
  %v6635 = vpop.f32.mrb[0].mxu0
  %v6636 = vadd.f32 0.0, %v6635
  %v6637 = vpop.f32.mrb[0].mxu0
  %6638 = vmatprep.mubr.f32.mxu0 0.0
  %6639 = vmatmul.mubr.f32.gmra.mrb[0].mxu0 %v565
  %v6640 = vpop.f32.mrb[0].mxu0
  %v6641 = vadd.f32 0.0, %v6640
  %v6642 = vpop.f32.mrb[0].mxu0
  %6643 = vmatprep.mubr.f32.mxu0 0.0
  %6644 = vmatmul.mubr.f32.gmra.mrb[0].mxu0 %v568
  %v6645 = vpop.f32.mrb[0].mxu0
  %v6646 = vadd.f32 0.0, %v6645
  %v6647 = vpop.f32.mrb[0].mxu0
  %6648 = vdwg.mxu0
  %v6649 = vadd.f32 %v5789, %v6631
  %v6650 = vadd.f32 %v5789, %v6636
  %v6651 = vadd.f32 %v5789, %v6641
  %v6652 = vadd.f32 %v5789, %v6646
  %6657 = vrot.lane.b32.xlu0 %v6560, 96
  %v6658 = vpop.permute.xlu0 %6657
  %6659 = vrot.lane.b32.xlu0 %v6561, 96
  %v6660 = vpop.permute.xlu0 %6659
  %6661 = vrot.lane.b32.xlu0 %v6562, 96
  %v6662 = vpop.permute.xlu0 %6661
  %6663 = vrot.lane.b32.xlu0 %v6563, 96
  %v6664 = vpop.permute.xlu0 %6663
  %6669 = vmatprep.subr.mxu0 0.0
  %6670 = vmatpush1.msra.mxu0 %v6658
  %6671 = vmatprep.subr.mxu0 0.0
  %6672 = vmatpush1.msra.mxu0 %v6660
  %6673 = vmatprep.subr.mxu0 0.0
  %6674 = vmatpush1.msra.mxu0 %v6662
  %6675 = vmatprep.subr.mxu0 0.0
  %6676 = vmatpush1.msra.mxu0 %v6664
  %6677 = vmatprep.subr.mxu0 0.0
  %6678 = vmatpush1.msra.mxu0 0.0
  %6679 = vmatprep.subr.mxu0 0.0
  %6680 = vmatpush1.msra.mxu0 0.0
  %6681 = vmatprep.subr.mxu0 0.0
  %6682 = vmatpush1.msra.mxu0 0.0
  %6683 = vmatprep.subr.mxu0 0.0
  %6684 = vmatpush1.msra.mxu0 0.0
  %6685 = vmatprep.subr.mxu0 0.0
  %6686 = vmatpush1.msra.mxu0 0.0
  %6687 = vmatprep.subr.mxu0 0.0
  %6688 = vmatpush1.msra.mxu0 0.0
  %6689 = vmatprep.subr.mxu0 0.0
  %6690 = vmatpush1.msra.mxu0 0.0
  %6691 = vmatprep.subr.mxu0 0.0
  %6692 = vmatpush1.msra.mxu0 0.0
  %6693 = vmatprep.subr.mxu0 0.0
  %6694 = vmatpush1.msra.mxu0 0.0
  %6695 = vmatprep.subr.mxu0 0.0
  %6696 = vmatpush1.msra.mxu0 0.0
  %6697 = vmatprep.subr.mxu0 0.0
  %6698 = vmatpush1.msra.mxu0 0.0
  %6699 = vmatprep.subr.mxu0 0.0
  %6700 = vmatpush1.msra.mxu0 0.0
  %6701 = vmatprep.subr.mxu0 0.0
  %6702 = vmatpush1.msra.mxu0 0.0
  %6703 = vmatprep.subr.mxu0 0.0
  %6704 = vmatpush1.msra.mxu0 0.0
  %6705 = vmatprep.subr.mxu0 0.0
  %6706 = vmatpush1.msra.mxu0 0.0
  %6707 = vmatprep.subr.mxu0 0.0
  %6708 = vmatpush1.msra.mxu0 0.0
  %6709 = vmatprep.subr.mxu0 0.0
  %6710 = vmatpush1.msra.mxu0 0.0
  %6711 = vmatprep.subr.mxu0 0.0
  %6712 = vmatpush1.msra.mxu0 0.0
  %6713 = vmatprep.subr.mxu0 0.0
  %6714 = vmatpush1.msra.mxu0 0.0
  %6715 = vmatprep.subr.mxu0 0.0
  %6716 = vmatpush1.msra.mxu0 0.0
  %6717 = vmatprep.subr.mxu0 0.0
  %6718 = vmatpush1.msra.mxu0 0.0
  %6719 = vmatprep.subr.mxu0 0.0
  %6720 = vmatpush1.msra.mxu0 0.0
  %6721 = vmatprep.subr.mxu0 0.0
  %6722 = vmatpush1.msra.mxu0 0.0
  %6723 = vmatprep.subr.mxu0 0.0
  %6724 = vmatpush1.msra.mxu0 0.0
  %6725 = vmatprep.subr.mxu0 0.0
  %6726 = vmatpush1.msra.mxu0 0.0
  %6727 = vmatprep.subr.mxu0 0.0
  %6728 = vmatpush1.msra.mxu0 0.0
  %6729 = vmatprep.subr.mxu0 0.0
  %6730 = vmatpush1.msra.mxu0 0.0
  %6731 = vmatprep.subr.mxu0 0.0
  %6732 = vmatpush1.msra.mxu0 0.0
  %6733 = vmatprep.mubr.f32.mxu0 0.0
  %6734 = vmatmul.mubr.f32.gmra.mrb[0].mxu0 %v676
  %v6735 = vpop.f32.mrb[0].mxu0
  %v6736 = vadd.f32 0.0, %v6735
  %v6737 = vpop.f32.mrb[0].mxu0
  %6738 = vmatprep.mubr.f32.mxu0 0.0
  %6739 = vmatmul.mubr.f32.gmra.mrb[0].mxu0 %v679
  %v6740 = vpop.f32.mrb[0].mxu0
  %v6741 = vadd.f32 0.0, %v6740
  %v6742 = vpop.f32.mrb[0].mxu0
  %6743 = vmatprep.mubr.f32.mxu0 0.0
  %6744 = vmatmul.mubr.f32.gmra.mrb[0].mxu0 %v682
  %v6745 = vpop.f32.mrb[0].mxu0
  %v6746 = vadd.f32 0.0, %v6745
  %v6747 = vpop.f32.mrb[0].mxu0
  %6748 = vmatprep.mubr.f32.mxu0 0.0
  %6749 = vmatmul.mubr.f32.gmra.mrb[0].mxu0 %v685
  %v6750 = vpop.f32.mrb[0].mxu0
  %v6751 = vadd.f32 0.0, %v6750
  %v6752 = vpop.f32.mrb[0].mxu0
  %6753 = vdwg.mxu0
  %v6754 = vadd.f32 %v6649, %v6736
  %v6755 = vadd.f32 %v6650, %v6741
  %v6756 = vadd.f32 %v6651, %v6746
  %v6757 = vadd.f32 %v6652, %v6751
  %v6758 = vtanh.pop %v6754
  %v6759 = vtanh.pop %v6755
  %v6760 = vtanh.pop %v6756
  %v6761 = vtanh.pop %v6757
  %v6762 = vmul.f32 %v6444, %v6758
  %v6763 = vmul.f32 %v6446, %v6759
  %v6764 = vmul.f32 %v6448, %v6760
  %v6765 = vmul.f32 %v6450, %v6761
  %v6766 = vadd.f32 %v6762, 0.0
  %v6767 = vadd.f32 %v6763, 0.0
  %v6768 = vadd.f32 %v6764, 0.0
  %v6769 = vadd.f32 %v6765, 0.0
  %6770 = vst.msk [vmem:[%s12] sm:$0xff] %vm465, %v6766
  %6771 = vst.msk [vmem:[%s12 + $0x8] sm:$0xff] %vm465, %v6767
  %6772 = vst.msk [vmem:[%s12 + $0x10] sm:$0xff] %vm465, %v6768
  %6773 = vst.msk [vmem:[%s12 + $0x18] sm:$0xff] %vm465, %v6769
  %v6775 = vsel %vm465, %v6766, 0
  %v6778 = vsel %vm465, %v6767, 0
  %v6781 = vsel %vm465, %v6768, 0
  %v6784 = vsel %vm465, %v6769, 0
  %6786 = vmatprep.subr.mxu0 0.0
  %6787 = vmatpush1.msra.mxu0 %v5769
  %6788 = vmatprep.subr.mxu0 0.0
  %6789 = vmatpush1.msra.mxu0 %v5770
  %6790 = vmatprep.subr.mxu0 0.0
  %6791 = vmatpush1.msra.mxu0 %v5771
  %6792 = vmatprep.subr.mxu0 0.0
  %6793 = vmatpush1.msra.mxu0 %v5772
  %6794 = vmatprep.subr.mxu0 0.0
  %6795 = vmatpush1.msra.mxu0 0.0
  %6796 = vmatprep.subr.mxu0 0.0
  %6797 = vmatpush1.msra.mxu0 0.0
  %6798 = vmatprep.subr.mxu0 0.0
  %6799 = vmatpush1.msra.mxu0 0.0
  %6800 = vmatprep.subr.mxu0 0.0
  %6801 = vmatpush1.msra.mxu0 0.0
  %6802 = vmatprep.subr.mxu0 0.0
  %6803 = vmatpush1.msra.mxu0 0.0
  %6804 = vmatprep.subr.mxu0 0.0
  %6805 = vmatpush1.msra.mxu0 0.0
  %6806 = vmatprep.subr.mxu0 0.0
  %6807 = vmatpush1.msra.mxu0 0.0
  %6808 = vmatprep.subr.mxu0 0.0
  %6809 = vmatpush1.msra.mxu0 0.0
  %6810 = vmatprep.subr.mxu0 0.0
  %6811 = vmatpush1.msra.mxu0 0.0
  %6812 = vmatprep.subr.mxu0 0.0
  %6813 = vmatpush1.msra.mxu0 0.0
  %6814 = vmatprep.subr.mxu0 0.0
  %6815 = vmatpush1.msra.mxu0 0.0
  %6816 = vmatprep.subr.mxu0 0.0
  %6817 = vmatpush1.msra.mxu0 0.0
  %6818 = vmatprep.subr.mxu0 0.0
  %6819 = vmatpush1.msra.mxu0 0.0
  %6820 = vmatprep.subr.mxu0 0.0
  %6821 = vmatpush1.msra.mxu0 0.0
  %6822 = vmatprep.subr.mxu0 0.0
  %6823 = vmatpush1.msra.mxu0 0.0
  %6824 = vmatprep.subr.mxu0 0.0
  %6825 = vmatpush1.msra.mxu0 0.0
  %6826 = vmatprep.subr.mxu0 0.0
  %6827 = vmatpush1.msra.mxu0 0.0
  %6828 = vmatprep.subr.mxu0 0.0
  %6829 = vmatpush1.msra.mxu0 0.0
  %6830 = vmatprep.subr.mxu0 0.0
  %6831 = vmatpush1.msra.mxu0 0.0
  %6832 = vmatprep.subr.mxu0 0.0
  %6833 = vmatpush1.msra.mxu0 0.0
  %6834 = vmatprep.subr.mxu0 0.0
  %6835 = vmatpush1.msra.mxu0 0.0
  %6836 = vmatprep.subr.mxu0 0.0
  %6837 = vmatpush1.msra.mxu0 0.0
  %6838 = vmatprep.subr.mxu0 0.0
  %6839 = vmatpush1.msra.mxu0 0.0
  %6840 = vmatprep.subr.mxu0 0.0
  %6841 = vmatpush1.msra.mxu0 0.0
  %6842 = vmatprep.subr.mxu0 0.0
  %6843 = vmatpush1.msra.mxu0 0.0
  %6844 = vmatprep.subr.mxu0 0.0
  %6845 = vmatpush1.msra.mxu0 0.0
  %6846 = vmatprep.subr.mxu0 0.0
  %6847 = vmatpush1.msra.mxu0 0.0
  %6848 = vmatprep.subr.mxu0 0.0
  %6849 = vmatpush1.msra.mxu0 0.0
  %6850 = vmatprep.mubr.f32.mxu0 0.0
  %6851 = vmatmul.mubr.f32.gmra.mrb[0].mxu0 %v6775
  %v6852 = vpop.f32.mrb[0].mxu0
  %v6853 = vadd.f32 0.0, %v6852
  %v6854 = vpop.f32.mrb[0].mxu0
  %6855 = vmatprep.mubr.f32.mxu0 0.0
  %6856 = vmatmul.mubr.f32.gmra.mrb[0].mxu0 %v6778
  %v6857 = vpop.f32.mrb[0].mxu0
  %v6858 = vadd.f32 0.0, %v6857
  %v6859 = vpop.f32.mrb[0].mxu0
  %6860 = vmatprep.mubr.f32.mxu0 0.0
  %6861 = vmatmul.mubr.f32.gmra.mrb[0].mxu0 %v6781
  %v6862 = vpop.f32.mrb[0].mxu0
  %v6863 = vadd.f32 0.0, %v6862
  %v6864 = vpop.f32.mrb[0].mxu0
  %6865 = vmatprep.mubr.f32.mxu0 0.0
  %6866 = vmatmul.mubr.f32.gmra.mrb[0].mxu0 %v6784
  %v6867 = vpop.f32.mrb[0].mxu0
  %v6868 = vadd.f32 0.0, %v6867
  %v6869 = vpop.f32.mrb[0].mxu0
  %6870 = vdwg.mxu0
  %v6871 = vadd.f32 %v5978, %v6853
  %v6872 = vadd.f32 %v5984, %v6858
  %v6873 = vadd.f32 %v5990, %v6863
  %v6874 = vadd.f32 %v5996, %v6868
  %6875 = vmatprep.subr.mxu0 0.0
  %6876 = vmatpush1.msra.mxu0 %v6871
  %6877 = vmatprep.subr.mxu0 0.0
  %6878 = vmatpush1.msra.mxu0 %v6872
  %6879 = vmatprep.subr.mxu0 0.0
  %6880 = vmatpush1.msra.mxu0 %v6873
  %6881 = vmatprep.subr.mxu0 0.0
  %6882 = vmatpush1.msra.mxu0 %v6874
  %6883 = vmatprep.subr.mxu0 0.0
  %6884 = vmatpush1.msra.mxu0 0.0
  %6885 = vmatprep.subr.mxu0 0.0
  %6886 = vmatpush1.msra.mxu0 0.0
  %6887 = vmatprep.subr.mxu0 0.0
  %6888 = vmatpush1.msra.mxu0 0.0
  %6889 = vmatprep.subr.mxu0 0.0
  %6890 = vmatpush1.msra.mxu0 0.0
  %6891 = vmatprep.subr.mxu0 0.0
  %6892 = vmatpush1.msra.mxu0 0.0
  %6893 = vmatprep.subr.mxu0 0.0
  %6894 = vmatpush1.msra.mxu0 0.0
  %6895 = vmatprep.subr.mxu0 0.0
  %6896 = vmatpush1.msra.mxu0 0.0
  %6897 = vmatprep.subr.mxu0 0.0
  %6898 = vmatpush1.msra.mxu0 0.0
  %6899 = vmatprep.subr.mxu0 0.0
  %6900 = vmatpush1.msra.mxu0 0.0
  %6901 = vmatprep.subr.mxu0 0.0
  %6902 = vmatpush1.msra.mxu0 0.0
  %6903 = vmatprep.subr.mxu0 0.0
  %6904 = vmatpush1.msra.mxu0 0.0
  %6905 = vmatprep.subr.mxu0 0.0
  %6906 = vmatpush1.msra.mxu0 0.0
  %6907 = vmatprep.subr.mxu0 0.0
  %6908 = vmatpush1.msra.mxu0 0.0
  %6909 = vmatprep.subr.mxu0 0.0
  %6910 = vmatpush1.msra.mxu0 0.0
  %6911 = vmatprep.subr.mxu0 0.0
  %6912 = vmatpush1.msra.mxu0 0.0
  %6913 = vmatprep.subr.mxu0 0.0
  %6914 = vmatpush1.msra.mxu0 0.0
  %6915 = vmatprep.subr.mxu0 0.0
  %6916 = vmatpush1.msra.mxu0 0.0
  %6917 = vmatprep.subr.mxu0 0.0
  %6918 = vmatpush1.msra.mxu0 0.0
  %6919 = vmatprep.subr.mxu0 0.0
  %6920 = vmatpush1.msra.mxu0 0.0
  %6921 = vmatprep.subr.mxu0 0.0
  %6922 = vmatpush1.msra.mxu0 0.0
  %6923 = vmatprep.subr.mxu0 0.0
  %6924 = vmatpush1.msra.mxu0 0.0
  %6925 = vmatprep.subr.mxu0 0.0
  %6926 = vmatpush1.msra.mxu0 0.0
  %6927 = vmatprep.subr.mxu0 0.0
  %6928 = vmatpush1.msra.mxu0 0.0
  %6929 = vmatprep.subr.mxu0 0.0
  %6930 = vmatpush1.msra.mxu0 0.0
  %6931 = vmatprep.subr.mxu0 0.0
  %6932 = vmatpush1.msra.mxu0 0.0
  %6933 = vmatprep.subr.mxu0 0.0
  %6934 = vmatpush1.msra.mxu0 0.0
  %6935 = vmatprep.subr.mxu0 0.0
  %6936 = vmatpush1.msra.mxu0 0.0
  %6937 = vmatprep.subr.mxu0 0.0
  %6938 = vmatpush1.msra.mxu0 0.0
  %6939 = vmatprep.mubr.f32.mxu0 0.0
  %6940 = vmatmul.mubr.f32.gmra.mrb[0].mxu0 %v559
  %v6941 = vpop.f32.mrb[0].mxu0
  %v6942 = vadd.f32 0.0, %v6941
  %v6943 = vpop.f32.mrb[0].mxu0
  %6944 = vmatprep.mubr.f32.mxu0 0.0
  %6945 = vmatmul.mubr.f32.gmra.mrb[0].mxu0 %v562
  %v6946 = vpop.f32.mrb[0].mxu0
  %v6947 = vadd.f32 0.0, %v6946
  %v6948 = vpop.f32.mrb[0].mxu0
  %6949 = vmatprep.mubr.f32.mxu0 0.0
  %6950 = vmatmul.mubr.f32.gmra.mrb[0].mxu0 %v565
  %v6951 = vpop.f32.mrb[0].mxu0
  %v6952 = vadd.f32 0.0, %v6951
  %v6953 = vpop.f32.mrb[0].mxu0
  %6954 = vmatprep.mubr.f32.mxu0 0.0
  %6955 = vmatmul.mubr.f32.gmra.mrb[0].mxu0 %v568
  %v6956 = vpop.f32.mrb[0].mxu0
  %v6957 = vadd.f32 0.0, %v6956
  %v6958 = vpop.f32.mrb[0].mxu0
  %6959 = vdwg.mxu0
  %v6960 = vadd.f32 %v5782, %v6942
  %v6961 = vadd.f32 %v5782, %v6947
  %v6962 = vadd.f32 %v5782, %v6952
  %v6963 = vadd.f32 %v5782, %v6957
  %6968 = vrot.lane.b32.xlu0 %v6871, 64
  %v6969 = vpop.permute.xlu0 %6968
  %6970 = vrot.lane.b32.xlu0 %v6872, 64
  %v6971 = vpop.permute.xlu0 %6970
  %6972 = vrot.lane.b32.xlu0 %v6873, 64
  %v6973 = vpop.permute.xlu0 %6972
  %6974 = vrot.lane.b32.xlu0 %v6874, 64
  %v6975 = vpop.permute.xlu0 %6974
  %6980 = vmatprep.subr.mxu0 0.0
  %6981 = vmatpush1.msra.mxu0 %v6969
  %6982 = vmatprep.subr.mxu0 0.0
  %6983 = vmatpush1.msra.mxu0 %v6971
  %6984 = vmatprep.subr.mxu0 0.0
  %6985 = vmatpush1.msra.mxu0 %v6973
  %6986 = vmatprep.subr.mxu0 0.0
  %6987 = vmatpush1.msra.mxu0 %v6975
  %6988 = vmatprep.subr.mxu0 0.0
  %6989 = vmatpush1.msra.mxu0 0.0
  %6990 = vmatprep.subr.mxu0 0.0
  %6991 = vmatpush1.msra.mxu0 0.0
  %6992 = vmatprep.subr.mxu0 0.0
  %6993 = vmatpush1.msra.mxu0 0.0
  %6994 = vmatprep.subr.mxu0 0.0
  %6995 = vmatpush1.msra.mxu0 0.0
  %6996 = vmatprep.subr.mxu0 0.0
  %6997 = vmatpush1.msra.mxu0 0.0
  %6998 = vmatprep.subr.mxu0 0.0
  %6999 = vmatpush1.msra.mxu0 0.0
  %7000 = vmatprep.subr.mxu0 0.0
  %7001 = vmatpush1.msra.mxu0 0.0
  %7002 = vmatprep.subr.mxu0 0.0
  %7003 = vmatpush1.msra.mxu0 0.0
  %7004 = vmatprep.subr.mxu0 0.0
  %7005 = vmatpush1.msra.mxu0 0.0
  %7006 = vmatprep.subr.mxu0 0.0
  %7007 = vmatpush1.msra.mxu0 0.0
  %7008 = vmatprep.subr.mxu0 0.0
  %7009 = vmatpush1.msra.mxu0 0.0
  %7010 = vmatprep.subr.mxu0 0.0
  %7011 = vmatpush1.msra.mxu0 0.0
  %7012 = vmatprep.subr.mxu0 0.0
  %7013 = vmatpush1.msra.mxu0 0.0
  %7014 = vmatprep.subr.mxu0 0.0
  %7015 = vmatpush1.msra.mxu0 0.0
  %7016 = vmatprep.subr.mxu0 0.0
  %7017 = vmatpush1.msra.mxu0 0.0
  %7018 = vmatprep.subr.mxu0 0.0
  %7019 = vmatpush1.msra.mxu0 0.0
  %7020 = vmatprep.subr.mxu0 0.0
  %7021 = vmatpush1.msra.mxu0 0.0
  %7022 = vmatprep.subr.mxu0 0.0
  %7023 = vmatpush1.msra.mxu0 0.0
  %7024 = vmatprep.subr.mxu0 0.0
  %7025 = vmatpush1.msra.mxu0 0.0
  %7026 = vmatprep.subr.mxu0 0.0
  %7027 = vmatpush1.msra.mxu0 0.0
  %7028 = vmatprep.subr.mxu0 0.0
  %7029 = vmatpush1.msra.mxu0 0.0
  %7030 = vmatprep.subr.mxu0 0.0
  %7031 = vmatpush1.msra.mxu0 0.0
  %7032 = vmatprep.subr.mxu0 0.0
  %7033 = vmatpush1.msra.mxu0 0.0
  %7034 = vmatprep.subr.mxu0 0.0
  %7035 = vmatpush1.msra.mxu0 0.0
  %7036 = vmatprep.subr.mxu0 0.0
  %7037 = vmatpush1.msra.mxu0 0.0
  %7038 = vmatprep.subr.mxu0 0.0
  %7039 = vmatpush1.msra.mxu0 0.0
  %7040 = vmatprep.subr.mxu0 0.0
  %7041 = vmatpush1.msra.mxu0 0.0
  %7042 = vmatprep.subr.mxu0 0.0
  %7043 = vmatpush1.msra.mxu0 0.0
  %7044 = vmatprep.mubr.f32.mxu0 0.0
  %7045 = vmatmul.mubr.f32.gmra.mrb[0].mxu0 %v676
  %v7046 = vpop.f32.mrb[0].mxu0
  %v7047 = vadd.f32 0.0, %v7046
  %v7048 = vpop.f32.mrb[0].mxu0
  %7049 = vmatprep.mubr.f32.mxu0 0.0
  %7050 = vmatmul.mubr.f32.gmra.mrb[0].mxu0 %v679
  %v7051 = vpop.f32.mrb[0].mxu0
  %v7052 = vadd.f32 0.0, %v7051
  %v7053 = vpop.f32.mrb[0].mxu0
  %7054 = vmatprep.mubr.f32.mxu0 0.0
  %7055 = vmatmul.mubr.f32.gmra.mrb[0].mxu0 %v682
  %v7056 = vpop.f32.mrb[0].mxu0
  %v7057 = vadd.f32 0.0, %v7056
  %v7058 = vpop.f32.mrb[0].mxu0
  %7059 = vmatprep.mubr.f32.mxu0 0.0
  %7060 = vmatmul.mubr.f32.gmra.mrb[0].mxu0 %v685
  %v7061 = vpop.f32.mrb[0].mxu0
  %v7062 = vadd.f32 0.0, %v7061
  %v7063 = vpop.f32.mrb[0].mxu0
  %7064 = vdwg.mxu0
  %v7065 = vadd.f32 %v6960, %v7047
  %v7066 = vadd.f32 %v6961, %v7052
  %v7067 = vadd.f32 %v6962, %v7057
  %v7068 = vadd.f32 %v6963, %v7062
  %v7069 = vxor.u32 %v7065, 2147483648
  %v7070 = vxor.u32 %v7066, 2147483648
  %v7071 = vxor.u32 %v7067, 2147483648
  %v7072 = vxor.u32 %v7068, 2147483648
  %v7073 = vmul.f32 %v7069, 1.442695
  %v7074 = vpow.pop %v7073
  %v7075 = vmul.f32 %v7070, 1.442695
  %v7076 = vpow.pop %v7075
  %v7077 = vmul.f32 %v7071, 1.442695
  %v7078 = vpow.pop %v7077
  %v7079 = vmul.f32 %v7072, 1.442695
  %v7080 = vpow.pop %v7079
  %v7081 = vadd.f32 %v7074, 1.0
  %v7082 = vadd.f32 %v7076, 1.0
  %v7083 = vadd.f32 %v7078, 1.0
  %v7084 = vadd.f32 %v7080, 1.0
  %v7085 = vrcp.pop %v7081
  %v7086 = vmul.f32 1.0, %v7085
  %v7087 = vrcp.pop %v7082
  %v7088 = vmul.f32 1.0, %v7087
  %v7089 = vrcp.pop %v7083
  %v7090 = vmul.f32 1.0, %v7089
  %v7091 = vrcp.pop %v7084
  %v7092 = vmul.f32 1.0, %v7091
  %7093 = vrot.lane.b32.xlu0 %v6766, 32
  %v7094 = vpop.permute.xlu0 %7093
  %7095 = vrot.lane.b32.xlu0 %v6767, 32
  %v7096 = vpop.permute.xlu0 %7095
  %7097 = vrot.lane.b32.xlu0 %v6768, 32
  %v7098 = vpop.permute.xlu0 %7097
  %7099 = vrot.lane.b32.xlu0 %v6769, 32
  %v7100 = vpop.permute.xlu0 %7099
  %v7105 = vmul.f32 %v7086, %v7094
  %v7106 = vmul.f32 %v7088, %v7096
  %v7107 = vmul.f32 %v7090, %v7098
  %v7108 = vmul.f32 %v7092, %v7100
  %7113 = vrot.lane.b32.xlu0 %v7105, 96
  %v7114 = vpop.permute.xlu0 %7113
  %7115 = vrot.lane.b32.xlu0 %v7106, 96
  %v7116 = vpop.permute.xlu0 %7115
  %7117 = vrot.lane.b32.xlu0 %v7107, 96
  %v7118 = vpop.permute.xlu0 %7117
  %7119 = vrot.lane.b32.xlu0 %v7108, 96
  %v7120 = vpop.permute.xlu0 %7119
  %v7121 = vsel %vm465, %v7114, 0
  %v7123 = vsel %vm465, %v7116, 0
  %v7125 = vsel %vm465, %v7118, 0
  %v7127 = vsel %vm465, %v7120, 0
  %7129 = vmatprep.subr.mxu0 0.0
  %7130 = vmatpush1.msra.mxu0 %v5773
  %7131 = vmatprep.subr.mxu0 0.0
  %7132 = vmatpush1.msra.mxu0 %v5774
  %7133 = vmatprep.subr.mxu0 0.0
  %7134 = vmatpush1.msra.mxu0 %v5775
  %7135 = vmatprep.subr.mxu0 0.0
  %7136 = vmatpush1.msra.mxu0 %v5776
  %7137 = vmatprep.subr.mxu0 0.0
  %7138 = vmatpush1.msra.mxu0 0.0
  %7139 = vmatprep.subr.mxu0 0.0
  %7140 = vmatpush1.msra.mxu0 0.0
  %7141 = vmatprep.subr.mxu0 0.0
  %7142 = vmatpush1.msra.mxu0 0.0
  %7143 = vmatprep.subr.mxu0 0.0
  %7144 = vmatpush1.msra.mxu0 0.0
  %7145 = vmatprep.subr.mxu0 0.0
  %7146 = vmatpush1.msra.mxu0 0.0
  %7147 = vmatprep.subr.mxu0 0.0
  %7148 = vmatpush1.msra.mxu0 0.0
  %7149 = vmatprep.subr.mxu0 0.0
  %7150 = vmatpush1.msra.mxu0 0.0
  %7151 = vmatprep.subr.mxu0 0.0
  %7152 = vmatpush1.msra.mxu0 0.0
  %7153 = vmatprep.subr.mxu0 0.0
  %7154 = vmatpush1.msra.mxu0 0.0
  %7155 = vmatprep.subr.mxu0 0.0
  %7156 = vmatpush1.msra.mxu0 0.0
  %7157 = vmatprep.subr.mxu0 0.0
  %7158 = vmatpush1.msra.mxu0 0.0
  %7159 = vmatprep.subr.mxu0 0.0
  %7160 = vmatpush1.msra.mxu0 0.0
  %7161 = vmatprep.subr.mxu0 0.0
  %7162 = vmatpush1.msra.mxu0 0.0
  %7163 = vmatprep.subr.mxu0 0.0
  %7164 = vmatpush1.msra.mxu0 0.0
  %7165 = vmatprep.subr.mxu0 0.0
  %7166 = vmatpush1.msra.mxu0 0.0
  %7167 = vmatprep.subr.mxu0 0.0
  %7168 = vmatpush1.msra.mxu0 0.0
  %7169 = vmatprep.subr.mxu0 0.0
  %7170 = vmatpush1.msra.mxu0 0.0
  %7171 = vmatprep.subr.mxu0 0.0
  %7172 = vmatpush1.msra.mxu0 0.0
  %7173 = vmatprep.subr.mxu0 0.0
  %7174 = vmatpush1.msra.mxu0 0.0
  %7175 = vmatprep.subr.mxu0 0.0
  %7176 = vmatpush1.msra.mxu0 0.0
  %7177 = vmatprep.subr.mxu0 0.0
  %7178 = vmatpush1.msra.mxu0 0.0
  %7179 = vmatprep.subr.mxu0 0.0
  %7180 = vmatpush1.msra.mxu0 0.0
  %7181 = vmatprep.subr.mxu0 0.0
  %7182 = vmatpush1.msra.mxu0 0.0
  %7183 = vmatprep.subr.mxu0 0.0
  %7184 = vmatpush1.msra.mxu0 0.0
  %7185 = vmatprep.subr.mxu0 0.0
  %7186 = vmatpush1.msra.mxu0 0.0
  %7187 = vmatprep.subr.mxu0 0.0
  %7188 = vmatpush1.msra.mxu0 0.0
  %7189 = vmatprep.subr.mxu0 0.0
  %7190 = vmatpush1.msra.mxu0 0.0
  %7191 = vmatprep.subr.mxu0 0.0
  %7192 = vmatpush1.msra.mxu0 0.0
  %7193 = vmatprep.mubr.f32.mxu0 0.0
  %7194 = vmatmul.mubr.f32.gmra.mrb[0].mxu0 %v7121
  %v7195 = vpop.f32.mrb[0].mxu0
  %v7196 = vadd.f32 0.0, %v7195
  %v7197 = vpop.f32.mrb[0].mxu0
  %7198 = vmatprep.mubr.f32.mxu0 0.0
  %7199 = vmatmul.mubr.f32.gmra.mrb[0].mxu0 %v7123
  %v7200 = vpop.f32.mrb[0].mxu0
  %v7201 = vadd.f32 0.0, %v7200
  %v7202 = vpop.f32.mrb[0].mxu0
  %7203 = vmatprep.mubr.f32.mxu0 0.0
  %7204 = vmatmul.mubr.f32.gmra.mrb[0].mxu0 %v7125
  %v7205 = vpop.f32.mrb[0].mxu0
  %v7206 = vadd.f32 0.0, %v7205
  %v7207 = vpop.f32.mrb[0].mxu0
  %7208 = vmatprep.mubr.f32.mxu0 0.0
  %7209 = vmatmul.mubr.f32.gmra.mrb[0].mxu0 %v7127
  %v7210 = vpop.f32.mrb[0].mxu0
  %v7211 = vadd.f32 0.0, %v7210
  %v7212 = vpop.f32.mrb[0].mxu0
  %7213 = vdwg.mxu0
  %v7214 = vadd.f32 %v5980, %v7196
  %v7215 = vadd.f32 %v5986, %v7201
  %v7216 = vadd.f32 %v5992, %v7206
  %v7217 = vadd.f32 %v5998, %v7211
  %7218 = vmatprep.subr.mxu0 0.0
  %7219 = vmatpush1.msra.mxu0 %v7214
  %7220 = vmatprep.subr.mxu0 0.0
  %7221 = vmatpush1.msra.mxu0 %v7215
  %7222 = vmatprep.subr.mxu0 0.0
  %7223 = vmatpush1.msra.mxu0 %v7216
  %7224 = vmatprep.subr.mxu0 0.0
  %7225 = vmatpush1.msra.mxu0 %v7217
  %7226 = vmatprep.subr.mxu0 0.0
  %7227 = vmatpush1.msra.mxu0 0.0
  %7228 = vmatprep.subr.mxu0 0.0
  %7229 = vmatpush1.msra.mxu0 0.0
  %7230 = vmatprep.subr.mxu0 0.0
  %7231 = vmatpush1.msra.mxu0 0.0
  %7232 = vmatprep.subr.mxu0 0.0
  %7233 = vmatpush1.msra.mxu0 0.0
  %7234 = vmatprep.subr.mxu0 0.0
  %7235 = vmatpush1.msra.mxu0 0.0
  %7236 = vmatprep.subr.mxu0 0.0
  %7237 = vmatpush1.msra.mxu0 0.0
  %7238 = vmatprep.subr.mxu0 0.0
  %7239 = vmatpush1.msra.mxu0 0.0
  %7240 = vmatprep.subr.mxu0 0.0
  %7241 = vmatpush1.msra.mxu0 0.0
  %7242 = vmatprep.subr.mxu0 0.0
  %7243 = vmatpush1.msra.mxu0 0.0
  %7244 = vmatprep.subr.mxu0 0.0
  %7245 = vmatpush1.msra.mxu0 0.0
  %7246 = vmatprep.subr.mxu0 0.0
  %7247 = vmatpush1.msra.mxu0 0.0
  %7248 = vmatprep.subr.mxu0 0.0
  %7249 = vmatpush1.msra.mxu0 0.0
  %7250 = vmatprep.subr.mxu0 0.0
  %7251 = vmatpush1.msra.mxu0 0.0
  %7252 = vmatprep.subr.mxu0 0.0
  %7253 = vmatpush1.msra.mxu0 0.0
  %7254 = vmatprep.subr.mxu0 0.0
  %7255 = vmatpush1.msra.mxu0 0.0
  %7256 = vmatprep.subr.mxu0 0.0
  %7257 = vmatpush1.msra.mxu0 0.0
  %7258 = vmatprep.subr.mxu0 0.0
  %7259 = vmatpush1.msra.mxu0 0.0
  %7260 = vmatprep.subr.mxu0 0.0
  %7261 = vmatpush1.msra.mxu0 0.0
  %7262 = vmatprep.subr.mxu0 0.0
  %7263 = vmatpush1.msra.mxu0 0.0
  %7264 = vmatprep.subr.mxu0 0.0
  %7265 = vmatpush1.msra.mxu0 0.0
  %7266 = vmatprep.subr.mxu0 0.0
  %7267 = vmatpush1.msra.mxu0 0.0
  %7268 = vmatprep.subr.mxu0 0.0
  %7269 = vmatpush1.msra.mxu0 0.0
  %7270 = vmatprep.subr.mxu0 0.0
  %7271 = vmatpush1.msra.mxu0 0.0
  %7272 = vmatprep.subr.mxu0 0.0
  %7273 = vmatpush1.msra.mxu0 0.0
  %7274 = vmatprep.subr.mxu0 0.0
  %7275 = vmatpush1.msra.mxu0 0.0
  %7276 = vmatprep.subr.mxu0 0.0
  %7277 = vmatpush1.msra.mxu0 0.0
  %7278 = vmatprep.subr.mxu0 0.0
  %7279 = vmatpush1.msra.mxu0 0.0
  %7280 = vmatprep.subr.mxu0 0.0
  %7281 = vmatpush1.msra.mxu0 0.0
  %7282 = vmatprep.mubr.f32.mxu0 0.0
  %7283 = vmatmul.mubr.f32.gmra.mrb[0].mxu0 %v559
  %v7284 = vpop.f32.mrb[0].mxu0
  %v7285 = vadd.f32 0.0, %v7284
  %v7286 = vpop.f32.mrb[0].mxu0
  %7287 = vmatprep.mubr.f32.mxu0 0.0
  %7288 = vmatmul.mubr.f32.gmra.mrb[0].mxu0 %v562
  %v7289 = vpop.f32.mrb[0].mxu0
  %v7290 = vadd.f32 0.0, %v7289
  %v7291 = vpop.f32.mrb[0].mxu0
  %7292 = vmatprep.mubr.f32.mxu0 0.0
  %7293 = vmatmul.mubr.f32.gmra.mrb[0].mxu0 %v565
  %v7294 = vpop.f32.mrb[0].mxu0
  %v7295 = vadd.f32 0.0, %v7294
  %v7296 = vpop.f32.mrb[0].mxu0
  %7297 = vmatprep.mubr.f32.mxu0 0.0
  %7298 = vmatmul.mubr.f32.gmra.mrb[0].mxu0 %v568
  %v7299 = vpop.f32.mrb[0].mxu0
  %v7300 = vadd.f32 0.0, %v7299
  %v7301 = vpop.f32.mrb[0].mxu0
  %7302 = vdwg.mxu0
  %v7303 = vadd.f32 %v5789, %v7285
  %v7304 = vadd.f32 %v5789, %v7290
  %v7305 = vadd.f32 %v5789, %v7295
  %v7306 = vadd.f32 %v5789, %v7300
  %7311 = vrot.lane.b32.xlu0 %v7214, 96
  %v7312 = vpop.permute.xlu0 %7311
  %7313 = vrot.lane.b32.xlu0 %v7215, 96
  %v7314 = vpop.permute.xlu0 %7313
  %7315 = vrot.lane.b32.xlu0 %v7216, 96
  %v7316 = vpop.permute.xlu0 %7315
  %7317 = vrot.lane.b32.xlu0 %v7217, 96
  %v7318 = vpop.permute.xlu0 %7317
  %7323 = vmatprep.subr.mxu0 0.0
  %7324 = vmatpush1.msra.mxu0 %v7312
  %7325 = vmatprep.subr.mxu0 0.0
  %7326 = vmatpush1.msra.mxu0 %v7314
  %7327 = vmatprep.subr.mxu0 0.0
  %7328 = vmatpush1.msra.mxu0 %v7316
  %7329 = vmatprep.subr.mxu0 0.0
  %7330 = vmatpush1.msra.mxu0 %v7318
  %7331 = vmatprep.subr.mxu0 0.0
  %7332 = vmatpush1.msra.mxu0 0.0
  %7333 = vmatprep.subr.mxu0 0.0
  %7334 = vmatpush1.msra.mxu0 0.0
  %7335 = vmatprep.subr.mxu0 0.0
  %7336 = vmatpush1.msra.mxu0 0.0
  %7337 = vmatprep.subr.mxu0 0.0
  %7338 = vmatpush1.msra.mxu0 0.0
  %7339 = vmatprep.subr.mxu0 0.0
  %7340 = vmatpush1.msra.mxu0 0.0
  %7341 = vmatprep.subr.mxu0 0.0
  %7342 = vmatpush1.msra.mxu0 0.0
  %7343 = vmatprep.subr.mxu0 0.0
  %7344 = vmatpush1.msra.mxu0 0.0
  %7345 = vmatprep.subr.mxu0 0.0
  %7346 = vmatpush1.msra.mxu0 0.0
  %7347 = vmatprep.subr.mxu0 0.0
  %7348 = vmatpush1.msra.mxu0 0.0
  %7349 = vmatprep.subr.mxu0 0.0
  %7350 = vmatpush1.msra.mxu0 0.0
  %7351 = vmatprep.subr.mxu0 0.0
  %7352 = vmatpush1.msra.mxu0 0.0
  %7353 = vmatprep.subr.mxu0 0.0
  %7354 = vmatpush1.msra.mxu0 0.0
  %7355 = vmatprep.subr.mxu0 0.0
  %7356 = vmatpush1.msra.mxu0 0.0
  %7357 = vmatprep.subr.mxu0 0.0
  %7358 = vmatpush1.msra.mxu0 0.0
  %7359 = vmatprep.subr.mxu0 0.0
  %7360 = vmatpush1.msra.mxu0 0.0
  %7361 = vmatprep.subr.mxu0 0.0
  %7362 = vmatpush1.msra.mxu0 0.0
  %7363 = vmatprep.subr.mxu0 0.0
  %7364 = vmatpush1.msra.mxu0 0.0
  %7365 = vmatprep.subr.mxu0 0.0
  %7366 = vmatpush1.msra.mxu0 0.0
  %7367 = vmatprep.subr.mxu0 0.0
  %7368 = vmatpush1.msra.mxu0 0.0
  %7369 = vmatprep.subr.mxu0 0.0
  %7370 = vmatpush1.msra.mxu0 0.0
  %7371 = vmatprep.subr.mxu0 0.0
  %7372 = vmatpush1.msra.mxu0 0.0
  %7373 = vmatprep.subr.mxu0 0.0
  %7374 = vmatpush1.msra.mxu0 0.0
  %7375 = vmatprep.subr.mxu0 0.0
  %7376 = vmatpush1.msra.mxu0 0.0
  %7377 = vmatprep.subr.mxu0 0.0
  %7378 = vmatpush1.msra.mxu0 0.0
  %7379 = vmatprep.subr.mxu0 0.0
  %7380 = vmatpush1.msra.mxu0 0.0
  %7381 = vmatprep.subr.mxu0 0.0
  %7382 = vmatpush1.msra.mxu0 0.0
  %7383 = vmatprep.subr.mxu0 0.0
  %7384 = vmatpush1.msra.mxu0 0.0
  %7385 = vmatprep.subr.mxu0 0.0
  %7386 = vmatpush1.msra.mxu0 0.0
  %7387 = vmatprep.mubr.f32.mxu0 0.0
  %7388 = vmatmul.mubr.f32.gmra.mrb[0].mxu0 %v676
  %v7389 = vpop.f32.mrb[0].mxu0
  %v7390 = vadd.f32 0.0, %v7389
  %v7391 = vpop.f32.mrb[0].mxu0
  %7392 = vmatprep.mubr.f32.mxu0 0.0
  %7393 = vmatmul.mubr.f32.gmra.mrb[0].mxu0 %v679
  %v7394 = vpop.f32.mrb[0].mxu0
  %v7395 = vadd.f32 0.0, %v7394
  %v7396 = vpop.f32.mrb[0].mxu0
  %7397 = vmatprep.mubr.f32.mxu0 0.0
  %7398 = vmatmul.mubr.f32.gmra.mrb[0].mxu0 %v682
  %v7399 = vpop.f32.mrb[0].mxu0
  %v7400 = vadd.f32 0.0, %v7399
  %v7401 = vpop.f32.mrb[0].mxu0
  %7402 = vmatprep.mubr.f32.mxu0 0.0
  %7403 = vmatmul.mubr.f32.gmra.mrb[0].mxu0 %v685
  %v7404 = vpop.f32.mrb[0].mxu0
  %v7405 = vadd.f32 0.0, %v7404
  %v7406 = vpop.f32.mrb[0].mxu0
  %7407 = vdwg.mxu0
  %v7408 = vadd.f32 %v7303, %v7390
  %v7409 = vadd.f32 %v7304, %v7395
  %v7410 = vadd.f32 %v7305, %v7400
  %v7411 = vadd.f32 %v7306, %v7405
  %v7412 = vtanh.pop %v7408
  %v7413 = vtanh.pop %v7409
  %v7414 = vtanh.pop %v7410
  %v7415 = vtanh.pop %v7411
  %v7416 = vsub.f32 %v7412, %v6766
  %v7417 = vsub.f32 %v7413, %v6767
  %v7418 = vsub.f32 %v7414, %v6768
  %v7419 = vsub.f32 %v7415, %v6769
  %v7420 = vmul.f32 %v7086, %v7416
  %v7421 = vmul.f32 %v7088, %v7417
  %v7422 = vmul.f32 %v7090, %v7418
  %v7423 = vmul.f32 %v7092, %v7419
  %v7424 = vadd.f32 %v6766, %v7420
  %v7425 = vadd.f32 %v6767, %v7421
  %v7426 = vadd.f32 %v6768, %v7422
  %v7427 = vadd.f32 %v6769, %v7423
  %7428 = vst.msk [vmem:[%s12 + $0x20] sm:$0xff] %vm465, %v7424
  %7429 = vst.msk [vmem:[%s12 + $0x28] sm:$0xff] %vm465, %v7425
  %7430 = vst.msk [vmem:[%s12 + $0x30] sm:$0xff] %vm465, %v7426
  %7431 = vst.msk [vmem:[%s12 + $0x38] sm:$0xff] %vm465, %v7427
  %v7433 = vsel %vm465, %v7424, 0
  %v7436 = vsel %vm465, %v7425, 0
  %v7439 = vsel %vm465, %v7426, 0
  %v7442 = vsel %vm465, %v7427, 0
  %7444 = vmatprep.subr.mxu0 0.0
  %7445 = vmatpush1.msra.mxu0 %v5769
  %7446 = vmatprep.subr.mxu0 0.0
  %7447 = vmatpush1.msra.mxu0 %v5770
  %7448 = vmatprep.subr.mxu0 0.0
  %7449 = vmatpush1.msra.mxu0 %v5771
  %7450 = vmatprep.subr.mxu0 0.0
  %7451 = vmatpush1.msra.mxu0 %v5772
  %7452 = vmatprep.subr.mxu0 0.0
  %7453 = vmatpush1.msra.mxu0 0.0
  %7454 = vmatprep.subr.mxu0 0.0
  %7455 = vmatpush1.msra.mxu0 0.0
  %7456 = vmatprep.subr.mxu0 0.0
  %7457 = vmatpush1.msra.mxu0 0.0
  %7458 = vmatprep.subr.mxu0 0.0
  %7459 = vmatpush1.msra.mxu0 0.0
  %7460 = vmatprep.subr.mxu0 0.0
  %7461 = vmatpush1.msra.mxu0 0.0
  %7462 = vmatprep.subr.mxu0 0.0
  %7463 = vmatpush1.msra.mxu0 0.0
  %7464 = vmatprep.subr.mxu0 0.0
  %7465 = vmatpush1.msra.mxu0 0.0
  %7466 = vmatprep.subr.mxu0 0.0
  %7467 = vmatpush1.msra.mxu0 0.0
  %7468 = vmatprep.subr.mxu0 0.0
  %7469 = vmatpush1.msra.mxu0 0.0
  %7470 = vmatprep.subr.mxu0 0.0
  %7471 = vmatpush1.msra.mxu0 0.0
  %7472 = vmatprep.subr.mxu0 0.0
  %7473 = vmatpush1.msra.mxu0 0.0
  %7474 = vmatprep.subr.mxu0 0.0
  %7475 = vmatpush1.msra.mxu0 0.0
  %7476 = vmatprep.subr.mxu0 0.0
  %7477 = vmatpush1.msra.mxu0 0.0
  %7478 = vmatprep.subr.mxu0 0.0
  %7479 = vmatpush1.msra.mxu0 0.0
  %7480 = vmatprep.subr.mxu0 0.0
  %7481 = vmatpush1.msra.mxu0 0.0
  %7482 = vmatprep.subr.mxu0 0.0
  %7483 = vmatpush1.msra.mxu0 0.0
  %7484 = vmatprep.subr.mxu0 0.0
  %7485 = vmatpush1.msra.mxu0 0.0
  %7486 = vmatprep.subr.mxu0 0.0
  %7487 = vmatpush1.msra.mxu0 0.0
  %7488 = vmatprep.subr.mxu0 0.0
  %7489 = vmatpush1.msra.mxu0 0.0
  %7490 = vmatprep.subr.mxu0 0.0
  %7491 = vmatpush1.msra.mxu0 0.0
  %7492 = vmatprep.subr.mxu0 0.0
  %7493 = vmatpush1.msra.mxu0 0.0
  %7494 = vmatprep.subr.mxu0 0.0
  %7495 = vmatpush1.msra.mxu0 0.0
  %7496 = vmatprep.subr.mxu0 0.0
  %7497 = vmatpush1.msra.mxu0 0.0
  %7498 = vmatprep.subr.mxu0 0.0
  %7499 = vmatpush1.msra.mxu0 0.0
  %7500 = vmatprep.subr.mxu0 0.0
  %7501 = vmatpush1.msra.mxu0 0.0
  %7502 = vmatprep.subr.mxu0 0.0
  %7503 = vmatpush1.msra.mxu0 0.0
  %7504 = vmatprep.subr.mxu0 0.0
  %7505 = vmatpush1.msra.mxu0 0.0
  %7506 = vmatprep.subr.mxu0 0.0
  %7507 = vmatpush1.msra.mxu0 0.0
  %7508 = vmatprep.mubr.f32.mxu0 0.0
  %7509 = vmatmul.mubr.f32.gmra.mrb[0].mxu0 %v7433
  %v7510 = vpop.f32.mrb[0].mxu0
  %v7511 = vadd.f32 0.0, %v7510
  %v7512 = vpop.f32.mrb[0].mxu0
  %7513 = vmatprep.mubr.f32.mxu0 0.0
  %7514 = vmatmul.mubr.f32.gmra.mrb[0].mxu0 %v7436
  %v7515 = vpop.f32.mrb[0].mxu0
  %v7516 = vadd.f32 0.0, %v7515
  %v7517 = vpop.f32.mrb[0].mxu0
  %7518 = vmatprep.mubr.f32.mxu0 0.0
  %7519 = vmatmul.mubr.f32.gmra.mrb[0].mxu0 %v7439
  %v7520 = vpop.f32.mrb[0].mxu0
  %v7521 = vadd.f32 0.0, %v7520
  %v7522 = vpop.f32.mrb[0].mxu0
  %7523 = vmatprep.mubr.f32.mxu0 0.0
  %7524 = vmatmul.mubr.f32.gmra.mrb[0].mxu0 %v7442
  %v7525 = vpop.f32.mrb[0].mxu0
  %v7526 = vadd.f32 0.0, %v7525
  %v7527 = vpop.f32.mrb[0].mxu0
  %7528 = vdwg.mxu0
  %v7529 = vadd.f32 %v6002, %v7511
  %v7530 = vadd.f32 %v6008, %v7516
  %v7531 = vadd.f32 %v6014, %v7521
  %v7532 = vadd.f32 %v6020, %v7526
  %7533 = vmatprep.subr.mxu0 0.0
  %7534 = vmatpush1.msra.mxu0 %v7529
  %7535 = vmatprep.subr.mxu0 0.0
  %7536 = vmatpush1.msra.mxu0 %v7530
  %7537 = vmatprep.subr.mxu0 0.0
  %7538 = vmatpush1.msra.mxu0 %v7531
  %7539 = vmatprep.subr.mxu0 0.0
  %7540 = vmatpush1.msra.mxu0 %v7532
  %7541 = vmatprep.subr.mxu0 0.0
  %7542 = vmatpush1.msra.mxu0 0.0
  %7543 = vmatprep.subr.mxu0 0.0
  %7544 = vmatpush1.msra.mxu0 0.0
  %7545 = vmatprep.subr.mxu0 0.0
  %7546 = vmatpush1.msra.mxu0 0.0
  %7547 = vmatprep.subr.mxu0 0.0
  %7548 = vmatpush1.msra.mxu0 0.0
  %7549 = vmatprep.subr.mxu0 0.0
  %7550 = vmatpush1.msra.mxu0 0.0
  %7551 = vmatprep.subr.mxu0 0.0
  %7552 = vmatpush1.msra.mxu0 0.0
  %7553 = vmatprep.subr.mxu0 0.0
  %7554 = vmatpush1.msra.mxu0 0.0
  %7555 = vmatprep.subr.mxu0 0.0
  %7556 = vmatpush1.msra.mxu0 0.0
  %7557 = vmatprep.subr.mxu0 0.0
  %7558 = vmatpush1.msra.mxu0 0.0
  %7559 = vmatprep.subr.mxu0 0.0
  %7560 = vmatpush1.msra.mxu0 0.0
  %7561 = vmatprep.subr.mxu0 0.0
  %7562 = vmatpush1.msra.mxu0 0.0
  %7563 = vmatprep.subr.mxu0 0.0
  %7564 = vmatpush1.msra.mxu0 0.0
  %7565 = vmatprep.subr.mxu0 0.0
  %7566 = vmatpush1.msra.mxu0 0.0
  %7567 = vmatprep.subr.mxu0 0.0
  %7568 = vmatpush1.msra.mxu0 0.0
  %7569 = vmatprep.subr.mxu0 0.0
  %7570 = vmatpush1.msra.mxu0 0.0
  %7571 = vmatprep.subr.mxu0 0.0
  %7572 = vmatpush1.msra.mxu0 0.0
  %7573 = vmatprep.subr.mxu0 0.0
  %7574 = vmatpush1.msra.mxu0 0.0
  %7575 = vmatprep.subr.mxu0 0.0
  %7576 = vmatpush1.msra.mxu0 0.0
  %7577 = vmatprep.subr.mxu0 0.0
  %7578 = vmatpush1.msra.mxu0 0.0
  %7579 = vmatprep.subr.mxu0 0.0
  %7580 = vmatpush1.msra.mxu0 0.0
  %7581 = vmatprep.subr.mxu0 0.0
  %7582 = vmatpush1.msra.mxu0 0.0
  %7583 = vmatprep.subr.mxu0 0.0
  %7584 = vmatpush1.msra.mxu0 0.0
  %7585 = vmatprep.subr.mxu0 0.0
  %7586 = vmatpush1.msra.mxu0 0.0
  %7587 = vmatprep.subr.mxu0 0.0
  %7588 = vmatpush1.msra.mxu0 0.0
  %7589 = vmatprep.subr.mxu0 0.0
  %7590 = vmatpush1.msra.mxu0 0.0
  %7591 = vmatprep.subr.mxu0 0.0
  %7592 = vmatpush1.msra.mxu0 0.0
  %7593 = vmatprep.subr.mxu0 0.0
  %7594 = vmatpush1.msra.mxu0 0.0
  %7595 = vmatprep.subr.mxu0 0.0
  %7596 = vmatpush1.msra.mxu0 0.0
  %7597 = vmatprep.mubr.f32.mxu0 0.0
  %7598 = vmatmul.mubr.f32.gmra.mrb[0].mxu0 %v559
  %v7599 = vpop.f32.mrb[0].mxu0
  %v7600 = vadd.f32 0.0, %v7599
  %v7601 = vpop.f32.mrb[0].mxu0
  %7602 = vmatprep.mubr.f32.mxu0 0.0
  %7603 = vmatmul.mubr.f32.gmra.mrb[0].mxu0 %v562
  %v7604 = vpop.f32.mrb[0].mxu0
  %v7605 = vadd.f32 0.0, %v7604
  %v7606 = vpop.f32.mrb[0].mxu0
  %7607 = vmatprep.mubr.f32.mxu0 0.0
  %7608 = vmatmul.mubr.f32.gmra.mrb[0].mxu0 %v565
  %v7609 = vpop.f32.mrb[0].mxu0
  %v7610 = vadd.f32 0.0, %v7609
  %v7611 = vpop.f32.mrb[0].mxu0
  %7612 = vmatprep.mubr.f32.mxu0 0.0
  %7613 = vmatmul.mubr.f32.gmra.mrb[0].mxu0 %v568
  %v7614 = vpop.f32.mrb[0].mxu0
  %v7615 = vadd.f32 0.0, %v7614
  %v7616 = vpop.f32.mrb[0].mxu0
  %7617 = vdwg.mxu0
  %v7618 = vadd.f32 %v5782, %v7600
  %v7619 = vadd.f32 %v5782, %v7605
  %v7620 = vadd.f32 %v5782, %v7610
  %v7621 = vadd.f32 %v5782, %v7615
  %7626 = vrot.lane.b32.xlu0 %v7529, 64
  %v7627 = vpop.permute.xlu0 %7626
  %7628 = vrot.lane.b32.xlu0 %v7530, 64
  %v7629 = vpop.permute.xlu0 %7628
  %7630 = vrot.lane.b32.xlu0 %v7531, 64
  %v7631 = vpop.permute.xlu0 %7630
  %7632 = vrot.lane.b32.xlu0 %v7532, 64
  %v7633 = vpop.permute.xlu0 %7632
  %7638 = vmatprep.subr.mxu0 0.0
  %7639 = vmatpush1.msra.mxu0 %v7627
  %7640 = vmatprep.subr.mxu0 0.0
  %7641 = vmatpush1.msra.mxu0 %v7629
  %7642 = vmatprep.subr.mxu0 0.0
  %7643 = vmatpush1.msra.mxu0 %v7631
  %7644 = vmatprep.subr.mxu0 0.0
  %7645 = vmatpush1.msra.mxu0 %v7633
  %7646 = vmatprep.subr.mxu0 0.0
  %7647 = vmatpush1.msra.mxu0 0.0
  %7648 = vmatprep.subr.mxu0 0.0
  %7649 = vmatpush1.msra.mxu0 0.0
  %7650 = vmatprep.subr.mxu0 0.0
  %7651 = vmatpush1.msra.mxu0 0.0
  %7652 = vmatprep.subr.mxu0 0.0
  %7653 = vmatpush1.msra.mxu0 0.0
  %7654 = vmatprep.subr.mxu0 0.0
  %7655 = vmatpush1.msra.mxu0 0.0
  %7656 = vmatprep.subr.mxu0 0.0
  %7657 = vmatpush1.msra.mxu0 0.0
  %7658 = vmatprep.subr.mxu0 0.0
  %7659 = vmatpush1.msra.mxu0 0.0
  %7660 = vmatprep.subr.mxu0 0.0
  %7661 = vmatpush1.msra.mxu0 0.0
  %7662 = vmatprep.subr.mxu0 0.0
  %7663 = vmatpush1.msra.mxu0 0.0
  %7664 = vmatprep.subr.mxu0 0.0
  %7665 = vmatpush1.msra.mxu0 0.0
  %7666 = vmatprep.subr.mxu0 0.0
  %7667 = vmatpush1.msra.mxu0 0.0
  %7668 = vmatprep.subr.mxu0 0.0
  %7669 = vmatpush1.msra.mxu0 0.0
  %7670 = vmatprep.subr.mxu0 0.0
  %7671 = vmatpush1.msra.mxu0 0.0
  %7672 = vmatprep.subr.mxu0 0.0
  %7673 = vmatpush1.msra.mxu0 0.0
  %7674 = vmatprep.subr.mxu0 0.0
  %7675 = vmatpush1.msra.mxu0 0.0
  %7676 = vmatprep.subr.mxu0 0.0
  %7677 = vmatpush1.msra.mxu0 0.0
  %7678 = vmatprep.subr.mxu0 0.0
  %7679 = vmatpush1.msra.mxu0 0.0
  %7680 = vmatprep.subr.mxu0 0.0
  %7681 = vmatpush1.msra.mxu0 0.0
  %7682 = vmatprep.subr.mxu0 0.0
  %7683 = vmatpush1.msra.mxu0 0.0
  %7684 = vmatprep.subr.mxu0 0.0
  %7685 = vmatpush1.msra.mxu0 0.0
  %7686 = vmatprep.subr.mxu0 0.0
  %7687 = vmatpush1.msra.mxu0 0.0
  %7688 = vmatprep.subr.mxu0 0.0
  %7689 = vmatpush1.msra.mxu0 0.0
  %7690 = vmatprep.subr.mxu0 0.0
  %7691 = vmatpush1.msra.mxu0 0.0
  %7692 = vmatprep.subr.mxu0 0.0
  %7693 = vmatpush1.msra.mxu0 0.0
  %7694 = vmatprep.subr.mxu0 0.0
  %7695 = vmatpush1.msra.mxu0 0.0
  %7696 = vmatprep.subr.mxu0 0.0
  %7697 = vmatpush1.msra.mxu0 0.0
  %7698 = vmatprep.subr.mxu0 0.0
  %7699 = vmatpush1.msra.mxu0 0.0
  %7700 = vmatprep.subr.mxu0 0.0
  %7701 = vmatpush1.msra.mxu0 0.0
  %7702 = vmatprep.mubr.f32.mxu0 0.0
  %7703 = vmatmul.mubr.f32.gmra.mrb[0].mxu0 %v676
  %v7704 = vpop.f32.mrb[0].mxu0
  %v7705 = vadd.f32 0.0, %v7704
  %v7706 = vpop.f32.mrb[0].mxu0
  %7707 = vmatprep.mubr.f32.mxu0 0.0
  %7708 = vmatmul.mubr.f32.gmra.mrb[0].mxu0 %v679
  %v7709 = vpop.f32.mrb[0].mxu0
  %v7710 = vadd.f32 0.0, %v7709
  %v7711 = vpop.f32.mrb[0].mxu0
  %7712 = vmatprep.mubr.f32.mxu0 0.0
  %7713 = vmatmul.mubr.f32.gmra.mrb[0].mxu0 %v682
  %v7714 = vpop.f32.mrb[0].mxu0
  %v7715 = vadd.f32 0.0, %v7714
  %v7716 = vpop.f32.mrb[0].mxu0
  %7717 = vmatprep.mubr.f32.mxu0 0.0
  %7718 = vmatmul.mubr.f32.gmra.mrb[0].mxu0 %v685
  %v7719 = vpop.f32.mrb[0].mxu0
  %v7720 = vadd.f32 0.0, %v7719
  %v7721 = vpop.f32.mrb[0].mxu0
  %7722 = vdwg.mxu0
  %v7723 = vadd.f32 %v7618, %v7705
  %v7724 = vadd.f32 %v7619, %v7710
  %v7725 = vadd.f32 %v7620, %v7715
  %v7726 = vadd.f32 %v7621, %v7720
  %v7727 = vxor.u32 %v7723, 2147483648
  %v7728 = vxor.u32 %v7724, 2147483648
  %v7729 = vxor.u32 %v7725, 2147483648
  %v7730 = vxor.u32 %v7726, 2147483648
  %v7731 = vmul.f32 %v7727, 1.442695
  %v7732 = vpow.pop %v7731
  %v7733 = vmul.f32 %v7728, 1.442695
  %v7734 = vpow.pop %v7733
  %v7735 = vmul.f32 %v7729, 1.442695
  %v7736 = vpow.pop %v7735
  %v7737 = vmul.f32 %v7730, 1.442695
  %v7738 = vpow.pop %v7737
  %v7739 = vadd.f32 %v7732, 1.0
  %v7740 = vadd.f32 %v7734, 1.0
  %v7741 = vadd.f32 %v7736, 1.0
  %v7742 = vadd.f32 %v7738, 1.0
  %v7743 = vrcp.pop %v7739
  %v7744 = vmul.f32 1.0, %v7743
  %v7745 = vrcp.pop %v7740
  %v7746 = vmul.f32 1.0, %v7745
  %v7747 = vrcp.pop %v7741
  %v7748 = vmul.f32 1.0, %v7747
  %v7749 = vrcp.pop %v7742
  %v7750 = vmul.f32 1.0, %v7749
  %7751 = vrot.lane.b32.xlu0 %v7424, 32
  %v7752 = vpop.permute.xlu0 %7751
  %7753 = vrot.lane.b32.xlu0 %v7425, 32
  %v7754 = vpop.permute.xlu0 %7753
  %7755 = vrot.lane.b32.xlu0 %v7426, 32
  %v7756 = vpop.permute.xlu0 %7755
  %7757 = vrot.lane.b32.xlu0 %v7427, 32
  %v7758 = vpop.permute.xlu0 %7757
  %v7763 = vmul.f32 %v7744, %v7752
  %v7764 = vmul.f32 %v7746, %v7754
  %v7765 = vmul.f32 %v7748, %v7756
  %v7766 = vmul.f32 %v7750, %v7758
  %7771 = vrot.lane.b32.xlu0 %v7763, 96
  %v7772 = vpop.permute.xlu0 %7771
  %7773 = vrot.lane.b32.xlu0 %v7764, 96
  %v7774 = vpop.permute.xlu0 %7773
  %7775 = vrot.lane.b32.xlu0 %v7765, 96
  %v7776 = vpop.permute.xlu0 %7775
  %7777 = vrot.lane.b32.xlu0 %v7766, 96
  %v7778 = vpop.permute.xlu0 %7777
  %v7779 = vsel %vm465, %v7772, 0
  %v7781 = vsel %vm465, %v7774, 0
  %v7783 = vsel %vm465, %v7776, 0
  %v7785 = vsel %vm465, %v7778, 0
  %7787 = vmatprep.subr.mxu0 0.0
  %7788 = vmatpush1.msra.mxu0 %v5773
  %7789 = vmatprep.subr.mxu0 0.0
  %7790 = vmatpush1.msra.mxu0 %v5774
  %7791 = vmatprep.subr.mxu0 0.0
  %7792 = vmatpush1.msra.mxu0 %v5775
  %7793 = vmatprep.subr.mxu0 0.0
  %7794 = vmatpush1.msra.mxu0 %v5776
  %7795 = vmatprep.subr.mxu0 0.0
  %7796 = vmatpush1.msra.mxu0 0.0
  %7797 = vmatprep.subr.mxu0 0.0
  %7798 = vmatpush1.msra.mxu0 0.0
  %7799 = vmatprep.subr.mxu0 0.0
  %7800 = vmatpush1.msra.mxu0 0.0
  %7801 = vmatprep.subr.mxu0 0.0
  %7802 = vmatpush1.msra.mxu0 0.0
  %7803 = vmatprep.subr.mxu0 0.0
  %7804 = vmatpush1.msra.mxu0 0.0
  %7805 = vmatprep.subr.mxu0 0.0
  %7806 = vmatpush1.msra.mxu0 0.0
  %7807 = vmatprep.subr.mxu0 0.0
  %7808 = vmatpush1.msra.mxu0 0.0
  %7809 = vmatprep.subr.mxu0 0.0
  %7810 = vmatpush1.msra.mxu0 0.0
  %7811 = vmatprep.subr.mxu0 0.0
  %7812 = vmatpush1.msra.mxu0 0.0
  %7813 = vmatprep.subr.mxu0 0.0
  %7814 = vmatpush1.msra.mxu0 0.0
  %7815 = vmatprep.subr.mxu0 0.0
  %7816 = vmatpush1.msra.mxu0 0.0
  %7817 = vmatprep.subr.mxu0 0.0
  %7818 = vmatpush1.msra.mxu0 0.0
  %7819 = vmatprep.subr.mxu0 0.0
  %7820 = vmatpush1.msra.mxu0 0.0
  %7821 = vmatprep.subr.mxu0 0.0
  %7822 = vmatpush1.msra.mxu0 0.0
  %7823 = vmatprep.subr.mxu0 0.0
  %7824 = vmatpush1.msra.mxu0 0.0
  %7825 = vmatprep.subr.mxu0 0.0
  %7826 = vmatpush1.msra.mxu0 0.0
  %7827 = vmatprep.subr.mxu0 0.0
  %7828 = vmatpush1.msra.mxu0 0.0
  %7829 = vmatprep.subr.mxu0 0.0
  %7830 = vmatpush1.msra.mxu0 0.0
  %7831 = vmatprep.subr.mxu0 0.0
  %7832 = vmatpush1.msra.mxu0 0.0
  %7833 = vmatprep.subr.mxu0 0.0
  %7834 = vmatpush1.msra.mxu0 0.0
  %7835 = vmatprep.subr.mxu0 0.0
  %7836 = vmatpush1.msra.mxu0 0.0
  %7837 = vmatprep.subr.mxu0 0.0
  %7838 = vmatpush1.msra.mxu0 0.0
  %7839 = vmatprep.subr.mxu0 0.0
  %7840 = vmatpush1.msra.mxu0 0.0
  %7841 = vmatprep.subr.mxu0 0.0
  %7842 = vmatpush1.msra.mxu0 0.0
  %7843 = vmatprep.subr.mxu0 0.0
  %7844 = vmatpush1.msra.mxu0 0.0
  %7845 = vmatprep.subr.mxu0 0.0
  %7846 = vmatpush1.msra.mxu0 0.0
  %7847 = vmatprep.subr.mxu0 0.0
  %7848 = vmatpush1.msra.mxu0 0.0
  %7849 = vmatprep.subr.mxu0 0.0
  %7850 = vmatpush1.msra.mxu0 0.0
  %7851 = vmatprep.mubr.f32.mxu0 0.0
  %7852 = vmatmul.mubr.f32.gmra.mrb[0].mxu0 %v7779
  %v7853 = vpop.f32.mrb[0].mxu0
  %v7854 = vadd.f32 0.0, %v7853
  %v7855 = vpop.f32.mrb[0].mxu0
  %7856 = vmatprep.mubr.f32.mxu0 0.0
  %7857 = vmatmul.mubr.f32.gmra.mrb[0].mxu0 %v7781
  %v7858 = vpop.f32.mrb[0].mxu0
  %v7859 = vadd.f32 0.0, %v7858
  %v7860 = vpop.f32.mrb[0].mxu0
  %7861 = vmatprep.mubr.f32.mxu0 0.0
  %7862 = vmatmul.mubr.f32.gmra.mrb[0].mxu0 %v7783
  %v7863 = vpop.f32.mrb[0].mxu0
  %v7864 = vadd.f32 0.0, %v7863
  %v7865 = vpop.f32.mrb[0].mxu0
  %7866 = vmatprep.mubr.f32.mxu0 0.0
  %7867 = vmatmul.mubr.f32.gmra.mrb[0].mxu0 %v7785
  %v7868 = vpop.f32.mrb[0].mxu0
  %v7869 = vadd.f32 0.0, %v7868
  %v7870 = vpop.f32.mrb[0].mxu0
  %7871 = vdwg.mxu0
  %v7872 = vadd.f32 %v6004, %v7854
  %v7873 = vadd.f32 %v6010, %v7859
  %v7874 = vadd.f32 %v6016, %v7864
  %v7875 = vadd.f32 %v6022, %v7869
  %7876 = vmatprep.subr.mxu0 0.0
  %7877 = vmatpush1.msra.mxu0 %v7872
  %7878 = vmatprep.subr.mxu0 0.0
  %7879 = vmatpush1.msra.mxu0 %v7873
  %7880 = vmatprep.subr.mxu0 0.0
  %7881 = vmatpush1.msra.mxu0 %v7874
  %7882 = vmatprep.subr.mxu0 0.0
  %7883 = vmatpush1.msra.mxu0 %v7875
  %7884 = vmatprep.subr.mxu0 0.0
  %7885 = vmatpush1.msra.mxu0 0.0
  %7886 = vmatprep.subr.mxu0 0.0
  %7887 = vmatpush1.msra.mxu0 0.0
  %7888 = vmatprep.subr.mxu0 0.0
  %7889 = vmatpush1.msra.mxu0 0.0
  %7890 = vmatprep.subr.mxu0 0.0
  %7891 = vmatpush1.msra.mxu0 0.0
  %7892 = vmatprep.subr.mxu0 0.0
  %7893 = vmatpush1.msra.mxu0 0.0
  %7894 = vmatprep.subr.mxu0 0.0
  %7895 = vmatpush1.msra.mxu0 0.0
  %7896 = vmatprep.subr.mxu0 0.0
  %7897 = vmatpush1.msra.mxu0 0.0
  %7898 = vmatprep.subr.mxu0 0.0
  %7899 = vmatpush1.msra.mxu0 0.0
  %7900 = vmatprep.subr.mxu0 0.0
  %7901 = vmatpush1.msra.mxu0 0.0
  %7902 = vmatprep.subr.mxu0 0.0
  %7903 = vmatpush1.msra.mxu0 0.0
  %7904 = vmatprep.subr.mxu0 0.0
  %7905 = vmatpush1.msra.mxu0 0.0
  %7906 = vmatprep.subr.mxu0 0.0
  %7907 = vmatpush1.msra.mxu0 0.0
  %7908 = vmatprep.subr.mxu0 0.0
  %7909 = vmatpush1.msra.mxu0 0.0
  %7910 = vmatprep.subr.mxu0 0.0
  %7911 = vmatpush1.msra.mxu0 0.0
  %7912 = vmatprep.subr.mxu0 0.0
  %7913 = vmatpush1.msra.mxu0 0.0
  %7914 = vmatprep.subr.mxu0 0.0
  %7915 = vmatpush1.msra.mxu0 0.0
  %7916 = vmatprep.subr.mxu0 0.0
  %7917 = vmatpush1.msra.mxu0 0.0
  %7918 = vmatprep.subr.mxu0 0.0
  %7919 = vmatpush1.msra.mxu0 0.0
  %7920 = vmatprep.subr.mxu0 0.0
  %7921 = vmatpush1.msra.mxu0 0.0
  %7922 = vmatprep.subr.mxu0 0.0
  %7923 = vmatpush1.msra.mxu0 0.0
  %7924 = vmatprep.subr.mxu0 0.0
  %7925 = vmatpush1.msra.mxu0 0.0
  %7926 = vmatprep.subr.mxu0 0.0
  %7927 = vmatpush1.msra.mxu0 0.0
  %7928 = vmatprep.subr.mxu0 0.0
  %7929 = vmatpush1.msra.mxu0 0.0
  %7930 = vmatprep.subr.mxu0 0.0
  %7931 = vmatpush1.msra.mxu0 0.0
  %7932 = vmatprep.subr.mxu0 0.0
  %7933 = vmatpush1.msra.mxu0 0.0
  %7934 = vmatprep.subr.mxu0 0.0
  %7935 = vmatpush1.msra.mxu0 0.0
  %7936 = vmatprep.subr.mxu0 0.0
  %7937 = vmatpush1.msra.mxu0 0.0
  %7938 = vmatprep.subr.mxu0 0.0
  %7939 = vmatpush1.msra.mxu0 0.0
  %7940 = vmatprep.mubr.f32.mxu0 0.0
  %7941 = vmatmul.mubr.f32.gmra.mrb[0].mxu0 %v559
  %v7942 = vpop.f32.mrb[0].mxu0
  %v7943 = vadd.f32 0.0, %v7942
  %v7944 = vpop.f32.mrb[0].mxu0
  %7945 = vmatprep.mubr.f32.mxu0 0.0
  %7946 = vmatmul.mubr.f32.gmra.mrb[0].mxu0 %v562
  %v7947 = vpop.f32.mrb[0].mxu0
  %v7948 = vadd.f32 0.0, %v7947
  %v7949 = vpop.f32.mrb[0].mxu0
  %7950 = vmatprep.mubr.f32.mxu0 0.0
  %7951 = vmatmul.mubr.f32.gmra.mrb[0].mxu0 %v565
  %v7952 = vpop.f32.mrb[0].mxu0
  %v7953 = vadd.f32 0.0, %v7952
  %v7954 = vpop.f32.mrb[0].mxu0
  %7955 = vmatprep.mubr.f32.mxu0 0.0
  %7956 = vmatmul.mubr.f32.gmra.mrb[0].mxu0 %v568
  %v7957 = vpop.f32.mrb[0].mxu0
  %v7958 = vadd.f32 0.0, %v7957
  %v7959 = vpop.f32.mrb[0].mxu0
  %7960 = vdwg.mxu0
  %v7961 = vadd.f32 %v5789, %v7943
  %v7962 = vadd.f32 %v5789, %v7948
  %v7963 = vadd.f32 %v5789, %v7953
  %v7964 = vadd.f32 %v5789, %v7958
  %7969 = vrot.lane.b32.xlu0 %v7872, 96
  %v7970 = vpop.permute.xlu0 %7969
  %7971 = vrot.lane.b32.xlu0 %v7873, 96
  %v7972 = vpop.permute.xlu0 %7971
  %7973 = vrot.lane.b32.xlu0 %v7874, 96
  %v7974 = vpop.permute.xlu0 %7973
  %7975 = vrot.lane.b32.xlu0 %v7875, 96
  %v7976 = vpop.permute.xlu0 %7975
  %7981 = vmatprep.subr.mxu0 0.0
  %7982 = vmatpush1.msra.mxu0 %v7970
  %7983 = vmatprep.subr.mxu0 0.0
  %7984 = vmatpush1.msra.mxu0 %v7972
  %7985 = vmatprep.subr.mxu0 0.0
  %7986 = vmatpush1.msra.mxu0 %v7974
  %7987 = vmatprep.subr.mxu0 0.0
  %7988 = vmatpush1.msra.mxu0 %v7976
  %7989 = vmatprep.subr.mxu0 0.0
  %7990 = vmatpush1.msra.mxu0 0.0
  %7991 = vmatprep.subr.mxu0 0.0
  %7992 = vmatpush1.msra.mxu0 0.0
  %7993 = vmatprep.subr.mxu0 0.0
  %7994 = vmatpush1.msra.mxu0 0.0
  %7995 = vmatprep.subr.mxu0 0.0
  %7996 = vmatpush1.msra.mxu0 0.0
  %7997 = vmatprep.subr.mxu0 0.0
  %7998 = vmatpush1.msra.mxu0 0.0
  %7999 = vmatprep.subr.mxu0 0.0
  %8000 = vmatpush1.msra.mxu0 0.0
  %8001 = vmatprep.subr.mxu0 0.0
  %8002 = vmatpush1.msra.mxu0 0.0
  %8003 = vmatprep.subr.mxu0 0.0
  %8004 = vmatpush1.msra.mxu0 0.0
  %8005 = vmatprep.subr.mxu0 0.0
  %8006 = vmatpush1.msra.mxu0 0.0
  %8007 = vmatprep.subr.mxu0 0.0
  %8008 = vmatpush1.msra.mxu0 0.0
  %8009 = vmatprep.subr.mxu0 0.0
  %8010 = vmatpush1.msra.mxu0 0.0
  %8011 = vmatprep.subr.mxu0 0.0
  %8012 = vmatpush1.msra.mxu0 0.0
  %8013 = vmatprep.subr.mxu0 0.0
  %8014 = vmatpush1.msra.mxu0 0.0
  %8015 = vmatprep.subr.mxu0 0.0
  %8016 = vmatpush1.msra.mxu0 0.0
  %8017 = vmatprep.subr.mxu0 0.0
  %8018 = vmatpush1.msra.mxu0 0.0
  %8019 = vmatprep.subr.mxu0 0.0
  %8020 = vmatpush1.msra.mxu0 0.0
  %8021 = vmatprep.subr.mxu0 0.0
  %8022 = vmatpush1.msra.mxu0 0.0
  %8023 = vmatprep.subr.mxu0 0.0
  %8024 = vmatpush1.msra.mxu0 0.0
  %8025 = vmatprep.subr.mxu0 0.0
  %8026 = vmatpush1.msra.mxu0 0.0
  %8027 = vmatprep.subr.mxu0 0.0
  %8028 = vmatpush1.msra.mxu0 0.0
  %8029 = vmatprep.subr.mxu0 0.0
  %8030 = vmatpush1.msra.mxu0 0.0
  %8031 = vmatprep.subr.mxu0 0.0
  %8032 = vmatpush1.msra.mxu0 0.0
  %8033 = vmatprep.subr.mxu0 0.0
  %8034 = vmatpush1.msra.mxu0 0.0
  %8035 = vmatprep.subr.mxu0 0.0
  %8036 = vmatpush1.msra.mxu0 0.0
  %8037 = vmatprep.subr.mxu0 0.0
  %8038 = vmatpush1.msra.mxu0 0.0
  %8039 = vmatprep.subr.mxu0 0.0
  %8040 = vmatpush1.msra.mxu0 0.0
  %8041 = vmatprep.subr.mxu0 0.0
  %8042 = vmatpush1.msra.mxu0 0.0
  %8043 = vmatprep.subr.mxu0 0.0
  %8044 = vmatpush1.msra.mxu0 0.0
  %8045 = vmatprep.mubr.f32.mxu0 0.0
  %8046 = vmatmul.mubr.f32.gmra.mrb[0].mxu0 %v676
  %v8047 = vpop.f32.mrb[0].mxu0
  %v8048 = vadd.f32 0.0, %v8047
  %v8049 = vpop.f32.mrb[0].mxu0
  %8050 = vmatprep.mubr.f32.mxu0 0.0
  %8051 = vmatmul.mubr.f32.gmra.mrb[0].mxu0 %v679
  %v8052 = vpop.f32.mrb[0].mxu0
  %v8053 = vadd.f32 0.0, %v8052
  %v8054 = vpop.f32.mrb[0].mxu0
  %8055 = vmatprep.mubr.f32.mxu0 0.0
  %8056 = vmatmul.mubr.f32.gmra.mrb[0].mxu0 %v682
  %v8057 = vpop.f32.mrb[0].mxu0
  %v8058 = vadd.f32 0.0, %v8057
  %v8059 = vpop.f32.mrb[0].mxu0
  %8060 = vmatprep.mubr.f32.mxu0 0.0
  %8061 = vmatmul.mubr.f32.gmra.mrb[0].mxu0 %v685
  %v8062 = vpop.f32.mrb[0].mxu0
  %v8063 = vadd.f32 0.0, %v8062
  %v8064 = vpop.f32.mrb[0].mxu0
  %8065 = vdwg.mxu0
  %v8066 = vadd.f32 %v7961, %v8048
  %v8067 = vadd.f32 %v7962, %v8053
  %v8068 = vadd.f32 %v7963, %v8058
  %v8069 = vadd.f32 %v7964, %v8063
  %v8070 = vtanh.pop %v8066
  %v8071 = vtanh.pop %v8067
  %v8072 = vtanh.pop %v8068
  %v8073 = vtanh.pop %v8069
  %v8074 = vsub.f32 %v8070, %v7424
  %v8075 = vsub.f32 %v8071, %v7425
  %v8076 = vsub.f32 %v8072, %v7426
  %v8077 = vsub.f32 %v8073, %v7427
  %v8078 = vmul.f32 %v7744, %v8074
  %v8079 = vmul.f32 %v7746, %v8075
  %v8080 = vmul.f32 %v7748, %v8076
  %v8081 = vmul.f32 %v7750, %v8077
  %v8082 = vadd.f32 %v7424, %v8078
  %v8083 = vadd.f32 %v7425, %v8079
  %v8084 = vadd.f32 %v7426, %v8080
  %v8085 = vadd.f32 %v7427, %v8081
  %8086 = vst.msk [vmem:[%s12 + $0x40] sm:$0xff] %vm465, %v8082
  %8087 = vst.msk [vmem:[%s12 + $0x48] sm:$0xff] %vm465, %v8083
  %8088 = vst.msk [vmem:[%s12 + $0x50] sm:$0xff] %vm465, %v8084
  %8089 = vst.msk [vmem:[%s12 + $0x58] sm:$0xff] %vm465, %v8085
  %v8091 = vsel %vm465, %v8082, 0
  %v8094 = vsel %vm465, %v8083, 0
  %v8097 = vsel %vm465, %v8084, 0
  %v8100 = vsel %vm465, %v8085, 0
  %8102 = vmatprep.subr.mxu0 0.0
  %8103 = vmatpush1.msra.mxu0 %v5769
  %8104 = vmatprep.subr.mxu0 0.0
  %8105 = vmatpush1.msra.mxu0 %v5770
  %8106 = vmatprep.subr.mxu0 0.0
  %8107 = vmatpush1.msra.mxu0 %v5771
  %8108 = vmatprep.subr.mxu0 0.0
  %8109 = vmatpush1.msra.mxu0 %v5772
  %8110 = vmatprep.subr.mxu0 0.0
  %8111 = vmatpush1.msra.mxu0 0.0
  %8112 = vmatprep.subr.mxu0 0.0
  %8113 = vmatpush1.msra.mxu0 0.0
  %8114 = vmatprep.subr.mxu0 0.0
  %8115 = vmatpush1.msra.mxu0 0.0
  %8116 = vmatprep.subr.mxu0 0.0
  %8117 = vmatpush1.msra.mxu0 0.0
  %8118 = vmatprep.subr.mxu0 0.0
  %8119 = vmatpush1.msra.mxu0 0.0
  %8120 = vmatprep.subr.mxu0 0.0
  %8121 = vmatpush1.msra.mxu0 0.0
  %8122 = vmatprep.subr.mxu0 0.0
  %8123 = vmatpush1.msra.mxu0 0.0
  %8124 = vmatprep.subr.mxu0 0.0
  %8125 = vmatpush1.msra.mxu0 0.0
  %8126 = vmatprep.subr.mxu0 0.0
  %8127 = vmatpush1.msra.mxu0 0.0
  %8128 = vmatprep.subr.mxu0 0.0
  %8129 = vmatpush1.msra.mxu0 0.0
  %8130 = vmatprep.subr.mxu0 0.0
  %8131 = vmatpush1.msra.mxu0 0.0
  %8132 = vmatprep.subr.mxu0 0.0
  %8133 = vmatpush1.msra.mxu0 0.0
  %8134 = vmatprep.subr.mxu0 0.0
  %8135 = vmatpush1.msra.mxu0 0.0
  %8136 = vmatprep.subr.mxu0 0.0
  %8137 = vmatpush1.msra.mxu0 0.0
  %8138 = vmatprep.subr.mxu0 0.0
  %8139 = vmatpush1.msra.mxu0 0.0
  %8140 = vmatprep.subr.mxu0 0.0
  %8141 = vmatpush1.msra.mxu0 0.0
  %8142 = vmatprep.subr.mxu0 0.0
  %8143 = vmatpush1.msra.mxu0 0.0
  %8144 = vmatprep.subr.mxu0 0.0
  %8145 = vmatpush1.msra.mxu0 0.0
  %8146 = vmatprep.subr.mxu0 0.0
  %8147 = vmatpush1.msra.mxu0 0.0
  %8148 = vmatprep.subr.mxu0 0.0
  %8149 = vmatpush1.msra.mxu0 0.0
  %8150 = vmatprep.subr.mxu0 0.0
  %8151 = vmatpush1.msra.mxu0 0.0
  %8152 = vmatprep.subr.mxu0 0.0
  %8153 = vmatpush1.msra.mxu0 0.0
  %8154 = vmatprep.subr.mxu0 0.0
  %8155 = vmatpush1.msra.mxu0 0.0
  %8156 = vmatprep.subr.mxu0 0.0
  %8157 = vmatpush1.msra.mxu0 0.0
  %8158 = vmatprep.subr.mxu0 0.0
  %8159 = vmatpush1.msra.mxu0 0.0
  %8160 = vmatprep.subr.mxu0 0.0
  %8161 = vmatpush1.msra.mxu0 0.0
  %8162 = vmatprep.subr.mxu0 0.0
  %8163 = vmatpush1.msra.mxu0 0.0
  %8164 = vmatprep.subr.mxu0 0.0
  %8165 = vmatpush1.msra.mxu0 0.0
  %8166 = vmatprep.mubr.f32.mxu0 0.0
  %8167 = vmatmul.mubr.f32.gmra.mrb[0].mxu0 %v8091
  %v8168 = vpop.f32.mrb[0].mxu0
  %v8169 = vadd.f32 0.0, %v8168
  %v8170 = vpop.f32.mrb[0].mxu0
  %8171 = vmatprep.mubr.f32.mxu0 0.0
  %8172 = vmatmul.mubr.f32.gmra.mrb[0].mxu0 %v8094
  %v8173 = vpop.f32.mrb[0].mxu0
  %v8174 = vadd.f32 0.0, %v8173
  %v8175 = vpop.f32.mrb[0].mxu0
  %8176 = vmatprep.mubr.f32.mxu0 0.0
  %8177 = vmatmul.mubr.f32.gmra.mrb[0].mxu0 %v8097
  %v8178 = vpop.f32.mrb[0].mxu0
  %v8179 = vadd.f32 0.0, %v8178
  %v8180 = vpop.f32.mrb[0].mxu0
  %8181 = vmatprep.mubr.f32.mxu0 0.0
  %8182 = vmatmul.mubr.f32.gmra.mrb[0].mxu0 %v8100
  %v8183 = vpop.f32.mrb[0].mxu0
  %v8184 = vadd.f32 0.0, %v8183
  %v8185 = vpop.f32.mrb[0].mxu0
  %8186 = vdwg.mxu0
  %v8187 = vadd.f32 %v6026, %v8169
  %v8188 = vadd.f32 %v6032, %v8174
  %v8189 = vadd.f32 %v6038, %v8179
  %v8190 = vadd.f32 %v6044, %v8184
  %8191 = vmatprep.subr.mxu0 0.0
  %8192 = vmatpush1.msra.mxu0 %v8187
  %8193 = vmatprep.subr.mxu0 0.0
  %8194 = vmatpush1.msra.mxu0 %v8188
  %8195 = vmatprep.subr.mxu0 0.0
  %8196 = vmatpush1.msra.mxu0 %v8189
  %8197 = vmatprep.subr.mxu0 0.0
  %8198 = vmatpush1.msra.mxu0 %v8190
  %8199 = vmatprep.subr.mxu0 0.0
  %8200 = vmatpush1.msra.mxu0 0.0
  %8201 = vmatprep.subr.mxu0 0.0
  %8202 = vmatpush1.msra.mxu0 0.0
  %8203 = vmatprep.subr.mxu0 0.0
  %8204 = vmatpush1.msra.mxu0 0.0
  %8205 = vmatprep.subr.mxu0 0.0
  %8206 = vmatpush1.msra.mxu0 0.0
  %8207 = vmatprep.subr.mxu0 0.0
  %8208 = vmatpush1.msra.mxu0 0.0
  %8209 = vmatprep.subr.mxu0 0.0
  %8210 = vmatpush1.msra.mxu0 0.0
  %8211 = vmatprep.subr.mxu0 0.0
  %8212 = vmatpush1.msra.mxu0 0.0
  %8213 = vmatprep.subr.mxu0 0.0
  %8214 = vmatpush1.msra.mxu0 0.0
  %8215 = vmatprep.subr.mxu0 0.0
  %8216 = vmatpush1.msra.mxu0 0.0
  %8217 = vmatprep.subr.mxu0 0.0
  %8218 = vmatpush1.msra.mxu0 0.0
  %8219 = vmatprep.subr.mxu0 0.0
  %8220 = vmatpush1.msra.mxu0 0.0
  %8221 = vmatprep.subr.mxu0 0.0
  %8222 = vmatpush1.msra.mxu0 0.0
  %8223 = vmatprep.subr.mxu0 0.0
  %8224 = vmatpush1.msra.mxu0 0.0
  %8225 = vmatprep.subr.mxu0 0.0
  %8226 = vmatpush1.msra.mxu0 0.0
  %8227 = vmatprep.subr.mxu0 0.0
  %8228 = vmatpush1.msra.mxu0 0.0
  %8229 = vmatprep.subr.mxu0 0.0
  %8230 = vmatpush1.msra.mxu0 0.0
  %8231 = vmatprep.subr.mxu0 0.0
  %8232 = vmatpush1.msra.mxu0 0.0
  %8233 = vmatprep.subr.mxu0 0.0
  %8234 = vmatpush1.msra.mxu0 0.0
  %8235 = vmatprep.subr.mxu0 0.0
  %8236 = vmatpush1.msra.mxu0 0.0
  %8237 = vmatprep.subr.mxu0 0.0
  %8238 = vmatpush1.msra.mxu0 0.0
  %8239 = vmatprep.subr.mxu0 0.0
  %8240 = vmatpush1.msra.mxu0 0.0
  %8241 = vmatprep.subr.mxu0 0.0
  %8242 = vmatpush1.msra.mxu0 0.0
  %8243 = vmatprep.subr.mxu0 0.0
  %8244 = vmatpush1.msra.mxu0 0.0
  %8245 = vmatprep.subr.mxu0 0.0
  %8246 = vmatpush1.msra.mxu0 0.0
  %8247 = vmatprep.subr.mxu0 0.0
  %8248 = vmatpush1.msra.mxu0 0.0
  %8249 = vmatprep.subr.mxu0 0.0
  %8250 = vmatpush1.msra.mxu0 0.0
  %8251 = vmatprep.subr.mxu0 0.0
  %8252 = vmatpush1.msra.mxu0 0.0
  %8253 = vmatprep.subr.mxu0 0.0
  %8254 = vmatpush1.msra.mxu0 0.0
  %8255 = vmatprep.mubr.f32.mxu0 0.0
  %8256 = vmatmul.mubr.f32.gmra.mrb[0].mxu0 %v559
  %v8257 = vpop.f32.mrb[0].mxu0
  %v8258 = vadd.f32 0.0, %v8257
  %v8259 = vpop.f32.mrb[0].mxu0
  %8260 = vmatprep.mubr.f32.mxu0 0.0
  %8261 = vmatmul.mubr.f32.gmra.mrb[0].mxu0 %v562
  %v8262 = vpop.f32.mrb[0].mxu0
  %v8263 = vadd.f32 0.0, %v8262
  %v8264 = vpop.f32.mrb[0].mxu0
  %8265 = vmatprep.mubr.f32.mxu0 0.0
  %8266 = vmatmul.mubr.f32.gmra.mrb[0].mxu0 %v565
  %v8267 = vpop.f32.mrb[0].mxu0
  %v8268 = vadd.f32 0.0, %v8267
  %v8269 = vpop.f32.mrb[0].mxu0
  %8270 = vmatprep.mubr.f32.mxu0 0.0
  %8271 = vmatmul.mubr.f32.gmra.mrb[0].mxu0 %v568
  %v8272 = vpop.f32.mrb[0].mxu0
  %v8273 = vadd.f32 0.0, %v8272
  %v8274 = vpop.f32.mrb[0].mxu0
  %8275 = vdwg.mxu0
  %v8276 = vadd.f32 %v5782, %v8258
  %v8277 = vadd.f32 %v5782, %v8263
  %v8278 = vadd.f32 %v5782, %v8268
  %v8279 = vadd.f32 %v5782, %v8273
  %8284 = vrot.lane.b32.xlu0 %v8187, 64
  %v8285 = vpop.permute.xlu0 %8284
  %8286 = vrot.lane.b32.xlu0 %v8188, 64
  %v8287 = vpop.permute.xlu0 %8286
  %8288 = vrot.lane.b32.xlu0 %v8189, 64
  %v8289 = vpop.permute.xlu0 %8288
  %8290 = vrot.lane.b32.xlu0 %v8190, 64
  %v8291 = vpop.permute.xlu0 %8290
  %8296 = vmatprep.subr.mxu0 0.0
  %8297 = vmatpush1.msra.mxu0 %v8285
  %8298 = vmatprep.subr.mxu0 0.0
  %8299 = vmatpush1.msra.mxu0 %v8287
  %8300 = vmatprep.subr.mxu0 0.0
  %8301 = vmatpush1.msra.mxu0 %v8289
  %8302 = vmatprep.subr.mxu0 0.0
  %8303 = vmatpush1.msra.mxu0 %v8291
  %8304 = vmatprep.subr.mxu0 0.0
  %8305 = vmatpush1.msra.mxu0 0.0
  %8306 = vmatprep.subr.mxu0 0.0
  %8307 = vmatpush1.msra.mxu0 0.0
  %8308 = vmatprep.subr.mxu0 0.0
  %8309 = vmatpush1.msra.mxu0 0.0
  %8310 = vmatprep.subr.mxu0 0.0
  %8311 = vmatpush1.msra.mxu0 0.0
  %8312 = vmatprep.subr.mxu0 0.0
  %8313 = vmatpush1.msra.mxu0 0.0
  %8314 = vmatprep.subr.mxu0 0.0
  %8315 = vmatpush1.msra.mxu0 0.0
  %8316 = vmatprep.subr.mxu0 0.0
  %8317 = vmatpush1.msra.mxu0 0.0
  %8318 = vmatprep.subr.mxu0 0.0
  %8319 = vmatpush1.msra.mxu0 0.0
  %8320 = vmatprep.subr.mxu0 0.0
  %8321 = vmatpush1.msra.mxu0 0.0
  %8322 = vmatprep.subr.mxu0 0.0
  %8323 = vmatpush1.msra.mxu0 0.0
  %8324 = vmatprep.subr.mxu0 0.0
  %8325 = vmatpush1.msra.mxu0 0.0
  %8326 = vmatprep.subr.mxu0 0.0
  %8327 = vmatpush1.msra.mxu0 0.0
  %8328 = vmatprep.subr.mxu0 0.0
  %8329 = vmatpush1.msra.mxu0 0.0
  %8330 = vmatprep.subr.mxu0 0.0
  %8331 = vmatpush1.msra.mxu0 0.0
  %8332 = vmatprep.subr.mxu0 0.0
  %8333 = vmatpush1.msra.mxu0 0.0
  %8334 = vmatprep.subr.mxu0 0.0
  %8335 = vmatpush1.msra.mxu0 0.0
  %8336 = vmatprep.subr.mxu0 0.0
  %8337 = vmatpush1.msra.mxu0 0.0
  %8338 = vmatprep.subr.mxu0 0.0
  %8339 = vmatpush1.msra.mxu0 0.0
  %8340 = vmatprep.subr.mxu0 0.0
  %8341 = vmatpush1.msra.mxu0 0.0
  %8342 = vmatprep.subr.mxu0 0.0
  %8343 = vmatpush1.msra.mxu0 0.0
  %8344 = vmatprep.subr.mxu0 0.0
  %8345 = vmatpush1.msra.mxu0 0.0
  %8346 = vmatprep.subr.mxu0 0.0
  %8347 = vmatpush1.msra.mxu0 0.0
  %8348 = vmatprep.subr.mxu0 0.0
  %8349 = vmatpush1.msra.mxu0 0.0
  %8350 = vmatprep.subr.mxu0 0.0
  %8351 = vmatpush1.msra.mxu0 0.0
  %8352 = vmatprep.subr.mxu0 0.0
  %8353 = vmatpush1.msra.mxu0 0.0
  %8354 = vmatprep.subr.mxu0 0.0
  %8355 = vmatpush1.msra.mxu0 0.0
  %8356 = vmatprep.subr.mxu0 0.0
  %8357 = vmatpush1.msra.mxu0 0.0
  %8358 = vmatprep.subr.mxu0 0.0
  %8359 = vmatpush1.msra.mxu0 0.0
  %8360 = vmatprep.mubr.f32.mxu0 0.0
  %8361 = vmatmul.mubr.f32.gmra.mrb[0].mxu0 %v676
  %v8362 = vpop.f32.mrb[0].mxu0
  %v8363 = vadd.f32 0.0, %v8362
  %v8364 = vpop.f32.mrb[0].mxu0
  %8365 = vmatprep.mubr.f32.mxu0 0.0
  %8366 = vmatmul.mubr.f32.gmra.mrb[0].mxu0 %v679
  %v8367 = vpop.f32.mrb[0].mxu0
  %v8368 = vadd.f32 0.0, %v8367
  %v8369 = vpop.f32.mrb[0].mxu0
  %8370 = vmatprep.mubr.f32.mxu0 0.0
  %8371 = vmatmul.mubr.f32.gmra.mrb[0].mxu0 %v682
  %v8372 = vpop.f32.mrb[0].mxu0
  %v8373 = vadd.f32 0.0, %v8372
  %v8374 = vpop.f32.mrb[0].mxu0
  %8375 = vmatprep.mubr.f32.mxu0 0.0
  %8376 = vmatmul.mubr.f32.gmra.mrb[0].mxu0 %v685
  %v8377 = vpop.f32.mrb[0].mxu0
  %v8378 = vadd.f32 0.0, %v8377
  %v8379 = vpop.f32.mrb[0].mxu0
  %8380 = vdwg.mxu0
  %v8381 = vadd.f32 %v8276, %v8363
  %v8382 = vadd.f32 %v8277, %v8368
  %v8383 = vadd.f32 %v8278, %v8373
  %v8384 = vadd.f32 %v8279, %v8378
  %v8385 = vxor.u32 %v8381, 2147483648
  %v8386 = vxor.u32 %v8382, 2147483648
  %v8387 = vxor.u32 %v8383, 2147483648
  %v8388 = vxor.u32 %v8384, 2147483648
  %v8389 = vmul.f32 %v8385, 1.442695
  %v8390 = vpow.pop %v8389
  %v8391 = vmul.f32 %v8386, 1.442695
  %v8392 = vpow.pop %v8391
  %v8393 = vmul.f32 %v8387, 1.442695
  %v8394 = vpow.pop %v8393
  %v8395 = vmul.f32 %v8388, 1.442695
  %v8396 = vpow.pop %v8395
  %v8397 = vadd.f32 %v8390, 1.0
  %v8398 = vadd.f32 %v8392, 1.0
  %v8399 = vadd.f32 %v8394, 1.0
  %v8400 = vadd.f32 %v8396, 1.0
  %v8401 = vrcp.pop %v8397
  %v8402 = vmul.f32 1.0, %v8401
  %v8403 = vrcp.pop %v8398
  %v8404 = vmul.f32 1.0, %v8403
  %v8405 = vrcp.pop %v8399
  %v8406 = vmul.f32 1.0, %v8405
  %v8407 = vrcp.pop %v8400
  %v8408 = vmul.f32 1.0, %v8407
  %8409 = vrot.lane.b32.xlu0 %v8082, 32
  %v8410 = vpop.permute.xlu0 %8409
  %8411 = vrot.lane.b32.xlu0 %v8083, 32
  %v8412 = vpop.permute.xlu0 %8411
  %8413 = vrot.lane.b32.xlu0 %v8084, 32
  %v8414 = vpop.permute.xlu0 %8413
  %8415 = vrot.lane.b32.xlu0 %v8085, 32
  %v8416 = vpop.permute.xlu0 %8415
  %v8421 = vmul.f32 %v8402, %v8410
  %v8422 = vmul.f32 %v8404, %v8412
  %v8423 = vmul.f32 %v8406, %v8414
  %v8424 = vmul.f32 %v8408, %v8416
  %8429 = vrot.lane.b32.xlu0 %v8421, 96
  %v8430 = vpop.permute.xlu0 %8429
  %8431 = vrot.lane.b32.xlu0 %v8422, 96
  %v8432 = vpop.permute.xlu0 %8431
  %8433 = vrot.lane.b32.xlu0 %v8423, 96
  %v8434 = vpop.permute.xlu0 %8433
  %8435 = vrot.lane.b32.xlu0 %v8424, 96
  %v8436 = vpop.permute.xlu0 %8435
  %v8437 = vsel %vm465, %v8430, 0
  %v8439 = vsel %vm465, %v8432, 0
  %v8441 = vsel %vm465, %v8434, 0
  %v8443 = vsel %vm465, %v8436, 0
  %8445 = vmatprep.subr.mxu0 0.0
  %8446 = vmatpush1.msra.mxu0 %v5773
  %8447 = vmatprep.subr.mxu0 0.0
  %8448 = vmatpush1.msra.mxu0 %v5774
  %8449 = vmatprep.subr.mxu0 0.0
  %8450 = vmatpush1.msra.mxu0 %v5775
  %8451 = vmatprep.subr.mxu0 0.0
  %8452 = vmatpush1.msra.mxu0 %v5776
  %8453 = vmatprep.subr.mxu0 0.0
  %8454 = vmatpush1.msra.mxu0 0.0
  %8455 = vmatprep.subr.mxu0 0.0
  %8456 = vmatpush1.msra.mxu0 0.0
  %8457 = vmatprep.subr.mxu0 0.0
  %8458 = vmatpush1.msra.mxu0 0.0
  %8459 = vmatprep.subr.mxu0 0.0
  %8460 = vmatpush1.msra.mxu0 0.0
  %8461 = vmatprep.subr.mxu0 0.0
  %8462 = vmatpush1.msra.mxu0 0.0
  %8463 = vmatprep.subr.mxu0 0.0
  %8464 = vmatpush1.msra.mxu0 0.0
  %8465 = vmatprep.subr.mxu0 0.0
  %8466 = vmatpush1.msra.mxu0 0.0
  %8467 = vmatprep.subr.mxu0 0.0
  %8468 = vmatpush1.msra.mxu0 0.0
  %8469 = vmatprep.subr.mxu0 0.0
  %8470 = vmatpush1.msra.mxu0 0.0
  %8471 = vmatprep.subr.mxu0 0.0
  %8472 = vmatpush1.msra.mxu0 0.0
  %8473 = vmatprep.subr.mxu0 0.0
  %8474 = vmatpush1.msra.mxu0 0.0
  %8475 = vmatprep.subr.mxu0 0.0
  %8476 = vmatpush1.msra.mxu0 0.0
  %8477 = vmatprep.subr.mxu0 0.0
  %8478 = vmatpush1.msra.mxu0 0.0
  %8479 = vmatprep.subr.mxu0 0.0
  %8480 = vmatpush1.msra.mxu0 0.0
  %8481 = vmatprep.subr.mxu0 0.0
  %8482 = vmatpush1.msra.mxu0 0.0
  %8483 = vmatprep.subr.mxu0 0.0
  %8484 = vmatpush1.msra.mxu0 0.0
  %8485 = vmatprep.subr.mxu0 0.0
  %8486 = vmatpush1.msra.mxu0 0.0
  %8487 = vmatprep.subr.mxu0 0.0
  %8488 = vmatpush1.msra.mxu0 0.0
  %8489 = vmatprep.subr.mxu0 0.0
  %8490 = vmatpush1.msra.mxu0 0.0
  %8491 = vmatprep.subr.mxu0 0.0
  %8492 = vmatpush1.msra.mxu0 0.0
  %8493 = vmatprep.subr.mxu0 0.0
  %8494 = vmatpush1.msra.mxu0 0.0
  %8495 = vmatprep.subr.mxu0 0.0
  %8496 = vmatpush1.msra.mxu0 0.0
  %8497 = vmatprep.subr.mxu0 0.0
  %8498 = vmatpush1.msra.mxu0 0.0
  %8499 = vmatprep.subr.mxu0 0.0
  %8500 = vmatpush1.msra.mxu0 0.0
  %8501 = vmatprep.subr.mxu0 0.0
  %8502 = vmatpush1.msra.mxu0 0.0
  %8503 = vmatprep.subr.mxu0 0.0
  %8504 = vmatpush1.msra.mxu0 0.0
  %8505 = vmatprep.subr.mxu0 0.0
  %8506 = vmatpush1.msra.mxu0 0.0
  %8507 = vmatprep.subr.mxu0 0.0
  %8508 = vmatpush1.msra.mxu0 0.0
  %8509 = vmatprep.mubr.f32.mxu0 0.0
  %8510 = vmatmul.mubr.f32.gmra.mrb[0].mxu0 %v8437
  %v8511 = vpop.f32.mrb[0].mxu0
  %v8512 = vadd.f32 0.0, %v8511
  %v8513 = vpop.f32.mrb[0].mxu0
  %8514 = vmatprep.mubr.f32.mxu0 0.0
  %8515 = vmatmul.mubr.f32.gmra.mrb[0].mxu0 %v8439
  %v8516 = vpop.f32.mrb[0].mxu0
  %v8517 = vadd.f32 0.0, %v8516
  %v8518 = vpop.f32.mrb[0].mxu0
  %8519 = vmatprep.mubr.f32.mxu0 0.0
  %8520 = vmatmul.mubr.f32.gmra.mrb[0].mxu0 %v8441
  %v8521 = vpop.f32.mrb[0].mxu0
  %v8522 = vadd.f32 0.0, %v8521
  %v8523 = vpop.f32.mrb[0].mxu0
  %8524 = vmatprep.mubr.f32.mxu0 0.0
  %8525 = vmatmul.mubr.f32.gmra.mrb[0].mxu0 %v8443
  %v8526 = vpop.f32.mrb[0].mxu0
  %v8527 = vadd.f32 0.0, %v8526
  %v8528 = vpop.f32.mrb[0].mxu0
  %8529 = vdwg.mxu0
  %v8530 = vadd.f32 %v6028, %v8512
  %v8531 = vadd.f32 %v6034, %v8517
  %v8532 = vadd.f32 %v6040, %v8522
  %v8533 = vadd.f32 %v6046, %v8527
  %8534 = vmatprep.subr.mxu0 0.0
  %8535 = vmatpush1.msra.mxu0 %v8530
  %8536 = vmatprep.subr.mxu0 0.0
  %8537 = vmatpush1.msra.mxu0 %v8531
  %8538 = vmatprep.subr.mxu0 0.0
  %8539 = vmatpush1.msra.mxu0 %v8532
  %8540 = vmatprep.subr.mxu0 0.0
  %8541 = vmatpush1.msra.mxu0 %v8533
  %8542 = vmatprep.subr.mxu0 0.0
  %8543 = vmatpush1.msra.mxu0 0.0
  %8544 = vmatprep.subr.mxu0 0.0
  %8545 = vmatpush1.msra.mxu0 0.0
  %8546 = vmatprep.subr.mxu0 0.0
  %8547 = vmatpush1.msra.mxu0 0.0
  %8548 = vmatprep.subr.mxu0 0.0
  %8549 = vmatpush1.msra.mxu0 0.0
  %8550 = vmatprep.subr.mxu0 0.0
  %8551 = vmatpush1.msra.mxu0 0.0
  %8552 = vmatprep.subr.mxu0 0.0
  %8553 = vmatpush1.msra.mxu0 0.0
  %8554 = vmatprep.subr.mxu0 0.0
  %8555 = vmatpush1.msra.mxu0 0.0
  %8556 = vmatprep.subr.mxu0 0.0
  %8557 = vmatpush1.msra.mxu0 0.0
  %8558 = vmatprep.subr.mxu0 0.0
  %8559 = vmatpush1.msra.mxu0 0.0
  %8560 = vmatprep.subr.mxu0 0.0
  %8561 = vmatpush1.msra.mxu0 0.0
  %8562 = vmatprep.subr.mxu0 0.0
  %8563 = vmatpush1.msra.mxu0 0.0
  %8564 = vmatprep.subr.mxu0 0.0
  %8565 = vmatpush1.msra.mxu0 0.0
  %8566 = vmatprep.subr.mxu0 0.0
  %8567 = vmatpush1.msra.mxu0 0.0
  %8568 = vmatprep.subr.mxu0 0.0
  %8569 = vmatpush1.msra.mxu0 0.0
  %8570 = vmatprep.subr.mxu0 0.0
  %8571 = vmatpush1.msra.mxu0 0.0
  %8572 = vmatprep.subr.mxu0 0.0
  %8573 = vmatpush1.msra.mxu0 0.0
  %8574 = vmatprep.subr.mxu0 0.0
  %8575 = vmatpush1.msra.mxu0 0.0
  %8576 = vmatprep.subr.mxu0 0.0
  %8577 = vmatpush1.msra.mxu0 0.0
  %8578 = vmatprep.subr.mxu0 0.0
  %8579 = vmatpush1.msra.mxu0 0.0
  %8580 = vmatprep.subr.mxu0 0.0
  %8581 = vmatpush1.msra.mxu0 0.0
  %8582 = vmatprep.subr.mxu0 0.0
  %8583 = vmatpush1.msra.mxu0 0.0
  %8584 = vmatprep.subr.mxu0 0.0
  %8585 = vmatpush1.msra.mxu0 0.0
  %8586 = vmatprep.subr.mxu0 0.0
  %8587 = vmatpush1.msra.mxu0 0.0
  %8588 = vmatprep.subr.mxu0 0.0
  %8589 = vmatpush1.msra.mxu0 0.0
  %8590 = vmatprep.subr.mxu0 0.0
  %8591 = vmatpush1.msra.mxu0 0.0
  %8592 = vmatprep.subr.mxu0 0.0
  %8593 = vmatpush1.msra.mxu0 0.0
  %8594 = vmatprep.subr.mxu0 0.0
  %8595 = vmatpush1.msra.mxu0 0.0
  %8596 = vmatprep.subr.mxu0 0.0
  %8597 = vmatpush1.msra.mxu0 0.0
  %8598 = vmatprep.mubr.f32.mxu0 0.0
  %8599 = vmatmul.mubr.f32.gmra.mrb[0].mxu0 %v559
  %v8600 = vpop.f32.mrb[0].mxu0
  %v8601 = vadd.f32 0.0, %v8600
  %v8602 = vpop.f32.mrb[0].mxu0
  %8603 = vmatprep.mubr.f32.mxu0 0.0
  %8604 = vmatmul.mubr.f32.gmra.mrb[0].mxu0 %v562
  %v8605 = vpop.f32.mrb[0].mxu0
  %v8606 = vadd.f32 0.0, %v8605
  %v8607 = vpop.f32.mrb[0].mxu0
  %8608 = vmatprep.mubr.f32.mxu0 0.0
  %8609 = vmatmul.mubr.f32.gmra.mrb[0].mxu0 %v565
  %v8610 = vpop.f32.mrb[0].mxu0
  %v8611 = vadd.f32 0.0, %v8610
  %v8612 = vpop.f32.mrb[0].mxu0
  %8613 = vmatprep.mubr.f32.mxu0 0.0
  %8614 = vmatmul.mubr.f32.gmra.mrb[0].mxu0 %v568
  %v8615 = vpop.f32.mrb[0].mxu0
  %v8616 = vadd.f32 0.0, %v8615
  %v8617 = vpop.f32.mrb[0].mxu0
  %8618 = vdwg.mxu0
  %v8619 = vadd.f32 %v5789, %v8601
  %v8620 = vadd.f32 %v5789, %v8606
  %v8621 = vadd.f32 %v5789, %v8611
  %v8622 = vadd.f32 %v5789, %v8616
  %8627 = vrot.lane.b32.xlu0 %v8530, 96
  %v8628 = vpop.permute.xlu0 %8627
  %8629 = vrot.lane.b32.xlu0 %v8531, 96
  %v8630 = vpop.permute.xlu0 %8629
  %8631 = vrot.lane.b32.xlu0 %v8532, 96
  %v8632 = vpop.permute.xlu0 %8631
  %8633 = vrot.lane.b32.xlu0 %v8533, 96
  %v8634 = vpop.permute.xlu0 %8633
  %8639 = vmatprep.subr.mxu0 0.0
  %8640 = vmatpush1.msra.mxu0 %v8628
  %8641 = vmatprep.subr.mxu0 0.0
  %8642 = vmatpush1.msra.mxu0 %v8630
  %8643 = vmatprep.subr.mxu0 0.0
  %8644 = vmatpush1.msra.mxu0 %v8632
  %8645 = vmatprep.subr.mxu0 0.0
  %8646 = vmatpush1.msra.mxu0 %v8634
  %8647 = vmatprep.subr.mxu0 0.0
  %8648 = vmatpush1.msra.mxu0 0.0
  %8649 = vmatprep.subr.mxu0 0.0
  %8650 = vmatpush1.msra.mxu0 0.0
  %8651 = vmatprep.subr.mxu0 0.0
  %8652 = vmatpush1.msra.mxu0 0.0
  %8653 = vmatprep.subr.mxu0 0.0
  %8654 = vmatpush1.msra.mxu0 0.0
  %8655 = vmatprep.subr.mxu0 0.0
  %8656 = vmatpush1.msra.mxu0 0.0
  %8657 = vmatprep.subr.mxu0 0.0
  %8658 = vmatpush1.msra.mxu0 0.0
  %8659 = vmatprep.subr.mxu0 0.0
  %8660 = vmatpush1.msra.mxu0 0.0
  %8661 = vmatprep.subr.mxu0 0.0
  %8662 = vmatpush1.msra.mxu0 0.0
  %8663 = vmatprep.subr.mxu0 0.0
  %8664 = vmatpush1.msra.mxu0 0.0
  %8665 = vmatprep.subr.mxu0 0.0
  %8666 = vmatpush1.msra.mxu0 0.0
  %8667 = vmatprep.subr.mxu0 0.0
  %8668 = vmatpush1.msra.mxu0 0.0
  %8669 = vmatprep.subr.mxu0 0.0
  %8670 = vmatpush1.msra.mxu0 0.0
  %8671 = vmatprep.subr.mxu0 0.0
  %8672 = vmatpush1.msra.mxu0 0.0
  %8673 = vmatprep.subr.mxu0 0.0
  %8674 = vmatpush1.msra.mxu0 0.0
  %8675 = vmatprep.subr.mxu0 0.0
  %8676 = vmatpush1.msra.mxu0 0.0
  %8677 = vmatprep.subr.mxu0 0.0
  %8678 = vmatpush1.msra.mxu0 0.0
  %8679 = vmatprep.subr.mxu0 0.0
  %8680 = vmatpush1.msra.mxu0 0.0
  %8681 = vmatprep.subr.mxu0 0.0
  %8682 = vmatpush1.msra.mxu0 0.0
  %8683 = vmatprep.subr.mxu0 0.0
  %8684 = vmatpush1.msra.mxu0 0.0
  %8685 = vmatprep.subr.mxu0 0.0
  %8686 = vmatpush1.msra.mxu0 0.0
  %8687 = vmatprep.subr.mxu0 0.0
  %8688 = vmatpush1.msra.mxu0 0.0
  %8689 = vmatprep.subr.mxu0 0.0
  %8690 = vmatpush1.msra.mxu0 0.0
  %8691 = vmatprep.subr.mxu0 0.0
  %8692 = vmatpush1.msra.mxu0 0.0
  %8693 = vmatprep.subr.mxu0 0.0
  %8694 = vmatpush1.msra.mxu0 0.0
  %8695 = vmatprep.subr.mxu0 0.0
  %8696 = vmatpush1.msra.mxu0 0.0
  %8697 = vmatprep.subr.mxu0 0.0
  %8698 = vmatpush1.msra.mxu0 0.0
  %8699 = vmatprep.subr.mxu0 0.0
  %8700 = vmatpush1.msra.mxu0 0.0
  %8701 = vmatprep.subr.mxu0 0.0
  %8702 = vmatpush1.msra.mxu0 0.0
  %8703 = vmatprep.mubr.f32.mxu0 0.0
  %8704 = vmatmul.mubr.f32.gmra.mrb[0].mxu0 %v676
  %v8705 = vpop.f32.mrb[0].mxu0
  %v8706 = vadd.f32 0.0, %v8705
  %v8707 = vpop.f32.mrb[0].mxu0
  %8708 = vmatprep.mubr.f32.mxu0 0.0
  %8709 = vmatmul.mubr.f32.gmra.mrb[0].mxu0 %v679
  %v8710 = vpop.f32.mrb[0].mxu0
  %v8711 = vadd.f32 0.0, %v8710
  %v8712 = vpop.f32.mrb[0].mxu0
  %8713 = vmatprep.mubr.f32.mxu0 0.0
  %8714 = vmatmul.mubr.f32.gmra.mrb[0].mxu0 %v682
  %v8715 = vpop.f32.mrb[0].mxu0
  %v8716 = vadd.f32 0.0, %v8715
  %v8717 = vpop.f32.mrb[0].mxu0
  %8718 = vmatprep.mubr.f32.mxu0 0.0
  %8719 = vmatmul.mubr.f32.gmra.mrb[0].mxu0 %v685
  %v8720 = vpop.f32.mrb[0].mxu0
  %v8721 = vadd.f32 0.0, %v8720
  %v8722 = vpop.f32.mrb[0].mxu0
  %8723 = vdwg.mxu0
  %v8724 = vadd.f32 %v8619, %v8706
  %v8725 = vadd.f32 %v8620, %v8711
  %v8726 = vadd.f32 %v8621, %v8716
  %v8727 = vadd.f32 %v8622, %v8721
  %v8728 = vtanh.pop %v8724
  %v8729 = vtanh.pop %v8725
  %v8730 = vtanh.pop %v8726
  %v8731 = vtanh.pop %v8727
  %v8732 = vsub.f32 %v8728, %v8082
  %v8733 = vsub.f32 %v8729, %v8083
  %v8734 = vsub.f32 %v8730, %v8084
  %v8735 = vsub.f32 %v8731, %v8085
  %v8736 = vmul.f32 %v8402, %v8732
  %v8737 = vmul.f32 %v8404, %v8733
  %v8738 = vmul.f32 %v8406, %v8734
  %v8739 = vmul.f32 %v8408, %v8735
  %v8740 = vadd.f32 %v8082, %v8736
  %v8741 = vadd.f32 %v8083, %v8737
  %v8742 = vadd.f32 %v8084, %v8738
  %v8743 = vadd.f32 %v8085, %v8739
  %8744 = vst.msk [vmem:[%s12 + $0x60] sm:$0xff] %vm465, %v8740
  %8745 = vst.msk [vmem:[%s12 + $0x68] sm:$0xff] %vm465, %v8741
  %8746 = vst.msk [vmem:[%s12 + $0x70] sm:$0xff] %vm465, %v8742
  %8747 = vst.msk [vmem:[%s12 + $0x78] sm:$0xff] %vm465, %v8743
  %v8749 = vsel %vm465, %v8740, 0
  %v8752 = vsel %vm465, %v8741, 0
  %v8755 = vsel %vm465, %v8742, 0
  %v8758 = vsel %vm465, %v8743, 0
  %8760 = vmatprep.subr.mxu0 0.0
  %8761 = vmatpush1.msra.mxu0 %v5769
  %8762 = vmatprep.subr.mxu0 0.0
  %8763 = vmatpush1.msra.mxu0 %v5770
  %8764 = vmatprep.subr.mxu0 0.0
  %8765 = vmatpush1.msra.mxu0 %v5771
  %8766 = vmatprep.subr.mxu0 0.0
  %8767 = vmatpush1.msra.mxu0 %v5772
  %8768 = vmatprep.subr.mxu0 0.0
  %8769 = vmatpush1.msra.mxu0 0.0
  %8770 = vmatprep.subr.mxu0 0.0
  %8771 = vmatpush1.msra.mxu0 0.0
  %8772 = vmatprep.subr.mxu0 0.0
  %8773 = vmatpush1.msra.mxu0 0.0
  %8774 = vmatprep.subr.mxu0 0.0
  %8775 = vmatpush1.msra.mxu0 0.0
  %8776 = vmatprep.subr.mxu0 0.0
  %8777 = vmatpush1.msra.mxu0 0.0
  %8778 = vmatprep.subr.mxu0 0.0
  %8779 = vmatpush1.msra.mxu0 0.0
  %8780 = vmatprep.subr.mxu0 0.0
  %8781 = vmatpush1.msra.mxu0 0.0
  %8782 = vmatprep.subr.mxu0 0.0
  %8783 = vmatpush1.msra.mxu0 0.0
  %8784 = vmatprep.subr.mxu0 0.0
  %8785 = vmatpush1.msra.mxu0 0.0
  %8786 = vmatprep.subr.mxu0 0.0
  %8787 = vmatpush1.msra.mxu0 0.0
  %8788 = vmatprep.subr.mxu0 0.0
  %8789 = vmatpush1.msra.mxu0 0.0
  %8790 = vmatprep.subr.mxu0 0.0
  %8791 = vmatpush1.msra.mxu0 0.0
  %8792 = vmatprep.subr.mxu0 0.0
  %8793 = vmatpush1.msra.mxu0 0.0
  %8794 = vmatprep.subr.mxu0 0.0
  %8795 = vmatpush1.msra.mxu0 0.0
  %8796 = vmatprep.subr.mxu0 0.0
  %8797 = vmatpush1.msra.mxu0 0.0
  %8798 = vmatprep.subr.mxu0 0.0
  %8799 = vmatpush1.msra.mxu0 0.0
  %8800 = vmatprep.subr.mxu0 0.0
  %8801 = vmatpush1.msra.mxu0 0.0
  %8802 = vmatprep.subr.mxu0 0.0
  %8803 = vmatpush1.msra.mxu0 0.0
  %8804 = vmatprep.subr.mxu0 0.0
  %8805 = vmatpush1.msra.mxu0 0.0
  %8806 = vmatprep.subr.mxu0 0.0
  %8807 = vmatpush1.msra.mxu0 0.0
  %8808 = vmatprep.subr.mxu0 0.0
  %8809 = vmatpush1.msra.mxu0 0.0
  %8810 = vmatprep.subr.mxu0 0.0
  %8811 = vmatpush1.msra.mxu0 0.0
  %8812 = vmatprep.subr.mxu0 0.0
  %8813 = vmatpush1.msra.mxu0 0.0
  %8814 = vmatprep.subr.mxu0 0.0
  %8815 = vmatpush1.msra.mxu0 0.0
  %8816 = vmatprep.subr.mxu0 0.0
  %8817 = vmatpush1.msra.mxu0 0.0
  %8818 = vmatprep.subr.mxu0 0.0
  %8819 = vmatpush1.msra.mxu0 0.0
  %8820 = vmatprep.subr.mxu0 0.0
  %8821 = vmatpush1.msra.mxu0 0.0
  %8822 = vmatprep.subr.mxu0 0.0
  %8823 = vmatpush1.msra.mxu0 0.0
  %8824 = vmatprep.mubr.f32.mxu0 0.0
  %8825 = vmatmul.mubr.f32.gmra.mrb[0].mxu0 %v8749
  %v8826 = vpop.f32.mrb[0].mxu0
  %v8827 = vadd.f32 0.0, %v8826
  %v8828 = vpop.f32.mrb[0].mxu0
  %8829 = vmatprep.mubr.f32.mxu0 0.0
  %8830 = vmatmul.mubr.f32.gmra.mrb[0].mxu0 %v8752
  %v8831 = vpop.f32.mrb[0].mxu0
  %v8832 = vadd.f32 0.0, %v8831
  %v8833 = vpop.f32.mrb[0].mxu0
  %8834 = vmatprep.mubr.f32.mxu0 0.0
  %8835 = vmatmul.mubr.f32.gmra.mrb[0].mxu0 %v8755
  %v8836 = vpop.f32.mrb[0].mxu0
  %v8837 = vadd.f32 0.0, %v8836
  %v8838 = vpop.f32.mrb[0].mxu0
  %8839 = vmatprep.mubr.f32.mxu0 0.0
  %8840 = vmatmul.mubr.f32.gmra.mrb[0].mxu0 %v8758
  %v8841 = vpop.f32.mrb[0].mxu0
  %v8842 = vadd.f32 0.0, %v8841
  %v8843 = vpop.f32.mrb[0].mxu0
  %8844 = vdwg.mxu0
  %v8845 = vadd.f32 %v6050, %v8827
  %v8846 = vadd.f32 %v6056, %v8832
  %v8847 = vadd.f32 %v6062, %v8837
  %v8848 = vadd.f32 %v6068, %v8842
  %8849 = vmatprep.subr.mxu0 0.0
  %8850 = vmatpush1.msra.mxu0 %v8845
  %8851 = vmatprep.subr.mxu0 0.0
  %8852 = vmatpush1.msra.mxu0 %v8846
  %8853 = vmatprep.subr.mxu0 0.0
  %8854 = vmatpush1.msra.mxu0 %v8847
  %8855 = vmatprep.subr.mxu0 0.0
  %8856 = vmatpush1.msra.mxu0 %v8848
  %8857 = vmatprep.subr.mxu0 0.0
  %8858 = vmatpush1.msra.mxu0 0.0
  %8859 = vmatprep.subr.mxu0 0.0
  %8860 = vmatpush1.msra.mxu0 0.0
  %8861 = vmatprep.subr.mxu0 0.0
  %8862 = vmatpush1.msra.mxu0 0.0
  %8863 = vmatprep.subr.mxu0 0.0
  %8864 = vmatpush1.msra.mxu0 0.0
  %8865 = vmatprep.subr.mxu0 0.0
  %8866 = vmatpush1.msra.mxu0 0.0
  %8867 = vmatprep.subr.mxu0 0.0
  %8868 = vmatpush1.msra.mxu0 0.0
  %8869 = vmatprep.subr.mxu0 0.0
  %8870 = vmatpush1.msra.mxu0 0.0
  %8871 = vmatprep.subr.mxu0 0.0
  %8872 = vmatpush1.msra.mxu0 0.0
  %8873 = vmatprep.subr.mxu0 0.0
  %8874 = vmatpush1.msra.mxu0 0.0
  %8875 = vmatprep.subr.mxu0 0.0
  %8876 = vmatpush1.msra.mxu0 0.0
  %8877 = vmatprep.subr.mxu0 0.0
  %8878 = vmatpush1.msra.mxu0 0.0
  %8879 = vmatprep.subr.mxu0 0.0
  %8880 = vmatpush1.msra.mxu0 0.0
  %8881 = vmatprep.subr.mxu0 0.0
  %8882 = vmatpush1.msra.mxu0 0.0
  %8883 = vmatprep.subr.mxu0 0.0
  %8884 = vmatpush1.msra.mxu0 0.0
  %8885 = vmatprep.subr.mxu0 0.0
  %8886 = vmatpush1.msra.mxu0 0.0
  %8887 = vmatprep.subr.mxu0 0.0
  %8888 = vmatpush1.msra.mxu0 0.0
  %8889 = vmatprep.subr.mxu0 0.0
  %8890 = vmatpush1.msra.mxu0 0.0
  %8891 = vmatprep.subr.mxu0 0.0
  %8892 = vmatpush1.msra.mxu0 0.0
  %8893 = vmatprep.subr.mxu0 0.0
  %8894 = vmatpush1.msra.mxu0 0.0
  %8895 = vmatprep.subr.mxu0 0.0
  %8896 = vmatpush1.msra.mxu0 0.0
  %8897 = vmatprep.subr.mxu0 0.0
  %8898 = vmatpush1.msra.mxu0 0.0
  %8899 = vmatprep.subr.mxu0 0.0
  %8900 = vmatpush1.msra.mxu0 0.0
  %8901 = vmatprep.subr.mxu0 0.0
  %8902 = vmatpush1.msra.mxu0 0.0
  %8903 = vmatprep.subr.mxu0 0.0
  %8904 = vmatpush1.msra.mxu0 0.0
  %8905 = vmatprep.subr.mxu0 0.0
  %8906 = vmatpush1.msra.mxu0 0.0
  %8907 = vmatprep.subr.mxu0 0.0
  %8908 = vmatpush1.msra.mxu0 0.0
  %8909 = vmatprep.subr.mxu0 0.0
  %8910 = vmatpush1.msra.mxu0 0.0
  %8911 = vmatprep.subr.mxu0 0.0
  %8912 = vmatpush1.msra.mxu0 0.0
  %8913 = vmatprep.mubr.f32.mxu0 0.0
  %8914 = vmatmul.mubr.f32.gmra.mrb[0].mxu0 %v559
  %v8915 = vpop.f32.mrb[0].mxu0
  %v8916 = vadd.f32 0.0, %v8915
  %v8917 = vpop.f32.mrb[0].mxu0
  %8918 = vmatprep.mubr.f32.mxu0 0.0
  %8919 = vmatmul.mubr.f32.gmra.mrb[0].mxu0 %v562
  %v8920 = vpop.f32.mrb[0].mxu0
  %v8921 = vadd.f32 0.0, %v8920
  %v8922 = vpop.f32.mrb[0].mxu0
  %8923 = vmatprep.mubr.f32.mxu0 0.0
  %8924 = vmatmul.mubr.f32.gmra.mrb[0].mxu0 %v565
  %v8925 = vpop.f32.mrb[0].mxu0
  %v8926 = vadd.f32 0.0, %v8925
  %v8927 = vpop.f32.mrb[0].mxu0
  %8928 = vmatprep.mubr.f32.mxu0 0.0
  %8929 = vmatmul.mubr.f32.gmra.mrb[0].mxu0 %v568
  %v8930 = vpop.f32.mrb[0].mxu0
  %v8931 = vadd.f32 0.0, %v8930
  %v8932 = vpop.f32.mrb[0].mxu0
  %8933 = vdwg.mxu0
  %v8934 = vadd.f32 %v5782, %v8916
  %v8935 = vadd.f32 %v5782, %v8921
  %v8936 = vadd.f32 %v5782, %v8926
  %v8937 = vadd.f32 %v5782, %v8931
  %8942 = vrot.lane.b32.xlu0 %v8845, 64
  %v8943 = vpop.permute.xlu0 %8942
  %8944 = vrot.lane.b32.xlu0 %v8846, 64
  %v8945 = vpop.permute.xlu0 %8944
  %8946 = vrot.lane.b32.xlu0 %v8847, 64
  %v8947 = vpop.permute.xlu0 %8946
  %8948 = vrot.lane.b32.xlu0 %v8848, 64
  %v8949 = vpop.permute.xlu0 %8948
  %8954 = vmatprep.subr.mxu0 0.0
  %8955 = vmatpush1.msra.mxu0 %v8943
  %8956 = vmatprep.subr.mxu0 0.0
  %8957 = vmatpush1.msra.mxu0 %v8945
  %8958 = vmatprep.subr.mxu0 0.0
  %8959 = vmatpush1.msra.mxu0 %v8947
  %8960 = vmatprep.subr.mxu0 0.0
  %8961 = vmatpush1.msra.mxu0 %v8949
  %8962 = vmatprep.subr.mxu0 0.0
  %8963 = vmatpush1.msra.mxu0 0.0
  %8964 = vmatprep.subr.mxu0 0.0
  %8965 = vmatpush1.msra.mxu0 0.0
  %8966 = vmatprep.subr.mxu0 0.0
  %8967 = vmatpush1.msra.mxu0 0.0
  %8968 = vmatprep.subr.mxu0 0.0
  %8969 = vmatpush1.msra.mxu0 0.0
  %8970 = vmatprep.subr.mxu0 0.0
  %8971 = vmatpush1.msra.mxu0 0.0
  %8972 = vmatprep.subr.mxu0 0.0
  %8973 = vmatpush1.msra.mxu0 0.0
  %8974 = vmatprep.subr.mxu0 0.0
  %8975 = vmatpush1.msra.mxu0 0.0
  %8976 = vmatprep.subr.mxu0 0.0
  %8977 = vmatpush1.msra.mxu0 0.0
  %8978 = vmatprep.subr.mxu0 0.0
  %8979 = vmatpush1.msra.mxu0 0.0
  %8980 = vmatprep.subr.mxu0 0.0
  %8981 = vmatpush1.msra.mxu0 0.0
  %8982 = vmatprep.subr.mxu0 0.0
  %8983 = vmatpush1.msra.mxu0 0.0
  %8984 = vmatprep.subr.mxu0 0.0
  %8985 = vmatpush1.msra.mxu0 0.0
  %8986 = vmatprep.subr.mxu0 0.0
  %8987 = vmatpush1.msra.mxu0 0.0
  %8988 = vmatprep.subr.mxu0 0.0
  %8989 = vmatpush1.msra.mxu0 0.0
  %8990 = vmatprep.subr.mxu0 0.0
  %8991 = vmatpush1.msra.mxu0 0.0
  %8992 = vmatprep.subr.mxu0 0.0
  %8993 = vmatpush1.msra.mxu0 0.0
  %8994 = vmatprep.subr.mxu0 0.0
  %8995 = vmatpush1.msra.mxu0 0.0
  %8996 = vmatprep.subr.mxu0 0.0
  %8997 = vmatpush1.msra.mxu0 0.0
  %8998 = vmatprep.subr.mxu0 0.0
  %8999 = vmatpush1.msra.mxu0 0.0
  %9000 = vmatprep.subr.mxu0 0.0
  %9001 = vmatpush1.msra.mxu0 0.0
  %9002 = vmatprep.subr.mxu0 0.0
  %9003 = vmatpush1.msra.mxu0 0.0
  %9004 = vmatprep.subr.mxu0 0.0
  %9005 = vmatpush1.msra.mxu0 0.0
  %9006 = vmatprep.subr.mxu0 0.0
  %9007 = vmatpush1.msra.mxu0 0.0
  %9008 = vmatprep.subr.mxu0 0.0
  %9009 = vmatpush1.msra.mxu0 0.0
  %9010 = vmatprep.subr.mxu0 0.0
  %9011 = vmatpush1.msra.mxu0 0.0
  %9012 = vmatprep.subr.mxu0 0.0
  %9013 = vmatpush1.msra.mxu0 0.0
  %9014 = vmatprep.subr.mxu0 0.0
  %9015 = vmatpush1.msra.mxu0 0.0
  %9016 = vmatprep.subr.mxu0 0.0
  %9017 = vmatpush1.msra.mxu0 0.0
  %9018 = vmatprep.mubr.f32.mxu0 0.0
  %9019 = vmatmul.mubr.f32.gmra.mrb[0].mxu0 %v676
  %v9020 = vpop.f32.mrb[0].mxu0
  %v9021 = vadd.f32 0.0, %v9020
  %v9022 = vpop.f32.mrb[0].mxu0
  %9023 = vmatprep.mubr.f32.mxu0 0.0
  %9024 = vmatmul.mubr.f32.gmra.mrb[0].mxu0 %v679
  %v9025 = vpop.f32.mrb[0].mxu0
  %v9026 = vadd.f32 0.0, %v9025
  %v9027 = vpop.f32.mrb[0].mxu0
  %9028 = vmatprep.mubr.f32.mxu0 0.0
  %9029 = vmatmul.mubr.f32.gmra.mrb[0].mxu0 %v682
  %v9030 = vpop.f32.mrb[0].mxu0
  %v9031 = vadd.f32 0.0, %v9030
  %v9032 = vpop.f32.mrb[0].mxu0
  %9033 = vmatprep.mubr.f32.mxu0 0.0
  %9034 = vmatmul.mubr.f32.gmra.mrb[0].mxu0 %v685
  %v9035 = vpop.f32.mrb[0].mxu0
  %v9036 = vadd.f32 0.0, %v9035
  %v9037 = vpop.f32.mrb[0].mxu0
  %9038 = vdwg.mxu0
  %v9039 = vadd.f32 %v8934, %v9021
  %v9040 = vadd.f32 %v8935, %v9026
  %v9041 = vadd.f32 %v8936, %v9031
  %v9042 = vadd.f32 %v8937, %v9036
  %v9043 = vxor.u32 %v9039, 2147483648
  %v9044 = vxor.u32 %v9040, 2147483648
  %v9045 = vxor.u32 %v9041, 2147483648
  %v9046 = vxor.u32 %v9042, 2147483648
  %v9047 = vmul.f32 %v9043, 1.442695
  %v9048 = vpow.pop %v9047
  %v9049 = vmul.f32 %v9044, 1.442695
  %v9050 = vpow.pop %v9049
  %v9051 = vmul.f32 %v9045, 1.442695
  %v9052 = vpow.pop %v9051
  %v9053 = vmul.f32 %v9046, 1.442695
  %v9054 = vpow.pop %v9053
  %v9055 = vadd.f32 %v9048, 1.0
  %v9056 = vadd.f32 %v9050, 1.0
  %v9057 = vadd.f32 %v9052, 1.0
  %v9058 = vadd.f32 %v9054, 1.0
  %v9059 = vrcp.pop %v9055
  %v9060 = vmul.f32 1.0, %v9059
  %v9061 = vrcp.pop %v9056
  %v9062 = vmul.f32 1.0, %v9061
  %v9063 = vrcp.pop %v9057
  %v9064 = vmul.f32 1.0, %v9063
  %v9065 = vrcp.pop %v9058
  %v9066 = vmul.f32 1.0, %v9065
  %9067 = vrot.lane.b32.xlu0 %v8740, 32
  %v9068 = vpop.permute.xlu0 %9067
  %9069 = vrot.lane.b32.xlu0 %v8741, 32
  %v9070 = vpop.permute.xlu0 %9069
  %9071 = vrot.lane.b32.xlu0 %v8742, 32
  %v9072 = vpop.permute.xlu0 %9071
  %9073 = vrot.lane.b32.xlu0 %v8743, 32
  %v9074 = vpop.permute.xlu0 %9073
  %v9079 = vmul.f32 %v9060, %v9068
  %v9080 = vmul.f32 %v9062, %v9070
  %v9081 = vmul.f32 %v9064, %v9072
  %v9082 = vmul.f32 %v9066, %v9074
  %9087 = vrot.lane.b32.xlu0 %v9079, 96
  %v9088 = vpop.permute.xlu0 %9087
  %9089 = vrot.lane.b32.xlu0 %v9080, 96
  %v9090 = vpop.permute.xlu0 %9089
  %9091 = vrot.lane.b32.xlu0 %v9081, 96
  %v9092 = vpop.permute.xlu0 %9091
  %9093 = vrot.lane.b32.xlu0 %v9082, 96
  %v9094 = vpop.permute.xlu0 %9093
  %v9095 = vsel %vm465, %v9088, 0
  %v9097 = vsel %vm465, %v9090, 0
  %v9099 = vsel %vm465, %v9092, 0
  %v9101 = vsel %vm465, %v9094, 0
  %9103 = vmatprep.subr.mxu0 0.0
  %9104 = vmatpush1.msra.mxu0 %v5773
  %9105 = vmatprep.subr.mxu0 0.0
  %9106 = vmatpush1.msra.mxu0 %v5774
  %9107 = vmatprep.subr.mxu0 0.0
  %9108 = vmatpush1.msra.mxu0 %v5775
  %9109 = vmatprep.subr.mxu0 0.0
  %9110 = vmatpush1.msra.mxu0 %v5776
  %9111 = vmatprep.subr.mxu0 0.0
  %9112 = vmatpush1.msra.mxu0 0.0
  %9113 = vmatprep.subr.mxu0 0.0
  %9114 = vmatpush1.msra.mxu0 0.0
  %9115 = vmatprep.subr.mxu0 0.0
  %9116 = vmatpush1.msra.mxu0 0.0
  %9117 = vmatprep.subr.mxu0 0.0
  %9118 = vmatpush1.msra.mxu0 0.0
  %9119 = vmatprep.subr.mxu0 0.0
  %9120 = vmatpush1.msra.mxu0 0.0
  %9121 = vmatprep.subr.mxu0 0.0
  %9122 = vmatpush1.msra.mxu0 0.0
  %9123 = vmatprep.subr.mxu0 0.0
  %9124 = vmatpush1.msra.mxu0 0.0
  %9125 = vmatprep.subr.mxu0 0.0
  %9126 = vmatpush1.msra.mxu0 0.0
  %9127 = vmatprep.subr.mxu0 0.0
  %9128 = vmatpush1.msra.mxu0 0.0
  %9129 = vmatprep.subr.mxu0 0.0
  %9130 = vmatpush1.msra.mxu0 0.0
  %9131 = vmatprep.subr.mxu0 0.0
  %9132 = vmatpush1.msra.mxu0 0.0
  %9133 = vmatprep.subr.mxu0 0.0
  %9134 = vmatpush1.msra.mxu0 0.0
  %9135 = vmatprep.subr.mxu0 0.0
  %9136 = vmatpush1.msra.mxu0 0.0
  %9137 = vmatprep.subr.mxu0 0.0
  %9138 = vmatpush1.msra.mxu0 0.0
  %9139 = vmatprep.subr.mxu0 0.0
  %9140 = vmatpush1.msra.mxu0 0.0
  %9141 = vmatprep.subr.mxu0 0.0
  %9142 = vmatpush1.msra.mxu0 0.0
  %9143 = vmatprep.subr.mxu0 0.0
  %9144 = vmatpush1.msra.mxu0 0.0
  %9145 = vmatprep.subr.mxu0 0.0
  %9146 = vmatpush1.msra.mxu0 0.0
  %9147 = vmatprep.subr.mxu0 0.0
  %9148 = vmatpush1.msra.mxu0 0.0
  %9149 = vmatprep.subr.mxu0 0.0
  %9150 = vmatpush1.msra.mxu0 0.0
  %9151 = vmatprep.subr.mxu0 0.0
  %9152 = vmatpush1.msra.mxu0 0.0
  %9153 = vmatprep.subr.mxu0 0.0
  %9154 = vmatpush1.msra.mxu0 0.0
  %9155 = vmatprep.subr.mxu0 0.0
  %9156 = vmatpush1.msra.mxu0 0.0
  %9157 = vmatprep.subr.mxu0 0.0
  %9158 = vmatpush1.msra.mxu0 0.0
  %9159 = vmatprep.subr.mxu0 0.0
  %9160 = vmatpush1.msra.mxu0 0.0
  %9161 = vmatprep.subr.mxu0 0.0
  %9162 = vmatpush1.msra.mxu0 0.0
  %9163 = vmatprep.subr.mxu0 0.0
  %9164 = vmatpush1.msra.mxu0 0.0
  %9165 = vmatprep.subr.mxu0 0.0
  %9166 = vmatpush1.msra.mxu0 0.0
  %9167 = vmatprep.mubr.f32.mxu0 0.0
  %9168 = vmatmul.mubr.f32.gmra.mrb[0].mxu0 %v9095
  %v9169 = vpop.f32.mrb[0].mxu0
  %v9170 = vadd.f32 0.0, %v9169
  %v9171 = vpop.f32.mrb[0].mxu0
  %9172 = vmatprep.mubr.f32.mxu0 0.0
  %9173 = vmatmul.mubr.f32.gmra.mrb[0].mxu0 %v9097
  %v9174 = vpop.f32.mrb[0].mxu0
  %v9175 = vadd.f32 0.0, %v9174
  %v9176 = vpop.f32.mrb[0].mxu0
  %9177 = vmatprep.mubr.f32.mxu0 0.0
  %9178 = vmatmul.mubr.f32.gmra.mrb[0].mxu0 %v9099
  %v9179 = vpop.f32.mrb[0].mxu0
  %v9180 = vadd.f32 0.0, %v9179
  %v9181 = vpop.f32.mrb[0].mxu0
  %9182 = vmatprep.mubr.f32.mxu0 0.0
  %9183 = vmatmul.mubr.f32.gmra.mrb[0].mxu0 %v9101
  %v9184 = vpop.f32.mrb[0].mxu0
  %v9185 = vadd.f32 0.0, %v9184
  %v9186 = vpop.f32.mrb[0].mxu0
  %9187 = vdwg.mxu0
  %v9188 = vadd.f32 %v6052, %v9170
  %v9189 = vadd.f32 %v6058, %v9175
  %v9190 = vadd.f32 %v6064, %v9180
  %v9191 = vadd.f32 %v6070, %v9185
  %9192 = vmatprep.subr.mxu0 0.0
  %9193 = vmatpush1.msra.mxu0 %v9188
  %9194 = vmatprep.subr.mxu0 0.0
  %9195 = vmatpush1.msra.mxu0 %v9189
  %9196 = vmatprep.subr.mxu0 0.0
  %9197 = vmatpush1.msra.mxu0 %v9190
  %9198 = vmatprep.subr.mxu0 0.0
  %9199 = vmatpush1.msra.mxu0 %v9191
  %9200 = vmatprep.subr.mxu0 0.0
  %9201 = vmatpush1.msra.mxu0 0.0
  %9202 = vmatprep.subr.mxu0 0.0
  %9203 = vmatpush1.msra.mxu0 0.0
  %9204 = vmatprep.subr.mxu0 0.0
  %9205 = vmatpush1.msra.mxu0 0.0
  %9206 = vmatprep.subr.mxu0 0.0
  %9207 = vmatpush1.msra.mxu0 0.0
  %9208 = vmatprep.subr.mxu0 0.0
  %9209 = vmatpush1.msra.mxu0 0.0
  %9210 = vmatprep.subr.mxu0 0.0
  %9211 = vmatpush1.msra.mxu0 0.0
  %9212 = vmatprep.subr.mxu0 0.0
  %9213 = vmatpush1.msra.mxu0 0.0
  %9214 = vmatprep.subr.mxu0 0.0
  %9215 = vmatpush1.msra.mxu0 0.0
  %9216 = vmatprep.subr.mxu0 0.0
  %9217 = vmatpush1.msra.mxu0 0.0
  %9218 = vmatprep.subr.mxu0 0.0
  %9219 = vmatpush1.msra.mxu0 0.0
  %9220 = vmatprep.subr.mxu0 0.0
  %9221 = vmatpush1.msra.mxu0 0.0
  %9222 = vmatprep.subr.mxu0 0.0
  %9223 = vmatpush1.msra.mxu0 0.0
  %9224 = vmatprep.subr.mxu0 0.0
  %9225 = vmatpush1.msra.mxu0 0.0
  %9226 = vmatprep.subr.mxu0 0.0
  %9227 = vmatpush1.msra.mxu0 0.0
  %9228 = vmatprep.subr.mxu0 0.0
  %9229 = vmatpush1.msra.mxu0 0.0
  %9230 = vmatprep.subr.mxu0 0.0
  %9231 = vmatpush1.msra.mxu0 0.0
  %9232 = vmatprep.subr.mxu0 0.0
  %9233 = vmatpush1.msra.mxu0 0.0
  %9234 = vmatprep.subr.mxu0 0.0
  %9235 = vmatpush1.msra.mxu0 0.0
  %9236 = vmatprep.subr.mxu0 0.0
  %9237 = vmatpush1.msra.mxu0 0.0
  %9238 = vmatprep.subr.mxu0 0.0
  %9239 = vmatpush1.msra.mxu0 0.0
  %9240 = vmatprep.subr.mxu0 0.0
  %9241 = vmatpush1.msra.mxu0 0.0
  %9242 = vmatprep.subr.mxu0 0.0
  %9243 = vmatpush1.msra.mxu0 0.0
  %9244 = vmatprep.subr.mxu0 0.0
  %9245 = vmatpush1.msra.mxu0 0.0
  %9246 = vmatprep.subr.mxu0 0.0
  %9247 = vmatpush1.msra.mxu0 0.0
  %9248 = vmatprep.subr.mxu0 0.0
  %9249 = vmatpush1.msra.mxu0 0.0
  %9250 = vmatprep.subr.mxu0 0.0
  %9251 = vmatpush1.msra.mxu0 0.0
  %9252 = vmatprep.subr.mxu0 0.0
  %9253 = vmatpush1.msra.mxu0 0.0
  %9254 = vmatprep.subr.mxu0 0.0
  %9255 = vmatpush1.msra.mxu0 0.0
  %9256 = vmatprep.mubr.f32.mxu0 0.0
  %9257 = vmatmul.mubr.f32.gmra.mrb[0].mxu0 %v559
  %v9258 = vpop.f32.mrb[0].mxu0
  %v9259 = vadd.f32 0.0, %v9258
  %v9260 = vpop.f32.mrb[0].mxu0
  %9261 = vmatprep.mubr.f32.mxu0 0.0
  %9262 = vmatmul.mubr.f32.gmra.mrb[0].mxu0 %v562
  %v9263 = vpop.f32.mrb[0].mxu0
  %v9264 = vadd.f32 0.0, %v9263
  %v9265 = vpop.f32.mrb[0].mxu0
  %9266 = vmatprep.mubr.f32.mxu0 0.0
  %9267 = vmatmul.mubr.f32.gmra.mrb[0].mxu0 %v565
  %v9268 = vpop.f32.mrb[0].mxu0
  %v9269 = vadd.f32 0.0, %v9268
  %v9270 = vpop.f32.mrb[0].mxu0
  %9271 = vmatprep.mubr.f32.mxu0 0.0
  %9272 = vmatmul.mubr.f32.gmra.mrb[0].mxu0 %v568
  %v9273 = vpop.f32.mrb[0].mxu0
  %v9274 = vadd.f32 0.0, %v9273
  %v9275 = vpop.f32.mrb[0].mxu0
  %9276 = vdwg.mxu0
  %v9277 = vadd.f32 %v5789, %v9259
  %v9278 = vadd.f32 %v5789, %v9264
  %v9279 = vadd.f32 %v5789, %v9269
  %v9280 = vadd.f32 %v5789, %v9274
  %9285 = vrot.lane.b32.xlu0 %v9188, 96
  %v9286 = vpop.permute.xlu0 %9285
  %9287 = vrot.lane.b32.xlu0 %v9189, 96
  %v9288 = vpop.permute.xlu0 %9287
  %9289 = vrot.lane.b32.xlu0 %v9190, 96
  %v9290 = vpop.permute.xlu0 %9289
  %9291 = vrot.lane.b32.xlu0 %v9191, 96
  %v9292 = vpop.permute.xlu0 %9291
  %9297 = vmatprep.subr.mxu0 0.0
  %9298 = vmatpush1.msra.mxu0 %v9286
  %9299 = vmatprep.subr.mxu0 0.0
  %9300 = vmatpush1.msra.mxu0 %v9288
  %9301 = vmatprep.subr.mxu0 0.0
  %9302 = vmatpush1.msra.mxu0 %v9290
  %9303 = vmatprep.subr.mxu0 0.0
  %9304 = vmatpush1.msra.mxu0 %v9292
  %9305 = vmatprep.subr.mxu0 0.0
  %9306 = vmatpush1.msra.mxu0 0.0
  %9307 = vmatprep.subr.mxu0 0.0
  %9308 = vmatpush1.msra.mxu0 0.0
  %9309 = vmatprep.subr.mxu0 0.0
  %9310 = vmatpush1.msra.mxu0 0.0
  %9311 = vmatprep.subr.mxu0 0.0
  %9312 = vmatpush1.msra.mxu0 0.0
  %9313 = vmatprep.subr.mxu0 0.0
  %9314 = vmatpush1.msra.mxu0 0.0
  %9315 = vmatprep.subr.mxu0 0.0
  %9316 = vmatpush1.msra.mxu0 0.0
  %9317 = vmatprep.subr.mxu0 0.0
  %9318 = vmatpush1.msra.mxu0 0.0
  %9319 = vmatprep.subr.mxu0 0.0
  %9320 = vmatpush1.msra.mxu0 0.0
  %9321 = vmatprep.subr.mxu0 0.0
  %9322 = vmatpush1.msra.mxu0 0.0
  %9323 = vmatprep.subr.mxu0 0.0
  %9324 = vmatpush1.msra.mxu0 0.0
  %9325 = vmatprep.subr.mxu0 0.0
  %9326 = vmatpush1.msra.mxu0 0.0
  %9327 = vmatprep.subr.mxu0 0.0
  %9328 = vmatpush1.msra.mxu0 0.0
  %9329 = vmatprep.subr.mxu0 0.0
  %9330 = vmatpush1.msra.mxu0 0.0
  %9331 = vmatprep.subr.mxu0 0.0
  %9332 = vmatpush1.msra.mxu0 0.0
  %9333 = vmatprep.subr.mxu0 0.0
  %9334 = vmatpush1.msra.mxu0 0.0
  %9335 = vmatprep.subr.mxu0 0.0
  %9336 = vmatpush1.msra.mxu0 0.0
  %9337 = vmatprep.subr.mxu0 0.0
  %9338 = vmatpush1.msra.mxu0 0.0
  %9339 = vmatprep.subr.mxu0 0.0
  %9340 = vmatpush1.msra.mxu0 0.0
  %9341 = vmatprep.subr.mxu0 0.0
  %9342 = vmatpush1.msra.mxu0 0.0
  %9343 = vmatprep.subr.mxu0 0.0
  %9344 = vmatpush1.msra.mxu0 0.0
  %9345 = vmatprep.subr.mxu0 0.0
  %9346 = vmatpush1.msra.mxu0 0.0
  %9347 = vmatprep.subr.mxu0 0.0
  %9348 = vmatpush1.msra.mxu0 0.0
  %9349 = vmatprep.subr.mxu0 0.0
  %9350 = vmatpush1.msra.mxu0 0.0
  %9351 = vmatprep.subr.mxu0 0.0
  %9352 = vmatpush1.msra.mxu0 0.0
  %9353 = vmatprep.subr.mxu0 0.0
  %9354 = vmatpush1.msra.mxu0 0.0
  %9355 = vmatprep.subr.mxu0 0.0
  %9356 = vmatpush1.msra.mxu0 0.0
  %9357 = vmatprep.subr.mxu0 0.0
  %9358 = vmatpush1.msra.mxu0 0.0
  %9359 = vmatprep.subr.mxu0 0.0
  %9360 = vmatpush1.msra.mxu0 0.0
  %9361 = vmatprep.mubr.f32.mxu0 0.0
  %9362 = vmatmul.mubr.f32.gmra.mrb[0].mxu0 %v676
  %v9363 = vpop.f32.mrb[0].mxu0
  %v9364 = vadd.f32 0.0, %v9363
  %v9365 = vpop.f32.mrb[0].mxu0
  %9366 = vmatprep.mubr.f32.mxu0 0.0
  %9367 = vmatmul.mubr.f32.gmra.mrb[0].mxu0 %v679
  %v9368 = vpop.f32.mrb[0].mxu0
  %v9369 = vadd.f32 0.0, %v9368
  %v9370 = vpop.f32.mrb[0].mxu0
  %9371 = vmatprep.mubr.f32.mxu0 0.0
  %9372 = vmatmul.mubr.f32.gmra.mrb[0].mxu0 %v682
  %v9373 = vpop.f32.mrb[0].mxu0
  %v9374 = vadd.f32 0.0, %v9373
  %v9375 = vpop.f32.mrb[0].mxu0
  %9376 = vmatprep.mubr.f32.mxu0 0.0
  %9377 = vmatmul.mubr.f32.gmra.mrb[0].mxu0 %v685
  %v9378 = vpop.f32.mrb[0].mxu0
  %v9379 = vadd.f32 0.0, %v9378
  %v9380 = vpop.f32.mrb[0].mxu0
  %9381 = vdwg.mxu0
  %v9382 = vadd.f32 %v9277, %v9364
  %v9383 = vadd.f32 %v9278, %v9369
  %v9384 = vadd.f32 %v9279, %v9374
  %v9385 = vadd.f32 %v9280, %v9379
  %v9386 = vtanh.pop %v9382
  %v9387 = vtanh.pop %v9383
  %v9388 = vtanh.pop %v9384
  %v9389 = vtanh.pop %v9385
  %v9390 = vsub.f32 %v9386, %v8740
  %v9391 = vsub.f32 %v9387, %v8741
  %v9392 = vsub.f32 %v9388, %v8742
  %v9393 = vsub.f32 %v9389, %v8743
  %v9394 = vmul.f32 %v9060, %v9390
  %v9395 = vmul.f32 %v9062, %v9391
  %v9396 = vmul.f32 %v9064, %v9392
  %v9397 = vmul.f32 %v9066, %v9393
  %v9398 = vadd.f32 %v8740, %v9394
  %v9399 = vadd.f32 %v8741, %v9395
  %v9400 = vadd.f32 %v8742, %v9396
  %v9401 = vadd.f32 %v8743, %v9397
  %9402 = vst.msk [vmem:[%s12 + $0x80] sm:$0xff] %vm465, %v9398
  %9403 = vst.msk [vmem:[%s12 + $0x88] sm:$0xff] %vm465, %v9399
  %9404 = vst.msk [vmem:[%s12 + $0x90] sm:$0xff] %vm465, %v9400
  %9405 = vst.msk [vmem:[%s12 + $0x98] sm:$0xff] %vm465, %v9401
  %v9407 = vsel %vm465, %v9398, 0
  %v9410 = vsel %vm465, %v9399, 0
  %v9413 = vsel %vm465, %v9400, 0
  %v9416 = vsel %vm465, %v9401, 0
  %9418 = vmatprep.subr.mxu0 0.0
  %9419 = vmatpush1.msra.mxu0 %v5769
  %9420 = vmatprep.subr.mxu0 0.0
  %9421 = vmatpush1.msra.mxu0 %v5770
  %9422 = vmatprep.subr.mxu0 0.0
  %9423 = vmatpush1.msra.mxu0 %v5771
  %9424 = vmatprep.subr.mxu0 0.0
  %9425 = vmatpush1.msra.mxu0 %v5772
  %9426 = vmatprep.subr.mxu0 0.0
  %9427 = vmatpush1.msra.mxu0 0.0
  %9428 = vmatprep.subr.mxu0 0.0
  %9429 = vmatpush1.msra.mxu0 0.0
  %9430 = vmatprep.subr.mxu0 0.0
  %9431 = vmatpush1.msra.mxu0 0.0
  %9432 = vmatprep.subr.mxu0 0.0
  %9433 = vmatpush1.msra.mxu0 0.0
  %9434 = vmatprep.subr.mxu0 0.0
  %9435 = vmatpush1.msra.mxu0 0.0
  %9436 = vmatprep.subr.mxu0 0.0
  %9437 = vmatpush1.msra.mxu0 0.0
  %9438 = vmatprep.subr.mxu0 0.0
  %9439 = vmatpush1.msra.mxu0 0.0
  %9440 = vmatprep.subr.mxu0 0.0
  %9441 = vmatpush1.msra.mxu0 0.0
  %9442 = vmatprep.subr.mxu0 0.0
  %9443 = vmatpush1.msra.mxu0 0.0
  %9444 = vmatprep.subr.mxu0 0.0
  %9445 = vmatpush1.msra.mxu0 0.0
  %9446 = vmatprep.subr.mxu0 0.0
  %9447 = vmatpush1.msra.mxu0 0.0
  %9448 = vmatprep.subr.mxu0 0.0
  %9449 = vmatpush1.msra.mxu0 0.0
  %9450 = vmatprep.subr.mxu0 0.0
  %9451 = vmatpush1.msra.mxu0 0.0
  %9452 = vmatprep.subr.mxu0 0.0
  %9453 = vmatpush1.msra.mxu0 0.0
  %9454 = vmatprep.subr.mxu0 0.0
  %9455 = vmatpush1.msra.mxu0 0.0
  %9456 = vmatprep.subr.mxu0 0.0
  %9457 = vmatpush1.msra.mxu0 0.0
  %9458 = vmatprep.subr.mxu0 0.0
  %9459 = vmatpush1.msra.mxu0 0.0
  %9460 = vmatprep.subr.mxu0 0.0
  %9461 = vmatpush1.msra.mxu0 0.0
  %9462 = vmatprep.subr.mxu0 0.0
  %9463 = vmatpush1.msra.mxu0 0.0
  %9464 = vmatprep.subr.mxu0 0.0
  %9465 = vmatpush1.msra.mxu0 0.0
  %9466 = vmatprep.subr.mxu0 0.0
  %9467 = vmatpush1.msra.mxu0 0.0
  %9468 = vmatprep.subr.mxu0 0.0
  %9469 = vmatpush1.msra.mxu0 0.0
  %9470 = vmatprep.subr.mxu0 0.0
  %9471 = vmatpush1.msra.mxu0 0.0
  %9472 = vmatprep.subr.mxu0 0.0
  %9473 = vmatpush1.msra.mxu0 0.0
  %9474 = vmatprep.subr.mxu0 0.0
  %9475 = vmatpush1.msra.mxu0 0.0
  %9476 = vmatprep.subr.mxu0 0.0
  %9477 = vmatpush1.msra.mxu0 0.0
  %9478 = vmatprep.subr.mxu0 0.0
  %9479 = vmatpush1.msra.mxu0 0.0
  %9480 = vmatprep.subr.mxu0 0.0
  %9481 = vmatpush1.msra.mxu0 0.0
  %9482 = vmatprep.mubr.f32.mxu0 0.0
  %9483 = vmatmul.mubr.f32.gmra.mrb[0].mxu0 %v9407
  %v9484 = vpop.f32.mrb[0].mxu0
  %v9485 = vadd.f32 0.0, %v9484
  %v9486 = vpop.f32.mrb[0].mxu0
  %9487 = vmatprep.mubr.f32.mxu0 0.0
  %9488 = vmatmul.mubr.f32.gmra.mrb[0].mxu0 %v9410
  %v9489 = vpop.f32.mrb[0].mxu0
  %v9490 = vadd.f32 0.0, %v9489
  %v9491 = vpop.f32.mrb[0].mxu0
  %9492 = vmatprep.mubr.f32.mxu0 0.0
  %9493 = vmatmul.mubr.f32.gmra.mrb[0].mxu0 %v9413
  %v9494 = vpop.f32.mrb[0].mxu0
  %v9495 = vadd.f32 0.0, %v9494
  %v9496 = vpop.f32.mrb[0].mxu0
  %9497 = vmatprep.mubr.f32.mxu0 0.0
  %9498 = vmatmul.mubr.f32.gmra.mrb[0].mxu0 %v9416
  %v9499 = vpop.f32.mrb[0].mxu0
  %v9500 = vadd.f32 0.0, %v9499
  %v9501 = vpop.f32.mrb[0].mxu0
  %9502 = vdwg.mxu0
  %v9503 = vadd.f32 %v6074, %v9485
  %v9504 = vadd.f32 %v6080, %v9490
  %v9505 = vadd.f32 %v6086, %v9495
  %v9506 = vadd.f32 %v6092, %v9500
  %9507 = vmatprep.subr.mxu0 0.0
  %9508 = vmatpush1.msra.mxu0 %v9503
  %9509 = vmatprep.subr.mxu0 0.0
  %9510 = vmatpush1.msra.mxu0 %v9504
  %9511 = vmatprep.subr.mxu0 0.0
  %9512 = vmatpush1.msra.mxu0 %v9505
  %9513 = vmatprep.subr.mxu0 0.0
  %9514 = vmatpush1.msra.mxu0 %v9506
  %9515 = vmatprep.subr.mxu0 0.0
  %9516 = vmatpush1.msra.mxu0 0.0
  %9517 = vmatprep.subr.mxu0 0.0
  %9518 = vmatpush1.msra.mxu0 0.0
  %9519 = vmatprep.subr.mxu0 0.0
  %9520 = vmatpush1.msra.mxu0 0.0
  %9521 = vmatprep.subr.mxu0 0.0
  %9522 = vmatpush1.msra.mxu0 0.0
  %9523 = vmatprep.subr.mxu0 0.0
  %9524 = vmatpush1.msra.mxu0 0.0
  %9525 = vmatprep.subr.mxu0 0.0
  %9526 = vmatpush1.msra.mxu0 0.0
  %9527 = vmatprep.subr.mxu0 0.0
  %9528 = vmatpush1.msra.mxu0 0.0
  %9529 = vmatprep.subr.mxu0 0.0
  %9530 = vmatpush1.msra.mxu0 0.0
  %9531 = vmatprep.subr.mxu0 0.0
  %9532 = vmatpush1.msra.mxu0 0.0
  %9533 = vmatprep.subr.mxu0 0.0
  %9534 = vmatpush1.msra.mxu0 0.0
  %9535 = vmatprep.subr.mxu0 0.0
  %9536 = vmatpush1.msra.mxu0 0.0
  %9537 = vmatprep.subr.mxu0 0.0
  %9538 = vmatpush1.msra.mxu0 0.0
  %9539 = vmatprep.subr.mxu0 0.0
  %9540 = vmatpush1.msra.mxu0 0.0
  %9541 = vmatprep.subr.mxu0 0.0
  %9542 = vmatpush1.msra.mxu0 0.0
  %9543 = vmatprep.subr.mxu0 0.0
  %9544 = vmatpush1.msra.mxu0 0.0
  %9545 = vmatprep.subr.mxu0 0.0
  %9546 = vmatpush1.msra.mxu0 0.0
  %9547 = vmatprep.subr.mxu0 0.0
  %9548 = vmatpush1.msra.mxu0 0.0
  %9549 = vmatprep.subr.mxu0 0.0
  %9550 = vmatpush1.msra.mxu0 0.0
  %9551 = vmatprep.subr.mxu0 0.0
  %9552 = vmatpush1.msra.mxu0 0.0
  %9553 = vmatprep.subr.mxu0 0.0
  %9554 = vmatpush1.msra.mxu0 0.0
  %9555 = vmatprep.subr.mxu0 0.0
  %9556 = vmatpush1.msra.mxu0 0.0
  %9557 = vmatprep.subr.mxu0 0.0
  %9558 = vmatpush1.msra.mxu0 0.0
  %9559 = vmatprep.subr.mxu0 0.0
  %9560 = vmatpush1.msra.mxu0 0.0
  %9561 = vmatprep.subr.mxu0 0.0
  %9562 = vmatpush1.msra.mxu0 0.0
  %9563 = vmatprep.subr.mxu0 0.0
  %9564 = vmatpush1.msra.mxu0 0.0
  %9565 = vmatprep.subr.mxu0 0.0
  %9566 = vmatpush1.msra.mxu0 0.0
  %9567 = vmatprep.subr.mxu0 0.0
  %9568 = vmatpush1.msra.mxu0 0.0
  %9569 = vmatprep.subr.mxu0 0.0
  %9570 = vmatpush1.msra.mxu0 0.0
  %9571 = vmatprep.mubr.f32.mxu0 0.0
  %9572 = vmatmul.mubr.f32.gmra.mrb[0].mxu0 %v559
  %v9573 = vpop.f32.mrb[0].mxu0
  %v9574 = vadd.f32 0.0, %v9573
  %v9575 = vpop.f32.mrb[0].mxu0
  %9576 = vmatprep.mubr.f32.mxu0 0.0
  %9577 = vmatmul.mubr.f32.gmra.mrb[0].mxu0 %v562
  %v9578 = vpop.f32.mrb[0].mxu0
  %v9579 = vadd.f32 0.0, %v9578
  %v9580 = vpop.f32.mrb[0].mxu0
  %9581 = vmatprep.mubr.f32.mxu0 0.0
  %9582 = vmatmul.mubr.f32.gmra.mrb[0].mxu0 %v565
  %v9583 = vpop.f32.mrb[0].mxu0
  %v9584 = vadd.f32 0.0, %v9583
  %v9585 = vpop.f32.mrb[0].mxu0
  %9586 = vmatprep.mubr.f32.mxu0 0.0
  %9587 = vmatmul.mubr.f32.gmra.mrb[0].mxu0 %v568
  %v9588 = vpop.f32.mrb[0].mxu0
  %v9589 = vadd.f32 0.0, %v9588
  %v9590 = vpop.f32.mrb[0].mxu0
  %9591 = vdwg.mxu0
  %v9592 = vadd.f32 %v5782, %v9574
  %v9593 = vadd.f32 %v5782, %v9579
  %v9594 = vadd.f32 %v5782, %v9584
  %v9595 = vadd.f32 %v5782, %v9589
  %9600 = vrot.lane.b32.xlu0 %v9503, 64
  %v9601 = vpop.permute.xlu0 %9600
  %9602 = vrot.lane.b32.xlu0 %v9504, 64
  %v9603 = vpop.permute.xlu0 %9602
  %9604 = vrot.lane.b32.xlu0 %v9505, 64
  %v9605 = vpop.permute.xlu0 %9604
  %9606 = vrot.lane.b32.xlu0 %v9506, 64
  %v9607 = vpop.permute.xlu0 %9606
  %9612 = vmatprep.subr.mxu0 0.0
  %9613 = vmatpush1.msra.mxu0 %v9601
  %9614 = vmatprep.subr.mxu0 0.0
  %9615 = vmatpush1.msra.mxu0 %v9603
  %9616 = vmatprep.subr.mxu0 0.0
  %9617 = vmatpush1.msra.mxu0 %v9605
  %9618 = vmatprep.subr.mxu0 0.0
  %9619 = vmatpush1.msra.mxu0 %v9607
  %9620 = vmatprep.subr.mxu0 0.0
  %9621 = vmatpush1.msra.mxu0 0.0
  %9622 = vmatprep.subr.mxu0 0.0
  %9623 = vmatpush1.msra.mxu0 0.0
  %9624 = vmatprep.subr.mxu0 0.0
  %9625 = vmatpush1.msra.mxu0 0.0
  %9626 = vmatprep.subr.mxu0 0.0
  %9627 = vmatpush1.msra.mxu0 0.0
  %9628 = vmatprep.subr.mxu0 0.0
  %9629 = vmatpush1.msra.mxu0 0.0
  %9630 = vmatprep.subr.mxu0 0.0
  %9631 = vmatpush1.msra.mxu0 0.0
  %9632 = vmatprep.subr.mxu0 0.0
  %9633 = vmatpush1.msra.mxu0 0.0
  %9634 = vmatprep.subr.mxu0 0.0
  %9635 = vmatpush1.msra.mxu0 0.0
  %9636 = vmatprep.subr.mxu0 0.0
  %9637 = vmatpush1.msra.mxu0 0.0
  %9638 = vmatprep.subr.mxu0 0.0
  %9639 = vmatpush1.msra.mxu0 0.0
  %9640 = vmatprep.subr.mxu0 0.0
  %9641 = vmatpush1.msra.mxu0 0.0
  %9642 = vmatprep.subr.mxu0 0.0
  %9643 = vmatpush1.msra.mxu0 0.0
  %9644 = vmatprep.subr.mxu0 0.0
  %9645 = vmatpush1.msra.mxu0 0.0
  %9646 = vmatprep.subr.mxu0 0.0
  %9647 = vmatpush1.msra.mxu0 0.0
  %9648 = vmatprep.subr.mxu0 0.0
  %9649 = vmatpush1.msra.mxu0 0.0
  %9650 = vmatprep.subr.mxu0 0.0
  %9651 = vmatpush1.msra.mxu0 0.0
  %9652 = vmatprep.subr.mxu0 0.0
  %9653 = vmatpush1.msra.mxu0 0.0
  %9654 = vmatprep.subr.mxu0 0.0
  %9655 = vmatpush1.msra.mxu0 0.0
  %9656 = vmatprep.subr.mxu0 0.0
  %9657 = vmatpush1.msra.mxu0 0.0
  %9658 = vmatprep.subr.mxu0 0.0
  %9659 = vmatpush1.msra.mxu0 0.0
  %9660 = vmatprep.subr.mxu0 0.0
  %9661 = vmatpush1.msra.mxu0 0.0
  %9662 = vmatprep.subr.mxu0 0.0
  %9663 = vmatpush1.msra.mxu0 0.0
  %9664 = vmatprep.subr.mxu0 0.0
  %9665 = vmatpush1.msra.mxu0 0.0
  %9666 = vmatprep.subr.mxu0 0.0
  %9667 = vmatpush1.msra.mxu0 0.0
  %9668 = vmatprep.subr.mxu0 0.0
  %9669 = vmatpush1.msra.mxu0 0.0
  %9670 = vmatprep.subr.mxu0 0.0
  %9671 = vmatpush1.msra.mxu0 0.0
  %9672 = vmatprep.subr.mxu0 0.0
  %9673 = vmatpush1.msra.mxu0 0.0
  %9674 = vmatprep.subr.mxu0 0.0
  %9675 = vmatpush1.msra.mxu0 0.0
  %9676 = vmatprep.mubr.f32.mxu0 0.0
  %9677 = vmatmul.mubr.f32.gmra.mrb[0].mxu0 %v676
  %v9678 = vpop.f32.mrb[0].mxu0
  %v9679 = vadd.f32 0.0, %v9678
  %v9680 = vpop.f32.mrb[0].mxu0
  %9681 = vmatprep.mubr.f32.mxu0 0.0
  %9682 = vmatmul.mubr.f32.gmra.mrb[0].mxu0 %v679
  %v9683 = vpop.f32.mrb[0].mxu0
  %v9684 = vadd.f32 0.0, %v9683
  %v9685 = vpop.f32.mrb[0].mxu0
  %9686 = vmatprep.mubr.f32.mxu0 0.0
  %9687 = vmatmul.mubr.f32.gmra.mrb[0].mxu0 %v682
  %v9688 = vpop.f32.mrb[0].mxu0
  %v9689 = vadd.f32 0.0, %v9688
  %v9690 = vpop.f32.mrb[0].mxu0
  %9691 = vmatprep.mubr.f32.mxu0 0.0
  %9692 = vmatmul.mubr.f32.gmra.mrb[0].mxu0 %v685
  %v9693 = vpop.f32.mrb[0].mxu0
  %v9694 = vadd.f32 0.0, %v9693
  %v9695 = vpop.f32.mrb[0].mxu0
  %9696 = vdwg.mxu0
  %v9697 = vadd.f32 %v9592, %v9679
  %v9698 = vadd.f32 %v9593, %v9684
  %v9699 = vadd.f32 %v9594, %v9689
  %v9700 = vadd.f32 %v9595, %v9694
  %v9701 = vxor.u32 %v9697, 2147483648
  %v9702 = vxor.u32 %v9698, 2147483648
  %v9703 = vxor.u32 %v9699, 2147483648
  %v9704 = vxor.u32 %v9700, 2147483648
  %v9705 = vmul.f32 %v9701, 1.442695
  %v9706 = vpow.pop %v9705
  %v9707 = vmul.f32 %v9702, 1.442695
  %v9708 = vpow.pop %v9707
  %v9709 = vmul.f32 %v9703, 1.442695
  %v9710 = vpow.pop %v9709
  %v9711 = vmul.f32 %v9704, 1.442695
  %v9712 = vpow.pop %v9711
  %v9713 = vadd.f32 %v9706, 1.0
  %v9714 = vadd.f32 %v9708, 1.0
  %v9715 = vadd.f32 %v9710, 1.0
  %v9716 = vadd.f32 %v9712, 1.0
  %v9717 = vrcp.pop %v9713
  %v9718 = vmul.f32 1.0, %v9717
  %v9719 = vrcp.pop %v9714
  %v9720 = vmul.f32 1.0, %v9719
  %v9721 = vrcp.pop %v9715
  %v9722 = vmul.f32 1.0, %v9721
  %v9723 = vrcp.pop %v9716
  %v9724 = vmul.f32 1.0, %v9723
  %9725 = vrot.lane.b32.xlu0 %v9398, 32
  %v9726 = vpop.permute.xlu0 %9725
  %9727 = vrot.lane.b32.xlu0 %v9399, 32
  %v9728 = vpop.permute.xlu0 %9727
  %9729 = vrot.lane.b32.xlu0 %v9400, 32
  %v9730 = vpop.permute.xlu0 %9729
  %9731 = vrot.lane.b32.xlu0 %v9401, 32
  %v9732 = vpop.permute.xlu0 %9731
  %v9737 = vmul.f32 %v9718, %v9726
  %v9738 = vmul.f32 %v9720, %v9728
  %v9739 = vmul.f32 %v9722, %v9730
  %v9740 = vmul.f32 %v9724, %v9732
  %9745 = vrot.lane.b32.xlu0 %v9737, 96
  %v9746 = vpop.permute.xlu0 %9745
  %9747 = vrot.lane.b32.xlu0 %v9738, 96
  %v9748 = vpop.permute.xlu0 %9747
  %9749 = vrot.lane.b32.xlu0 %v9739, 96
  %v9750 = vpop.permute.xlu0 %9749
  %9751 = vrot.lane.b32.xlu0 %v9740, 96
  %v9752 = vpop.permute.xlu0 %9751
  %v9753 = vsel %vm465, %v9746, 0
  %v9755 = vsel %vm465, %v9748, 0
  %v9757 = vsel %vm465, %v9750, 0
  %v9759 = vsel %vm465, %v9752, 0
  %9761 = vmatprep.subr.mxu0 0.0
  %9762 = vmatpush1.msra.mxu0 %v5773
  %9763 = vmatprep.subr.mxu0 0.0
  %9764 = vmatpush1.msra.mxu0 %v5774
  %9765 = vmatprep.subr.mxu0 0.0
  %9766 = vmatpush1.msra.mxu0 %v5775
  %9767 = vmatprep.subr.mxu0 0.0
  %9768 = vmatpush1.msra.mxu0 %v5776
  %9769 = vmatprep.subr.mxu0 0.0
  %9770 = vmatpush1.msra.mxu0 0.0
  %9771 = vmatprep.subr.mxu0 0.0
  %9772 = vmatpush1.msra.mxu0 0.0
  %9773 = vmatprep.subr.mxu0 0.0
  %9774 = vmatpush1.msra.mxu0 0.0
  %9775 = vmatprep.subr.mxu0 0.0
  %9776 = vmatpush1.msra.mxu0 0.0
  %9777 = vmatprep.subr.mxu0 0.0
  %9778 = vmatpush1.msra.mxu0 0.0
  %9779 = vmatprep.subr.mxu0 0.0
  %9780 = vmatpush1.msra.mxu0 0.0
  %9781 = vmatprep.subr.mxu0 0.0
  %9782 = vmatpush1.msra.mxu0 0.0
  %9783 = vmatprep.subr.mxu0 0.0
  %9784 = vmatpush1.msra.mxu0 0.0
  %9785 = vmatprep.subr.mxu0 0.0
  %9786 = vmatpush1.msra.mxu0 0.0
  %9787 = vmatprep.subr.mxu0 0.0
  %9788 = vmatpush1.msra.mxu0 0.0
  %9789 = vmatprep.subr.mxu0 0.0
  %9790 = vmatpush1.msra.mxu0 0.0
  %9791 = vmatprep.subr.mxu0 0.0
  %9792 = vmatpush1.msra.mxu0 0.0
  %9793 = vmatprep.subr.mxu0 0.0
  %9794 = vmatpush1.msra.mxu0 0.0
  %9795 = vmatprep.subr.mxu0 0.0
  %9796 = vmatpush1.msra.mxu0 0.0
  %9797 = vmatprep.subr.mxu0 0.0
  %9798 = vmatpush1.msra.mxu0 0.0
  %9799 = vmatprep.subr.mxu0 0.0
  %9800 = vmatpush1.msra.mxu0 0.0
  %9801 = vmatprep.subr.mxu0 0.0
  %9802 = vmatpush1.msra.mxu0 0.0
  %9803 = vmatprep.subr.mxu0 0.0
  %9804 = vmatpush1.msra.mxu0 0.0
  %9805 = vmatprep.subr.mxu0 0.0
  %9806 = vmatpush1.msra.mxu0 0.0
  %9807 = vmatprep.subr.mxu0 0.0
  %9808 = vmatpush1.msra.mxu0 0.0
  %9809 = vmatprep.subr.mxu0 0.0
  %9810 = vmatpush1.msra.mxu0 0.0
  %9811 = vmatprep.subr.mxu0 0.0
  %9812 = vmatpush1.msra.mxu0 0.0
  %9813 = vmatprep.subr.mxu0 0.0
  %9814 = vmatpush1.msra.mxu0 0.0
  %9815 = vmatprep.subr.mxu0 0.0
  %9816 = vmatpush1.msra.mxu0 0.0
  %9817 = vmatprep.subr.mxu0 0.0
  %9818 = vmatpush1.msra.mxu0 0.0
  %9819 = vmatprep.subr.mxu0 0.0
  %9820 = vmatpush1.msra.mxu0 0.0
  %9821 = vmatprep.subr.mxu0 0.0
  %9822 = vmatpush1.msra.mxu0 0.0
  %9823 = vmatprep.subr.mxu0 0.0
  %9824 = vmatpush1.msra.mxu0 0.0
  %9825 = vmatprep.mubr.f32.mxu0 0.0
  %9826 = vmatmul.mubr.f32.gmra.mrb[0].mxu0 %v9753
  %v9827 = vpop.f32.mrb[0].mxu0
  %v9828 = vadd.f32 0.0, %v9827
  %v9829 = vpop.f32.mrb[0].mxu0
  %9830 = vmatprep.mubr.f32.mxu0 0.0
  %9831 = vmatmul.mubr.f32.gmra.mrb[0].mxu0 %v9755
  %v9832 = vpop.f32.mrb[0].mxu0
  %v9833 = vadd.f32 0.0, %v9832
  %v9834 = vpop.f32.mrb[0].mxu0
  %9835 = vmatprep.mubr.f32.mxu0 0.0
  %9836 = vmatmul.mubr.f32.gmra.mrb[0].mxu0 %v9757
  %v9837 = vpop.f32.mrb[0].mxu0
  %v9838 = vadd.f32 0.0, %v9837
  %v9839 = vpop.f32.mrb[0].mxu0
  %9840 = vmatprep.mubr.f32.mxu0 0.0
  %9841 = vmatmul.mubr.f32.gmra.mrb[0].mxu0 %v9759
  %v9842 = vpop.f32.mrb[0].mxu0
  %v9843 = vadd.f32 0.0, %v9842
  %v9844 = vpop.f32.mrb[0].mxu0
  %9845 = vdwg.mxu0
  %v9846 = vadd.f32 %v6076, %v9828
  %v9847 = vadd.f32 %v6082, %v9833
  %v9848 = vadd.f32 %v6088, %v9838
  %v9849 = vadd.f32 %v6094, %v9843
  %9850 = vmatprep.subr.mxu0 0.0
  %9851 = vmatpush1.msra.mxu0 %v9846
  %9852 = vmatprep.subr.mxu0 0.0
  %9853 = vmatpush1.msra.mxu0 %v9847
  %9854 = vmatprep.subr.mxu0 0.0
  %9855 = vmatpush1.msra.mxu0 %v9848
  %9856 = vmatprep.subr.mxu0 0.0
  %9857 = vmatpush1.msra.mxu0 %v9849
  %9858 = vmatprep.subr.mxu0 0.0
  %9859 = vmatpush1.msra.mxu0 0.0
  %9860 = vmatprep.subr.mxu0 0.0
  %9861 = vmatpush1.msra.mxu0 0.0
  %9862 = vmatprep.subr.mxu0 0.0
  %9863 = vmatpush1.msra.mxu0 0.0
  %9864 = vmatprep.subr.mxu0 0.0
  %9865 = vmatpush1.msra.mxu0 0.0
  %9866 = vmatprep.subr.mxu0 0.0
  %9867 = vmatpush1.msra.mxu0 0.0
  %9868 = vmatprep.subr.mxu0 0.0
  %9869 = vmatpush1.msra.mxu0 0.0
  %9870 = vmatprep.subr.mxu0 0.0
  %9871 = vmatpush1.msra.mxu0 0.0
  %9872 = vmatprep.subr.mxu0 0.0
  %9873 = vmatpush1.msra.mxu0 0.0
  %9874 = vmatprep.subr.mxu0 0.0
  %9875 = vmatpush1.msra.mxu0 0.0
  %9876 = vmatprep.subr.mxu0 0.0
  %9877 = vmatpush1.msra.mxu0 0.0
  %9878 = vmatprep.subr.mxu0 0.0
  %9879 = vmatpush1.msra.mxu0 0.0
  %9880 = vmatprep.subr.mxu0 0.0
  %9881 = vmatpush1.msra.mxu0 0.0
  %9882 = vmatprep.subr.mxu0 0.0
  %9883 = vmatpush1.msra.mxu0 0.0
  %9884 = vmatprep.subr.mxu0 0.0
  %9885 = vmatpush1.msra.mxu0 0.0
  %9886 = vmatprep.subr.mxu0 0.0
  %9887 = vmatpush1.msra.mxu0 0.0
  %9888 = vmatprep.subr.mxu0 0.0
  %9889 = vmatpush1.msra.mxu0 0.0
  %9890 = vmatprep.subr.mxu0 0.0
  %9891 = vmatpush1.msra.mxu0 0.0
  %9892 = vmatprep.subr.mxu0 0.0
  %9893 = vmatpush1.msra.mxu0 0.0
  %9894 = vmatprep.subr.mxu0 0.0
  %9895 = vmatpush1.msra.mxu0 0.0
  %9896 = vmatprep.subr.mxu0 0.0
  %9897 = vmatpush1.msra.mxu0 0.0
  %9898 = vmatprep.subr.mxu0 0.0
  %9899 = vmatpush1.msra.mxu0 0.0
  %9900 = vmatprep.subr.mxu0 0.0
  %9901 = vmatpush1.msra.mxu0 0.0
  %9902 = vmatprep.subr.mxu0 0.0
  %9903 = vmatpush1.msra.mxu0 0.0
  %9904 = vmatprep.subr.mxu0 0.0
  %9905 = vmatpush1.msra.mxu0 0.0
  %9906 = vmatprep.subr.mxu0 0.0
  %9907 = vmatpush1.msra.mxu0 0.0
  %9908 = vmatprep.subr.mxu0 0.0
  %9909 = vmatpush1.msra.mxu0 0.0
  %9910 = vmatprep.subr.mxu0 0.0
  %9911 = vmatpush1.msra.mxu0 0.0
  %9912 = vmatprep.subr.mxu0 0.0
  %9913 = vmatpush1.msra.mxu0 0.0
  %9914 = vmatprep.mubr.f32.mxu0 0.0
  %9915 = vmatmul.mubr.f32.gmra.mrb[0].mxu0 %v559
  %v9916 = vpop.f32.mrb[0].mxu0
  %v9917 = vadd.f32 0.0, %v9916
  %v9918 = vpop.f32.mrb[0].mxu0
  %9919 = vmatprep.mubr.f32.mxu0 0.0
  %9920 = vmatmul.mubr.f32.gmra.mrb[0].mxu0 %v562
  %v9921 = vpop.f32.mrb[0].mxu0
  %v9922 = vadd.f32 0.0, %v9921
  %v9923 = vpop.f32.mrb[0].mxu0
  %9924 = vmatprep.mubr.f32.mxu0 0.0
  %9925 = vmatmul.mubr.f32.gmra.mrb[0].mxu0 %v565
  %v9926 = vpop.f32.mrb[0].mxu0
  %v9927 = vadd.f32 0.0, %v9926
  %v9928 = vpop.f32.mrb[0].mxu0
  %9929 = vmatprep.mubr.f32.mxu0 0.0
  %9930 = vmatmul.mubr.f32.gmra.mrb[0].mxu0 %v568
  %v9931 = vpop.f32.mrb[0].mxu0
  %v9932 = vadd.f32 0.0, %v9931
  %v9933 = vpop.f32.mrb[0].mxu0
  %9934 = vdwg.mxu0
  %v9935 = vadd.f32 %v5789, %v9917
  %v9936 = vadd.f32 %v5789, %v9922
  %v9937 = vadd.f32 %v5789, %v9927
  %v9938 = vadd.f32 %v5789, %v9932
  %9943 = vrot.lane.b32.xlu0 %v9846, 96
  %v9944 = vpop.permute.xlu0 %9943
  %9945 = vrot.lane.b32.xlu0 %v9847, 96
  %v9946 = vpop.permute.xlu0 %9945
  %9947 = vrot.lane.b32.xlu0 %v9848, 96
  %v9948 = vpop.permute.xlu0 %9947
  %9949 = vrot.lane.b32.xlu0 %v9849, 96
  %v9950 = vpop.permute.xlu0 %9949
  %9955 = vmatprep.subr.mxu0 0.0
  %9956 = vmatpush1.msra.mxu0 %v9944
  %9957 = vmatprep.subr.mxu0 0.0
  %9958 = vmatpush1.msra.mxu0 %v9946
  %9959 = vmatprep.subr.mxu0 0.0
  %9960 = vmatpush1.msra.mxu0 %v9948
  %9961 = vmatprep.subr.mxu0 0.0
  %9962 = vmatpush1.msra.mxu0 %v9950
  %9963 = vmatprep.subr.mxu0 0.0
  %9964 = vmatpush1.msra.mxu0 0.0
  %9965 = vmatprep.subr.mxu0 0.0
  %9966 = vmatpush1.msra.mxu0 0.0
  %9967 = vmatprep.subr.mxu0 0.0
  %9968 = vmatpush1.msra.mxu0 0.0
  %9969 = vmatprep.subr.mxu0 0.0
  %9970 = vmatpush1.msra.mxu0 0.0
  %9971 = vmatprep.subr.mxu0 0.0
  %9972 = vmatpush1.msra.mxu0 0.0
  %9973 = vmatprep.subr.mxu0 0.0
  %9974 = vmatpush1.msra.mxu0 0.0
  %9975 = vmatprep.subr.mxu0 0.0
  %9976 = vmatpush1.msra.mxu0 0.0
  %9977 = vmatprep.subr.mxu0 0.0
  %9978 = vmatpush1.msra.mxu0 0.0
  %9979 = vmatprep.subr.mxu0 0.0
  %9980 = vmatpush1.msra.mxu0 0.0
  %9981 = vmatprep.subr.mxu0 0.0
  %9982 = vmatpush1.msra.mxu0 0.0
  %9983 = vmatprep.subr.mxu0 0.0
  %9984 = vmatpush1.msra.mxu0 0.0
  %9985 = vmatprep.subr.mxu0 0.0
  %9986 = vmatpush1.msra.mxu0 0.0
  %9987 = vmatprep.subr.mxu0 0.0
  %9988 = vmatpush1.msra.mxu0 0.0
  %9989 = vmatprep.subr.mxu0 0.0
  %9990 = vmatpush1.msra.mxu0 0.0
  %9991 = vmatprep.subr.mxu0 0.0
  %9992 = vmatpush1.msra.mxu0 0.0
  %9993 = vmatprep.subr.mxu0 0.0
  %9994 = vmatpush1.msra.mxu0 0.0
  %9995 = vmatprep.subr.mxu0 0.0
  %9996 = vmatpush1.msra.mxu0 0.0
  %9997 = vmatprep.subr.mxu0 0.0
  %9998 = vmatpush1.msra.mxu0 0.0
  %9999 = vmatprep.subr.mxu0 0.0
  %10000 = vmatpush1.msra.mxu0 0.0
  %10001 = vmatprep.subr.mxu0 0.0
  %10002 = vmatpush1.msra.mxu0 0.0
  %10003 = vmatprep.subr.mxu0 0.0
  %10004 = vmatpush1.msra.mxu0 0.0
  %10005 = vmatprep.subr.mxu0 0.0
  %10006 = vmatpush1.msra.mxu0 0.0
  %10007 = vmatprep.subr.mxu0 0.0
  %10008 = vmatpush1.msra.mxu0 0.0
  %10009 = vmatprep.subr.mxu0 0.0
  %10010 = vmatpush1.msra.mxu0 0.0
  %10011 = vmatprep.subr.mxu0 0.0
  %10012 = vmatpush1.msra.mxu0 0.0
  %10013 = vmatprep.subr.mxu0 0.0
  %10014 = vmatpush1.msra.mxu0 0.0
  %10015 = vmatprep.subr.mxu0 0.0
  %10016 = vmatpush1.msra.mxu0 0.0
  %10017 = vmatprep.subr.mxu0 0.0
  %10018 = vmatpush1.msra.mxu0 0.0
  %10019 = vmatprep.mubr.f32.mxu0 0.0
  %10020 = vmatmul.mubr.f32.gmra.mrb[0].mxu0 %v676
  %v10021 = vpop.f32.mrb[0].mxu0
  %v10022 = vadd.f32 0.0, %v10021
  %v10023 = vpop.f32.mrb[0].mxu0
  %10024 = vmatprep.mubr.f32.mxu0 0.0
  %10025 = vmatmul.mubr.f32.gmra.mrb[0].mxu0 %v679
  %v10026 = vpop.f32.mrb[0].mxu0
  %v10027 = vadd.f32 0.0, %v10026
  %v10028 = vpop.f32.mrb[0].mxu0
  %10029 = vmatprep.mubr.f32.mxu0 0.0
  %10030 = vmatmul.mubr.f32.gmra.mrb[0].mxu0 %v682
  %v10031 = vpop.f32.mrb[0].mxu0
  %v10032 = vadd.f32 0.0, %v10031
  %v10033 = vpop.f32.mrb[0].mxu0
  %10034 = vmatprep.mubr.f32.mxu0 0.0
  %10035 = vmatmul.mubr.f32.gmra.mrb[0].mxu0 %v685
  %v10036 = vpop.f32.mrb[0].mxu0
  %v10037 = vadd.f32 0.0, %v10036
  %v10038 = vpop.f32.mrb[0].mxu0
  %10039 = vdwg.mxu0
  %v10040 = vadd.f32 %v9935, %v10022
  %v10041 = vadd.f32 %v9936, %v10027
  %v10042 = vadd.f32 %v9937, %v10032
  %v10043 = vadd.f32 %v9938, %v10037
  %v10044 = vtanh.pop %v10040
  %v10045 = vtanh.pop %v10041
  %v10046 = vtanh.pop %v10042
  %v10047 = vtanh.pop %v10043
  %v10048 = vsub.f32 %v10044, %v9398
  %v10049 = vsub.f32 %v10045, %v9399
  %v10050 = vsub.f32 %v10046, %v9400
  %v10051 = vsub.f32 %v10047, %v9401
  %v10052 = vmul.f32 %v9718, %v10048
  %v10053 = vmul.f32 %v9720, %v10049
  %v10054 = vmul.f32 %v9722, %v10050
  %v10055 = vmul.f32 %v9724, %v10051
  %v10056 = vadd.f32 %v9398, %v10052
  %v10057 = vadd.f32 %v9399, %v10053
  %v10058 = vadd.f32 %v9400, %v10054
  %v10059 = vadd.f32 %v9401, %v10055
  %10060 = vst.msk [vmem:[%s12 + $0xa0] sm:$0xff] %vm465, %v10056
  %10061 = vst.msk [vmem:[%s12 + $0xa8] sm:$0xff] %vm465, %v10057
  %10062 = vst.msk [vmem:[%s12 + $0xb0] sm:$0xff] %vm465, %v10058
  %10063 = vst.msk [vmem:[%s12 + $0xb8] sm:$0xff] %vm465, %v10059
  %v10065 = vsel %vm465, %v10056, 0
  %v10068 = vsel %vm465, %v10057, 0
  %v10071 = vsel %vm465, %v10058, 0
  %v10074 = vsel %vm465, %v10059, 0
  %10076 = vmatprep.subr.mxu0 0.0
  %10077 = vmatpush1.msra.mxu0 %v5769
  %10078 = vmatprep.subr.mxu0 0.0
  %10079 = vmatpush1.msra.mxu0 %v5770
  %10080 = vmatprep.subr.mxu0 0.0
  %10081 = vmatpush1.msra.mxu0 %v5771
  %10082 = vmatprep.subr.mxu0 0.0
  %10083 = vmatpush1.msra.mxu0 %v5772
  %10084 = vmatprep.subr.mxu0 0.0
  %10085 = vmatpush1.msra.mxu0 0.0
  %10086 = vmatprep.subr.mxu0 0.0
  %10087 = vmatpush1.msra.mxu0 0.0
  %10088 = vmatprep.subr.mxu0 0.0
  %10089 = vmatpush1.msra.mxu0 0.0
  %10090 = vmatprep.subr.mxu0 0.0
  %10091 = vmatpush1.msra.mxu0 0.0
  %10092 = vmatprep.subr.mxu0 0.0
  %10093 = vmatpush1.msra.mxu0 0.0
  %10094 = vmatprep.subr.mxu0 0.0
  %10095 = vmatpush1.msra.mxu0 0.0
  %10096 = vmatprep.subr.mxu0 0.0
  %10097 = vmatpush1.msra.mxu0 0.0
  %10098 = vmatprep.subr.mxu0 0.0
  %10099 = vmatpush1.msra.mxu0 0.0
  %10100 = vmatprep.subr.mxu0 0.0
  %10101 = vmatpush1.msra.mxu0 0.0
  %10102 = vmatprep.subr.mxu0 0.0
  %10103 = vmatpush1.msra.mxu0 0.0
  %10104 = vmatprep.subr.mxu0 0.0
  %10105 = vmatpush1.msra.mxu0 0.0
  %10106 = vmatprep.subr.mxu0 0.0
  %10107 = vmatpush1.msra.mxu0 0.0
  %10108 = vmatprep.subr.mxu0 0.0
  %10109 = vmatpush1.msra.mxu0 0.0
  %10110 = vmatprep.subr.mxu0 0.0
  %10111 = vmatpush1.msra.mxu0 0.0
  %10112 = vmatprep.subr.mxu0 0.0
  %10113 = vmatpush1.msra.mxu0 0.0
  %10114 = vmatprep.subr.mxu0 0.0
  %10115 = vmatpush1.msra.mxu0 0.0
  %10116 = vmatprep.subr.mxu0 0.0
  %10117 = vmatpush1.msra.mxu0 0.0
  %10118 = vmatprep.subr.mxu0 0.0
  %10119 = vmatpush1.msra.mxu0 0.0
  %10120 = vmatprep.subr.mxu0 0.0
  %10121 = vmatpush1.msra.mxu0 0.0
  %10122 = vmatprep.subr.mxu0 0.0
  %10123 = vmatpush1.msra.mxu0 0.0
  %10124 = vmatprep.subr.mxu0 0.0
  %10125 = vmatpush1.msra.mxu0 0.0
  %10126 = vmatprep.subr.mxu0 0.0
  %10127 = vmatpush1.msra.mxu0 0.0
  %10128 = vmatprep.subr.mxu0 0.0
  %10129 = vmatpush1.msra.mxu0 0.0
  %10130 = vmatprep.subr.mxu0 0.0
  %10131 = vmatpush1.msra.mxu0 0.0
  %10132 = vmatprep.subr.mxu0 0.0
  %10133 = vmatpush1.msra.mxu0 0.0
  %10134 = vmatprep.subr.mxu0 0.0
  %10135 = vmatpush1.msra.mxu0 0.0
  %10136 = vmatprep.subr.mxu0 0.0
  %10137 = vmatpush1.msra.mxu0 0.0
  %10138 = vmatprep.subr.mxu0 0.0
  %10139 = vmatpush1.msra.mxu0 0.0
  %10140 = vmatprep.mubr.f32.mxu0 0.0
  %10141 = vmatmul.mubr.f32.gmra.mrb[0].mxu0 %v10065
  %v10142 = vpop.f32.mrb[0].mxu0
  %v10143 = vadd.f32 0.0, %v10142
  %v10144 = vpop.f32.mrb[0].mxu0
  %10145 = vmatprep.mubr.f32.mxu0 0.0
  %10146 = vmatmul.mubr.f32.gmra.mrb[0].mxu0 %v10068
  %v10147 = vpop.f32.mrb[0].mxu0
  %v10148 = vadd.f32 0.0, %v10147
  %v10149 = vpop.f32.mrb[0].mxu0
  %10150 = vmatprep.mubr.f32.mxu0 0.0
  %10151 = vmatmul.mubr.f32.gmra.mrb[0].mxu0 %v10071
  %v10152 = vpop.f32.mrb[0].mxu0
  %v10153 = vadd.f32 0.0, %v10152
  %v10154 = vpop.f32.mrb[0].mxu0
  %10155 = vmatprep.mubr.f32.mxu0 0.0
  %10156 = vmatmul.mubr.f32.gmra.mrb[0].mxu0 %v10074
  %v10157 = vpop.f32.mrb[0].mxu0
  %v10158 = vadd.f32 0.0, %v10157
  %v10159 = vpop.f32.mrb[0].mxu0
  %10160 = vdwg.mxu0
  %v10161 = vadd.f32 %v6098, %v10143
  %v10162 = vadd.f32 %v6104, %v10148
  %v10163 = vadd.f32 %v6110, %v10153
  %v10164 = vadd.f32 %v6116, %v10158
  %10165 = vmatprep.subr.mxu0 0.0
  %10166 = vmatpush1.msra.mxu0 %v10161
  %10167 = vmatprep.subr.mxu0 0.0
  %10168 = vmatpush1.msra.mxu0 %v10162
  %10169 = vmatprep.subr.mxu0 0.0
  %10170 = vmatpush1.msra.mxu0 %v10163
  %10171 = vmatprep.subr.mxu0 0.0
  %10172 = vmatpush1.msra.mxu0 %v10164
  %10173 = vmatprep.subr.mxu0 0.0
  %10174 = vmatpush1.msra.mxu0 0.0
  %10175 = vmatprep.subr.mxu0 0.0
  %10176 = vmatpush1.msra.mxu0 0.0
  %10177 = vmatprep.subr.mxu0 0.0
  %10178 = vmatpush1.msra.mxu0 0.0
  %10179 = vmatprep.subr.mxu0 0.0
  %10180 = vmatpush1.msra.mxu0 0.0
  %10181 = vmatprep.subr.mxu0 0.0
  %10182 = vmatpush1.msra.mxu0 0.0
  %10183 = vmatprep.subr.mxu0 0.0
  %10184 = vmatpush1.msra.mxu0 0.0
  %10185 = vmatprep.subr.mxu0 0.0
  %10186 = vmatpush1.msra.mxu0 0.0
  %10187 = vmatprep.subr.mxu0 0.0
  %10188 = vmatpush1.msra.mxu0 0.0
  %10189 = vmatprep.subr.mxu0 0.0
  %10190 = vmatpush1.msra.mxu0 0.0
  %10191 = vmatprep.subr.mxu0 0.0
  %10192 = vmatpush1.msra.mxu0 0.0
  %10193 = vmatprep.subr.mxu0 0.0
  %10194 = vmatpush1.msra.mxu0 0.0
  %10195 = vmatprep.subr.mxu0 0.0
  %10196 = vmatpush1.msra.mxu0 0.0
  %10197 = vmatprep.subr.mxu0 0.0
  %10198 = vmatpush1.msra.mxu0 0.0
  %10199 = vmatprep.subr.mxu0 0.0
  %10200 = vmatpush1.msra.mxu0 0.0
  %10201 = vmatprep.subr.mxu0 0.0
  %10202 = vmatpush1.msra.mxu0 0.0
  %10203 = vmatprep.subr.mxu0 0.0
  %10204 = vmatpush1.msra.mxu0 0.0
  %10205 = vmatprep.subr.mxu0 0.0
  %10206 = vmatpush1.msra.mxu0 0.0
  %10207 = vmatprep.subr.mxu0 0.0
  %10208 = vmatpush1.msra.mxu0 0.0
  %10209 = vmatprep.subr.mxu0 0.0
  %10210 = vmatpush1.msra.mxu0 0.0
  %10211 = vmatprep.subr.mxu0 0.0
  %10212 = vmatpush1.msra.mxu0 0.0
  %10213 = vmatprep.subr.mxu0 0.0
  %10214 = vmatpush1.msra.mxu0 0.0
  %10215 = vmatprep.subr.mxu0 0.0
  %10216 = vmatpush1.msra.mxu0 0.0
  %10217 = vmatprep.subr.mxu0 0.0
  %10218 = vmatpush1.msra.mxu0 0.0
  %10219 = vmatprep.subr.mxu0 0.0
  %10220 = vmatpush1.msra.mxu0 0.0
  %10221 = vmatprep.subr.mxu0 0.0
  %10222 = vmatpush1.msra.mxu0 0.0
  %10223 = vmatprep.subr.mxu0 0.0
  %10224 = vmatpush1.msra.mxu0 0.0
  %10225 = vmatprep.subr.mxu0 0.0
  %10226 = vmatpush1.msra.mxu0 0.0
  %10227 = vmatprep.subr.mxu0 0.0
  %10228 = vmatpush1.msra.mxu0 0.0
  %10229 = vmatprep.mubr.f32.mxu0 0.0
  %10230 = vmatmul.mubr.f32.gmra.mrb[0].mxu0 %v559
  %v10231 = vpop.f32.mrb[0].mxu0
  %v10232 = vadd.f32 0.0, %v10231
  %v10233 = vpop.f32.mrb[0].mxu0
  %10234 = vmatprep.mubr.f32.mxu0 0.0
  %10235 = vmatmul.mubr.f32.gmra.mrb[0].mxu0 %v562
  %v10236 = vpop.f32.mrb[0].mxu0
  %v10237 = vadd.f32 0.0, %v10236
  %v10238 = vpop.f32.mrb[0].mxu0
  %10239 = vmatprep.mubr.f32.mxu0 0.0
  %10240 = vmatmul.mubr.f32.gmra.mrb[0].mxu0 %v565
  %v10241 = vpop.f32.mrb[0].mxu0
  %v10242 = vadd.f32 0.0, %v10241
  %v10243 = vpop.f32.mrb[0].mxu0
  %10244 = vmatprep.mubr.f32.mxu0 0.0
  %10245 = vmatmul.mubr.f32.gmra.mrb[0].mxu0 %v568
  %v10246 = vpop.f32.mrb[0].mxu0
  %v10247 = vadd.f32 0.0, %v10246
  %v10248 = vpop.f32.mrb[0].mxu0
  %10249 = vdwg.mxu0
  %v10250 = vadd.f32 %v5782, %v10232
  %v10251 = vadd.f32 %v5782, %v10237
  %v10252 = vadd.f32 %v5782, %v10242
  %v10253 = vadd.f32 %v5782, %v10247
  %10258 = vrot.lane.b32.xlu0 %v10161, 64
  %v10259 = vpop.permute.xlu0 %10258
  %10260 = vrot.lane.b32.xlu0 %v10162, 64
  %v10261 = vpop.permute.xlu0 %10260
  %10262 = vrot.lane.b32.xlu0 %v10163, 64
  %v10263 = vpop.permute.xlu0 %10262
  %10264 = vrot.lane.b32.xlu0 %v10164, 64
  %v10265 = vpop.permute.xlu0 %10264
  %10270 = vmatprep.subr.mxu0 0.0
  %10271 = vmatpush1.msra.mxu0 %v10259
  %10272 = vmatprep.subr.mxu0 0.0
  %10273 = vmatpush1.msra.mxu0 %v10261
  %10274 = vmatprep.subr.mxu0 0.0
  %10275 = vmatpush1.msra.mxu0 %v10263
  %10276 = vmatprep.subr.mxu0 0.0
  %10277 = vmatpush1.msra.mxu0 %v10265
  %10278 = vmatprep.subr.mxu0 0.0
  %10279 = vmatpush1.msra.mxu0 0.0
  %10280 = vmatprep.subr.mxu0 0.0
  %10281 = vmatpush1.msra.mxu0 0.0
  %10282 = vmatprep.subr.mxu0 0.0
  %10283 = vmatpush1.msra.mxu0 0.0
  %10284 = vmatprep.subr.mxu0 0.0
  %10285 = vmatpush1.msra.mxu0 0.0
  %10286 = vmatprep.subr.mxu0 0.0
  %10287 = vmatpush1.msra.mxu0 0.0
  %10288 = vmatprep.subr.mxu0 0.0
  %10289 = vmatpush1.msra.mxu0 0.0
  %10290 = vmatprep.subr.mxu0 0.0
  %10291 = vmatpush1.msra.mxu0 0.0
  %10292 = vmatprep.subr.mxu0 0.0
  %10293 = vmatpush1.msra.mxu0 0.0
  %10294 = vmatprep.subr.mxu0 0.0
  %10295 = vmatpush1.msra.mxu0 0.0
  %10296 = vmatprep.subr.mxu0 0.0
  %10297 = vmatpush1.msra.mxu0 0.0
  %10298 = vmatprep.subr.mxu0 0.0
  %10299 = vmatpush1.msra.mxu0 0.0
  %10300 = vmatprep.subr.mxu0 0.0
  %10301 = vmatpush1.msra.mxu0 0.0
  %10302 = vmatprep.subr.mxu0 0.0
  %10303 = vmatpush1.msra.mxu0 0.0
  %10304 = vmatprep.subr.mxu0 0.0
  %10305 = vmatpush1.msra.mxu0 0.0
  %10306 = vmatprep.subr.mxu0 0.0
  %10307 = vmatpush1.msra.mxu0 0.0
  %10308 = vmatprep.subr.mxu0 0.0
  %10309 = vmatpush1.msra.mxu0 0.0
  %10310 = vmatprep.subr.mxu0 0.0
  %10311 = vmatpush1.msra.mxu0 0.0
  %10312 = vmatprep.subr.mxu0 0.0
  %10313 = vmatpush1.msra.mxu0 0.0
  %10314 = vmatprep.subr.mxu0 0.0
  %10315 = vmatpush1.msra.mxu0 0.0
  %10316 = vmatprep.subr.mxu0 0.0
  %10317 = vmatpush1.msra.mxu0 0.0
  %10318 = vmatprep.subr.mxu0 0.0
  %10319 = vmatpush1.msra.mxu0 0.0
  %10320 = vmatprep.subr.mxu0 0.0
  %10321 = vmatpush1.msra.mxu0 0.0
  %10322 = vmatprep.subr.mxu0 0.0
  %10323 = vmatpush1.msra.mxu0 0.0
  %10324 = vmatprep.subr.mxu0 0.0
  %10325 = vmatpush1.msra.mxu0 0.0
  %10326 = vmatprep.subr.mxu0 0.0
  %10327 = vmatpush1.msra.mxu0 0.0
  %10328 = vmatprep.subr.mxu0 0.0
  %10329 = vmatpush1.msra.mxu0 0.0
  %10330 = vmatprep.subr.mxu0 0.0
  %10331 = vmatpush1.msra.mxu0 0.0
  %10332 = vmatprep.subr.mxu0 0.0
  %10333 = vmatpush1.msra.mxu0 0.0
  %10334 = vmatprep.mubr.f32.mxu0 0.0
  %10335 = vmatmul.mubr.f32.gmra.mrb[0].mxu0 %v676
  %v10336 = vpop.f32.mrb[0].mxu0
  %v10337 = vadd.f32 0.0, %v10336
  %v10338 = vpop.f32.mrb[0].mxu0
  %10339 = vmatprep.mubr.f32.mxu0 0.0
  %10340 = vmatmul.mubr.f32.gmra.mrb[0].mxu0 %v679
  %v10341 = vpop.f32.mrb[0].mxu0
  %v10342 = vadd.f32 0.0, %v10341
  %v10343 = vpop.f32.mrb[0].mxu0
  %10344 = vmatprep.mubr.f32.mxu0 0.0
  %10345 = vmatmul.mubr.f32.gmra.mrb[0].mxu0 %v682
  %v10346 = vpop.f32.mrb[0].mxu0
  %v10347 = vadd.f32 0.0, %v10346
  %v10348 = vpop.f32.mrb[0].mxu0
  %10349 = vmatprep.mubr.f32.mxu0 0.0
  %10350 = vmatmul.mubr.f32.gmra.mrb[0].mxu0 %v685
  %v10351 = vpop.f32.mrb[0].mxu0
  %v10352 = vadd.f32 0.0, %v10351
  %v10353 = vpop.f32.mrb[0].mxu0
  %10354 = vdwg.mxu0
  %v10355 = vadd.f32 %v10250, %v10337
  %v10356 = vadd.f32 %v10251, %v10342
  %v10357 = vadd.f32 %v10252, %v10347
  %v10358 = vadd.f32 %v10253, %v10352
  %v10359 = vxor.u32 %v10355, 2147483648
  %v10360 = vxor.u32 %v10356, 2147483648
  %v10361 = vxor.u32 %v10357, 2147483648
  %v10362 = vxor.u32 %v10358, 2147483648
  %v10363 = vmul.f32 %v10359, 1.442695
  %v10364 = vpow.pop %v10363
  %v10365 = vmul.f32 %v10360, 1.442695
  %v10366 = vpow.pop %v10365
  %v10367 = vmul.f32 %v10361, 1.442695
  %v10368 = vpow.pop %v10367
  %v10369 = vmul.f32 %v10362, 1.442695
  %v10370 = vpow.pop %v10369
  %v10371 = vadd.f32 %v10364, 1.0
  %v10372 = vadd.f32 %v10366, 1.0
  %v10373 = vadd.f32 %v10368, 1.0
  %v10374 = vadd.f32 %v10370, 1.0
  %v10375 = vrcp.pop %v10371
  %v10376 = vmul.f32 1.0, %v10375
  %v10377 = vrcp.pop %v10372
  %v10378 = vmul.f32 1.0, %v10377
  %v10379 = vrcp.pop %v10373
  %v10380 = vmul.f32 1.0, %v10379
  %v10381 = vrcp.pop %v10374
  %v10382 = vmul.f32 1.0, %v10381
  %10383 = vrot.lane.b32.xlu0 %v10056, 32
  %v10384 = vpop.permute.xlu0 %10383
  %10385 = vrot.lane.b32.xlu0 %v10057, 32
  %v10386 = vpop.permute.xlu0 %10385
  %10387 = vrot.lane.b32.xlu0 %v10058, 32
  %v10388 = vpop.permute.xlu0 %10387
  %10389 = vrot.lane.b32.xlu0 %v10059, 32
  %v10390 = vpop.permute.xlu0 %10389
  %v10395 = vmul.f32 %v10376, %v10384
  %v10396 = vmul.f32 %v10378, %v10386
  %v10397 = vmul.f32 %v10380, %v10388
  %v10398 = vmul.f32 %v10382, %v10390
  %10403 = vrot.lane.b32.xlu0 %v10395, 96
  %v10404 = vpop.permute.xlu0 %10403
  %10405 = vrot.lane.b32.xlu0 %v10396, 96
  %v10406 = vpop.permute.xlu0 %10405
  %10407 = vrot.lane.b32.xlu0 %v10397, 96
  %v10408 = vpop.permute.xlu0 %10407
  %10409 = vrot.lane.b32.xlu0 %v10398, 96
  %v10410 = vpop.permute.xlu0 %10409
  %v10411 = vsel %vm465, %v10404, 0
  %v10413 = vsel %vm465, %v10406, 0
  %v10415 = vsel %vm465, %v10408, 0
  %v10417 = vsel %vm465, %v10410, 0
  %10419 = vmatprep.subr.mxu0 0.0
  %10420 = vmatpush1.msra.mxu0 %v5773
  %10421 = vmatprep.subr.mxu0 0.0
  %10422 = vmatpush1.msra.mxu0 %v5774
  %10423 = vmatprep.subr.mxu0 0.0
  %10424 = vmatpush1.msra.mxu0 %v5775
  %10425 = vmatprep.subr.mxu0 0.0
  %10426 = vmatpush1.msra.mxu0 %v5776
  %10427 = vmatprep.subr.mxu0 0.0
  %10428 = vmatpush1.msra.mxu0 0.0
  %10429 = vmatprep.subr.mxu0 0.0
  %10430 = vmatpush1.msra.mxu0 0.0
  %10431 = vmatprep.subr.mxu0 0.0
  %10432 = vmatpush1.msra.mxu0 0.0
  %10433 = vmatprep.subr.mxu0 0.0
  %10434 = vmatpush1.msra.mxu0 0.0
  %10435 = vmatprep.subr.mxu0 0.0
  %10436 = vmatpush1.msra.mxu0 0.0
  %10437 = vmatprep.subr.mxu0 0.0
  %10438 = vmatpush1.msra.mxu0 0.0
  %10439 = vmatprep.subr.mxu0 0.0
  %10440 = vmatpush1.msra.mxu0 0.0
  %10441 = vmatprep.subr.mxu0 0.0
  %10442 = vmatpush1.msra.mxu0 0.0
  %10443 = vmatprep.subr.mxu0 0.0
  %10444 = vmatpush1.msra.mxu0 0.0
  %10445 = vmatprep.subr.mxu0 0.0
  %10446 = vmatpush1.msra.mxu0 0.0
  %10447 = vmatprep.subr.mxu0 0.0
  %10448 = vmatpush1.msra.mxu0 0.0
  %10449 = vmatprep.subr.mxu0 0.0
  %10450 = vmatpush1.msra.mxu0 0.0
  %10451 = vmatprep.subr.mxu0 0.0
  %10452 = vmatpush1.msra.mxu0 0.0
  %10453 = vmatprep.subr.mxu0 0.0
  %10454 = vmatpush1.msra.mxu0 0.0
  %10455 = vmatprep.subr.mxu0 0.0
  %10456 = vmatpush1.msra.mxu0 0.0
  %10457 = vmatprep.subr.mxu0 0.0
  %10458 = vmatpush1.msra.mxu0 0.0
  %10459 = vmatprep.subr.mxu0 0.0
  %10460 = vmatpush1.msra.mxu0 0.0
  %10461 = vmatprep.subr.mxu0 0.0
  %10462 = vmatpush1.msra.mxu0 0.0
  %10463 = vmatprep.subr.mxu0 0.0
  %10464 = vmatpush1.msra.mxu0 0.0
  %10465 = vmatprep.subr.mxu0 0.0
  %10466 = vmatpush1.msra.mxu0 0.0
  %10467 = vmatprep.subr.mxu0 0.0
  %10468 = vmatpush1.msra.mxu0 0.0
  %10469 = vmatprep.subr.mxu0 0.0
  %10470 = vmatpush1.msra.mxu0 0.0
  %10471 = vmatprep.subr.mxu0 0.0
  %10472 = vmatpush1.msra.mxu0 0.0
  %10473 = vmatprep.subr.mxu0 0.0
  %10474 = vmatpush1.msra.mxu0 0.0
  %10475 = vmatprep.subr.mxu0 0.0
  %10476 = vmatpush1.msra.mxu0 0.0
  %10477 = vmatprep.subr.mxu0 0.0
  %10478 = vmatpush1.msra.mxu0 0.0
  %10479 = vmatprep.subr.mxu0 0.0
  %10480 = vmatpush1.msra.mxu0 0.0
  %10481 = vmatprep.subr.mxu0 0.0
  %10482 = vmatpush1.msra.mxu0 0.0
  %10483 = vmatprep.mubr.f32.mxu0 0.0
  %10484 = vmatmul.mubr.f32.gmra.mrb[0].mxu0 %v10411
  %v10485 = vpop.f32.mrb[0].mxu0
  %v10486 = vadd.f32 0.0, %v10485
  %v10487 = vpop.f32.mrb[0].mxu0
  %10488 = vmatprep.mubr.f32.mxu0 0.0
  %10489 = vmatmul.mubr.f32.gmra.mrb[0].mxu0 %v10413
  %v10490 = vpop.f32.mrb[0].mxu0
  %v10491 = vadd.f32 0.0, %v10490
  %v10492 = vpop.f32.mrb[0].mxu0
  %10493 = vmatprep.mubr.f32.mxu0 0.0
  %10494 = vmatmul.mubr.f32.gmra.mrb[0].mxu0 %v10415
  %v10495 = vpop.f32.mrb[0].mxu0
  %v10496 = vadd.f32 0.0, %v10495
  %v10497 = vpop.f32.mrb[0].mxu0
  %10498 = vmatprep.mubr.f32.mxu0 0.0
  %10499 = vmatmul.mubr.f32.gmra.mrb[0].mxu0 %v10417
  %v10500 = vpop.f32.mrb[0].mxu0
  %v10501 = vadd.f32 0.0, %v10500
  %v10502 = vpop.f32.mrb[0].mxu0
  %10503 = vdwg.mxu0
  %v10504 = vadd.f32 %v6100, %v10486
  %v10505 = vadd.f32 %v6106, %v10491
  %v10506 = vadd.f32 %v6112, %v10496
  %v10507 = vadd.f32 %v6118, %v10501
  %10508 = vmatprep.subr.mxu0 0.0
  %10509 = vmatpush1.msra.mxu0 %v10504
  %10510 = vmatprep.subr.mxu0 0.0
  %10511 = vmatpush1.msra.mxu0 %v10505
  %10512 = vmatprep.subr.mxu0 0.0
  %10513 = vmatpush1.msra.mxu0 %v10506
  %10514 = vmatprep.subr.mxu0 0.0
  %10515 = vmatpush1.msra.mxu0 %v10507
  %10516 = vmatprep.subr.mxu0 0.0
  %10517 = vmatpush1.msra.mxu0 0.0
  %10518 = vmatprep.subr.mxu0 0.0
  %10519 = vmatpush1.msra.mxu0 0.0
  %10520 = vmatprep.subr.mxu0 0.0
  %10521 = vmatpush1.msra.mxu0 0.0
  %10522 = vmatprep.subr.mxu0 0.0
  %10523 = vmatpush1.msra.mxu0 0.0
  %10524 = vmatprep.subr.mxu0 0.0
  %10525 = vmatpush1.msra.mxu0 0.0
  %10526 = vmatprep.subr.mxu0 0.0
  %10527 = vmatpush1.msra.mxu0 0.0
  %10528 = vmatprep.subr.mxu0 0.0
  %10529 = vmatpush1.msra.mxu0 0.0
  %10530 = vmatprep.subr.mxu0 0.0
  %10531 = vmatpush1.msra.mxu0 0.0
  %10532 = vmatprep.subr.mxu0 0.0
  %10533 = vmatpush1.msra.mxu0 0.0
  %10534 = vmatprep.subr.mxu0 0.0
  %10535 = vmatpush1.msra.mxu0 0.0
  %10536 = vmatprep.subr.mxu0 0.0
  %10537 = vmatpush1.msra.mxu0 0.0
  %10538 = vmatprep.subr.mxu0 0.0
  %10539 = vmatpush1.msra.mxu0 0.0
  %10540 = vmatprep.subr.mxu0 0.0
  %10541 = vmatpush1.msra.mxu0 0.0
  %10542 = vmatprep.subr.mxu0 0.0
  %10543 = vmatpush1.msra.mxu0 0.0
  %10544 = vmatprep.subr.mxu0 0.0
  %10545 = vmatpush1.msra.mxu0 0.0
  %10546 = vmatprep.subr.mxu0 0.0
  %10547 = vmatpush1.msra.mxu0 0.0
  %10548 = vmatprep.subr.mxu0 0.0
  %10549 = vmatpush1.msra.mxu0 0.0
  %10550 = vmatprep.subr.mxu0 0.0
  %10551 = vmatpush1.msra.mxu0 0.0
  %10552 = vmatprep.subr.mxu0 0.0
  %10553 = vmatpush1.msra.mxu0 0.0
  %10554 = vmatprep.subr.mxu0 0.0
  %10555 = vmatpush1.msra.mxu0 0.0
  %10556 = vmatprep.subr.mxu0 0.0
  %10557 = vmatpush1.msra.mxu0 0.0
  %10558 = vmatprep.subr.mxu0 0.0
  %10559 = vmatpush1.msra.mxu0 0.0
  %10560 = vmatprep.subr.mxu0 0.0
  %10561 = vmatpush1.msra.mxu0 0.0
  %10562 = vmatprep.subr.mxu0 0.0
  %10563 = vmatpush1.msra.mxu0 0.0
  %10564 = vmatprep.subr.mxu0 0.0
  %10565 = vmatpush1.msra.mxu0 0.0
  %10566 = vmatprep.subr.mxu0 0.0
  %10567 = vmatpush1.msra.mxu0 0.0
  %10568 = vmatprep.subr.mxu0 0.0
  %10569 = vmatpush1.msra.mxu0 0.0
  %10570 = vmatprep.subr.mxu0 0.0
  %10571 = vmatpush1.msra.mxu0 0.0
  %10572 = vmatprep.mubr.f32.mxu0 0.0
  %10573 = vmatmul.mubr.f32.gmra.mrb[0].mxu0 %v559
  %v10574 = vpop.f32.mrb[0].mxu0
  %v10575 = vadd.f32 0.0, %v10574
  %v10576 = vpop.f32.mrb[0].mxu0
  %10577 = vmatprep.mubr.f32.mxu0 0.0
  %10578 = vmatmul.mubr.f32.gmra.mrb[0].mxu0 %v562
  %v10579 = vpop.f32.mrb[0].mxu0
  %v10580 = vadd.f32 0.0, %v10579
  %v10581 = vpop.f32.mrb[0].mxu0
  %10582 = vmatprep.mubr.f32.mxu0 0.0
  %10583 = vmatmul.mubr.f32.gmra.mrb[0].mxu0 %v565
  %v10584 = vpop.f32.mrb[0].mxu0
  %v10585 = vadd.f32 0.0, %v10584
  %v10586 = vpop.f32.mrb[0].mxu0
  %10587 = vmatprep.mubr.f32.mxu0 0.0
  %10588 = vmatmul.mubr.f32.gmra.mrb[0].mxu0 %v568
  %v10589 = vpop.f32.mrb[0].mxu0
  %v10590 = vadd.f32 0.0, %v10589
  %v10591 = vpop.f32.mrb[0].mxu0
  %10592 = vdwg.mxu0
  %v10593 = vadd.f32 %v5789, %v10575
  %v10594 = vadd.f32 %v5789, %v10580
  %v10595 = vadd.f32 %v5789, %v10585
  %v10596 = vadd.f32 %v5789, %v10590
  %10601 = vrot.lane.b32.xlu0 %v10504, 96
  %v10602 = vpop.permute.xlu0 %10601
  %10603 = vrot.lane.b32.xlu0 %v10505, 96
  %v10604 = vpop.permute.xlu0 %10603
  %10605 = vrot.lane.b32.xlu0 %v10506, 96
  %v10606 = vpop.permute.xlu0 %10605
  %10607 = vrot.lane.b32.xlu0 %v10507, 96
  %v10608 = vpop.permute.xlu0 %10607
  %10613 = vmatprep.subr.mxu0 0.0
  %10614 = vmatpush1.msra.mxu0 %v10602
  %10615 = vmatprep.subr.mxu0 0.0
  %10616 = vmatpush1.msra.mxu0 %v10604
  %10617 = vmatprep.subr.mxu0 0.0
  %10618 = vmatpush1.msra.mxu0 %v10606
  %10619 = vmatprep.subr.mxu0 0.0
  %10620 = vmatpush1.msra.mxu0 %v10608
  %10621 = vmatprep.subr.mxu0 0.0
  %10622 = vmatpush1.msra.mxu0 0.0
  %10623 = vmatprep.subr.mxu0 0.0
  %10624 = vmatpush1.msra.mxu0 0.0
  %10625 = vmatprep.subr.mxu0 0.0
  %10626 = vmatpush1.msra.mxu0 0.0
  %10627 = vmatprep.subr.mxu0 0.0
  %10628 = vmatpush1.msra.mxu0 0.0
  %10629 = vmatprep.subr.mxu0 0.0
  %10630 = vmatpush1.msra.mxu0 0.0
  %10631 = vmatprep.subr.mxu0 0.0
  %10632 = vmatpush1.msra.mxu0 0.0
  %10633 = vmatprep.subr.mxu0 0.0
  %10634 = vmatpush1.msra.mxu0 0.0
  %10635 = vmatprep.subr.mxu0 0.0
  %10636 = vmatpush1.msra.mxu0 0.0
  %10637 = vmatprep.subr.mxu0 0.0
  %10638 = vmatpush1.msra.mxu0 0.0
  %10639 = vmatprep.subr.mxu0 0.0
  %10640 = vmatpush1.msra.mxu0 0.0
  %10641 = vmatprep.subr.mxu0 0.0
  %10642 = vmatpush1.msra.mxu0 0.0
  %10643 = vmatprep.subr.mxu0 0.0
  %10644 = vmatpush1.msra.mxu0 0.0
  %10645 = vmatprep.subr.mxu0 0.0
  %10646 = vmatpush1.msra.mxu0 0.0
  %10647 = vmatprep.subr.mxu0 0.0
  %10648 = vmatpush1.msra.mxu0 0.0
  %10649 = vmatprep.subr.mxu0 0.0
  %10650 = vmatpush1.msra.mxu0 0.0
  %10651 = vmatprep.subr.mxu0 0.0
  %10652 = vmatpush1.msra.mxu0 0.0
  %10653 = vmatprep.subr.mxu0 0.0
  %10654 = vmatpush1.msra.mxu0 0.0
  %10655 = vmatprep.subr.mxu0 0.0
  %10656 = vmatpush1.msra.mxu0 0.0
  %10657 = vmatprep.subr.mxu0 0.0
  %10658 = vmatpush1.msra.mxu0 0.0
  %10659 = vmatprep.subr.mxu0 0.0
  %10660 = vmatpush1.msra.mxu0 0.0
  %10661 = vmatprep.subr.mxu0 0.0
  %10662 = vmatpush1.msra.mxu0 0.0
  %10663 = vmatprep.subr.mxu0 0.0
  %10664 = vmatpush1.msra.mxu0 0.0
  %10665 = vmatprep.subr.mxu0 0.0
  %10666 = vmatpush1.msra.mxu0 0.0
  %10667 = vmatprep.subr.mxu0 0.0
  %10668 = vmatpush1.msra.mxu0 0.0
  %10669 = vmatprep.subr.mxu0 0.0
  %10670 = vmatpush1.msra.mxu0 0.0
  %10671 = vmatprep.subr.mxu0 0.0
  %10672 = vmatpush1.msra.mxu0 0.0
  %10673 = vmatprep.subr.mxu0 0.0
  %10674 = vmatpush1.msra.mxu0 0.0
  %10675 = vmatprep.subr.mxu0 0.0
  %10676 = vmatpush1.msra.mxu0 0.0
  %10677 = vmatprep.mubr.f32.mxu0 0.0
  %10678 = vmatmul.mubr.f32.gmra.mrb[0].mxu0 %v676
  %v10679 = vpop.f32.mrb[0].mxu0
  %v10680 = vadd.f32 0.0, %v10679
  %v10681 = vpop.f32.mrb[0].mxu0
  %10682 = vmatprep.mubr.f32.mxu0 0.0
  %10683 = vmatmul.mubr.f32.gmra.mrb[0].mxu0 %v679
  %v10684 = vpop.f32.mrb[0].mxu0
  %v10685 = vadd.f32 0.0, %v10684
  %v10686 = vpop.f32.mrb[0].mxu0
  %10687 = vmatprep.mubr.f32.mxu0 0.0
  %10688 = vmatmul.mubr.f32.gmra.mrb[0].mxu0 %v682
  %v10689 = vpop.f32.mrb[0].mxu0
  %v10690 = vadd.f32 0.0, %v10689
  %v10691 = vpop.f32.mrb[0].mxu0
  %10692 = vmatprep.mubr.f32.mxu0 0.0
  %10693 = vmatmul.mubr.f32.gmra.mrb[0].mxu0 %v685
  %v10694 = vpop.f32.mrb[0].mxu0
  %v10695 = vadd.f32 0.0, %v10694
  %v10696 = vpop.f32.mrb[0].mxu0
  %10697 = vdwg.mxu0
  %v10698 = vadd.f32 %v10593, %v10680
  %v10699 = vadd.f32 %v10594, %v10685
  %v10700 = vadd.f32 %v10595, %v10690
  %v10701 = vadd.f32 %v10596, %v10695
  %v10702 = vtanh.pop %v10698
  %v10703 = vtanh.pop %v10699
  %v10704 = vtanh.pop %v10700
  %v10705 = vtanh.pop %v10701
  %v10706 = vsub.f32 %v10702, %v10056
  %v10707 = vsub.f32 %v10703, %v10057
  %v10708 = vsub.f32 %v10704, %v10058
  %v10709 = vsub.f32 %v10705, %v10059
  %v10710 = vmul.f32 %v10376, %v10706
  %v10711 = vmul.f32 %v10378, %v10707
  %v10712 = vmul.f32 %v10380, %v10708
  %v10713 = vmul.f32 %v10382, %v10709
  %v10714 = vadd.f32 %v10056, %v10710
  %v10715 = vadd.f32 %v10057, %v10711
  %v10716 = vadd.f32 %v10058, %v10712
  %v10717 = vadd.f32 %v10059, %v10713
  %10718 = vst.msk [vmem:[%s12 + $0xc0] sm:$0xff] %vm465, %v10714
  %10719 = vst.msk [vmem:[%s12 + $0xc8] sm:$0xff] %vm465, %v10715
  %10720 = vst.msk [vmem:[%s12 + $0xd0] sm:$0xff] %vm465, %v10716
  %10721 = vst.msk [vmem:[%s12 + $0xd8] sm:$0xff] %vm465, %v10717
  %v10723 = vsel %vm465, %v10714, 0
  %v10726 = vsel %vm465, %v10715, 0
  %v10729 = vsel %vm465, %v10716, 0
  %v10732 = vsel %vm465, %v10717, 0
  %10734 = vmatprep.subr.mxu0 0.0
  %10735 = vmatpush1.msra.mxu0 %v5769
  %10736 = vmatprep.subr.mxu0 0.0
  %10737 = vmatpush1.msra.mxu0 %v5770
  %10738 = vmatprep.subr.mxu0 0.0
  %10739 = vmatpush1.msra.mxu0 %v5771
  %10740 = vmatprep.subr.mxu0 0.0
  %10741 = vmatpush1.msra.mxu0 %v5772
  %10742 = vmatprep.subr.mxu0 0.0
  %10743 = vmatpush1.msra.mxu0 0.0
  %10744 = vmatprep.subr.mxu0 0.0
  %10745 = vmatpush1.msra.mxu0 0.0
  %10746 = vmatprep.subr.mxu0 0.0
  %10747 = vmatpush1.msra.mxu0 0.0
  %10748 = vmatprep.subr.mxu0 0.0
  %10749 = vmatpush1.msra.mxu0 0.0
  %10750 = vmatprep.subr.mxu0 0.0
  %10751 = vmatpush1.msra.mxu0 0.0
  %10752 = vmatprep.subr.mxu0 0.0
  %10753 = vmatpush1.msra.mxu0 0.0
  %10754 = vmatprep.subr.mxu0 0.0
  %10755 = vmatpush1.msra.mxu0 0.0
  %10756 = vmatprep.subr.mxu0 0.0
  %10757 = vmatpush1.msra.mxu0 0.0
  %10758 = vmatprep.subr.mxu0 0.0
  %10759 = vmatpush1.msra.mxu0 0.0
  %10760 = vmatprep.subr.mxu0 0.0
  %10761 = vmatpush1.msra.mxu0 0.0
  %10762 = vmatprep.subr.mxu0 0.0
  %10763 = vmatpush1.msra.mxu0 0.0
  %10764 = vmatprep.subr.mxu0 0.0
  %10765 = vmatpush1.msra.mxu0 0.0
  %10766 = vmatprep.subr.mxu0 0.0
  %10767 = vmatpush1.msra.mxu0 0.0
  %10768 = vmatprep.subr.mxu0 0.0
  %10769 = vmatpush1.msra.mxu0 0.0
  %10770 = vmatprep.subr.mxu0 0.0
  %10771 = vmatpush1.msra.mxu0 0.0
  %10772 = vmatprep.subr.mxu0 0.0
  %10773 = vmatpush1.msra.mxu0 0.0
  %10774 = vmatprep.subr.mxu0 0.0
  %10775 = vmatpush1.msra.mxu0 0.0
  %10776 = vmatprep.subr.mxu0 0.0
  %10777 = vmatpush1.msra.mxu0 0.0
  %10778 = vmatprep.subr.mxu0 0.0
  %10779 = vmatpush1.msra.mxu0 0.0
  %10780 = vmatprep.subr.mxu0 0.0
  %10781 = vmatpush1.msra.mxu0 0.0
  %10782 = vmatprep.subr.mxu0 0.0
  %10783 = vmatpush1.msra.mxu0 0.0
  %10784 = vmatprep.subr.mxu0 0.0
  %10785 = vmatpush1.msra.mxu0 0.0
  %10786 = vmatprep.subr.mxu0 0.0
  %10787 = vmatpush1.msra.mxu0 0.0
  %10788 = vmatprep.subr.mxu0 0.0
  %10789 = vmatpush1.msra.mxu0 0.0
  %10790 = vmatprep.subr.mxu0 0.0
  %10791 = vmatpush1.msra.mxu0 0.0
  %10792 = vmatprep.subr.mxu0 0.0
  %10793 = vmatpush1.msra.mxu0 0.0
  %10794 = vmatprep.subr.mxu0 0.0
  %10795 = vmatpush1.msra.mxu0 0.0
  %10796 = vmatprep.subr.mxu0 0.0
  %10797 = vmatpush1.msra.mxu0 0.0
  %10798 = vmatprep.mubr.f32.mxu0 0.0
  %10799 = vmatmul.mubr.f32.gmra.mrb[0].mxu0 %v10723
  %v10800 = vpop.f32.mrb[0].mxu0
  %v10801 = vadd.f32 0.0, %v10800
  %v10802 = vpop.f32.mrb[0].mxu0
  %10803 = vmatprep.mubr.f32.mxu0 0.0
  %10804 = vmatmul.mubr.f32.gmra.mrb[0].mxu0 %v10726
  %v10805 = vpop.f32.mrb[0].mxu0
  %v10806 = vadd.f32 0.0, %v10805
  %v10807 = vpop.f32.mrb[0].mxu0
  %10808 = vmatprep.mubr.f32.mxu0 0.0
  %10809 = vmatmul.mubr.f32.gmra.mrb[0].mxu0 %v10729
  %v10810 = vpop.f32.mrb[0].mxu0
  %v10811 = vadd.f32 0.0, %v10810
  %v10812 = vpop.f32.mrb[0].mxu0
  %10813 = vmatprep.mubr.f32.mxu0 0.0
  %10814 = vmatmul.mubr.f32.gmra.mrb[0].mxu0 %v10732
  %v10815 = vpop.f32.mrb[0].mxu0
  %v10816 = vadd.f32 0.0, %v10815
  %v10817 = vpop.f32.mrb[0].mxu0
  %10818 = vdwg.mxu0
  %v10819 = vadd.f32 %v6122, %v10801
  %v10820 = vadd.f32 %v6128, %v10806
  %v10821 = vadd.f32 %v6134, %v10811
  %v10822 = vadd.f32 %v6140, %v10816
  %10823 = vmatprep.subr.mxu0 0.0
  %10824 = vmatpush1.msra.mxu0 %v10819
  %10825 = vmatprep.subr.mxu0 0.0
  %10826 = vmatpush1.msra.mxu0 %v10820
  %10827 = vmatprep.subr.mxu0 0.0
  %10828 = vmatpush1.msra.mxu0 %v10821
  %10829 = vmatprep.subr.mxu0 0.0
  %10830 = vmatpush1.msra.mxu0 %v10822
  %10831 = vmatprep.subr.mxu0 0.0
  %10832 = vmatpush1.msra.mxu0 0.0
  %10833 = vmatprep.subr.mxu0 0.0
  %10834 = vmatpush1.msra.mxu0 0.0
  %10835 = vmatprep.subr.mxu0 0.0
  %10836 = vmatpush1.msra.mxu0 0.0
  %10837 = vmatprep.subr.mxu0 0.0
  %10838 = vmatpush1.msra.mxu0 0.0
  %10839 = vmatprep.subr.mxu0 0.0
  %10840 = vmatpush1.msra.mxu0 0.0
  %10841 = vmatprep.subr.mxu0 0.0
  %10842 = vmatpush1.msra.mxu0 0.0
  %10843 = vmatprep.subr.mxu0 0.0
  %10844 = vmatpush1.msra.mxu0 0.0
  %10845 = vmatprep.subr.mxu0 0.0
  %10846 = vmatpush1.msra.mxu0 0.0
  %10847 = vmatprep.subr.mxu0 0.0
  %10848 = vmatpush1.msra.mxu0 0.0
  %10849 = vmatprep.subr.mxu0 0.0
  %10850 = vmatpush1.msra.mxu0 0.0
  %10851 = vmatprep.subr.mxu0 0.0
  %10852 = vmatpush1.msra.mxu0 0.0
  %10853 = vmatprep.subr.mxu0 0.0
  %10854 = vmatpush1.msra.mxu0 0.0
  %10855 = vmatprep.subr.mxu0 0.0
  %10856 = vmatpush1.msra.mxu0 0.0
  %10857 = vmatprep.subr.mxu0 0.0
  %10858 = vmatpush1.msra.mxu0 0.0
  %10859 = vmatprep.subr.mxu0 0.0
  %10860 = vmatpush1.msra.mxu0 0.0
  %10861 = vmatprep.subr.mxu0 0.0
  %10862 = vmatpush1.msra.mxu0 0.0
  %10863 = vmatprep.subr.mxu0 0.0
  %10864 = vmatpush1.msra.mxu0 0.0
  %10865 = vmatprep.subr.mxu0 0.0
  %10866 = vmatpush1.msra.mxu0 0.0
  %10867 = vmatprep.subr.mxu0 0.0
  %10868 = vmatpush1.msra.mxu0 0.0
  %10869 = vmatprep.subr.mxu0 0.0
  %10870 = vmatpush1.msra.mxu0 0.0
  %10871 = vmatprep.subr.mxu0 0.0
  %10872 = vmatpush1.msra.mxu0 0.0
  %10873 = vmatprep.subr.mxu0 0.0
  %10874 = vmatpush1.msra.mxu0 0.0
  %10875 = vmatprep.subr.mxu0 0.0
  %10876 = vmatpush1.msra.mxu0 0.0
  %10877 = vmatprep.subr.mxu0 0.0
  %10878 = vmatpush1.msra.mxu0 0.0
  %10879 = vmatprep.subr.mxu0 0.0
  %10880 = vmatpush1.msra.mxu0 0.0
  %10881 = vmatprep.subr.mxu0 0.0
  %10882 = vmatpush1.msra.mxu0 0.0
  %10883 = vmatprep.subr.mxu0 0.0
  %10884 = vmatpush1.msra.mxu0 0.0
  %10885 = vmatprep.subr.mxu0 0.0
  %10886 = vmatpush1.msra.mxu0 0.0
  %10887 = vmatprep.mubr.f32.mxu0 0.0
  %10888 = vmatmul.mubr.f32.gmra.mrb[0].mxu0 %v559
  %v10889 = vpop.f32.mrb[0].mxu0
  %v10890 = vadd.f32 0.0, %v10889
  %v10891 = vpop.f32.mrb[0].mxu0
  %10892 = vmatprep.mubr.f32.mxu0 0.0
  %10893 = vmatmul.mubr.f32.gmra.mrb[0].mxu0 %v562
  %v10894 = vpop.f32.mrb[0].mxu0
  %v10895 = vadd.f32 0.0, %v10894
  %v10896 = vpop.f32.mrb[0].mxu0
  %10897 = vmatprep.mubr.f32.mxu0 0.0
  %10898 = vmatmul.mubr.f32.gmra.mrb[0].mxu0 %v565
  %v10899 = vpop.f32.mrb[0].mxu0
  %v10900 = vadd.f32 0.0, %v10899
  %v10901 = vpop.f32.mrb[0].mxu0
  %10902 = vmatprep.mubr.f32.mxu0 0.0
  %10903 = vmatmul.mubr.f32.gmra.mrb[0].mxu0 %v568
  %v10904 = vpop.f32.mrb[0].mxu0
  %v10905 = vadd.f32 0.0, %v10904
  %v10906 = vpop.f32.mrb[0].mxu0
  %10907 = vdwg.mxu0
  %v10908 = vadd.f32 %v5782, %v10890
  %v10909 = vadd.f32 %v5782, %v10895
  %v10910 = vadd.f32 %v5782, %v10900
  %v10911 = vadd.f32 %v5782, %v10905
  %10916 = vrot.lane.b32.xlu0 %v10819, 64
  %v10917 = vpop.permute.xlu0 %10916
  %10918 = vrot.lane.b32.xlu0 %v10820, 64
  %v10919 = vpop.permute.xlu0 %10918
  %10920 = vrot.lane.b32.xlu0 %v10821, 64
  %v10921 = vpop.permute.xlu0 %10920
  %10922 = vrot.lane.b32.xlu0 %v10822, 64
  %v10923 = vpop.permute.xlu0 %10922
  %10928 = vmatprep.subr.mxu0 0.0
  %10929 = vmatpush1.msra.mxu0 %v10917
  %10930 = vmatprep.subr.mxu0 0.0
  %10931 = vmatpush1.msra.mxu0 %v10919
  %10932 = vmatprep.subr.mxu0 0.0
  %10933 = vmatpush1.msra.mxu0 %v10921
  %10934 = vmatprep.subr.mxu0 0.0
  %10935 = vmatpush1.msra.mxu0 %v10923
  %10936 = vmatprep.subr.mxu0 0.0
  %10937 = vmatpush1.msra.mxu0 0.0
  %10938 = vmatprep.subr.mxu0 0.0
  %10939 = vmatpush1.msra.mxu0 0.0
  %10940 = vmatprep.subr.mxu0 0.0
  %10941 = vmatpush1.msra.mxu0 0.0
  %10942 = vmatprep.subr.mxu0 0.0
  %10943 = vmatpush1.msra.mxu0 0.0
  %10944 = vmatprep.subr.mxu0 0.0
  %10945 = vmatpush1.msra.mxu0 0.0
  %10946 = vmatprep.subr.mxu0 0.0
  %10947 = vmatpush1.msra.mxu0 0.0
  %10948 = vmatprep.subr.mxu0 0.0
  %10949 = vmatpush1.msra.mxu0 0.0
  %10950 = vmatprep.subr.mxu0 0.0
  %10951 = vmatpush1.msra.mxu0 0.0
  %10952 = vmatprep.subr.mxu0 0.0
  %10953 = vmatpush1.msra.mxu0 0.0
  %10954 = vmatprep.subr.mxu0 0.0
  %10955 = vmatpush1.msra.mxu0 0.0
  %10956 = vmatprep.subr.mxu0 0.0
  %10957 = vmatpush1.msra.mxu0 0.0
  %10958 = vmatprep.subr.mxu0 0.0
  %10959 = vmatpush1.msra.mxu0 0.0
  %10960 = vmatprep.subr.mxu0 0.0
  %10961 = vmatpush1.msra.mxu0 0.0
  %10962 = vmatprep.subr.mxu0 0.0
  %10963 = vmatpush1.msra.mxu0 0.0
  %10964 = vmatprep.subr.mxu0 0.0
  %10965 = vmatpush1.msra.mxu0 0.0
  %10966 = vmatprep.subr.mxu0 0.0
  %10967 = vmatpush1.msra.mxu0 0.0
  %10968 = vmatprep.subr.mxu0 0.0
  %10969 = vmatpush1.msra.mxu0 0.0
  %10970 = vmatprep.subr.mxu0 0.0
  %10971 = vmatpush1.msra.mxu0 0.0
  %10972 = vmatprep.subr.mxu0 0.0
  %10973 = vmatpush1.msra.mxu0 0.0
  %10974 = vmatprep.subr.mxu0 0.0
  %10975 = vmatpush1.msra.mxu0 0.0
  %10976 = vmatprep.subr.mxu0 0.0
  %10977 = vmatpush1.msra.mxu0 0.0
  %10978 = vmatprep.subr.mxu0 0.0
  %10979 = vmatpush1.msra.mxu0 0.0
  %10980 = vmatprep.subr.mxu0 0.0
  %10981 = vmatpush1.msra.mxu0 0.0
  %10982 = vmatprep.subr.mxu0 0.0
  %10983 = vmatpush1.msra.mxu0 0.0
  %10984 = vmatprep.subr.mxu0 0.0
  %10985 = vmatpush1.msra.mxu0 0.0
  %10986 = vmatprep.subr.mxu0 0.0
  %10987 = vmatpush1.msra.mxu0 0.0
  %10988 = vmatprep.subr.mxu0 0.0
  %10989 = vmatpush1.msra.mxu0 0.0
  %10990 = vmatprep.subr.mxu0 0.0
  %10991 = vmatpush1.msra.mxu0 0.0
  %10992 = vmatprep.mubr.f32.mxu0 0.0
  %10993 = vmatmul.mubr.f32.gmra.mrb[0].mxu0 %v676
  %v10994 = vpop.f32.mrb[0].mxu0
  %v10995 = vadd.f32 0.0, %v10994
  %v10996 = vpop.f32.mrb[0].mxu0
  %10997 = vmatprep.mubr.f32.mxu0 0.0
  %10998 = vmatmul.mubr.f32.gmra.mrb[0].mxu0 %v679
  %v10999 = vpop.f32.mrb[0].mxu0
  %v11000 = vadd.f32 0.0, %v10999
  %v11001 = vpop.f32.mrb[0].mxu0
  %11002 = vmatprep.mubr.f32.mxu0 0.0
  %11003 = vmatmul.mubr.f32.gmra.mrb[0].mxu0 %v682
  %v11004 = vpop.f32.mrb[0].mxu0
  %v11005 = vadd.f32 0.0, %v11004
  %v11006 = vpop.f32.mrb[0].mxu0
  %11007 = vmatprep.mubr.f32.mxu0 0.0
  %11008 = vmatmul.mubr.f32.gmra.mrb[0].mxu0 %v685
  %v11009 = vpop.f32.mrb[0].mxu0
  %v11010 = vadd.f32 0.0, %v11009
  %v11011 = vpop.f32.mrb[0].mxu0
  %11012 = vdwg.mxu0
  %v11013 = vadd.f32 %v10908, %v10995
  %v11014 = vadd.f32 %v10909, %v11000
  %v11015 = vadd.f32 %v10910, %v11005
  %v11016 = vadd.f32 %v10911, %v11010
  %v11017 = vxor.u32 %v11013, 2147483648
  %v11018 = vxor.u32 %v11014, 2147483648
  %v11019 = vxor.u32 %v11015, 2147483648
  %v11020 = vxor.u32 %v11016, 2147483648
  %v11021 = vmul.f32 %v11017, 1.442695
  %v11022 = vpow.pop %v11021
  %v11023 = vmul.f32 %v11018, 1.442695
  %v11024 = vpow.pop %v11023
  %v11025 = vmul.f32 %v11019, 1.442695
  %v11026 = vpow.pop %v11025
  %v11027 = vmul.f32 %v11020, 1.442695
  %v11028 = vpow.pop %v11027
  %v11029 = vadd.f32 %v11022, 1.0
  %v11030 = vadd.f32 %v11024, 1.0
  %v11031 = vadd.f32 %v11026, 1.0
  %v11032 = vadd.f32 %v11028, 1.0
  %v11033 = vrcp.pop %v11029
  %v11034 = vmul.f32 1.0, %v11033
  %v11035 = vrcp.pop %v11030
  %v11036 = vmul.f32 1.0, %v11035
  %v11037 = vrcp.pop %v11031
  %v11038 = vmul.f32 1.0, %v11037
  %v11039 = vrcp.pop %v11032
  %v11040 = vmul.f32 1.0, %v11039
  %11041 = vrot.lane.b32.xlu0 %v10714, 32
  %v11042 = vpop.permute.xlu0 %11041
  %11043 = vrot.lane.b32.xlu0 %v10715, 32
  %v11044 = vpop.permute.xlu0 %11043
  %11045 = vrot.lane.b32.xlu0 %v10716, 32
  %v11046 = vpop.permute.xlu0 %11045
  %11047 = vrot.lane.b32.xlu0 %v10717, 32
  %v11048 = vpop.permute.xlu0 %11047
  %v11053 = vmul.f32 %v11034, %v11042
  %v11054 = vmul.f32 %v11036, %v11044
  %v11055 = vmul.f32 %v11038, %v11046
  %v11056 = vmul.f32 %v11040, %v11048
  %11061 = vrot.lane.b32.xlu0 %v11053, 96
  %v11062 = vpop.permute.xlu0 %11061
  %11063 = vrot.lane.b32.xlu0 %v11054, 96
  %v11064 = vpop.permute.xlu0 %11063
  %11065 = vrot.lane.b32.xlu0 %v11055, 96
  %v11066 = vpop.permute.xlu0 %11065
  %11067 = vrot.lane.b32.xlu0 %v11056, 96
  %v11068 = vpop.permute.xlu0 %11067
  %v11069 = vsel %vm465, %v11062, 0
  %v11071 = vsel %vm465, %v11064, 0
  %v11073 = vsel %vm465, %v11066, 0
  %v11075 = vsel %vm465, %v11068, 0
  %11077 = vmatprep.subr.mxu0 0.0
  %11078 = vmatpush1.msra.mxu0 %v5773
  %11079 = vmatprep.subr.mxu0 0.0
  %11080 = vmatpush1.msra.mxu0 %v5774
  %11081 = vmatprep.subr.mxu0 0.0
  %11082 = vmatpush1.msra.mxu0 %v5775
  %11083 = vmatprep.subr.mxu0 0.0
  %11084 = vmatpush1.msra.mxu0 %v5776
  %11085 = vmatprep.subr.mxu0 0.0
  %11086 = vmatpush1.msra.mxu0 0.0
  %11087 = vmatprep.subr.mxu0 0.0
  %11088 = vmatpush1.msra.mxu0 0.0
  %11089 = vmatprep.subr.mxu0 0.0
  %11090 = vmatpush1.msra.mxu0 0.0
  %11091 = vmatprep.subr.mxu0 0.0
  %11092 = vmatpush1.msra.mxu0 0.0
  %11093 = vmatprep.subr.mxu0 0.0
  %11094 = vmatpush1.msra.mxu0 0.0
  %11095 = vmatprep.subr.mxu0 0.0
  %11096 = vmatpush1.msra.mxu0 0.0
  %11097 = vmatprep.subr.mxu0 0.0
  %11098 = vmatpush1.msra.mxu0 0.0
  %11099 = vmatprep.subr.mxu0 0.0
  %11100 = vmatpush1.msra.mxu0 0.0
  %11101 = vmatprep.subr.mxu0 0.0
  %11102 = vmatpush1.msra.mxu0 0.0
  %11103 = vmatprep.subr.mxu0 0.0
  %11104 = vmatpush1.msra.mxu0 0.0
  %11105 = vmatprep.subr.mxu0 0.0
  %11106 = vmatpush1.msra.mxu0 0.0
  %11107 = vmatprep.subr.mxu0 0.0
  %11108 = vmatpush1.msra.mxu0 0.0
  %11109 = vmatprep.subr.mxu0 0.0
  %11110 = vmatpush1.msra.mxu0 0.0
  %11111 = vmatprep.subr.mxu0 0.0
  %11112 = vmatpush1.msra.mxu0 0.0
  %11113 = vmatprep.subr.mxu0 0.0
  %11114 = vmatpush1.msra.mxu0 0.0
  %11115 = vmatprep.subr.mxu0 0.0
  %11116 = vmatpush1.msra.mxu0 0.0
  %11117 = vmatprep.subr.mxu0 0.0
  %11118 = vmatpush1.msra.mxu0 0.0
  %11119 = vmatprep.subr.mxu0 0.0
  %11120 = vmatpush1.msra.mxu0 0.0
  %11121 = vmatprep.subr.mxu0 0.0
  %11122 = vmatpush1.msra.mxu0 0.0
  %11123 = vmatprep.subr.mxu0 0.0
  %11124 = vmatpush1.msra.mxu0 0.0
  %11125 = vmatprep.subr.mxu0 0.0
  %11126 = vmatpush1.msra.mxu0 0.0
  %11127 = vmatprep.subr.mxu0 0.0
  %11128 = vmatpush1.msra.mxu0 0.0
  %11129 = vmatprep.subr.mxu0 0.0
  %11130 = vmatpush1.msra.mxu0 0.0
  %11131 = vmatprep.subr.mxu0 0.0
  %11132 = vmatpush1.msra.mxu0 0.0
  %11133 = vmatprep.subr.mxu0 0.0
  %11134 = vmatpush1.msra.mxu0 0.0
  %11135 = vmatprep.subr.mxu0 0.0
  %11136 = vmatpush1.msra.mxu0 0.0
  %11137 = vmatprep.subr.mxu0 0.0
  %11138 = vmatpush1.msra.mxu0 0.0
  %11139 = vmatprep.subr.mxu0 0.0
  %11140 = vmatpush1.msra.mxu0 0.0
  %11141 = vmatprep.mubr.f32.mxu0 0.0
  %11142 = vmatmul.mubr.f32.gmra.mrb[0].mxu0 %v11069
  %v11143 = vpop.f32.mrb[0].mxu0
  %v11144 = vadd.f32 0.0, %v11143
  %v11145 = vpop.f32.mrb[0].mxu0
  %11146 = vmatprep.mubr.f32.mxu0 0.0
  %11147 = vmatmul.mubr.f32.gmra.mrb[0].mxu0 %v11071
  %v11148 = vpop.f32.mrb[0].mxu0
  %v11149 = vadd.f32 0.0, %v11148
  %v11150 = vpop.f32.mrb[0].mxu0
  %11151 = vmatprep.mubr.f32.mxu0 0.0
  %11152 = vmatmul.mubr.f32.gmra.mrb[0].mxu0 %v11073
  %v11153 = vpop.f32.mrb[0].mxu0
  %v11154 = vadd.f32 0.0, %v11153
  %v11155 = vpop.f32.mrb[0].mxu0
  %11156 = vmatprep.mubr.f32.mxu0 0.0
  %11157 = vmatmul.mubr.f32.gmra.mrb[0].mxu0 %v11075
  %v11158 = vpop.f32.mrb[0].mxu0
  %v11159 = vadd.f32 0.0, %v11158
  %v11160 = vpop.f32.mrb[0].mxu0
  %11161 = vdwg.mxu0
  %v11162 = vadd.f32 %v6124, %v11144
  %v11163 = vadd.f32 %v6130, %v11149
  %v11164 = vadd.f32 %v6136, %v11154
  %v11165 = vadd.f32 %v6142, %v11159
  %11166 = vmatprep.subr.mxu0 0.0
  %11167 = vmatpush1.msra.mxu0 %v11162
  %11168 = vmatprep.subr.mxu0 0.0
  %11169 = vmatpush1.msra.mxu0 %v11163
  %11170 = vmatprep.subr.mxu0 0.0
  %11171 = vmatpush1.msra.mxu0 %v11164
  %11172 = vmatprep.subr.mxu0 0.0
  %11173 = vmatpush1.msra.mxu0 %v11165
  %11174 = vmatprep.subr.mxu0 0.0
  %11175 = vmatpush1.msra.mxu0 0.0
  %11176 = vmatprep.subr.mxu0 0.0
  %11177 = vmatpush1.msra.mxu0 0.0
  %11178 = vmatprep.subr.mxu0 0.0
  %11179 = vmatpush1.msra.mxu0 0.0
  %11180 = vmatprep.subr.mxu0 0.0
  %11181 = vmatpush1.msra.mxu0 0.0
  %11182 = vmatprep.subr.mxu0 0.0
  %11183 = vmatpush1.msra.mxu0 0.0
  %11184 = vmatprep.subr.mxu0 0.0
  %11185 = vmatpush1.msra.mxu0 0.0
  %11186 = vmatprep.subr.mxu0 0.0
  %11187 = vmatpush1.msra.mxu0 0.0
  %11188 = vmatprep.subr.mxu0 0.0
  %11189 = vmatpush1.msra.mxu0 0.0
  %11190 = vmatprep.subr.mxu0 0.0
  %11191 = vmatpush1.msra.mxu0 0.0
  %11192 = vmatprep.subr.mxu0 0.0
  %11193 = vmatpush1.msra.mxu0 0.0
  %11194 = vmatprep.subr.mxu0 0.0
  %11195 = vmatpush1.msra.mxu0 0.0
  %11196 = vmatprep.subr.mxu0 0.0
  %11197 = vmatpush1.msra.mxu0 0.0
  %11198 = vmatprep.subr.mxu0 0.0
  %11199 = vmatpush1.msra.mxu0 0.0
  %11200 = vmatprep.subr.mxu0 0.0
  %11201 = vmatpush1.msra.mxu0 0.0
  %11202 = vmatprep.subr.mxu0 0.0
  %11203 = vmatpush1.msra.mxu0 0.0
  %11204 = vmatprep.subr.mxu0 0.0
  %11205 = vmatpush1.msra.mxu0 0.0
  %11206 = vmatprep.subr.mxu0 0.0
  %11207 = vmatpush1.msra.mxu0 0.0
  %11208 = vmatprep.subr.mxu0 0.0
  %11209 = vmatpush1.msra.mxu0 0.0
  %11210 = vmatprep.subr.mxu0 0.0
  %11211 = vmatpush1.msra.mxu0 0.0
  %11212 = vmatprep.subr.mxu0 0.0
  %11213 = vmatpush1.msra.mxu0 0.0
  %11214 = vmatprep.subr.mxu0 0.0
  %11215 = vmatpush1.msra.mxu0 0.0
  %11216 = vmatprep.subr.mxu0 0.0
  %11217 = vmatpush1.msra.mxu0 0.0
  %11218 = vmatprep.subr.mxu0 0.0
  %11219 = vmatpush1.msra.mxu0 0.0
  %11220 = vmatprep.subr.mxu0 0.0
  %11221 = vmatpush1.msra.mxu0 0.0
  %11222 = vmatprep.subr.mxu0 0.0
  %11223 = vmatpush1.msra.mxu0 0.0
  %11224 = vmatprep.subr.mxu0 0.0
  %11225 = vmatpush1.msra.mxu0 0.0
  %11226 = vmatprep.subr.mxu0 0.0
  %11227 = vmatpush1.msra.mxu0 0.0
  %11228 = vmatprep.subr.mxu0 0.0
  %11229 = vmatpush1.msra.mxu0 0.0
  %11230 = vmatprep.mubr.f32.mxu0 0.0
  %11231 = vmatmul.mubr.f32.gmra.mrb[0].mxu0 %v559
  %v11232 = vpop.f32.mrb[0].mxu0
  %v11233 = vadd.f32 0.0, %v11232
  %v11234 = vpop.f32.mrb[0].mxu0
  %11235 = vmatprep.mubr.f32.mxu0 0.0
  %11236 = vmatmul.mubr.f32.gmra.mrb[0].mxu0 %v562
  %v11237 = vpop.f32.mrb[0].mxu0
  %v11238 = vadd.f32 0.0, %v11237
  %v11239 = vpop.f32.mrb[0].mxu0
  %11240 = vmatprep.mubr.f32.mxu0 0.0
  %11241 = vmatmul.mubr.f32.gmra.mrb[0].mxu0 %v565
  %v11242 = vpop.f32.mrb[0].mxu0
  %v11243 = vadd.f32 0.0, %v11242
  %v11244 = vpop.f32.mrb[0].mxu0
  %11245 = vmatprep.mubr.f32.mxu0 0.0
  %11246 = vmatmul.mubr.f32.gmra.mrb[0].mxu0 %v568
  %v11247 = vpop.f32.mrb[0].mxu0
  %v11248 = vadd.f32 0.0, %v11247
  %v11249 = vpop.f32.mrb[0].mxu0
  %11250 = vdwg.mxu0
  %v11251 = vadd.f32 %v5789, %v11233
  %v11252 = vadd.f32 %v5789, %v11238
  %v11253 = vadd.f32 %v5789, %v11243
  %v11254 = vadd.f32 %v5789, %v11248
  %11259 = vrot.lane.b32.xlu0 %v11162, 96
  %v11260 = vpop.permute.xlu0 %11259
  %11261 = vrot.lane.b32.xlu0 %v11163, 96
  %v11262 = vpop.permute.xlu0 %11261
  %11263 = vrot.lane.b32.xlu0 %v11164, 96
  %v11264 = vpop.permute.xlu0 %11263
  %11265 = vrot.lane.b32.xlu0 %v11165, 96
  %v11266 = vpop.permute.xlu0 %11265
  %11271 = vmatprep.subr.mxu0 0.0
  %11272 = vmatpush1.msra.mxu0 %v11260
  %11273 = vmatprep.subr.mxu0 0.0
  %11274 = vmatpush1.msra.mxu0 %v11262
  %11275 = vmatprep.subr.mxu0 0.0
  %11276 = vmatpush1.msra.mxu0 %v11264
  %11277 = vmatprep.subr.mxu0 0.0
  %11278 = vmatpush1.msra.mxu0 %v11266
  %11279 = vmatprep.subr.mxu0 0.0
  %11280 = vmatpush1.msra.mxu0 0.0
  %11281 = vmatprep.subr.mxu0 0.0
  %11282 = vmatpush1.msra.mxu0 0.0
  %11283 = vmatprep.subr.mxu0 0.0
  %11284 = vmatpush1.msra.mxu0 0.0
  %11285 = vmatprep.subr.mxu0 0.0
  %11286 = vmatpush1.msra.mxu0 0.0
  %11287 = vmatprep.subr.mxu0 0.0
  %11288 = vmatpush1.msra.mxu0 0.0
  %11289 = vmatprep.subr.mxu0 0.0
  %11290 = vmatpush1.msra.mxu0 0.0
  %11291 = vmatprep.subr.mxu0 0.0
  %11292 = vmatpush1.msra.mxu0 0.0
  %11293 = vmatprep.subr.mxu0 0.0
  %11294 = vmatpush1.msra.mxu0 0.0
  %11295 = vmatprep.subr.mxu0 0.0
  %11296 = vmatpush1.msra.mxu0 0.0
  %11297 = vmatprep.subr.mxu0 0.0
  %11298 = vmatpush1.msra.mxu0 0.0
  %11299 = vmatprep.subr.mxu0 0.0
  %11300 = vmatpush1.msra.mxu0 0.0
  %11301 = vmatprep.subr.mxu0 0.0
  %11302 = vmatpush1.msra.mxu0 0.0
  %11303 = vmatprep.subr.mxu0 0.0
  %11304 = vmatpush1.msra.mxu0 0.0
  %11305 = vmatprep.subr.mxu0 0.0
  %11306 = vmatpush1.msra.mxu0 0.0
  %11307 = vmatprep.subr.mxu0 0.0
  %11308 = vmatpush1.msra.mxu0 0.0
  %11309 = vmatprep.subr.mxu0 0.0
  %11310 = vmatpush1.msra.mxu0 0.0
  %11311 = vmatprep.subr.mxu0 0.0
  %11312 = vmatpush1.msra.mxu0 0.0
  %11313 = vmatprep.subr.mxu0 0.0
  %11314 = vmatpush1.msra.mxu0 0.0
  %11315 = vmatprep.subr.mxu0 0.0
  %11316 = vmatpush1.msra.mxu0 0.0
  %11317 = vmatprep.subr.mxu0 0.0
  %11318 = vmatpush1.msra.mxu0 0.0
  %11319 = vmatprep.subr.mxu0 0.0
  %11320 = vmatpush1.msra.mxu0 0.0
  %11321 = vmatprep.subr.mxu0 0.0
  %11322 = vmatpush1.msra.mxu0 0.0
  %11323 = vmatprep.subr.mxu0 0.0
  %11324 = vmatpush1.msra.mxu0 0.0
  %11325 = vmatprep.subr.mxu0 0.0
  %11326 = vmatpush1.msra.mxu0 0.0
  %11327 = vmatprep.subr.mxu0 0.0
  %11328 = vmatpush1.msra.mxu0 0.0
  %11329 = vmatprep.subr.mxu0 0.0
  %11330 = vmatpush1.msra.mxu0 0.0
  %11331 = vmatprep.subr.mxu0 0.0
  %11332 = vmatpush1.msra.mxu0 0.0
  %11333 = vmatprep.subr.mxu0 0.0
  %11334 = vmatpush1.msra.mxu0 0.0
  %11335 = vmatprep.mubr.f32.mxu0 0.0
  %11336 = vmatmul.mubr.f32.gmra.mrb[0].mxu0 %v676
  %v11337 = vpop.f32.mrb[0].mxu0
  %v11338 = vadd.f32 0.0, %v11337
  %v11339 = vpop.f32.mrb[0].mxu0
  %11340 = vmatprep.mubr.f32.mxu0 0.0
  %11341 = vmatmul.mubr.f32.gmra.mrb[0].mxu0 %v679
  %v11342 = vpop.f32.mrb[0].mxu0
  %v11343 = vadd.f32 0.0, %v11342
  %v11344 = vpop.f32.mrb[0].mxu0
  %11345 = vmatprep.mubr.f32.mxu0 0.0
  %11346 = vmatmul.mubr.f32.gmra.mrb[0].mxu0 %v682
  %v11347 = vpop.f32.mrb[0].mxu0
  %v11348 = vadd.f32 0.0, %v11347
  %v11349 = vpop.f32.mrb[0].mxu0
  %11350 = vmatprep.mubr.f32.mxu0 0.0
  %11351 = vmatmul.mubr.f32.gmra.mrb[0].mxu0 %v685
  %v11352 = vpop.f32.mrb[0].mxu0
  %v11353 = vadd.f32 0.0, %v11352
  %v11354 = vpop.f32.mrb[0].mxu0
  %11355 = vdwg.mxu0
  %v11356 = vadd.f32 %v11251, %v11338
  %v11357 = vadd.f32 %v11252, %v11343
  %v11358 = vadd.f32 %v11253, %v11348
  %v11359 = vadd.f32 %v11254, %v11353
  %v11360 = vtanh.pop %v11356
  %v11361 = vtanh.pop %v11357
  %v11362 = vtanh.pop %v11358
  %v11363 = vtanh.pop %v11359
  %v11364 = vsub.f32 %v11360, %v10714
  %v11365 = vsub.f32 %v11361, %v10715
  %v11366 = vsub.f32 %v11362, %v10716
  %v11367 = vsub.f32 %v11363, %v10717
  %v11368 = vmul.f32 %v11034, %v11364
  %v11369 = vmul.f32 %v11036, %v11365
  %v11370 = vmul.f32 %v11038, %v11366
  %v11371 = vmul.f32 %v11040, %v11367
  %v11372 = vadd.f32 %v10714, %v11368
  %v11373 = vadd.f32 %v10715, %v11369
  %v11374 = vadd.f32 %v10716, %v11370
  %v11375 = vadd.f32 %v10717, %v11371
  %11376 = vst.msk [vmem:[%s12 + $0xe0] sm:$0xff] %vm465, %v11372
  %11377 = vst.msk [vmem:[%s12 + $0xe8] sm:$0xff] %vm465, %v11373
  %11378 = vst.msk [vmem:[%s12 + $0xf0] sm:$0xff] %vm465, %v11374
  %11379 = vst.msk [vmem:[%s12 + $0xf8] sm:$0xff] %vm465, %v11375
  // Predicated region
  $region50: #{tpu_custom_call.1} parent=0 // pred_check
    _
  $region51: #{tpu_custom_call.1} parent=0 // pred_check_branch
    %11381 = sbr.rel (0) target = $region53
  $region52: #{tpu_custom_call.1} parent=0 // pred_region
    _
  $region53: #{tpu_custom_call.1} parent=0 // pred_fallthru
    _
  // Predicated region
  $region54: #{tpu_custom_call.1} parent=0 // pred_check
    _
  $region55: #{tpu_custom_call.1} parent=0 // pred_check_branch
    %11383 = sbr.rel (0) target = $region57
  $region56: #{tpu_custom_call.1} parent=0 // pred_region
    _
  $region57: #{tpu_custom_call.1} parent=0 // pred_fallthru
    _

</llo_original>
